<compile_context>
chip_gen: v6e
topology: v6e:2x2x1
jax: 0.10.0
libtpu: 0.0.40
codegen_flags: <defaults>
</compile_context>

<pallas_src>
import functools

import jax
import jax.numpy as jnp
from jax.experimental import pallas as pl
from jax.experimental.pallas import tpu as pltpu

EXPANSION = 4


def _round_up(a, m):
    return (a + m - 1) // m * m


# ------------------------------ fused kernel ---------------------------------
def _bottleneckx_kernel(x_ref, w1_ref, w2_ref, w3_ref, wd_ref,
                        b1_ref, b2_ref, b3_ref, o_ref,
                        hpad_ref, col_ref, *, H, W, Wpa, d):
    """Whole BottleneckX block for one image, fully VMEM resident.

    x_ref   : (1, H*W, Cin)    bf16  input image (NHWC, spatially flattened)
    w1_ref  : (Cin, C2)        bf16  [conv1 | conv1_d] 1x1 (bn1 scales folded)
    w2_ref  : (9*C2, C2)       bf16  grouped 3x3, block-diagonal, im2col order
    w3_ref  : (C2, Cout)       bf16  [conv3 ; conv3_d] (bn3 scale folded)
    wd_ref  : (Cin, Cout)      bf16  downsample 1x1 (bn scale folded)
    b*_ref  : (1, C)           f32   folded biases (b3 includes downsample bias)
    o_ref   : (1, H*W, Cout)   f32
    hpad_ref: (H+2d, Wpa, C2)  f32   zero-padded stage-1 activation
    col_ref : (H*Wpa, 9*C2)    bf16  in-VMEM im2col slab
    """
    C2 = w1_ref.shape[1]
    rows = H * Wpa

    # Zero the padded buffer every step (safe for a "parallel" grid / megacore);
    # only the interior is rewritten below, the border stays zero padding.
    hpad_ref[...] = jnp.zeros_like(hpad_ref)

    x = x_ref[0]                                              # (H*W, Cin) bf16

    # ---- stage 1: conv1 & conv1_d (1x1) + bn + relu, one lane-dense GEMM
    h1 = jnp.dot(x, w1_ref[...], preferred_element_type=jnp.float32) + b1_ref[...]
    h1 = jnp.maximum(h1, 0.0)
    hpad_ref[d:d + H, d:d + W, :] = h1.reshape(H, W, C2)

    # ---- stage 2: conv2 & conv2_d (grouped 3x3, 2G groups) + bn2 + relu.
    # Build im2col with tile-aligned slab loads; the kw*d column shift is a
    # sublane roll (XLU).  Wrap-around only hits the (Wpa-W) junk columns.
    for kh in range(3):
        slab = hpad_ref[kh * d:kh * d + H].reshape(rows, C2)  # tile-aligned load
        for kw in range(3):
            t = kh * 3 + kw
            tap = slab if kw == 0 else pltpu.roll(slab, shift=rows - kw * d, axis=0)
            col_ref[:, t * C2:(t + 1) * C2] = tap.astype(col_ref.dtype)

    h2 = jnp.dot(col_ref[...], w2_ref[...], preferred_element_type=jnp.float32)
    h2 = jnp.maximum(h2 + b2_ref[...], 0.0).astype(jnp.bfloat16)
    h2 = h2.reshape(H, Wpa, C2)[:, :W, :].reshape(H * W, C2)  # drop junk columns

    # ---- stage 3: conv3 + conv3_d + bn3 + downsample residual + relu (fused)
    acc = jnp.dot(h2, w3_ref[...], preferred_element_type=jnp.float32)
    acc = acc + jnp.dot(x, wd_ref[...], preferred_element_type=jnp.float32)
    o_ref[0] = jnp.maximum(acc + b3_ref[...], 0.0).astype(o_ref.dtype)


# ------------------------------ wrapper ---------------------------------------
def bottleneckx_forward(params, x_nchw, *, stride, dilation):
    assert stride == 1, "fused kernel implements the stride=1 configuration"
    x = jnp.transpose(x_nchw, (0, 2, 3, 1))                    # NCHW -> NHWC
    N, H, W, Cin = x.shape
    x2d = x.astype(jnp.bfloat16).reshape(N, H * W, Cin)

    d = dilation
    Wpa = _round_up(W + 2 * d, 8)                              # aligned row pitch
    C2 = params["w1_cat"].shape[1]
    Cout = params["w3_cat"].shape[1]

    kernel = functools.partial(_bottleneckx_kernel, H=H, W=W, Wpa=Wpa, d=d)
    out = pl.pallas_call(
        kernel,
        out_shape=jax.ShapeDtypeStruct((N, H * W, Cout), jnp.float32),
        grid=(N,),
        in_specs=[
            pl.BlockSpec((1, H * W, Cin), lambda n: (n, 0, 0)),
            pl.BlockSpec((Cin, C2), lambda n: (0, 0)),
            pl.BlockSpec((9 * C2, C2), lambda n: (0, 0)),
            pl.BlockSpec((C2, Cout), lambda n: (0, 0)),
            pl.BlockSpec((Cin, Cout), lambda n: (0, 0)),
            pl.BlockSpec((1, C2), lambda n: (0, 0)),
            pl.BlockSpec((1, C2), lambda n: (0, 0)),
            pl.BlockSpec((1, Cout), lambda n: (0, 0)),
        ],
        out_specs=pl.BlockSpec((1, H * W, Cout), lambda n: (n, 0, 0)),
        scratch_shapes=[
            pltpu.VMEM((H + 2 * d, Wpa, C2), jnp.float32),     # padded h1
            pltpu.VMEM((H * Wpa, 9 * C2), jnp.bfloat16),       # im2col slab
        ],
        compiler_params=pltpu.CompilerParams(
            dimension_semantics=("parallel",),                 # 1 image / TC on v7x
        ),
    )(x2d, params["w1_cat"], params["w2_flat"], params["w3_cat"], params["wd"],
      params["b1"], params["b2"], params["b3"])
    out = out.reshape(N, H, W, Cout)
    return jnp.transpose(out, (0, 3, 1, 2))                    # back to NCHW


# ------------------------------ parameters ------------------------------------
def _bn_affine(c, eps=1e-5):
    gamma = jnp.ones((c,), jnp.float32)
    beta = jnp.zeros((c,), jnp.float32)
    mean = jnp.zeros((c,), jnp.float32)
    var = jnp.ones((c,), jnp.float32)
    scale = gamma / jnp.sqrt(var + eps)
    return scale, beta - mean * scale


def _fold_1x1(w, scale):
    """(Cout, Cin, 1, 1) conv weight + per-out-channel scale -> (Cin, Cout)."""
    return (w[:, :, 0, 0] * scale[:, None]).T


def _block_diag_taps(w, scale, groups):
    """Grouped conv (Cout, Cg, 3, 3) -> (9, groups*Cg, Cout) block-diag taps."""
    Cout, Cg = w.shape[0], w.shape[1]
    Coutg = Cout // groups
    wt = (w * scale[:, None, None, None]).reshape(groups, Coutg, Cg, 3, 3)
    wt = wt.transpose(3, 4, 0, 2, 1)                           # (3,3,G,Cg,Coutg)
    eye = jnp.eye(groups, dtype=w.dtype)
    full = jnp.einsum('khgio,gf->khgifo', wt, eye)             # (3,3,G,Cg,G,Coutg)
    return full.reshape(9, groups * Cg, groups * Coutg)


def init_params(key, *, inplanes, planes, cardinality):
    G = cardinality // 2
    out_ch = planes * EXPANSION
    ks = jax.random.split(key, 7)

    def conv_w(k, cout, cin, ksz):
        fan_in = cin * ksz * ksz
        return (jax.random.normal(k, (cout, cin, ksz, ksz), jnp.float32)
                * jnp.sqrt(2.0 / fan_in))

    raw = dict(
        w1=conv_w(ks[0], planes, inplanes, 1),
        w1d=conv_w(ks[1], planes, inplanes, 1),
        w2=conv_w(ks[2], planes, planes // G, 3),
        w2d=conv_w(ks[3], planes, planes // G, 3),
        w3=conv_w(ks[4], out_ch, planes, 1),
        w3d=conv_w(ks[5], out_ch, planes, 1),
        wd=conv_w(ks[6], out_ch, inplanes, 1),
    )
    s1, b1 = _bn_affine(planes);  s1d, b1d = _bn_affine(planes)
    s2, b2 = _bn_affine(planes);  s2d, b2d = _bn_affine(planes)
    s3, b3 = _bn_affine(out_ch);  sd, bd = _bn_affine(out_ch)
    raw.update(bn1=(s1, b1), bn1d=(s1d, b1d), bn2=(s2, b2), bn2d=(s2d, b2d),
               bn3=(s3, b3), bnd=(sd, bd))

    fused = {}
    fused["w1_cat"] = jnp.concatenate(
        [_fold_1x1(raw["w1"], s1), _fold_1x1(raw["w1d"], s1d)], axis=1).astype(jnp.bfloat16)
    fused["b1"] = jnp.concatenate([b1, b1d]).reshape(1, -1)
    w2_cat = jnp.concatenate([raw["w2"], raw["w2d"]], axis=0)
    s2_cat = jnp.concatenate([s2, s2d])
    taps = _block_diag_taps(w2_cat, s2_cat, 2 * G)             # (9, C2, C2)
    fused["w2_flat"] = taps.reshape(9 * 2 * planes, 2 * planes).astype(jnp.bfloat16)
    fused["b2"] = jnp.concatenate([b2, b2d]).reshape(1, -1)
    fused["w3_cat"] = jnp.concatenate(
        [_fold_1x1(raw["w3"], s3), _fold_1x1(raw["w3d"], s3)], axis=0).astype(jnp.bfloat16)
    fused["wd"] = _fold_1x1(raw["wd"], sd).astype(jnp.bfloat16)
    fused["b3"] = (b3 + bd).reshape(1, -1)                     # bn3 + downsample bias
    return raw, fused


# --------------------- references (correctness checks) ------------------------
def reference_equiv(fused, x_nchw, *, dilation):
    """Pure-JAX mirror of the kernel's folded/bf16 math (implementation check)."""
    x = jnp.transpose(x_nchw, (0, 2, 3, 1))
    N, H, W, Cin = x.shape
    xb = x.astype(jnp.bfloat16).astype(jnp.float32)
    h1 = jnp.maximum(xb.reshape(-1, Cin) @ fused["w1_cat"].astype(jnp.float32)
                     + fused["b1"], 0.0)
    C2 = h1.shape[-1]
    h1 = h1.astype(jnp.bfloat16).astype(jnp.float32).reshape(N, H, W, C2)
    d = dilation
    hp = jnp.pad(h1, ((0, 0), (d, d), (d, d), (0, 0)))
    taps = fused["w2_flat"].astype(jnp.float32).reshape(9, C2, C2)
    acc = jnp.zeros((N, H, W, C2), jnp.float32)
    for kh in range(3):
        for kw in range(3):
            acc = acc + hp[:, kh * d:kh * d + H, kw * d:kw * d + W, :] @ taps[kh * 3 + kw]
    h2 = jnp.maximum(acc + fused["b2"], 0.0)
    h2 = h2.astype(jnp.bfloat16).astype(jnp.float32)
    out = jnp.maximum(h2.reshape(-1, C2) @ fused["w3_cat"].astype(jnp.float32)
                      + xb.reshape(-1, Cin) @ fused["wd"].astype(jnp.float32)
                      + fused["b3"], 0.0)
    return jnp.transpose(out.reshape(N, H, W, -1), (0, 3, 1, 2))


def reference_conv(raw, x_nchw, *, stride, dilation, groups):
    """Independent f32 reference with raw weights via lax.conv_general_dilated."""
    hi = jax.lax.Precision.HIGHEST
    d = dilation

    def conv(x, w, *, stride=1, grp=1, dil=1, pad=0):
        return jax.lax.conv_general_dilated(
            x, w, window_strides=(stride, stride),
            padding=[(pad, pad), (pad, pad)], rhs_dilation=(dil, dil),
            dimension_numbers=("NCHW", "OIHW", "NCHW"),
            feature_group_count=grp, precision=hi)

    def bn(x, sb):
        s, b = sb
        return x * s[None, :, None, None] + b[None, :, None, None]

    relu = lambda v: jnp.maximum(v, 0.0)

    def branch(w1, bn1, w2, bn2, w3):
        h = relu(bn(conv(x_nchw, w1), bn1))
        h = relu(bn(conv(h, w2, stride=stride, grp=groups, dil=d, pad=d), bn2))
        return conv(h, w3)

    out = branch(raw["w1"], raw["bn1"], raw["w2"], raw["bn2"], raw["w3"])
    out = out + branch(raw["w1d"], raw["bn1d"], raw["w2d"], raw["bn2d"], raw["w3d"])
    out = bn(out, raw["bn3"])
    res = bn(conv(x_nchw, raw["wd"], stride=stride), raw["bnd"])
    return relu(out + res)


# ------------------------------ main -------------------------------------------
if __name__ == "__main__":
    INPLANES, PLANES, CARDINALITY = 64, 64, 32
    STRIDE, DILATION = 1, 1

    key = jax.random.PRNGKey(0)
    pkey, xkey = jax.random.split(key)
    raw, fused = init_params(pkey, inplanes=INPLANES, planes=PLANES,
                             cardinality=CARDINALITY)
    x = jax.random.normal(xkey, (2, INPLANES, 16, 16), jnp.float32)   # NCHW input

    fwd = jax.jit(functools.partial(bottleneckx_forward,
                                    stride=STRIDE, dilation=DILATION))
    out = fwd(fused, x)
    jax.block_until_ready(out)
    assert out.shape == (2, PLANES * EXPANSION, 16, 16), out.shape

    # implementation check (same folded bf16 math, pure JAX)
    ref_e = reference_equiv(fused, x, dilation=DILATION)
    err_impl = float(jnp.max(jnp.abs(out - ref_e)))
    assert err_impl < 2e-2, f"impl err vs equivalent reference: {err_impl}"

    # independent model check (raw weights, grouped lax conv, f32)
    ref_c = reference_conv(raw, x, stride=STRIDE, dilation=DILATION,
                           groups=CARDINALITY // 2)
    err_conv = float(jnp.max(jnp.abs(out - ref_c)))
    scale = float(jnp.maximum(1.0, jnp.max(jnp.abs(ref_c))))
    assert err_conv / scale < 5e-2, f"err vs conv reference: {err_conv} (max {scale})"

    print("KERNEL_OK")
</pallas_src>

<mosaic_0001>
module attributes {stable_mosaic.version = 11 : i64} {
  func.func @_bottleneckx_kernel(%arg0: i32, %arg1: memref<1x256x64xbf16, #tpu.memory_space<vmem>>, %arg2: memref<64x128xbf16, #tpu.memory_space<vmem>>, %arg3: memref<1152x128xbf16, #tpu.memory_space<vmem>>, %arg4: memref<128x256xbf16, #tpu.memory_space<vmem>>, %arg5: memref<64x256xbf16, #tpu.memory_space<vmem>>, %arg6: memref<1x128xf32, #tpu.memory_space<vmem>>, %arg7: memref<1x128xf32, #tpu.memory_space<vmem>>, %arg8: memref<1x256xf32, #tpu.memory_space<vmem>>, %arg9: memref<1x256x256xf32, #tpu.memory_space<vmem>>, %arg10: memref<18x24x128xf32, #tpu.memory_space<vmem>>, %arg11: memref<384x1152xbf16, #tpu.memory_space<vmem>>) attributes {dimension_semantics = [#tpu.dimension_semantics<parallel>], iteration_bounds = array<i64: 2>, scalar_prefetch = 0 : i64, scratch_operands = 2 : i64, tpu.core_type = #tpu.core_type<tc>, window_params = [{transform_indices = @transform_0, window_bounds = array<i64: 1, 256, 64>}, {pipeline_mode = #tpu.pipeline_mode<synchronous>, transform_indices = @transform_1, window_bounds = array<i64: 64, 128>}, {pipeline_mode = #tpu.pipeline_mode<synchronous>, transform_indices = @transform_2, window_bounds = array<i64: 1152, 128>}, {pipeline_mode = #tpu.pipeline_mode<synchronous>, transform_indices = @transform_3, window_bounds = array<i64: 128, 256>}, {pipeline_mode = #tpu.pipeline_mode<synchronous>, transform_indices = @transform_4, window_bounds = array<i64: 64, 256>}, {pipeline_mode = #tpu.pipeline_mode<synchronous>, transform_indices = @transform_5, window_bounds = array<i64: 1, 128>}, {pipeline_mode = #tpu.pipeline_mode<synchronous>, transform_indices = @transform_6, window_bounds = array<i64: 1, 128>}, {pipeline_mode = #tpu.pipeline_mode<synchronous>, transform_indices = @transform_7, window_bounds = array<i64: 1, 256>}, {transform_indices = @transform_8, window_bounds = array<i64: 1, 256, 256>}]} {
    %cst = arith.constant 0.000000e+00 : f32
    %0 = vector.broadcast %cst : f32 to vector<18x24x128xf32>
    %c0 = arith.constant 0 : index
    %c0_0 = arith.constant 0 : index
    %c0_1 = arith.constant 0 : index
    %1 = vector.load %arg10[%c0, %c0_0, %c0_1] : memref<18x24x128xf32, #tpu.memory_space<vmem>>, vector<18x24x128xf32>
    tpu.vector_store %arg10[%c0, %c0_0, %c0_1], %0 {strides = array<i32>} : memref<18x24x128xf32, #tpu.memory_space<vmem>>, vector<18x24x128xf32>,
    %c0_2 = arith.constant 0 : index
    %c0_3 = arith.constant 0 : index
    %c0_4 = arith.constant 0 : index
    %2 = vector.load %arg1[%c0_2, %c0_3, %c0_4] : memref<1x256x64xbf16, #tpu.memory_space<vmem>>, vector<1x256x64xbf16>
    %3 = vector.shape_cast %2 : vector<1x256x64xbf16> to vector<256x64xbf16>
    %c0_5 = arith.constant 0 : index
    %c0_6 = arith.constant 0 : index
    %4 = vector.load %arg2[%c0_5, %c0_6] : memref<64x128xbf16, #tpu.memory_space<vmem>>, vector<64x128xbf16>
    %cst_7 = arith.constant dense<0.000000e+00> : vector<256x128xf32>
    %5 = tpu.matmul %3, %4, %cst_7 {dimension_numbers = #tpu.dot_dimension_numbers<[1], [0], [0], [1], [0, 0, 1, 1], [], []>} : vector<256x64xbf16>, vector<64x128xbf16>, vector<256x128xf32> -> vector<256x128xf32>
    %c0_8 = arith.constant 0 : index
    %c0_9 = arith.constant 0 : index
    %6 = vector.load %arg6[%c0_8, %c0_9] : memref<1x128xf32, #tpu.memory_space<vmem>>, vector<1x128xf32>
    %7 = vector.broadcast %6 : vector<1x128xf32> to vector<256x128xf32>
    %8 = arith.addf %5, %7 : vector<256x128xf32>
    %cst_10 = arith.constant 0.000000e+00 : f32
    %9 = vector.broadcast %cst_10 : f32 to vector<256x128xf32>
    %10 = arith.maximumf %8, %9 : vector<256x128xf32>
    %11 = vector.shape_cast %10 : vector<256x128xf32> to vector<16x16x128xf32>
    %c1 = arith.constant 1 : index
    %c1_11 = arith.constant 1 : index
    %c0_12 = arith.constant 0 : index
    %12 = vector.load %arg10[%c1, %c1_11, %c0_12] : memref<18x24x128xf32, #tpu.memory_space<vmem>>, vector<16x16x128xf32>
    tpu.vector_store %arg10[%c1, %c1_11, %c0_12], %11 {strides = array<i32>} : memref<18x24x128xf32, #tpu.memory_space<vmem>>, vector<16x16x128xf32>,
    %c0_13 = arith.constant 0 : index
    %c0_14 = arith.constant 0 : index
    %c0_15 = arith.constant 0 : index
    %13 = vector.load %arg10[%c0_13, %c0_14, %c0_15] : memref<18x24x128xf32, #tpu.memory_space<vmem>>, vector<16x24x128xf32>
    %14 = vector.shape_cast %13 : vector<16x24x128xf32> to vector<384x128xf32>
    %15 = arith.truncf %14 : vector<384x128xf32> to vector<384x128xbf16>
    %c0_16 = arith.constant 0 : index
    %c0_17 = arith.constant 0 : index
    %16 = vector.load %arg11[%c0_16, %c0_17] : memref<384x1152xbf16, #tpu.memory_space<vmem>>, vector<384x128xbf16>
    tpu.vector_store %arg11[%c0_16, %c0_17], %15 {strides = array<i32>} : memref<384x1152xbf16, #tpu.memory_space<vmem>>, vector<384x128xbf16>,
    %c383_i32 = arith.constant 383 : i32
    %17 = tpu.dynamic_rotate %14 by %c383_i32 dim 0 : vector<384x128xf32>, i32 -> vector<384x128xf32>
    %18 = arith.truncf %17 : vector<384x128xf32> to vector<384x128xbf16>
    %c0_18 = arith.constant 0 : index
    %c128 = arith.constant 128 : index
    %19 = vector.load %arg11[%c0_18, %c128] : memref<384x1152xbf16, #tpu.memory_space<vmem>>, vector<384x128xbf16>
    tpu.vector_store %arg11[%c0_18, %c128], %18 {strides = array<i32>} : memref<384x1152xbf16, #tpu.memory_space<vmem>>, vector<384x128xbf16>,
    %c382_i32 = arith.constant 382 : i32
    %20 = tpu.dynamic_rotate %14 by %c382_i32 dim 0 : vector<384x128xf32>, i32 -> vector<384x128xf32>
    %21 = arith.truncf %20 : vector<384x128xf32> to vector<384x128xbf16>
    %c0_19 = arith.constant 0 : index
    %c256 = arith.constant 256 : index
    %22 = vector.load %arg11[%c0_19, %c256] : memref<384x1152xbf16, #tpu.memory_space<vmem>>, vector<384x128xbf16>
    tpu.vector_store %arg11[%c0_19, %c256], %21 {strides = array<i32>} : memref<384x1152xbf16, #tpu.memory_space<vmem>>, vector<384x128xbf16>,
    %c1_20 = arith.constant 1 : index
    %c0_21 = arith.constant 0 : index
    %c0_22 = arith.constant 0 : index
    %23 = vector.load %arg10[%c1_20, %c0_21, %c0_22] : memref<18x24x128xf32, #tpu.memory_space<vmem>>, vector<16x24x128xf32>
    %24 = vector.shape_cast %23 : vector<16x24x128xf32> to vector<384x128xf32>
    %25 = arith.truncf %24 : vector<384x128xf32> to vector<384x128xbf16>
    %c0_23 = arith.constant 0 : index
    %c384 = arith.constant 384 : index
    %26 = vector.load %arg11[%c0_23, %c384] : memref<384x1152xbf16, #tpu.memory_space<vmem>>, vector<384x128xbf16>
    tpu.vector_store %arg11[%c0_23, %c384], %25 {strides = array<i32>} : memref<384x1152xbf16, #tpu.memory_space<vmem>>, vector<384x128xbf16>,
    %c383_i32_24 = arith.constant 383 : i32
    %27 = tpu.dynamic_rotate %24 by %c383_i32_24 dim 0 : vector<384x128xf32>, i32 -> vector<384x128xf32>
    %28 = arith.truncf %27 : vector<384x128xf32> to vector<384x128xbf16>
    %c0_25 = arith.constant 0 : index
    %c512 = arith.constant 512 : index
    %29 = vector.load %arg11[%c0_25, %c512] : memref<384x1152xbf16, #tpu.memory_space<vmem>>, vector<384x128xbf16>
    tpu.vector_store %arg11[%c0_25, %c512], %28 {strides = array<i32>} : memref<384x1152xbf16, #tpu.memory_space<vmem>>, vector<384x128xbf16>,
    %c382_i32_26 = arith.constant 382 : i32
    %30 = tpu.dynamic_rotate %24 by %c382_i32_26 dim 0 : vector<384x128xf32>, i32 -> vector<384x128xf32>
    %31 = arith.truncf %30 : vector<384x128xf32> to vector<384x128xbf16>
    %c0_27 = arith.constant 0 : index
    %c640 = arith.constant 640 : index
    %32 = vector.load %arg11[%c0_27, %c640] : memref<384x1152xbf16, #tpu.memory_space<vmem>>, vector<384x128xbf16>
    tpu.vector_store %arg11[%c0_27, %c640], %31 {strides = array<i32>} : memref<384x1152xbf16, #tpu.memory_space<vmem>>, vector<384x128xbf16>,
    %c2 = arith.constant 2 : index
    %c0_28 = arith.constant 0 : index
    %c0_29 = arith.constant 0 : index
    %33 = vector.load %arg10[%c2, %c0_28, %c0_29] : memref<18x24x128xf32, #tpu.memory_space<vmem>>, vector<16x24x128xf32>
    %34 = vector.shape_cast %33 : vector<16x24x128xf32> to vector<384x128xf32>
    %35 = arith.truncf %34 : vector<384x128xf32> to vector<384x128xbf16>
    %c0_30 = arith.constant 0 : index
    %c768 = arith.constant 768 : index
    %36 = vector.load %arg11[%c0_30, %c768] : memref<384x1152xbf16, #tpu.memory_space<vmem>>, vector<384x128xbf16>
    tpu.vector_store %arg11[%c0_30, %c768], %35 {strides = array<i32>} : memref<384x1152xbf16, #tpu.memory_space<vmem>>, vector<384x128xbf16>,
    %c383_i32_31 = arith.constant 383 : i32
    %37 = tpu.dynamic_rotate %34 by %c383_i32_31 dim 0 : vector<384x128xf32>, i32 -> vector<384x128xf32>
    %38 = arith.truncf %37 : vector<384x128xf32> to vector<384x128xbf16>
    %c0_32 = arith.constant 0 : index
    %c896 = arith.constant 896 : index
    %39 = vector.load %arg11[%c0_32, %c896] : memref<384x1152xbf16, #tpu.memory_space<vmem>>, vector<384x128xbf16>
    tpu.vector_store %arg11[%c0_32, %c896], %38 {strides = array<i32>} : memref<384x1152xbf16, #tpu.memory_space<vmem>>, vector<384x128xbf16>,
    %c382_i32_33 = arith.constant 382 : i32
    %40 = tpu.dynamic_rotate %34 by %c382_i32_33 dim 0 : vector<384x128xf32>, i32 -> vector<384x128xf32>
    %41 = arith.truncf %40 : vector<384x128xf32> to vector<384x128xbf16>
    %c0_34 = arith.constant 0 : index
    %c1024 = arith.constant 1024 : index
    %42 = vector.load %arg11[%c0_34, %c1024] : memref<384x1152xbf16, #tpu.memory_space<vmem>>, vector<384x128xbf16>
    tpu.vector_store %arg11[%c0_34, %c1024], %41 {strides = array<i32>} : memref<384x1152xbf16, #tpu.memory_space<vmem>>, vector<384x128xbf16>,
    %c0_35 = arith.constant 0 : index
    %c0_36 = arith.constant 0 : index
    %43 = vector.load %arg11[%c0_35, %c0_36] : memref<384x1152xbf16, #tpu.memory_space<vmem>>, vector<384x1152xbf16>
    %c0_37 = arith.constant 0 : index
    %c0_38 = arith.constant 0 : index
    %44 = vector.load %arg3[%c0_37, %c0_38] : memref<1152x128xbf16, #tpu.memory_space<vmem>>, vector<1152x128xbf16>
    %cst_39 = arith.constant dense<0.000000e+00> : vector<384x128xf32>
    %45 = tpu.matmul %43, %44, %cst_39 {dimension_numbers = #tpu.dot_dimension_numbers<[1], [0], [0], [1], [0, 0, 1, 1], [], []>} : vector<384x1152xbf16>, vector<1152x128xbf16>, vector<384x128xf32> -> vector<384x128xf32>
    %c0_40 = arith.constant 0 : index
    %c0_41 = arith.constant 0 : index
    %46 = vector.load %arg7[%c0_40, %c0_41] : memref<1x128xf32, #tpu.memory_space<vmem>>, vector<1x128xf32>
    %47 = vector.broadcast %46 : vector<1x128xf32> to vector<384x128xf32>
    %48 = arith.addf %45, %47 : vector<384x128xf32>
    %cst_42 = arith.constant 0.000000e+00 : f32
    %49 = vector.broadcast %cst_42 : f32 to vector<384x128xf32>
    %50 = arith.maximumf %48, %49 : vector<384x128xf32>
    %51 = arith.truncf %50 : vector<384x128xf32> to vector<384x128xbf16>
    %52 = vector.shape_cast %51 : vector<384x128xbf16> to vector<16x24x128xbf16>
    %53 = vector.extract_strided_slice %52 {offsets = [0, 0, 0], sizes = [16, 16, 128], strides = [1, 1, 1]} : vector<16x24x128xbf16> to vector<16x16x128xbf16>
    %54 = vector.shape_cast %53 : vector<16x16x128xbf16> to vector<256x128xbf16>
    %c0_43 = arith.constant 0 : index
    %c0_44 = arith.constant 0 : index
    %55 = vector.load %arg4[%c0_43, %c0_44] : memref<128x256xbf16, #tpu.memory_space<vmem>>, vector<128x256xbf16>
    %cst_45 = arith.constant dense<0.000000e+00> : vector<256x256xf32>
    %56 = tpu.matmul %54, %55, %cst_45 {dimension_numbers = #tpu.dot_dimension_numbers<[1], [0], [0], [1], [0, 0, 1, 1], [], []>} : vector<256x128xbf16>, vector<128x256xbf16>, vector<256x256xf32> -> vector<256x256xf32>
    %c0_46 = arith.constant 0 : index
    %c0_47 = arith.constant 0 : index
    %57 = vector.load %arg5[%c0_46, %c0_47] : memref<64x256xbf16, #tpu.memory_space<vmem>>, vector<64x256xbf16>
    %cst_48 = arith.constant dense<0.000000e+00> : vector<256x256xf32>
    %58 = tpu.matmul %3, %57, %cst_48 {dimension_numbers = #tpu.dot_dimension_numbers<[1], [0], [0], [1], [0, 0, 1, 1], [], []>} : vector<256x64xbf16>, vector<64x256xbf16>, vector<256x256xf32> -> vector<256x256xf32>
    %59 = arith.addf %56, %58 : vector<256x256xf32>
    %c0_49 = arith.constant 0 : index
    %c0_50 = arith.constant 0 : index
    %60 = vector.load %arg8[%c0_49, %c0_50] : memref<1x256xf32, #tpu.memory_space<vmem>>, vector<1x256xf32>
    %61 = vector.broadcast %60 : vector<1x256xf32> to vector<256x256xf32>
    %62 = arith.addf %59, %61 : vector<256x256xf32>
    %cst_51 = arith.constant 0.000000e+00 : f32
    %63 = vector.broadcast %cst_51 : f32 to vector<256x256xf32>
    %64 = arith.maximumf %62, %63 : vector<256x256xf32>
    %c0_52 = arith.constant 0 : index
    %c0_53 = arith.constant 0 : index
    %c0_54 = arith.constant 0 : index
    %65 = vector.load %arg9[%c0_52, %c0_53, %c0_54] : memref<1x256x256xf32, #tpu.memory_space<vmem>>, vector<1x256x256xf32>
    %66 = vector.shape_cast %65 : vector<1x256x256xf32> to vector<256x256xf32>
    %67 = vector.shape_cast %64 : vector<256x256xf32> to vector<1x256x256xf32>
    tpu.vector_store %arg9[%c0_52, %c0_53, %c0_54], %67 {strides = array<i32>} : memref<1x256x256xf32, #tpu.memory_space<vmem>>, vector<1x256x256xf32>,
    return
  }
  func.func @transform_0(%arg0: i32) -> (i32, i32, i32) {
    %c0_i32 = arith.constant 0 : i32
    %c0_i32_0 = arith.constant 0 : i32
    %c0_i32_1 = arith.constant 0 : i32
    return %arg0, %c0_i32, %c0_i32_0 : i32, i32, i32
  }
  func.func @transform_1(%arg0: i32) -> (i32, i32) {
    %c0_i32 = arith.constant 0 : i32
    %c0_i32_0 = arith.constant 0 : i32
    %c0_i32_1 = arith.constant 0 : i32
    return %c0_i32, %c0_i32_0 : i32, i32
  }
  func.func @transform_2(%arg0: i32) -> (i32, i32) {
    %c0_i32 = arith.constant 0 : i32
    %c0_i32_0 = arith.constant 0 : i32
    %c0_i32_1 = arith.constant 0 : i32
    return %c0_i32, %c0_i32_0 : i32, i32
  }
  func.func @transform_3(%arg0: i32) -> (i32, i32) {
    %c0_i32 = arith.constant 0 : i32
    %c0_i32_0 = arith.constant 0 : i32
    %c0_i32_1 = arith.constant 0 : i32
    return %c0_i32, %c0_i32_0 : i32, i32
  }
  func.func @transform_4(%arg0: i32) -> (i32, i32) {
    %c0_i32 = arith.constant 0 : i32
    %c0_i32_0 = arith.constant 0 : i32
    %c0_i32_1 = arith.constant 0 : i32
    return %c0_i32, %c0_i32_0 : i32, i32
  }
  func.func @transform_5(%arg0: i32) -> (i32, i32) {
    %c0_i32 = arith.constant 0 : i32
    %c0_i32_0 = arith.constant 0 : i32
    %c0_i32_1 = arith.constant 0 : i32
    return %c0_i32, %c0_i32_0 : i32, i32
  }
  func.func @transform_6(%arg0: i32) -> (i32, i32) {
    %c0_i32 = arith.constant 0 : i32
    %c0_i32_0 = arith.constant 0 : i32
    %c0_i32_1 = arith.constant 0 : i32
    return %c0_i32, %c0_i32_0 : i32, i32
  }
  func.func @transform_7(%arg0: i32) -> (i32, i32) {
    %c0_i32 = arith.constant 0 : i32
    %c0_i32_0 = arith.constant 0 : i32
    %c0_i32_1 = arith.constant 0 : i32
    return %c0_i32, %c0_i32_0 : i32, i32
  }
  func.func @transform_8(%arg0: i32) -> (i32, i32, i32) {
    %c0_i32 = arith.constant 0 : i32
    %c0_i32_0 = arith.constant 0 : i32
    %c0_i32_1 = arith.constant 0 : i32
    return %arg0, %c0_i32, %c0_i32_0 : i32, i32, i32
  }
}

</mosaic_0001>

<llo_original>
// kernel: bottleneckx_forward.1
$region0: #{bottleneckx_forward.1}
  #allocation0 [shape = 'u32[]', space=smem, size = 0x4, offset = 0x4, fixed_abs, tag = 'smem constant byte address 0x4 - core index']
  #allocation1 [shape = 'u32[144,128]{1,0:T(1,128)}', space=vmem, size = 0x12000, scoped, tag = 'internal scratch']
  #allocation2 [shape = 'f32[18,24,128]{2,1,0:T(8,128)}', space=vmem, size = 0x36000, scoped, tag = 'scratch operand']
  #allocation3 [shape = 'bf16[384,1152]{1,0:T(8,128)(2,1)}', space=vmem, size = 0xd8000, scoped, tag = 'scratch operand']
  %s0 = inlined_call_operand.vmem [shape: bf16[2,256,64], index: 0, kind: input, shape index: {}]
  %s1 = inlined_call_operand.hbm [shape: bf16[64,128], index: 1, kind: input, shape index: {}]
  %s2 = inlined_call_operand.vmem [shape: bf16[1152,128], index: 2, kind: input, shape index: {}]
  %s3 = inlined_call_operand.vmem [shape: bf16[128,256], index: 3, kind: input, shape index: {}]
  %s4 = inlined_call_operand.vmem [shape: bf16[64,256], index: 4, kind: input, shape index: {}]
  %s5 = inlined_call_operand.vmem [shape: f32[1,128], index: 5, kind: input, shape index: {}]
  %s6 = inlined_call_operand.vmem [shape: f32[1,128], index: 6, kind: input, shape index: {}]
  %s7 = inlined_call_operand.vmem [shape: f32[1,256], index: 7, kind: input, shape index: {}]
  %s8 = inlined_call_operand.hbm [shape: f32[2,256,256], index: 8, kind: output, shape index: {}]
  %s9 = sld [smem:[#allocation0]]
  $region69: #{bottleneckx_forward.1} parent=0
    _
  %s11 = ssub.s32 1, %s9
  %s12 = scalar_select 0, %s11, %s9
  $region1: #{bottleneckx_forward.1} parent=0
    #allocation4 [shape = 'u8[16384]{0}', space=vmem, size = 0x4000, scoped, tag = 'input window, operand 1, single buffered']
    #allocation5 [shape = 's32[2]{0}', space=sflag, size = 0x8, scoped, tag = 'scoped memory for bottleneckx_forward.1']
    #allocation6 [shape = 's32[2]{0}', space=sflag, size = 0x8, scoped, tag = 'scoped memory for bottleneckx_forward.1']
    #allocation7 [shape = 'u8[524288]{0}', space=vmem, size = 0x80000, scoped, tag = 'output window, operand 0']
    %13 = vsyncpa [#allocation5], 0
    %14 = vsyncpa [#allocation6], 0
    %s15 = scalar_lea.sflag [#allocation6], 1
    %16 = vsyncpa %s15, 0
    loop: start=0, step=1, limit=4
    $region2: #{bottleneckx_forward.1} parent=1 // loop_pre_header
      _
    $region3: #{bottleneckx_forward.1} parent=1 // loop_header
      %s18 = sphi 0, %s22
      %p19 = scmp.ge.s32.totalorder %s18, 4
      %s28 = sphi 0, %s30
      %s31 = sphi 0, %s28
      %s32 = sphi 0, %s31
      %s48 = sphi 0, %s32
      %s52 = sphi 0, %s52
      %s54 = sphi 0, %s52
      %s55 = sphi 0, %s54
      %s69 = sphi 0, %s55
      %s73 = sphi 0, %s73
      %s75 = sphi 0, %s73
      %s76 = sphi 0, %s75
      %s90 = sphi 0, %s76
      %s94 = sphi 0, %s94
      %s96 = sphi 0, %s94
      %s97 = sphi 0, %s96
      %s111 = sphi 0, %s97
      %s115 = sphi 0, %s115
      %s117 = sphi 0, %s115
      %s118 = sphi 0, %s117
      %s132 = sphi 0, %s118
      %s136 = sphi 0, %s136
      %s138 = sphi 0, %s136
      %s139 = sphi 0, %s138
      %s153 = sphi 0, %s139
      %s157 = sphi 0, %s157
      %s159 = sphi 0, %s157
      %s160 = sphi 0, %s159
      %s174 = sphi 0, %s160
      %s178 = sphi 0, %s178
      %s180 = sphi 0, %s178
      %s181 = sphi 0, %s180
      %s195 = sphi 0, %s181
      %s201 = sphi 0, %s203
      %s204 = sphi 0, %s201
      %s205 = sphi 0, %s204
      %s221 = sphi 0, %s205
    $region4: #{bottleneckx_forward.1} parent=1 // loop_header_branch
      %21 = sbr.rel (%p19) target = $region8
    $region5: #{bottleneckx_forward.1} parent=1 // loop_body
      %s23 = ssub.s32 %s18, 1
      %s24 = ssub.s32 %s18, 2
      %s25 = sadd.s32 %s18, 1
      %s26 = ssub.s32 %s18, %s25
      %p27 = scmp.eq.s32.totalorder %s26, 0
      %s29 = sadd.s32 %s28, 1
      %s30 = scalar_select %p27, %s28, %s29
      %p33 = pneg %p27
      %p34 = scmp.eq.s32.totalorder %s18, 1
      %p35 = por %p33, %p34
      %p36 = scmp.ne.s32.totalorder %s28, %s31
      %p37 = scmp.eq.s32.totalorder %s18, 0
      %p38 = por %p36, %p37
      %p39 = scmp.ne.s32.totalorder %s28, %s31
      %p40 = scmp.eq.s32.totalorder %s23, 1
      %p41 = por %p39, %p40
      %p42 = scmp.ne.s32.totalorder %s31, %s32
      %p43 = scmp.eq.s32.totalorder %s23, 0
      %p44 = por %p42, %p43
      %p45 = scmp.ne.s32.totalorder %s31, %s32
      %p46 = scmp.eq.s32.totalorder %s24, 1
      %p47 = por %p45, %p46
      %p49 = scmp.ne.s32.totalorder %s32, %s48
      %p50 = scmp.eq.s32.totalorder %s24, 0
      %p51 = por %p49, %p50
      %s53 = sadd.s32 %s52, 1
      %p56 = scmp.eq.s32.totalorder %s18, 1
      %p57 = scmp.ne.s32.totalorder %s52, %s54
      %p58 = scmp.eq.s32.totalorder %s18, 0
      %p59 = por %p57, %p58
      %p60 = scmp.ne.s32.totalorder %s52, %s54
      %p61 = scmp.eq.s32.totalorder %s23, 1
      %p62 = por %p60, %p61
      %p63 = scmp.ne.s32.totalorder %s54, %s55
      %p64 = scmp.eq.s32.totalorder %s23, 0
      %p65 = por %p63, %p64
      %p66 = scmp.ne.s32.totalorder %s54, %s55
      %p67 = scmp.eq.s32.totalorder %s24, 1
      %p68 = por %p66, %p67
      %p70 = scmp.ne.s32.totalorder %s55, %s69
      %p71 = scmp.eq.s32.totalorder %s24, 0
      %p72 = por %p70, %p71
      %s74 = sadd.s32 %s73, 1
      %p77 = scmp.eq.s32.totalorder %s18, 1
      %p78 = scmp.ne.s32.totalorder %s73, %s75
      %p79 = scmp.eq.s32.totalorder %s18, 0
      %p80 = por %p78, %p79
      %p81 = scmp.ne.s32.totalorder %s73, %s75
      %p82 = scmp.eq.s32.totalorder %s23, 1
      %p83 = por %p81, %p82
      %p84 = scmp.ne.s32.totalorder %s75, %s76
      %p85 = scmp.eq.s32.totalorder %s23, 0
      %p86 = por %p84, %p85
      %p87 = scmp.ne.s32.totalorder %s75, %s76
      %p88 = scmp.eq.s32.totalorder %s24, 1
      %p89 = por %p87, %p88
      %p91 = scmp.ne.s32.totalorder %s76, %s90
      %p92 = scmp.eq.s32.totalorder %s24, 0
      %p93 = por %p91, %p92
      %s95 = sadd.s32 %s94, 1
      %p98 = scmp.eq.s32.totalorder %s18, 1
      %p99 = scmp.ne.s32.totalorder %s94, %s96
      %p100 = scmp.eq.s32.totalorder %s18, 0
      %p101 = por %p99, %p100
      %p102 = scmp.ne.s32.totalorder %s94, %s96
      %p103 = scmp.eq.s32.totalorder %s23, 1
      %p104 = por %p102, %p103
      %p105 = scmp.ne.s32.totalorder %s96, %s97
      %p106 = scmp.eq.s32.totalorder %s23, 0
      %p107 = por %p105, %p106
      %p108 = scmp.ne.s32.totalorder %s96, %s97
      %p109 = scmp.eq.s32.totalorder %s24, 1
      %p110 = por %p108, %p109
      %p112 = scmp.ne.s32.totalorder %s97, %s111
      %p113 = scmp.eq.s32.totalorder %s24, 0
      %p114 = por %p112, %p113
      %s116 = sadd.s32 %s115, 1
      %p119 = scmp.eq.s32.totalorder %s18, 1
      %p120 = scmp.ne.s32.totalorder %s115, %s117
      %p121 = scmp.eq.s32.totalorder %s18, 0
      %p122 = por %p120, %p121
      %p123 = scmp.ne.s32.totalorder %s115, %s117
      %p124 = scmp.eq.s32.totalorder %s23, 1
      %p125 = por %p123, %p124
      %p126 = scmp.ne.s32.totalorder %s117, %s118
      %p127 = scmp.eq.s32.totalorder %s23, 0
      %p128 = por %p126, %p127
      %p129 = scmp.ne.s32.totalorder %s117, %s118
      %p130 = scmp.eq.s32.totalorder %s24, 1
      %p131 = por %p129, %p130
      %p133 = scmp.ne.s32.totalorder %s118, %s132
      %p134 = scmp.eq.s32.totalorder %s24, 0
      %p135 = por %p133, %p134
      %s137 = sadd.s32 %s136, 1
      %p140 = scmp.eq.s32.totalorder %s18, 1
      %p141 = scmp.ne.s32.totalorder %s136, %s138
      %p142 = scmp.eq.s32.totalorder %s18, 0
      %p143 = por %p141, %p142
      %p144 = scmp.ne.s32.totalorder %s136, %s138
      %p145 = scmp.eq.s32.totalorder %s23, 1
      %p146 = por %p144, %p145
      %p147 = scmp.ne.s32.totalorder %s138, %s139
      %p148 = scmp.eq.s32.totalorder %s23, 0
      %p149 = por %p147, %p148
      %p150 = scmp.ne.s32.totalorder %s138, %s139
      %p151 = scmp.eq.s32.totalorder %s24, 1
      %p152 = por %p150, %p151
      %p154 = scmp.ne.s32.totalorder %s139, %s153
      %p155 = scmp.eq.s32.totalorder %s24, 0
      %p156 = por %p154, %p155
      %s158 = sadd.s32 %s157, 1
      %p161 = scmp.eq.s32.totalorder %s18, 1
      %p162 = scmp.ne.s32.totalorder %s157, %s159
      %p163 = scmp.eq.s32.totalorder %s18, 0
      %p164 = por %p162, %p163
      %p165 = scmp.ne.s32.totalorder %s157, %s159
      %p166 = scmp.eq.s32.totalorder %s23, 1
      %p167 = por %p165, %p166
      %p168 = scmp.ne.s32.totalorder %s159, %s160
      %p169 = scmp.eq.s32.totalorder %s23, 0
      %p170 = por %p168, %p169
      %p171 = scmp.ne.s32.totalorder %s159, %s160
      %p172 = scmp.eq.s32.totalorder %s24, 1
      %p173 = por %p171, %p172
      %p175 = scmp.ne.s32.totalorder %s160, %s174
      %p176 = scmp.eq.s32.totalorder %s24, 0
      %p177 = por %p175, %p176
      %s179 = sadd.s32 %s178, 1
      %p182 = scmp.eq.s32.totalorder %s18, 1
      %p183 = scmp.ne.s32.totalorder %s178, %s180
      %p184 = scmp.eq.s32.totalorder %s18, 0
      %p185 = por %p183, %p184
      %p186 = scmp.ne.s32.totalorder %s178, %s180
      %p187 = scmp.eq.s32.totalorder %s23, 1
      %p188 = por %p186, %p187
      %p189 = scmp.ne.s32.totalorder %s180, %s181
      %p190 = scmp.eq.s32.totalorder %s23, 0
      %p191 = por %p189, %p190
      %p192 = scmp.ne.s32.totalorder %s180, %s181
      %p193 = scmp.eq.s32.totalorder %s24, 1
      %p194 = por %p192, %p193
      %p196 = scmp.ne.s32.totalorder %s181, %s195
      %p197 = scmp.eq.s32.totalorder %s24, 0
      %p198 = por %p196, %p197
      %s199 = ssub.s32 %s18, %s25
      %p200 = scmp.eq.s32.totalorder %s199, 0
      %s202 = sadd.s32 %s201, 1
      %s203 = scalar_select %p200, %s201, %s202
      %p206 = pneg %p200
      %p207 = scmp.eq.s32.totalorder %s18, 1
      %p208 = por %p206, %p207
      %p209 = scmp.ne.s32.totalorder %s201, %s204
      %p210 = scmp.eq.s32.totalorder %s18, 0
      %p211 = por %p209, %p210
      %p212 = scmp.ne.s32.totalorder %s201, %s204
      %p213 = scmp.eq.s32.totalorder %s23, 1
      %p214 = por %p212, %p213
      %p215 = scmp.ne.s32.totalorder %s204, %s205
      %p216 = scmp.eq.s32.totalorder %s23, 0
      %p217 = por %p215, %p216
      %p218 = scmp.ne.s32.totalorder %s204, %s205
      %p219 = scmp.eq.s32.totalorder %s24, 1
      %p220 = por %p218, %p219
      %p222 = scmp.ne.s32.totalorder %s205, %s221
      %p223 = scmp.eq.s32.totalorder %s24, 0
      %p224 = por %p222, %p223
      %p225 = scmp.le.s32.totalorder 1, %s18
      %p226 = scmp.lt.s32.totalorder %s18, 3
      %p227 = pnand %p225, %p226
      %p228 = pneg %p227
      // Predicated region
      $region9: #{bottleneckx_forward.1} parent=5 // pred_check
        _
      $region10: #{bottleneckx_forward.1} parent=5 // pred_check_branch
        %230 = sbr.rel (%p227) target = $region12
      $region11: #{bottleneckx_forward.1} parent=5 // pred_region
        %s231 = ssub.s32 %s18, 1
        // Predicated region
        $region13: #{bottleneckx_forward.1} parent=11 // pred_check
          %p232 = pneg %p65
        $region14: #{bottleneckx_forward.1} parent=11 // pred_check_branch
          %234 = sbr.rel (%p232) target = $region16
        $region15: #{bottleneckx_forward.1} parent=11 // pred_region
          %s236 = ssub.s32 512, 512
          %237 = vsyncadd [#allocation5], %s236
          %s238 = sshll.u32 [#allocation4], 4
          %s239 = int_to_ptr.vmem [resolvable:$true] %s238
          %244 = dma.hbm_to_vmem [thread:$0]  %s1, 512, %s239, [#allocation5], 64, 64, 4
        $region16: #{bottleneckx_forward.1} parent=11 // pred_fallthru
          _
        // Predicated region
        $region17: #{bottleneckx_forward.1} parent=11 // pred_check
          %p245 = pneg %p86
        $region18: #{bottleneckx_forward.1} parent=11 // pred_check_branch
          %247 = sbr.rel (%p245) target = $region20
        $region19: #{bottleneckx_forward.1} parent=11 // pred_region
          _
        $region20: #{bottleneckx_forward.1} parent=11 // pred_fallthru
          _
        // Predicated region
        $region21: #{bottleneckx_forward.1} parent=11 // pred_check
          %p248 = pneg %p107
        $region22: #{bottleneckx_forward.1} parent=11 // pred_check_branch
          %250 = sbr.rel (%p248) target = $region24
        $region23: #{bottleneckx_forward.1} parent=11 // pred_region
          _
        $region24: #{bottleneckx_forward.1} parent=11 // pred_fallthru
          _
        // Predicated region
        $region25: #{bottleneckx_forward.1} parent=11 // pred_check
          %p251 = pneg %p128
        $region26: #{bottleneckx_forward.1} parent=11 // pred_check_branch
          %253 = sbr.rel (%p251) target = $region28
        $region27: #{bottleneckx_forward.1} parent=11 // pred_region
          _
        $region28: #{bottleneckx_forward.1} parent=11 // pred_fallthru
          _
        // Predicated region
        $region29: #{bottleneckx_forward.1} parent=11 // pred_check
          %p254 = pneg %p149
        $region30: #{bottleneckx_forward.1} parent=11 // pred_check_branch
          %256 = sbr.rel (%p254) target = $region32
        $region31: #{bottleneckx_forward.1} parent=11 // pred_region
          _
        $region32: #{bottleneckx_forward.1} parent=11 // pred_fallthru
          _
        // Predicated region
        $region33: #{bottleneckx_forward.1} parent=11 // pred_check
          %p257 = pneg %p170
        $region34: #{bottleneckx_forward.1} parent=11 // pred_check_branch
          %259 = sbr.rel (%p257) target = $region36
        $region35: #{bottleneckx_forward.1} parent=11 // pred_region
          _
        $region36: #{bottleneckx_forward.1} parent=11 // pred_fallthru
          _
        // Predicated region
        $region37: #{bottleneckx_forward.1} parent=11 // pred_check
          %p260 = pneg %p191
        $region38: #{bottleneckx_forward.1} parent=11 // pred_check_branch
          %262 = sbr.rel (%p260) target = $region40
        $region39: #{bottleneckx_forward.1} parent=11 // pred_region
          _
        $region40: #{bottleneckx_forward.1} parent=11 // pred_fallthru
          _
      $region12: #{bottleneckx_forward.1} parent=5 // pred_fallthru
        _
      %p263 = scmp.lt.s32.totalorder %s18, 2
      // Predicated region
      $region41: #{bottleneckx_forward.1} parent=5 // pred_check
        %p264 = pneg %p263
      $region42: #{bottleneckx_forward.1} parent=5 // pred_check_branch
        %266 = sbr.rel (%p264) target = $region44
      $region43: #{bottleneckx_forward.1} parent=5 // pred_region
        // Predicated region
        $region45: #{bottleneckx_forward.1} parent=43 // pred_check
          %p267 = pneg %p38
        $region46: #{bottleneckx_forward.1} parent=43 // pred_check_branch
          %269 = sbr.rel (%p267) target = $region48
        $region47: #{bottleneckx_forward.1} parent=43 // pred_region
          %p270 = scmp.lt.s32.totalorder %s18, 1
          %s271 = scalar_select %p270, %s18, 1
          %s272 = smul.addr %s271, 32
          %s273 = smul.addr %s272, 4
          %s274 = scalar_lea.vmem %s0, %s273
        $region48: #{bottleneckx_forward.1} parent=43 // pred_fallthru
          _
      $region44: #{bottleneckx_forward.1} parent=5 // pred_fallthru
        _
      %p275 = scmp.le.s32.totalorder 1, %s18
      %p276 = scmp.lt.s32.totalorder %s18, 3
      %p277 = pnand %p275, %p276
      %p278 = pneg %p277
      // Predicated region
      $region49: #{bottleneckx_forward.1} parent=5 // pred_check
        _
      $region50: #{bottleneckx_forward.1} parent=5 // pred_check_branch
        %280 = sbr.rel (%p277) target = $region52
      $region51: #{bottleneckx_forward.1} parent=5 // pred_region
        %s281 = ssub.s32 %s18, 1
        // Predicated region
        $region53: #{bottleneckx_forward.1} parent=51 // pred_check
          %p282 = pneg %p65
        $region54: #{bottleneckx_forward.1} parent=51 // pred_check_branch
          %284 = sbr.rel (%p282) target = $region56
        $region55: #{bottleneckx_forward.1} parent=51 // pred_region
          %285 = dma.done [#allocation5], 512
        $region56: #{bottleneckx_forward.1} parent=51 // pred_fallthru
          _
        %p286 = scmp.lt.s32.totalorder %s23, 1
        %s287 = scalar_select %p286, %s23, 1
        %s288 = smul.addr %s287, 32
        %s289 = smul.addr %s288, 4
        %s290 = scalar_lea.vmem %s0, %s289
        %p291 = pneg %p44
        %p292 = pneg %p41
        %p293 = pneg %p65
        %p294 = pneg %p62
        %p295 = pneg %p86
        %p296 = pneg %p83
        %p297 = pneg %p107
        %p298 = pneg %p104
        %p299 = pneg %p128
        %p300 = pneg %p125
        %p301 = pneg %p149
        %p302 = pneg %p146
        %p303 = pneg %p170
        %p304 = pneg %p167
        %p305 = pneg %p191
        %p306 = pneg %p188
        %p307 = pneg %p217
        %p308 = pneg %p214
        %s309 = sand.u32 %s204, 1
        %s310 = scalar_lea.sflag [#allocation6], %s309
        %s311 = sand.u32 %s204, 1
        %s312 = smul.addr %s311, 512
        %s313 = scalar_lea.vmem [#allocation7], %s312
        %p314 = scmp.lt.s32.totalorder %s23, 1
        %s315 = scalar_select %p314, %s23, 1
        %s316 = smul.addr %s315, 32
        %s317 = smul.addr %s316, 4
        %s318 = scalar_lea.vmem %s0, %s317
        %320 = vst [vmem:[#allocation2] sm:$0xff] 0.0
        %321 = vst [vmem:[#allocation2 + $0x8] sm:$0xff] 0.0
        %322 = vst [vmem:[#allocation2 + $0x10] sm:$0xff] 0.0
        %323 = vst [vmem:[#allocation2 + $0x18] sm:$0xff] 0.0
        %324 = vst [vmem:[#allocation2 + $0x20] sm:$0xff] 0.0
        %325 = vst [vmem:[#allocation2 + $0x28] sm:$0xff] 0.0
        %326 = vst [vmem:[#allocation2 + $0x30] sm:$0xff] 0.0
        %327 = vst [vmem:[#allocation2 + $0x38] sm:$0xff] 0.0
        %328 = vst [vmem:[#allocation2 + $0x40] sm:$0xff] 0.0
        %329 = vst [vmem:[#allocation2 + $0x48] sm:$0xff] 0.0
        %330 = vst [vmem:[#allocation2 + $0x50] sm:$0xff] 0.0
        %331 = vst [vmem:[#allocation2 + $0x58] sm:$0xff] 0.0
        %332 = vst [vmem:[#allocation2 + $0x60] sm:$0xff] 0.0
        %333 = vst [vmem:[#allocation2 + $0x68] sm:$0xff] 0.0
        %334 = vst [vmem:[#allocation2 + $0x70] sm:$0xff] 0.0
        %335 = vst [vmem:[#allocation2 + $0x78] sm:$0xff] 0.0
        %336 = vst [vmem:[#allocation2 + $0x80] sm:$0xff] 0.0
        %337 = vst [vmem:[#allocation2 + $0x88] sm:$0xff] 0.0
        %338 = vst [vmem:[#allocation2 + $0x90] sm:$0xff] 0.0
        %339 = vst [vmem:[#allocation2 + $0x98] sm:$0xff] 0.0
        %340 = vst [vmem:[#allocation2 + $0xa0] sm:$0xff] 0.0
        %341 = vst [vmem:[#allocation2 + $0xa8] sm:$0xff] 0.0
        %342 = vst [vmem:[#allocation2 + $0xb0] sm:$0xff] 0.0
        %343 = vst [vmem:[#allocation2 + $0xb8] sm:$0xff] 0.0
        %344 = vst [vmem:[#allocation2 + $0xc0] sm:$0xff] 0.0
        %345 = vst [vmem:[#allocation2 + $0xc8] sm:$0xff] 0.0
        %346 = vst [vmem:[#allocation2 + $0xd0] sm:$0xff] 0.0
        %347 = vst [vmem:[#allocation2 + $0xd8] sm:$0xff] 0.0
        %348 = vst [vmem:[#allocation2 + $0xe0] sm:$0xff] 0.0
        %349 = vst [vmem:[#allocation2 + $0xe8] sm:$0xff] 0.0
        %350 = vst [vmem:[#allocation2 + $0xf0] sm:$0xff] 0.0
        %351 = vst [vmem:[#allocation2 + $0xf8] sm:$0xff] 0.0
        %352 = vst [vmem:[#allocation2 + $0x100] sm:$0xff] 0.0
        %353 = vst [vmem:[#allocation2 + $0x108] sm:$0xff] 0.0
        %354 = vst [vmem:[#allocation2 + $0x110] sm:$0xff] 0.0
        %355 = vst [vmem:[#allocation2 + $0x118] sm:$0xff] 0.0
        %356 = vst [vmem:[#allocation2 + $0x120] sm:$0xff] 0.0
        %357 = vst [vmem:[#allocation2 + $0x128] sm:$0xff] 0.0
        %358 = vst [vmem:[#allocation2 + $0x130] sm:$0xff] 0.0
        %359 = vst [vmem:[#allocation2 + $0x138] sm:$0xff] 0.0
        %360 = vst [vmem:[#allocation2 + $0x140] sm:$0xff] 0.0
        %361 = vst [vmem:[#allocation2 + $0x148] sm:$0xff] 0.0
        %362 = vst [vmem:[#allocation2 + $0x150] sm:$0xff] 0.0
        %363 = vst [vmem:[#allocation2 + $0x158] sm:$0xff] 0.0
        %364 = vst [vmem:[#allocation2 + $0x160] sm:$0xff] 0.0
        %365 = vst [vmem:[#allocation2 + $0x168] sm:$0xff] 0.0
        %366 = vst [vmem:[#allocation2 + $0x170] sm:$0xff] 0.0
        %367 = vst [vmem:[#allocation2 + $0x178] sm:$0xff] 0.0
        %368 = vst [vmem:[#allocation2 + $0x180] sm:$0xff] 0.0
        %369 = vst [vmem:[#allocation2 + $0x188] sm:$0xff] 0.0
        %370 = vst [vmem:[#allocation2 + $0x190] sm:$0xff] 0.0
        %371 = vst [vmem:[#allocation2 + $0x198] sm:$0xff] 0.0
        %372 = vst [vmem:[#allocation2 + $0x1a0] sm:$0xff] 0.0
        %373 = vst [vmem:[#allocation2 + $0x1a8] sm:$0xff] 0.0
        %v374 = vld [vmem:[%s318] sm:$0xf]
        %v375 = vld [vmem:[%s318 + $0x4] sm:$0xf]
        %v376 = vld [vmem:[%s318 + $0x8] sm:$0xf]
        %v377 = vld [vmem:[%s318 + $0xc] sm:$0xf]
        %v378 = vld [vmem:[%s318 + $0x10] sm:$0xf]
        %v379 = vld [vmem:[%s318 + $0x14] sm:$0xf]
        %v380 = vld [vmem:[%s318 + $0x18] sm:$0xf]
        %v381 = vld [vmem:[%s318 + $0x1c] sm:$0xf]
        %v382 = vld [vmem:[%s318 + $0x20] sm:$0xf]
        %v383 = vld [vmem:[%s318 + $0x24] sm:$0xf]
        %v384 = vld [vmem:[%s318 + $0x28] sm:$0xf]
        %v385 = vld [vmem:[%s318 + $0x2c] sm:$0xf]
        %v386 = vld [vmem:[%s318 + $0x30] sm:$0xf]
        %v387 = vld [vmem:[%s318 + $0x34] sm:$0xf]
        %v388 = vld [vmem:[%s318 + $0x38] sm:$0xf]
        %v389 = vld [vmem:[%s318 + $0x3c] sm:$0xf]
        %v390 = vld [vmem:[%s318 + $0x40] sm:$0xf]
        %v391 = vld [vmem:[%s318 + $0x44] sm:$0xf]
        %v392 = vld [vmem:[%s318 + $0x48] sm:$0xf]
        %v393 = vld [vmem:[%s318 + $0x4c] sm:$0xf]
        %v394 = vld [vmem:[%s318 + $0x50] sm:$0xf]
        %v395 = vld [vmem:[%s318 + $0x54] sm:$0xf]
        %v396 = vld [vmem:[%s318 + $0x58] sm:$0xf]
        %v397 = vld [vmem:[%s318 + $0x5c] sm:$0xf]
        %v398 = vld [vmem:[%s318 + $0x60] sm:$0xf]
        %v399 = vld [vmem:[%s318 + $0x64] sm:$0xf]
        %v400 = vld [vmem:[%s318 + $0x68] sm:$0xf]
        %v401 = vld [vmem:[%s318 + $0x6c] sm:$0xf]
        %v402 = vld [vmem:[%s318 + $0x70] sm:$0xf]
        %v403 = vld [vmem:[%s318 + $0x74] sm:$0xf]
        %v404 = vld [vmem:[%s318 + $0x78] sm:$0xf]
        %v405 = vld [vmem:[%s318 + $0x7c] sm:$0xf]
        %v406 = vld [vmem:[#allocation4] sm:$0xf]
        %v407 = vld [vmem:[#allocation4 + $0x4] sm:$0xf]
        %v408 = vld [vmem:[#allocation4 + $0x8] sm:$0xf]
        %v409 = vld [vmem:[#allocation4 + $0xc] sm:$0xf]
        %v410 = vld [vmem:[#allocation4 + $0x10] sm:$0xf]
        %v411 = vld [vmem:[#allocation4 + $0x14] sm:$0xf]
        %v412 = vld [vmem:[#allocation4 + $0x18] sm:$0xf]
        %v413 = vld [vmem:[#allocation4 + $0x1c] sm:$0xf]
        %v414 = vld [vmem:[%s5] sm:$0x1]
        %v416 = vlaneseq
        %v417 = vshrl.u32 %v416, 7
        %v418 = vsub.s32 0, %v417
        %v419 = vrot.slane %v414, %v418
        %v453 = vunpack.c.l.b16 %v374
        %v454 = vunpack.c.l.b16 %v375
        %v455 = vunpack.c.l.b16 %v376
        %v456 = vunpack.c.l.b16 %v377
        %v457 = vunpack.c.l.b16 %v378
        %v458 = vunpack.c.l.b16 %v379
        %v459 = vunpack.c.l.b16 %v380
        %v460 = vunpack.c.l.b16 %v381
        %v461 = vunpack.c.l.b16 %v382
        %v462 = vunpack.c.l.b16 %v383
        %v463 = vunpack.c.l.b16 %v384
        %v464 = vunpack.c.l.b16 %v385
        %v465 = vunpack.c.l.b16 %v386
        %v466 = vunpack.c.l.b16 %v387
        %v467 = vunpack.c.l.b16 %v388
        %v468 = vunpack.c.l.b16 %v389
        %v469 = vunpack.c.l.b16 %v390
        %v470 = vunpack.c.l.b16 %v391
        %v471 = vunpack.c.l.b16 %v392
        %v472 = vunpack.c.l.b16 %v393
        %v473 = vunpack.c.l.b16 %v394
        %v474 = vunpack.c.l.b16 %v395
        %v475 = vunpack.c.l.b16 %v396
        %v476 = vunpack.c.l.b16 %v397
        %v477 = vunpack.c.l.b16 %v398
        %v478 = vunpack.c.l.b16 %v399
        %v479 = vunpack.c.l.b16 %v400
        %v480 = vunpack.c.l.b16 %v401
        %v481 = vunpack.c.l.b16 %v402
        %v482 = vunpack.c.l.b16 %v403
        %v483 = vunpack.c.l.b16 %v404
        %v484 = vunpack.c.l.b16 %v405
        %v485 = vpack.c.b16 %v454, %v453
        %v486 = vpack.c.b16 %v456, %v455
        %v487 = vpack.c.b16 %v458, %v457
        %v488 = vpack.c.b16 %v460, %v459
        %v489 = vpack.c.b16 %v462, %v461
        %v490 = vpack.c.b16 %v464, %v463
        %v491 = vpack.c.b16 %v466, %v465
        %v492 = vpack.c.b16 %v468, %v467
        %v493 = vpack.c.b16 %v470, %v469
        %v494 = vpack.c.b16 %v472, %v471
        %v495 = vpack.c.b16 %v474, %v473
        %v496 = vpack.c.b16 %v476, %v475
        %v497 = vpack.c.b16 %v478, %v477
        %v498 = vpack.c.b16 %v480, %v479
        %v499 = vpack.c.b16 %v482, %v481
        %v500 = vpack.c.b16 %v484, %v483
        %v509 = vunpack.c.l.b16 %v406
        %v510 = vunpack.c.l.b16 %v407
        %v511 = vunpack.c.l.b16 %v408
        %v512 = vunpack.c.l.b16 %v409
        %v513 = vunpack.c.l.b16 %v410
        %v514 = vunpack.c.l.b16 %v411
        %v515 = vunpack.c.l.b16 %v412
        %v516 = vunpack.c.l.b16 %v413
        %v517 = vpack.c.b16 %v510, %v509
        %v518 = vpack.c.b16 %v512, %v511
        %v519 = vpack.c.b16 %v514, %v513
        %v520 = vpack.c.b16 %v516, %v515
        %vm525 = vcmask 523264
        %v527 = vsel %vm525, %v485, 0
        %v530 = vsel %vm525, %v486, 0
        %v533 = vsel %vm525, %v487, 0
        %v536 = vsel %vm525, %v488, 0
        %v539 = vsel %vm525, %v489, 0
        %v542 = vsel %vm525, %v490, 0
        %v545 = vsel %vm525, %v491, 0
        %v548 = vsel %vm525, %v492, 0
        %v551 = vsel %vm525, %v493, 0
        %v554 = vsel %vm525, %v494, 0
        %v557 = vsel %vm525, %v495, 0
        %v560 = vsel %vm525, %v496, 0
        %v563 = vsel %vm525, %v497, 0
        %v566 = vsel %vm525, %v498, 0
        %v569 = vsel %vm525, %v499, 0
        %v572 = vsel %vm525, %v500, 0
        %574 = vmatprep.subr.bf16.mxu0 0
        %575 = vmatpush1.bf16.msra.mxu0 0
        %576 = vmatprep.subr.bf16.mxu0 0
        %577 = vmatpush1.bf16.msra.mxu0 0
        %578 = vmatprep.subr.bf16.mxu0 0
        %579 = vmatpush1.bf16.msra.mxu0 0
        %580 = vmatprep.subr.bf16.mxu0 0
        %581 = vmatpush1.bf16.msra.mxu0 0
        %582 = vmatprep.subr.bf16.mxu0 0
        %583 = vmatpush1.bf16.msra.mxu0 %v520
        %584 = vmatprep.subr.bf16.mxu0 0
        %585 = vmatpush1.bf16.msra.mxu0 %v519
        %586 = vmatprep.subr.bf16.mxu0 0
        %587 = vmatpush1.bf16.msra.mxu0 %v518
        %588 = vmatprep.subr.bf16.mxu0 0
        %589 = vmatpush1.bf16.msra.mxu0 %v517
        %590 = vmatprep.subr.bf16.mxu0 0
        %591 = vmatpush2.bf16.msra.mxu0 0
        %592 = vmatprep.subr.bf16.mxu0 0
        %593 = vmatpush2.bf16.msra.mxu0 0
        %594 = vmatprep.subr.bf16.mxu0 0
        %595 = vmatpush2.bf16.msra.mxu0 0
        %596 = vmatprep.subr.bf16.mxu0 0
        %597 = vmatpush2.bf16.msra.mxu0 0
        %598 = vmatprep.subr.bf16.mxu0 0
        %599 = vmatpush2.bf16.msra.mxu0 0
        %600 = vmatprep.subr.bf16.mxu0 0
        %601 = vmatpush2.bf16.msra.mxu0 0
        %602 = vmatprep.subr.bf16.mxu0 0
        %603 = vmatpush2.bf16.msra.mxu0 0
        %604 = vmatprep.subr.bf16.mxu0 0
        %605 = vmatpush2.bf16.msra.mxu0 0
        %606 = vmatprep.mubr.bf16.mxu0 0
        %607 = vmatmul.mubr.bf16.gmra.mxu0 %v527
        %v608 = vpop.f32.mrf.mxu0
        %v609 = vadd.f32 %v419, %v608
        %v610 = vpop.f32.mrf.mxu0
        %v611 = vpop.f32.mrf.mxu0
        %v612 = vadd.f32 %v419, %v611
        %v613 = vpop.f32.mrf.mxu0
        %614 = vmatprep.mubr.bf16.mxu0 0
        %615 = vmatmul.mubr.bf16.gmra.mxu0 %v530
        %v616 = vpop.f32.mrf.mxu0
        %v617 = vadd.f32 %v419, %v616
        %v618 = vpop.f32.mrf.mxu0
        %v619 = vpop.f32.mrf.mxu0
        %v620 = vadd.f32 %v419, %v619
        %v621 = vpop.f32.mrf.mxu0
        %622 = vmatprep.mubr.bf16.mxu0 0
        %623 = vmatmul.mubr.bf16.gmra.mxu0 %v533
        %v624 = vpop.f32.mrf.mxu0
        %v625 = vadd.f32 %v419, %v624
        %v626 = vpop.f32.mrf.mxu0
        %v627 = vpop.f32.mrf.mxu0
        %v628 = vadd.f32 %v419, %v627
        %v629 = vpop.f32.mrf.mxu0
        %630 = vmatprep.mubr.bf16.mxu0 0
        %631 = vmatmul.mubr.bf16.gmra.mxu0 %v536
        %v632 = vpop.f32.mrf.mxu0
        %v633 = vadd.f32 %v419, %v632
        %v634 = vpop.f32.mrf.mxu0
        %v635 = vpop.f32.mrf.mxu0
        %v636 = vadd.f32 %v419, %v635
        %v637 = vpop.f32.mrf.mxu0
        %638 = vmatprep.mubr.bf16.mxu0 0
        %639 = vmatmul.mubr.bf16.gmra.mxu0 %v539
        %v640 = vpop.f32.mrf.mxu0
        %v641 = vadd.f32 %v419, %v640
        %v642 = vpop.f32.mrf.mxu0
        %v643 = vpop.f32.mrf.mxu0
        %v644 = vadd.f32 %v419, %v643
        %v645 = vpop.f32.mrf.mxu0
        %646 = vmatprep.mubr.bf16.mxu0 0
        %647 = vmatmul.mubr.bf16.gmra.mxu0 %v542
        %v648 = vpop.f32.mrf.mxu0
        %v649 = vadd.f32 %v419, %v648
        %v650 = vpop.f32.mrf.mxu0
        %v651 = vpop.f32.mrf.mxu0
        %v652 = vadd.f32 %v419, %v651
        %v653 = vpop.f32.mrf.mxu0
        %654 = vmatprep.mubr.bf16.mxu0 0
        %655 = vmatmul.mubr.bf16.gmra.mxu0 %v545
        %v656 = vpop.f32.mrf.mxu0
        %v657 = vadd.f32 %v419, %v656
        %v658 = vpop.f32.mrf.mxu0
        %v659 = vpop.f32.mrf.mxu0
        %v660 = vadd.f32 %v419, %v659
        %v661 = vpop.f32.mrf.mxu0
        %662 = vmatprep.mubr.bf16.mxu0 0
        %663 = vmatmul.mubr.bf16.gmra.mxu0 %v548
        %v664 = vpop.f32.mrf.mxu0
        %v665 = vadd.f32 %v419, %v664
        %v666 = vpop.f32.mrf.mxu0
        %v667 = vpop.f32.mrf.mxu0
        %v668 = vadd.f32 %v419, %v667
        %v669 = vpop.f32.mrf.mxu0
        %670 = vmatprep.mubr.bf16.mxu0 0
        %671 = vmatmul.mubr.bf16.gmra.mxu0 %v551
        %v672 = vpop.f32.mrf.mxu0
        %v673 = vadd.f32 %v419, %v672
        %v674 = vpop.f32.mrf.mxu0
        %v675 = vpop.f32.mrf.mxu0
        %v676 = vadd.f32 %v419, %v675
        %v677 = vpop.f32.mrf.mxu0
        %678 = vmatprep.mubr.bf16.mxu0 0
        %679 = vmatmul.mubr.bf16.gmra.mxu0 %v554
        %v680 = vpop.f32.mrf.mxu0
        %v681 = vadd.f32 %v419, %v680
        %v682 = vpop.f32.mrf.mxu0
        %v683 = vpop.f32.mrf.mxu0
        %v684 = vadd.f32 %v419, %v683
        %v685 = vpop.f32.mrf.mxu0
        %686 = vmatprep.mubr.bf16.mxu0 0
        %687 = vmatmul.mubr.bf16.gmra.mxu0 %v557
        %v688 = vpop.f32.mrf.mxu0
        %v689 = vadd.f32 %v419, %v688
        %v690 = vpop.f32.mrf.mxu0
        %v691 = vpop.f32.mrf.mxu0
        %v692 = vadd.f32 %v419, %v691
        %v693 = vpop.f32.mrf.mxu0
        %694 = vmatprep.mubr.bf16.mxu0 0
        %695 = vmatmul.mubr.bf16.gmra.mxu0 %v560
        %v696 = vpop.f32.mrf.mxu0
        %v697 = vadd.f32 %v419, %v696
        %v698 = vpop.f32.mrf.mxu0
        %v699 = vpop.f32.mrf.mxu0
        %v700 = vadd.f32 %v419, %v699
        %v701 = vpop.f32.mrf.mxu0
        %702 = vmatprep.mubr.bf16.mxu0 0
        %703 = vmatmul.mubr.bf16.gmra.mxu0 %v563
        %v704 = vpop.f32.mrf.mxu0
        %v705 = vadd.f32 %v419, %v704
        %v706 = vpop.f32.mrf.mxu0
        %v707 = vpop.f32.mrf.mxu0
        %v708 = vadd.f32 %v419, %v707
        %v709 = vpop.f32.mrf.mxu0
        %710 = vmatprep.mubr.bf16.mxu0 0
        %711 = vmatmul.mubr.bf16.gmra.mxu0 %v566
        %v712 = vpop.f32.mrf.mxu0
        %v713 = vadd.f32 %v419, %v712
        %v714 = vpop.f32.mrf.mxu0
        %v715 = vpop.f32.mrf.mxu0
        %v716 = vadd.f32 %v419, %v715
        %v717 = vpop.f32.mrf.mxu0
        %718 = vmatprep.mubr.bf16.mxu0 0
        %719 = vmatmul.mubr.bf16.gmra.mxu0 %v569
        %v720 = vpop.f32.mrf.mxu0
        %v721 = vadd.f32 %v419, %v720
        %v722 = vpop.f32.mrf.mxu0
        %v723 = vpop.f32.mrf.mxu0
        %v724 = vadd.f32 %v419, %v723
        %v725 = vpop.f32.mrf.mxu0
        %726 = vmatprep.mubr.bf16.mxu0 0
        %727 = vmatmul.mubr.bf16.gmra.mxu0 %v572
        %v728 = vpop.f32.mrf.mxu0
        %v729 = vadd.f32 %v419, %v728
        %v730 = vpop.f32.mrf.mxu0
        %v731 = vpop.f32.mrf.mxu0
        %v732 = vadd.f32 %v419, %v731
        %v733 = vpop.f32.mrf.mxu0
        %734 = vdwg.mxu0
        %v735 = vmax.f32 %v609, 0.0
        %v736 = vmax.f32 %v612, 0.0
        %v737 = vmax.f32 %v617, 0.0
        %v738 = vmax.f32 %v620, 0.0
        %v739 = vmax.f32 %v625, 0.0
        %v740 = vmax.f32 %v628, 0.0
        %v741 = vmax.f32 %v633, 0.0
        %v742 = vmax.f32 %v636, 0.0
        %v743 = vmax.f32 %v641, 0.0
        %v744 = vmax.f32 %v644, 0.0
        %v745 = vmax.f32 %v649, 0.0
        %v746 = vmax.f32 %v652, 0.0
        %v747 = vmax.f32 %v657, 0.0
        %v748 = vmax.f32 %v660, 0.0
        %v749 = vmax.f32 %v665, 0.0
        %v750 = vmax.f32 %v668, 0.0
        %v751 = vmax.f32 %v673, 0.0
        %v752 = vmax.f32 %v676, 0.0
        %v753 = vmax.f32 %v681, 0.0
        %v754 = vmax.f32 %v684, 0.0
        %v755 = vmax.f32 %v689, 0.0
        %v756 = vmax.f32 %v692, 0.0
        %v757 = vmax.f32 %v697, 0.0
        %v758 = vmax.f32 %v700, 0.0
        %v759 = vmax.f32 %v705, 0.0
        %v760 = vmax.f32 %v708, 0.0
        %v761 = vmax.f32 %v713, 0.0
        %v762 = vmax.f32 %v716, 0.0
        %v763 = vmax.f32 %v721, 0.0
        %v764 = vmax.f32 %v724, 0.0
        %v765 = vmax.f32 %v729, 0.0
        %v766 = vmax.f32 %v732, 0.0
        %s767 = scalar_lea.vmem [#allocation2], 24
        %768 = vst [vmem:[%s767 + $0x1] sm:$0xff] %v735
        %769 = vst [vmem:[%s767 + $0x9] sm:$0xff] %v736
        %770 = vst [vmem:[%s767 + $0x19] sm:$0xff] %v737
        %771 = vst [vmem:[%s767 + $0x21] sm:$0xff] %v738
        %772 = vst [vmem:[%s767 + $0x31] sm:$0xff] %v739
        %773 = vst [vmem:[%s767 + $0x39] sm:$0xff] %v740
        %774 = vst [vmem:[%s767 + $0x49] sm:$0xff] %v741
        %775 = vst [vmem:[%s767 + $0x51] sm:$0xff] %v742
        %776 = vst [vmem:[%s767 + $0x61] sm:$0xff] %v743
        %777 = vst [vmem:[%s767 + $0x69] sm:$0xff] %v744
        %778 = vst [vmem:[%s767 + $0x79] sm:$0xff] %v745
        %779 = vst [vmem:[%s767 + $0x81] sm:$0xff] %v746
        %780 = vst [vmem:[%s767 + $0x91] sm:$0xff] %v747
        %781 = vst [vmem:[%s767 + $0x99] sm:$0xff] %v748
        %782 = vst [vmem:[%s767 + $0xa9] sm:$0xff] %v749
        %783 = vst [vmem:[%s767 + $0xb1] sm:$0xff] %v750
        %784 = vst [vmem:[%s767 + $0xc1] sm:$0xff] %v751
        %785 = vst [vmem:[%s767 + $0xc9] sm:$0xff] %v752
        %786 = vst [vmem:[%s767 + $0xd9] sm:$0xff] %v753
        %787 = vst [vmem:[%s767 + $0xe1] sm:$0xff] %v754
        %788 = vst [vmem:[%s767 + $0xf1] sm:$0xff] %v755
        %789 = vst [vmem:[%s767 + $0xf9] sm:$0xff] %v756
        %790 = vst [vmem:[%s767 + $0x109] sm:$0xff] %v757
        %791 = vst [vmem:[%s767 + $0x111] sm:$0xff] %v758
        %792 = vst [vmem:[%s767 + $0x121] sm:$0xff] %v759
        %793 = vst [vmem:[%s767 + $0x129] sm:$0xff] %v760
        %794 = vst [vmem:[%s767 + $0x139] sm:$0xff] %v761
        %795 = vst [vmem:[%s767 + $0x141] sm:$0xff] %v762
        %796 = vst [vmem:[%s767 + $0x151] sm:$0xff] %v763
        %797 = vst [vmem:[%s767 + $0x159] sm:$0xff] %v764
        %798 = vst [vmem:[%s767 + $0x169] sm:$0xff] %v765
        %799 = vst [vmem:[%s767 + $0x171] sm:$0xff] %v766
        %v800 = vld [vmem:[#allocation2] sm:$0xff]
        %v801 = vld [vmem:[#allocation2 + $0x8] sm:$0xff]
        %v802 = vld [vmem:[#allocation2 + $0x10] sm:$0xff]
        %v803 = vld [vmem:[#allocation2 + $0x18] sm:$0xff]
        %v804 = vld [vmem:[#allocation2 + $0x20] sm:$0xff]
        %v805 = vld [vmem:[#allocation2 + $0x28] sm:$0xff]
        %v806 = vld [vmem:[#allocation2 + $0x30] sm:$0xff]
        %v807 = vld [vmem:[#allocation2 + $0x38] sm:$0xff]
        %v808 = vld [vmem:[#allocation2 + $0x40] sm:$0xff]
        %v809 = vld [vmem:[#allocation2 + $0x48] sm:$0xff]
        %v810 = vld [vmem:[#allocation2 + $0x50] sm:$0xff]
        %v811 = vld [vmem:[#allocation2 + $0x58] sm:$0xff]
        %v812 = vld [vmem:[#allocation2 + $0x60] sm:$0xff]
        %v813 = vld [vmem:[#allocation2 + $0x68] sm:$0xff]
        %v814 = vld [vmem:[#allocation2 + $0x70] sm:$0xff]
        %v815 = vld [vmem:[#allocation2 + $0x78] sm:$0xff]
        %v816 = vld [vmem:[#allocation2 + $0x80] sm:$0xff]
        %v817 = vld [vmem:[#allocation2 + $0x88] sm:$0xff]
        %v818 = vld [vmem:[#allocation2 + $0x90] sm:$0xff]
        %v819 = vld [vmem:[#allocation2 + $0x98] sm:$0xff]
        %v820 = vld [vmem:[#allocation2 + $0xa0] sm:$0xff]
        %v821 = vld [vmem:[#allocation2 + $0xa8] sm:$0xff]
        %v822 = vld [vmem:[#allocation2 + $0xb0] sm:$0xff]
        %v823 = vld [vmem:[#allocation2 + $0xb8] sm:$0xff]
        %v824 = vld [vmem:[#allocation2 + $0xc0] sm:$0xff]
        %v825 = vld [vmem:[#allocation2 + $0xc8] sm:$0xff]
        %v826 = vld [vmem:[#allocation2 + $0xd0] sm:$0xff]
        %v827 = vld [vmem:[#allocation2 + $0xd8] sm:$0xff]
        %v828 = vld [vmem:[#allocation2 + $0xe0] sm:$0xff]
        %v829 = vld [vmem:[#allocation2 + $0xe8] sm:$0xff]
        %v830 = vld [vmem:[#allocation2 + $0xf0] sm:$0xff]
        %v831 = vld [vmem:[#allocation2 + $0xf8] sm:$0xff]
        %v832 = vld [vmem:[#allocation2 + $0x100] sm:$0xff]
        %v833 = vld [vmem:[#allocation2 + $0x108] sm:$0xff]
        %v834 = vld [vmem:[#allocation2 + $0x110] sm:$0xff]
        %v835 = vld [vmem:[#allocation2 + $0x118] sm:$0xff]
        %v836 = vld [vmem:[#allocation2 + $0x120] sm:$0xff]
        %v837 = vld [vmem:[#allocation2 + $0x128] sm:$0xff]
        %v838 = vld [vmem:[#allocation2 + $0x130] sm:$0xff]
        %v839 = vld [vmem:[#allocation2 + $0x138] sm:$0xff]
        %v840 = vld [vmem:[#allocation2 + $0x140] sm:$0xff]
        %v841 = vld [vmem:[#allocation2 + $0x148] sm:$0xff]
        %v842 = vld [vmem:[#allocation2 + $0x150] sm:$0xff]
        %v843 = vld [vmem:[#allocation2 + $0x158] sm:$0xff]
        %v844 = vld [vmem:[#allocation2 + $0x160] sm:$0xff]
        %v845 = vld [vmem:[#allocation2 + $0x168] sm:$0xff]
        %v846 = vld [vmem:[#allocation2 + $0x170] sm:$0xff]
        %v847 = vld [vmem:[#allocation2 + $0x178] sm:$0xff]
        %v848 = vpack.c.bf16 %v801, %v800
        %v849 = vpack.c.bf16 %v803, %v802
        %v850 = vpack.c.bf16 %v805, %v804
        %v851 = vpack.c.bf16 %v807, %v806
        %v852 = vpack.c.bf16 %v809, %v808
        %v853 = vpack.c.bf16 %v811, %v810
        %v854 = vpack.c.bf16 %v813, %v812
        %v855 = vpack.c.bf16 %v815, %v814
        %v856 = vpack.c.bf16 %v817, %v816
        %v857 = vpack.c.bf16 %v819, %v818
        %v858 = vpack.c.bf16 %v821, %v820
        %v859 = vpack.c.bf16 %v823, %v822
        %v860 = vpack.c.bf16 %v825, %v824
        %v861 = vpack.c.bf16 %v827, %v826
        %v862 = vpack.c.bf16 %v829, %v828
        %v863 = vpack.c.bf16 %v831, %v830
        %v864 = vpack.c.bf16 %v833, %v832
        %v865 = vpack.c.bf16 %v835, %v834
        %v866 = vpack.c.bf16 %v837, %v836
        %v867 = vpack.c.bf16 %v839, %v838
        %v868 = vpack.c.bf16 %v841, %v840
        %v869 = vpack.c.bf16 %v843, %v842
        %v870 = vpack.c.bf16 %v845, %v844
        %v871 = vpack.c.bf16 %v847, %v846
        %v896 = vunpack.c.l.b16 %v848
        %v897 = vunpack.c.h.b16 %v848
        %v898 = vunpack.c.l.b16 %v849
        %v899 = vunpack.c.h.b16 %v849
        %v900 = vunpack.c.l.b16 %v850
        %v901 = vunpack.c.h.b16 %v850
        %v902 = vunpack.c.l.b16 %v851
        %v903 = vunpack.c.h.b16 %v851
        %v904 = vunpack.c.l.b16 %v852
        %v905 = vunpack.c.h.b16 %v852
        %v906 = vunpack.c.l.b16 %v853
        %v907 = vunpack.c.h.b16 %v853
        %v908 = vunpack.c.l.b16 %v854
        %v909 = vunpack.c.h.b16 %v854
        %v910 = vunpack.c.l.b16 %v855
        %v911 = vunpack.c.h.b16 %v855
        %v912 = vunpack.c.l.b16 %v856
        %v913 = vunpack.c.h.b16 %v856
        %v914 = vunpack.c.l.b16 %v857
        %v915 = vunpack.c.h.b16 %v857
        %v916 = vunpack.c.l.b16 %v858
        %v917 = vunpack.c.h.b16 %v858
        %v918 = vunpack.c.l.b16 %v859
        %v919 = vunpack.c.h.b16 %v859
        %v920 = vunpack.c.l.b16 %v860
        %v921 = vunpack.c.h.b16 %v860
        %v922 = vunpack.c.l.b16 %v861
        %v923 = vunpack.c.h.b16 %v861
        %v924 = vunpack.c.l.b16 %v862
        %v925 = vunpack.c.h.b16 %v862
        %v926 = vunpack.c.l.b16 %v863
        %v927 = vunpack.c.h.b16 %v863
        %v928 = vunpack.c.l.b16 %v864
        %v929 = vunpack.c.h.b16 %v864
        %v930 = vunpack.c.l.b16 %v865
        %v931 = vunpack.c.h.b16 %v865
        %v932 = vunpack.c.l.b16 %v866
        %v933 = vunpack.c.h.b16 %v866
        %v934 = vunpack.c.l.b16 %v867
        %v935 = vunpack.c.h.b16 %v867
        %v936 = vunpack.c.l.b16 %v868
        %v937 = vunpack.c.h.b16 %v868
        %v938 = vunpack.c.l.b16 %v869
        %v939 = vunpack.c.h.b16 %v869
        %v940 = vunpack.c.l.b16 %v870
        %v941 = vunpack.c.h.b16 %v870
        %v942 = vunpack.c.l.b16 %v871
        %v943 = vunpack.c.h.b16 %v871
        %v944 = vpack.c.b16 %v896, %v896
        %v945 = vpack.c.b16 %v897, %v897
        %v946 = vpack.c.b16 %v898, %v898
        %v947 = vpack.c.b16 %v899, %v899
        %v948 = vpack.c.b16 %v900, %v900
        %v949 = vpack.c.b16 %v901, %v901
        %v950 = vpack.c.b16 %v902, %v902
        %v951 = vpack.c.b16 %v903, %v903
        %v952 = vpack.c.b16 %v904, %v904
        %v953 = vpack.c.b16 %v905, %v905
        %v954 = vpack.c.b16 %v906, %v906
        %v955 = vpack.c.b16 %v907, %v907
        %v956 = vpack.c.b16 %v908, %v908
        %v957 = vpack.c.b16 %v909, %v909
        %v958 = vpack.c.b16 %v910, %v910
        %v959 = vpack.c.b16 %v911, %v911
        %v960 = vpack.c.b16 %v912, %v912
        %v961 = vpack.c.b16 %v913, %v913
        %v962 = vpack.c.b16 %v914, %v914
        %v963 = vpack.c.b16 %v915, %v915
        %v964 = vpack.c.b16 %v916, %v916
        %v965 = vpack.c.b16 %v917, %v917
        %v966 = vpack.c.b16 %v918, %v918
        %v967 = vpack.c.b16 %v919, %v919
        %v968 = vpack.c.b16 %v920, %v920
        %v969 = vpack.c.b16 %v921, %v921
        %v970 = vpack.c.b16 %v922, %v922
        %v971 = vpack.c.b16 %v923, %v923
        %v972 = vpack.c.b16 %v924, %v924
        %v973 = vpack.c.b16 %v925, %v925
        %v974 = vpack.c.b16 %v926, %v926
        %v975 = vpack.c.b16 %v927, %v927
        %v976 = vpack.c.b16 %v928, %v928
        %v977 = vpack.c.b16 %v929, %v929
        %v978 = vpack.c.b16 %v930, %v930
        %v979 = vpack.c.b16 %v931, %v931
        %v980 = vpack.c.b16 %v932, %v932
        %v981 = vpack.c.b16 %v933, %v933
        %v982 = vpack.c.b16 %v934, %v934
        %v983 = vpack.c.b16 %v935, %v935
        %v984 = vpack.c.b16 %v936, %v936
        %v985 = vpack.c.b16 %v937, %v937
        %v986 = vpack.c.b16 %v938, %v938
        %v987 = vpack.c.b16 %v939, %v939
        %v988 = vpack.c.b16 %v940, %v940
        %v989 = vpack.c.b16 %v941, %v941
        %v990 = vpack.c.b16 %v942, %v942
        %v991 = vpack.c.b16 %v943, %v943
        %1040 = vst [vmem:[#allocation3] sm:$0xf] %v944
        %1041 = vst [vmem:[#allocation3 + $0x24] sm:$0xf] %v945
        %1042 = vst [vmem:[#allocation3 + $0x48] sm:$0xf] %v946
        %1043 = vst [vmem:[#allocation3 + $0x6c] sm:$0xf] %v947
        %1044 = vst [vmem:[#allocation3 + $0x90] sm:$0xf] %v948
        %1045 = vst [vmem:[#allocation3 + $0xb4] sm:$0xf] %v949
        %1046 = vst [vmem:[#allocation3 + $0xd8] sm:$0xf] %v950
        %1047 = vst [vmem:[#allocation3 + $0xfc] sm:$0xf] %v951
        %1048 = vst [vmem:[#allocation3 + $0x120] sm:$0xf] %v952
        %1049 = vst [vmem:[#allocation3 + $0x144] sm:$0xf] %v953
        %1050 = vst [vmem:[#allocation3 + $0x168] sm:$0xf] %v954
        %1051 = vst [vmem:[#allocation3 + $0x18c] sm:$0xf] %v955
        %1052 = vst [vmem:[#allocation3 + $0x1b0] sm:$0xf] %v956
        %1053 = vst [vmem:[#allocation3 + $0x1d4] sm:$0xf] %v957
        %1054 = vst [vmem:[#allocation3 + $0x1f8] sm:$0xf] %v958
        %1055 = vst [vmem:[#allocation3 + $0x21c] sm:$0xf] %v959
        %1056 = vst [vmem:[#allocation3 + $0x240] sm:$0xf] %v960
        %1057 = vst [vmem:[#allocation3 + $0x264] sm:$0xf] %v961
        %1058 = vst [vmem:[#allocation3 + $0x288] sm:$0xf] %v962
        %1059 = vst [vmem:[#allocation3 + $0x2ac] sm:$0xf] %v963
        %1060 = vst [vmem:[#allocation3 + $0x2d0] sm:$0xf] %v964
        %1061 = vst [vmem:[#allocation3 + $0x2f4] sm:$0xf] %v965
        %1062 = vst [vmem:[#allocation3 + $0x318] sm:$0xf] %v966
        %1063 = vst [vmem:[#allocation3 + $0x33c] sm:$0xf] %v967
        %1064 = vst [vmem:[#allocation3 + $0x360] sm:$0xf] %v968
        %1065 = vst [vmem:[#allocation3 + $0x384] sm:$0xf] %v969
        %1066 = vst [vmem:[#allocation3 + $0x3a8] sm:$0xf] %v970
        %1067 = vst [vmem:[#allocation3 + $0x3cc] sm:$0xf] %v971
        %1068 = vst [vmem:[#allocation3 + $0x3f0] sm:$0xf] %v972
        %1069 = vst [vmem:[#allocation3 + $0x414] sm:$0xf] %v973
        %1070 = vst [vmem:[#allocation3 + $0x438] sm:$0xf] %v974
        %1071 = vst [vmem:[#allocation3 + $0x45c] sm:$0xf] %v975
        %1072 = vst [vmem:[#allocation3 + $0x480] sm:$0xf] %v976
        %1073 = vst [vmem:[#allocation3 + $0x4a4] sm:$0xf] %v977
        %1074 = vst [vmem:[#allocation3 + $0x4c8] sm:$0xf] %v978
        %1075 = vst [vmem:[#allocation3 + $0x4ec] sm:$0xf] %v979
        %1076 = vst [vmem:[#allocation3 + $0x510] sm:$0xf] %v980
        %1077 = vst [vmem:[#allocation3 + $0x534] sm:$0xf] %v981
        %1078 = vst [vmem:[#allocation3 + $0x558] sm:$0xf] %v982
        %1079 = vst [vmem:[#allocation3 + $0x57c] sm:$0xf] %v983
        %1080 = vst [vmem:[#allocation3 + $0x5a0] sm:$0xf] %v984
        %1081 = vst [vmem:[#allocation3 + $0x5c4] sm:$0xf] %v985
        %1082 = vst [vmem:[#allocation3 + $0x5e8] sm:$0xf] %v986
        %1083 = vst [vmem:[#allocation3 + $0x60c] sm:$0xf] %v987
        %1084 = vst [vmem:[#allocation3 + $0x630] sm:$0xf] %v988
        %1085 = vst [vmem:[#allocation3 + $0x654] sm:$0xf] %v989
        %1086 = vst [vmem:[#allocation3 + $0x678] sm:$0xf] %v990
        %1087 = vst [vmem:[#allocation3 + $0x69c] sm:$0xf] %v991
        %v1088 = vrot.slane %v800, 1
        %v1089 = vrot.slane %v801, 1
        %v1090 = vrot.slane %v802, 1
        %v1091 = vrot.slane %v803, 1
        %v1092 = vrot.slane %v804, 1
        %v1093 = vrot.slane %v805, 1
        %v1094 = vrot.slane %v806, 1
        %v1095 = vrot.slane %v807, 1
        %v1096 = vrot.slane %v808, 1
        %v1097 = vrot.slane %v809, 1
        %v1098 = vrot.slane %v810, 1
        %v1099 = vrot.slane %v811, 1
        %v1100 = vrot.slane %v812, 1
        %v1101 = vrot.slane %v813, 1
        %v1102 = vrot.slane %v814, 1
        %v1103 = vrot.slane %v815, 1
        %v1104 = vrot.slane %v816, 1
        %v1105 = vrot.slane %v817, 1
        %v1106 = vrot.slane %v818, 1
        %v1107 = vrot.slane %v819, 1
        %v1108 = vrot.slane %v820, 1
        %v1109 = vrot.slane %v821, 1
        %v1110 = vrot.slane %v822, 1
        %v1111 = vrot.slane %v823, 1
        %v1112 = vrot.slane %v824, 1
        %v1113 = vrot.slane %v825, 1
        %v1114 = vrot.slane %v826, 1
        %v1115 = vrot.slane %v827, 1
        %v1116 = vrot.slane %v828, 1
        %v1117 = vrot.slane %v829, 1
        %v1118 = vrot.slane %v830, 1
        %v1119 = vrot.slane %v831, 1
        %v1120 = vrot.slane %v832, 1
        %v1121 = vrot.slane %v833, 1
        %v1122 = vrot.slane %v834, 1
        %v1123 = vrot.slane %v835, 1
        %v1124 = vrot.slane %v836, 1
        %v1125 = vrot.slane %v837, 1
        %v1126 = vrot.slane %v838, 1
        %v1127 = vrot.slane %v839, 1
        %v1128 = vrot.slane %v840, 1
        %v1129 = vrot.slane %v841, 1
        %v1130 = vrot.slane %v842, 1
        %v1131 = vrot.slane %v843, 1
        %v1132 = vrot.slane %v844, 1
        %v1133 = vrot.slane %v845, 1
        %v1134 = vrot.slane %v846, 1
        %v1135 = vrot.slane %v847, 1
        %v1136 = vlaneseq
        %v1137 = vshrl.u32 %v1136, 7
        %vm1138 = vcmp.lt.s32.totalorder %v1137, 7
        %v1139 = vsel %vm1138, %v1134, %v1135
        %v1140 = vsel %vm1138, %v1133, %v1134
        %v1141 = vsel %vm1138, %v1132, %v1133
        %v1142 = vsel %vm1138, %v1131, %v1132
        %v1143 = vsel %vm1138, %v1130, %v1131
        %v1144 = vsel %vm1138, %v1129, %v1130
        %v1145 = vsel %vm1138, %v1128, %v1129
        %v1146 = vsel %vm1138, %v1127, %v1128
        %v1147 = vsel %vm1138, %v1126, %v1127
        %v1148 = vsel %vm1138, %v1125, %v1126
        %v1149 = vsel %vm1138, %v1124, %v1125
        %v1150 = vsel %vm1138, %v1123, %v1124
        %v1151 = vsel %vm1138, %v1122, %v1123
        %v1152 = vsel %vm1138, %v1121, %v1122
        %v1153 = vsel %vm1138, %v1120, %v1121
        %v1154 = vsel %vm1138, %v1119, %v1120
        %v1155 = vsel %vm1138, %v1118, %v1119
        %v1156 = vsel %vm1138, %v1117, %v1118
        %v1157 = vsel %vm1138, %v1116, %v1117
        %v1158 = vsel %vm1138, %v1115, %v1116
        %v1159 = vsel %vm1138, %v1114, %v1115
        %v1160 = vsel %vm1138, %v1113, %v1114
        %v1161 = vsel %vm1138, %v1112, %v1113
        %v1162 = vsel %vm1138, %v1111, %v1112
        %v1163 = vsel %vm1138, %v1110, %v1111
        %v1164 = vsel %vm1138, %v1109, %v1110
        %v1165 = vsel %vm1138, %v1108, %v1109
        %v1166 = vsel %vm1138, %v1107, %v1108
        %v1167 = vsel %vm1138, %v1106, %v1107
        %v1168 = vsel %vm1138, %v1105, %v1106
        %v1169 = vsel %vm1138, %v1104, %v1105
        %v1170 = vsel %vm1138, %v1103, %v1104
        %v1171 = vsel %vm1138, %v1102, %v1103
        %v1172 = vsel %vm1138, %v1101, %v1102
        %v1173 = vsel %vm1138, %v1100, %v1101
        %v1174 = vsel %vm1138, %v1099, %v1100
        %v1175 = vsel %vm1138, %v1098, %v1099
        %v1176 = vsel %vm1138, %v1097, %v1098
        %v1177 = vsel %vm1138, %v1096, %v1097
        %v1178 = vsel %vm1138, %v1095, %v1096
        %v1179 = vsel %vm1138, %v1094, %v1095
        %v1180 = vsel %vm1138, %v1093, %v1094
        %v1181 = vsel %vm1138, %v1092, %v1093
        %v1182 = vsel %vm1138, %v1091, %v1092
        %v1183 = vsel %vm1138, %v1090, %v1091
        %v1184 = vsel %vm1138, %v1089, %v1090
        %v1185 = vsel %vm1138, %v1088, %v1089
        %v1186 = vsel %vm1138, %v1135, %v1088
        %v1187 = vpack.c.bf16 %v1184, %v1185
        %v1188 = vpack.c.bf16 %v1182, %v1183
        %v1189 = vpack.c.bf16 %v1180, %v1181
        %v1190 = vpack.c.bf16 %v1178, %v1179
        %v1191 = vpack.c.bf16 %v1176, %v1177
        %v1192 = vpack.c.bf16 %v1174, %v1175
        %v1193 = vpack.c.bf16 %v1172, %v1173
        %v1194 = vpack.c.bf16 %v1170, %v1171
        %v1195 = vpack.c.bf16 %v1168, %v1169
        %v1196 = vpack.c.bf16 %v1166, %v1167
        %v1197 = vpack.c.bf16 %v1164, %v1165
        %v1198 = vpack.c.bf16 %v1162, %v1163
        %v1199 = vpack.c.bf16 %v1160, %v1161
        %v1200 = vpack.c.bf16 %v1158, %v1159
        %v1201 = vpack.c.bf16 %v1156, %v1157
        %v1202 = vpack.c.bf16 %v1154, %v1155
        %v1203 = vpack.c.bf16 %v1152, %v1153
        %v1204 = vpack.c.bf16 %v1150, %v1151
        %v1205 = vpack.c.bf16 %v1148, %v1149
        %v1206 = vpack.c.bf16 %v1146, %v1147
        %v1207 = vpack.c.bf16 %v1144, %v1145
        %v1208 = vpack.c.bf16 %v1142, %v1143
        %v1209 = vpack.c.bf16 %v1140, %v1141
        %v1210 = vpack.c.bf16 %v1186, %v1139
        %v1235 = vunpack.c.l.b16 %v1187
        %v1236 = vunpack.c.h.b16 %v1187
        %v1237 = vunpack.c.l.b16 %v1188
        %v1238 = vunpack.c.h.b16 %v1188
        %v1239 = vunpack.c.l.b16 %v1189
        %v1240 = vunpack.c.h.b16 %v1189
        %v1241 = vunpack.c.l.b16 %v1190
        %v1242 = vunpack.c.h.b16 %v1190
        %v1243 = vunpack.c.l.b16 %v1191
        %v1244 = vunpack.c.h.b16 %v1191
        %v1245 = vunpack.c.l.b16 %v1192
        %v1246 = vunpack.c.h.b16 %v1192
        %v1247 = vunpack.c.l.b16 %v1193
        %v1248 = vunpack.c.h.b16 %v1193
        %v1249 = vunpack.c.l.b16 %v1194
        %v1250 = vunpack.c.h.b16 %v1194
        %v1251 = vunpack.c.l.b16 %v1195
        %v1252 = vunpack.c.h.b16 %v1195
        %v1253 = vunpack.c.l.b16 %v1196
        %v1254 = vunpack.c.h.b16 %v1196
        %v1255 = vunpack.c.l.b16 %v1197
        %v1256 = vunpack.c.h.b16 %v1197
        %v1257 = vunpack.c.l.b16 %v1198
        %v1258 = vunpack.c.h.b16 %v1198
        %v1259 = vunpack.c.l.b16 %v1199
        %v1260 = vunpack.c.h.b16 %v1199
        %v1261 = vunpack.c.l.b16 %v1200
        %v1262 = vunpack.c.h.b16 %v1200
        %v1263 = vunpack.c.l.b16 %v1201
        %v1264 = vunpack.c.h.b16 %v1201
        %v1265 = vunpack.c.l.b16 %v1202
        %v1266 = vunpack.c.h.b16 %v1202
        %v1267 = vunpack.c.l.b16 %v1203
        %v1268 = vunpack.c.h.b16 %v1203
        %v1269 = vunpack.c.l.b16 %v1204
        %v1270 = vunpack.c.h.b16 %v1204
        %v1271 = vunpack.c.l.b16 %v1205
        %v1272 = vunpack.c.h.b16 %v1205
        %v1273 = vunpack.c.l.b16 %v1206
        %v1274 = vunpack.c.h.b16 %v1206
        %v1275 = vunpack.c.l.b16 %v1207
        %v1276 = vunpack.c.h.b16 %v1207
        %v1277 = vunpack.c.l.b16 %v1208
        %v1278 = vunpack.c.h.b16 %v1208
        %v1279 = vunpack.c.l.b16 %v1209
        %v1280 = vunpack.c.h.b16 %v1209
        %v1281 = vunpack.c.l.b16 %v1210
        %v1282 = vunpack.c.h.b16 %v1210
        %v1283 = vpack.c.b16 %v1235, %v1235
        %v1284 = vpack.c.b16 %v1236, %v1236
        %v1285 = vpack.c.b16 %v1237, %v1237
        %v1286 = vpack.c.b16 %v1238, %v1238
        %v1287 = vpack.c.b16 %v1239, %v1239
        %v1288 = vpack.c.b16 %v1240, %v1240
        %v1289 = vpack.c.b16 %v1241, %v1241
        %v1290 = vpack.c.b16 %v1242, %v1242
        %v1291 = vpack.c.b16 %v1243, %v1243
        %v1292 = vpack.c.b16 %v1244, %v1244
        %v1293 = vpack.c.b16 %v1245, %v1245
        %v1294 = vpack.c.b16 %v1246, %v1246
        %v1295 = vpack.c.b16 %v1247, %v1247
        %v1296 = vpack.c.b16 %v1248, %v1248
        %v1297 = vpack.c.b16 %v1249, %v1249
        %v1298 = vpack.c.b16 %v1250, %v1250
        %v1299 = vpack.c.b16 %v1251, %v1251
        %v1300 = vpack.c.b16 %v1252, %v1252
        %v1301 = vpack.c.b16 %v1253, %v1253
        %v1302 = vpack.c.b16 %v1254, %v1254
        %v1303 = vpack.c.b16 %v1255, %v1255
        %v1304 = vpack.c.b16 %v1256, %v1256
        %v1305 = vpack.c.b16 %v1257, %v1257
        %v1306 = vpack.c.b16 %v1258, %v1258
        %v1307 = vpack.c.b16 %v1259, %v1259
        %v1308 = vpack.c.b16 %v1260, %v1260
        %v1309 = vpack.c.b16 %v1261, %v1261
        %v1310 = vpack.c.b16 %v1262, %v1262
        %v1311 = vpack.c.b16 %v1263, %v1263
        %v1312 = vpack.c.b16 %v1264, %v1264
        %v1313 = vpack.c.b16 %v1265, %v1265
        %v1314 = vpack.c.b16 %v1266, %v1266
        %v1315 = vpack.c.b16 %v1267, %v1267
        %v1316 = vpack.c.b16 %v1268, %v1268
        %v1317 = vpack.c.b16 %v1269, %v1269
        %v1318 = vpack.c.b16 %v1270, %v1270
        %v1319 = vpack.c.b16 %v1271, %v1271
        %v1320 = vpack.c.b16 %v1272, %v1272
        %v1321 = vpack.c.b16 %v1273, %v1273
        %v1322 = vpack.c.b16 %v1274, %v1274
        %v1323 = vpack.c.b16 %v1275, %v1275
        %v1324 = vpack.c.b16 %v1276, %v1276
        %v1325 = vpack.c.b16 %v1277, %v1277
        %v1326 = vpack.c.b16 %v1278, %v1278
        %v1327 = vpack.c.b16 %v1279, %v1279
        %v1328 = vpack.c.b16 %v1280, %v1280
        %v1329 = vpack.c.b16 %v1281, %v1281
        %v1330 = vpack.c.b16 %v1282, %v1282
        %1379 = vst [vmem:[#allocation3 + $0x4] sm:$0xf] %v1283
        %1380 = vst [vmem:[#allocation3 + $0x28] sm:$0xf] %v1284
        %1381 = vst [vmem:[#allocation3 + $0x4c] sm:$0xf] %v1285
        %1382 = vst [vmem:[#allocation3 + $0x70] sm:$0xf] %v1286
        %1383 = vst [vmem:[#allocation3 + $0x94] sm:$0xf] %v1287
        %1384 = vst [vmem:[#allocation3 + $0xb8] sm:$0xf] %v1288
        %1385 = vst [vmem:[#allocation3 + $0xdc] sm:$0xf] %v1289
        %1386 = vst [vmem:[#allocation3 + $0x100] sm:$0xf] %v1290
        %1387 = vst [vmem:[#allocation3 + $0x124] sm:$0xf] %v1291
        %1388 = vst [vmem:[#allocation3 + $0x148] sm:$0xf] %v1292
        %1389 = vst [vmem:[#allocation3 + $0x16c] sm:$0xf] %v1293
        %1390 = vst [vmem:[#allocation3 + $0x190] sm:$0xf] %v1294
        %1391 = vst [vmem:[#allocation3 + $0x1b4] sm:$0xf] %v1295
        %1392 = vst [vmem:[#allocation3 + $0x1d8] sm:$0xf] %v1296
        %1393 = vst [vmem:[#allocation3 + $0x1fc] sm:$0xf] %v1297
        %1394 = vst [vmem:[#allocation3 + $0x220] sm:$0xf] %v1298
        %1395 = vst [vmem:[#allocation3 + $0x244] sm:$0xf] %v1299
        %1396 = vst [vmem:[#allocation3 + $0x268] sm:$0xf] %v1300
        %1397 = vst [vmem:[#allocation3 + $0x28c] sm:$0xf] %v1301
        %1398 = vst [vmem:[#allocation3 + $0x2b0] sm:$0xf] %v1302
        %1399 = vst [vmem:[#allocation3 + $0x2d4] sm:$0xf] %v1303
        %1400 = vst [vmem:[#allocation3 + $0x2f8] sm:$0xf] %v1304
        %1401 = vst [vmem:[#allocation3 + $0x31c] sm:$0xf] %v1305
        %1402 = vst [vmem:[#allocation3 + $0x340] sm:$0xf] %v1306
        %1403 = vst [vmem:[#allocation3 + $0x364] sm:$0xf] %v1307
        %1404 = vst [vmem:[#allocation3 + $0x388] sm:$0xf] %v1308
        %1405 = vst [vmem:[#allocation3 + $0x3ac] sm:$0xf] %v1309
        %1406 = vst [vmem:[#allocation3 + $0x3d0] sm:$0xf] %v1310
        %1407 = vst [vmem:[#allocation3 + $0x3f4] sm:$0xf] %v1311
        %1408 = vst [vmem:[#allocation3 + $0x418] sm:$0xf] %v1312
        %1409 = vst [vmem:[#allocation3 + $0x43c] sm:$0xf] %v1313
        %1410 = vst [vmem:[#allocation3 + $0x460] sm:$0xf] %v1314
        %1411 = vst [vmem:[#allocation3 + $0x484] sm:$0xf] %v1315
        %1412 = vst [vmem:[#allocation3 + $0x4a8] sm:$0xf] %v1316
        %1413 = vst [vmem:[#allocation3 + $0x4cc] sm:$0xf] %v1317
        %1414 = vst [vmem:[#allocation3 + $0x4f0] sm:$0xf] %v1318
        %1415 = vst [vmem:[#allocation3 + $0x514] sm:$0xf] %v1319
        %1416 = vst [vmem:[#allocation3 + $0x538] sm:$0xf] %v1320
        %1417 = vst [vmem:[#allocation3 + $0x55c] sm:$0xf] %v1321
        %1418 = vst [vmem:[#allocation3 + $0x580] sm:$0xf] %v1322
        %1419 = vst [vmem:[#allocation3 + $0x5a4] sm:$0xf] %v1323
        %1420 = vst [vmem:[#allocation3 + $0x5c8] sm:$0xf] %v1324
        %1421 = vst [vmem:[#allocation3 + $0x5ec] sm:$0xf] %v1325
        %1422 = vst [vmem:[#allocation3 + $0x610] sm:$0xf] %v1326
        %1423 = vst [vmem:[#allocation3 + $0x634] sm:$0xf] %v1327
        %1424 = vst [vmem:[#allocation3 + $0x658] sm:$0xf] %v1328
        %1425 = vst [vmem:[#allocation3 + $0x67c] sm:$0xf] %v1329
        %1426 = vst [vmem:[#allocation3 + $0x6a0] sm:$0xf] %v1330
        %v1427 = vrot.slane %v800, 2
        %v1428 = vrot.slane %v801, 2
        %v1429 = vrot.slane %v802, 2
        %v1430 = vrot.slane %v803, 2
        %v1431 = vrot.slane %v804, 2
        %v1432 = vrot.slane %v805, 2
        %v1433 = vrot.slane %v806, 2
        %v1434 = vrot.slane %v807, 2
        %v1435 = vrot.slane %v808, 2
        %v1436 = vrot.slane %v809, 2
        %v1437 = vrot.slane %v810, 2
        %v1438 = vrot.slane %v811, 2
        %v1439 = vrot.slane %v812, 2
        %v1440 = vrot.slane %v813, 2
        %v1441 = vrot.slane %v814, 2
        %v1442 = vrot.slane %v815, 2
        %v1443 = vrot.slane %v816, 2
        %v1444 = vrot.slane %v817, 2
        %v1445 = vrot.slane %v818, 2
        %v1446 = vrot.slane %v819, 2
        %v1447 = vrot.slane %v820, 2
        %v1448 = vrot.slane %v821, 2
        %v1449 = vrot.slane %v822, 2
        %v1450 = vrot.slane %v823, 2
        %v1451 = vrot.slane %v824, 2
        %v1452 = vrot.slane %v825, 2
        %v1453 = vrot.slane %v826, 2
        %v1454 = vrot.slane %v827, 2
        %v1455 = vrot.slane %v828, 2
        %v1456 = vrot.slane %v829, 2
        %v1457 = vrot.slane %v830, 2
        %v1458 = vrot.slane %v831, 2
        %v1459 = vrot.slane %v832, 2
        %v1460 = vrot.slane %v833, 2
        %v1461 = vrot.slane %v834, 2
        %v1462 = vrot.slane %v835, 2
        %v1463 = vrot.slane %v836, 2
        %v1464 = vrot.slane %v837, 2
        %v1465 = vrot.slane %v838, 2
        %v1466 = vrot.slane %v839, 2
        %v1467 = vrot.slane %v840, 2
        %v1468 = vrot.slane %v841, 2
        %v1469 = vrot.slane %v842, 2
        %v1470 = vrot.slane %v843, 2
        %v1471 = vrot.slane %v844, 2
        %v1472 = vrot.slane %v845, 2
        %v1473 = vrot.slane %v846, 2
        %v1474 = vrot.slane %v847, 2
        %vm1475 = vcmp.lt.s32.totalorder %v1137, 6
        %v1476 = vsel %vm1475, %v1473, %v1474
        %v1477 = vsel %vm1475, %v1472, %v1473
        %v1478 = vsel %vm1475, %v1471, %v1472
        %v1479 = vsel %vm1475, %v1470, %v1471
        %v1480 = vsel %vm1475, %v1469, %v1470
        %v1481 = vsel %vm1475, %v1468, %v1469
        %v1482 = vsel %vm1475, %v1467, %v1468
        %v1483 = vsel %vm1475, %v1466, %v1467
        %v1484 = vsel %vm1475, %v1465, %v1466
        %v1485 = vsel %vm1475, %v1464, %v1465
        %v1486 = vsel %vm1475, %v1463, %v1464
        %v1487 = vsel %vm1475, %v1462, %v1463
        %v1488 = vsel %vm1475, %v1461, %v1462
        %v1489 = vsel %vm1475, %v1460, %v1461
        %v1490 = vsel %vm1475, %v1459, %v1460
        %v1491 = vsel %vm1475, %v1458, %v1459
        %v1492 = vsel %vm1475, %v1457, %v1458
        %v1493 = vsel %vm1475, %v1456, %v1457
        %v1494 = vsel %vm1475, %v1455, %v1456
        %v1495 = vsel %vm1475, %v1454, %v1455
        %v1496 = vsel %vm1475, %v1453, %v1454
        %v1497 = vsel %vm1475, %v1452, %v1453
        %v1498 = vsel %vm1475, %v1451, %v1452
        %v1499 = vsel %vm1475, %v1450, %v1451
        %v1500 = vsel %vm1475, %v1449, %v1450
        %v1501 = vsel %vm1475, %v1448, %v1449
        %v1502 = vsel %vm1475, %v1447, %v1448
        %v1503 = vsel %vm1475, %v1446, %v1447
        %v1504 = vsel %vm1475, %v1445, %v1446
        %v1505 = vsel %vm1475, %v1444, %v1445
        %v1506 = vsel %vm1475, %v1443, %v1444
        %v1507 = vsel %vm1475, %v1442, %v1443
        %v1508 = vsel %vm1475, %v1441, %v1442
        %v1509 = vsel %vm1475, %v1440, %v1441
        %v1510 = vsel %vm1475, %v1439, %v1440
        %v1511 = vsel %vm1475, %v1438, %v1439
        %v1512 = vsel %vm1475, %v1437, %v1438
        %v1513 = vsel %vm1475, %v1436, %v1437
        %v1514 = vsel %vm1475, %v1435, %v1436
        %v1515 = vsel %vm1475, %v1434, %v1435
        %v1516 = vsel %vm1475, %v1433, %v1434
        %v1517 = vsel %vm1475, %v1432, %v1433
        %v1518 = vsel %vm1475, %v1431, %v1432
        %v1519 = vsel %vm1475, %v1430, %v1431
        %v1520 = vsel %vm1475, %v1429, %v1430
        %v1521 = vsel %vm1475, %v1428, %v1429
        %v1522 = vsel %vm1475, %v1427, %v1428
        %v1523 = vsel %vm1475, %v1474, %v1427
        %v1524 = vpack.c.bf16 %v1521, %v1522
        %v1525 = vpack.c.bf16 %v1519, %v1520
        %v1526 = vpack.c.bf16 %v1517, %v1518
        %v1527 = vpack.c.bf16 %v1515, %v1516
        %v1528 = vpack.c.bf16 %v1513, %v1514
        %v1529 = vpack.c.bf16 %v1511, %v1512
        %v1530 = vpack.c.bf16 %v1509, %v1510
        %v1531 = vpack.c.bf16 %v1507, %v1508
        %v1532 = vpack.c.bf16 %v1505, %v1506
        %v1533 = vpack.c.bf16 %v1503, %v1504
        %v1534 = vpack.c.bf16 %v1501, %v1502
        %v1535 = vpack.c.bf16 %v1499, %v1500
        %v1536 = vpack.c.bf16 %v1497, %v1498
        %v1537 = vpack.c.bf16 %v1495, %v1496
        %v1538 = vpack.c.bf16 %v1493, %v1494
        %v1539 = vpack.c.bf16 %v1491, %v1492
        %v1540 = vpack.c.bf16 %v1489, %v1490
        %v1541 = vpack.c.bf16 %v1487, %v1488
        %v1542 = vpack.c.bf16 %v1485, %v1486
        %v1543 = vpack.c.bf16 %v1483, %v1484
        %v1544 = vpack.c.bf16 %v1481, %v1482
        %v1545 = vpack.c.bf16 %v1479, %v1480
        %v1546 = vpack.c.bf16 %v1477, %v1478
        %v1547 = vpack.c.bf16 %v1523, %v1476
        %v1572 = vunpack.c.l.b16 %v1524
        %v1573 = vunpack.c.h.b16 %v1524
        %v1574 = vunpack.c.l.b16 %v1525
        %v1575 = vunpack.c.h.b16 %v1525
        %v1576 = vunpack.c.l.b16 %v1526
        %v1577 = vunpack.c.h.b16 %v1526
        %v1578 = vunpack.c.l.b16 %v1527
        %v1579 = vunpack.c.h.b16 %v1527
        %v1580 = vunpack.c.l.b16 %v1528
        %v1581 = vunpack.c.h.b16 %v1528
        %v1582 = vunpack.c.l.b16 %v1529
        %v1583 = vunpack.c.h.b16 %v1529
        %v1584 = vunpack.c.l.b16 %v1530
        %v1585 = vunpack.c.h.b16 %v1530
        %v1586 = vunpack.c.l.b16 %v1531
        %v1587 = vunpack.c.h.b16 %v1531
        %v1588 = vunpack.c.l.b16 %v1532
        %v1589 = vunpack.c.h.b16 %v1532
        %v1590 = vunpack.c.l.b16 %v1533
        %v1591 = vunpack.c.h.b16 %v1533
        %v1592 = vunpack.c.l.b16 %v1534
        %v1593 = vunpack.c.h.b16 %v1534
        %v1594 = vunpack.c.l.b16 %v1535
        %v1595 = vunpack.c.h.b16 %v1535
        %v1596 = vunpack.c.l.b16 %v1536
        %v1597 = vunpack.c.h.b16 %v1536
        %v1598 = vunpack.c.l.b16 %v1537
        %v1599 = vunpack.c.h.b16 %v1537
        %v1600 = vunpack.c.l.b16 %v1538
        %v1601 = vunpack.c.h.b16 %v1538
        %v1602 = vunpack.c.l.b16 %v1539
        %v1603 = vunpack.c.h.b16 %v1539
        %v1604 = vunpack.c.l.b16 %v1540
        %v1605 = vunpack.c.h.b16 %v1540
        %v1606 = vunpack.c.l.b16 %v1541
        %v1607 = vunpack.c.h.b16 %v1541
        %v1608 = vunpack.c.l.b16 %v1542
        %v1609 = vunpack.c.h.b16 %v1542
        %v1610 = vunpack.c.l.b16 %v1543
        %v1611 = vunpack.c.h.b16 %v1543
        %v1612 = vunpack.c.l.b16 %v1544
        %v1613 = vunpack.c.h.b16 %v1544
        %v1614 = vunpack.c.l.b16 %v1545
        %v1615 = vunpack.c.h.b16 %v1545
        %v1616 = vunpack.c.l.b16 %v1546
        %v1617 = vunpack.c.h.b16 %v1546
        %v1618 = vunpack.c.l.b16 %v1547
        %v1619 = vunpack.c.h.b16 %v1547
        %v1620 = vpack.c.b16 %v1572, %v1572
        %v1621 = vpack.c.b16 %v1573, %v1573
        %v1622 = vpack.c.b16 %v1574, %v1574
        %v1623 = vpack.c.b16 %v1575, %v1575
        %v1624 = vpack.c.b16 %v1576, %v1576
        %v1625 = vpack.c.b16 %v1577, %v1577
        %v1626 = vpack.c.b16 %v1578, %v1578
        %v1627 = vpack.c.b16 %v1579, %v1579
        %v1628 = vpack.c.b16 %v1580, %v1580
        %v1629 = vpack.c.b16 %v1581, %v1581
        %v1630 = vpack.c.b16 %v1582, %v1582
        %v1631 = vpack.c.b16 %v1583, %v1583
        %v1632 = vpack.c.b16 %v1584, %v1584
        %v1633 = vpack.c.b16 %v1585, %v1585
        %v1634 = vpack.c.b16 %v1586, %v1586
        %v1635 = vpack.c.b16 %v1587, %v1587
        %v1636 = vpack.c.b16 %v1588, %v1588
        %v1637 = vpack.c.b16 %v1589, %v1589
        %v1638 = vpack.c.b16 %v1590, %v1590
        %v1639 = vpack.c.b16 %v1591, %v1591
        %v1640 = vpack.c.b16 %v1592, %v1592
        %v1641 = vpack.c.b16 %v1593, %v1593
        %v1642 = vpack.c.b16 %v1594, %v1594
        %v1643 = vpack.c.b16 %v1595, %v1595
        %v1644 = vpack.c.b16 %v1596, %v1596
        %v1645 = vpack.c.b16 %v1597, %v1597
        %v1646 = vpack.c.b16 %v1598, %v1598
        %v1647 = vpack.c.b16 %v1599, %v1599
        %v1648 = vpack.c.b16 %v1600, %v1600
        %v1649 = vpack.c.b16 %v1601, %v1601
        %v1650 = vpack.c.b16 %v1602, %v1602
        %v1651 = vpack.c.b16 %v1603, %v1603
        %v1652 = vpack.c.b16 %v1604, %v1604
        %v1653 = vpack.c.b16 %v1605, %v1605
        %v1654 = vpack.c.b16 %v1606, %v1606
        %v1655 = vpack.c.b16 %v1607, %v1607
        %v1656 = vpack.c.b16 %v1608, %v1608
        %v1657 = vpack.c.b16 %v1609, %v1609
        %v1658 = vpack.c.b16 %v1610, %v1610
        %v1659 = vpack.c.b16 %v1611, %v1611
        %v1660 = vpack.c.b16 %v1612, %v1612
        %v1661 = vpack.c.b16 %v1613, %v1613
        %v1662 = vpack.c.b16 %v1614, %v1614
        %v1663 = vpack.c.b16 %v1615, %v1615
        %v1664 = vpack.c.b16 %v1616, %v1616
        %v1665 = vpack.c.b16 %v1617, %v1617
        %v1666 = vpack.c.b16 %v1618, %v1618
        %v1667 = vpack.c.b16 %v1619, %v1619
        %1716 = vst [vmem:[#allocation3 + $0x8] sm:$0xf] %v1620
        %1717 = vst [vmem:[#allocation3 + $0x2c] sm:$0xf] %v1621
        %1718 = vst [vmem:[#allocation3 + $0x50] sm:$0xf] %v1622
        %1719 = vst [vmem:[#allocation3 + $0x74] sm:$0xf] %v1623
        %1720 = vst [vmem:[#allocation3 + $0x98] sm:$0xf] %v1624
        %1721 = vst [vmem:[#allocation3 + $0xbc] sm:$0xf] %v1625
        %1722 = vst [vmem:[#allocation3 + $0xe0] sm:$0xf] %v1626
        %1723 = vst [vmem:[#allocation3 + $0x104] sm:$0xf] %v1627
        %1724 = vst [vmem:[#allocation3 + $0x128] sm:$0xf] %v1628
        %1725 = vst [vmem:[#allocation3 + $0x14c] sm:$0xf] %v1629
        %1726 = vst [vmem:[#allocation3 + $0x170] sm:$0xf] %v1630
        %1727 = vst [vmem:[#allocation3 + $0x194] sm:$0xf] %v1631
        %1728 = vst [vmem:[#allocation3 + $0x1b8] sm:$0xf] %v1632
        %1729 = vst [vmem:[#allocation3 + $0x1dc] sm:$0xf] %v1633
        %1730 = vst [vmem:[#allocation3 + $0x200] sm:$0xf] %v1634
        %1731 = vst [vmem:[#allocation3 + $0x224] sm:$0xf] %v1635
        %1732 = vst [vmem:[#allocation3 + $0x248] sm:$0xf] %v1636
        %1733 = vst [vmem:[#allocation3 + $0x26c] sm:$0xf] %v1637
        %1734 = vst [vmem:[#allocation3 + $0x290] sm:$0xf] %v1638
        %1735 = vst [vmem:[#allocation3 + $0x2b4] sm:$0xf] %v1639
        %1736 = vst [vmem:[#allocation3 + $0x2d8] sm:$0xf] %v1640
        %1737 = vst [vmem:[#allocation3 + $0x2fc] sm:$0xf] %v1641
        %1738 = vst [vmem:[#allocation3 + $0x320] sm:$0xf] %v1642
        %1739 = vst [vmem:[#allocation3 + $0x344] sm:$0xf] %v1643
        %1740 = vst [vmem:[#allocation3 + $0x368] sm:$0xf] %v1644
        %1741 = vst [vmem:[#allocation3 + $0x38c] sm:$0xf] %v1645
        %1742 = vst [vmem:[#allocation3 + $0x3b0] sm:$0xf] %v1646
        %1743 = vst [vmem:[#allocation3 + $0x3d4] sm:$0xf] %v1647
        %1744 = vst [vmem:[#allocation3 + $0x3f8] sm:$0xf] %v1648
        %1745 = vst [vmem:[#allocation3 + $0x41c] sm:$0xf] %v1649
        %1746 = vst [vmem:[#allocation3 + $0x440] sm:$0xf] %v1650
        %1747 = vst [vmem:[#allocation3 + $0x464] sm:$0xf] %v1651
        %1748 = vst [vmem:[#allocation3 + $0x488] sm:$0xf] %v1652
        %1749 = vst [vmem:[#allocation3 + $0x4ac] sm:$0xf] %v1653
        %1750 = vst [vmem:[#allocation3 + $0x4d0] sm:$0xf] %v1654
        %1751 = vst [vmem:[#allocation3 + $0x4f4] sm:$0xf] %v1655
        %1752 = vst [vmem:[#allocation3 + $0x518] sm:$0xf] %v1656
        %1753 = vst [vmem:[#allocation3 + $0x53c] sm:$0xf] %v1657
        %1754 = vst [vmem:[#allocation3 + $0x560] sm:$0xf] %v1658
        %1755 = vst [vmem:[#allocation3 + $0x584] sm:$0xf] %v1659
        %1756 = vst [vmem:[#allocation3 + $0x5a8] sm:$0xf] %v1660
        %1757 = vst [vmem:[#allocation3 + $0x5cc] sm:$0xf] %v1661
        %1758 = vst [vmem:[#allocation3 + $0x5f0] sm:$0xf] %v1662
        %1759 = vst [vmem:[#allocation3 + $0x614] sm:$0xf] %v1663
        %1760 = vst [vmem:[#allocation3 + $0x638] sm:$0xf] %v1664
        %1761 = vst [vmem:[#allocation3 + $0x65c] sm:$0xf] %v1665
        %1762 = vst [vmem:[#allocation3 + $0x680] sm:$0xf] %v1666
        %1763 = vst [vmem:[#allocation3 + $0x6a4] sm:$0xf] %v1667
        %v1764 = vld [vmem:[%s767] sm:$0xff]
        %v1765 = vld [vmem:[%s767 + $0x8] sm:$0xff]
        %v1766 = vld [vmem:[%s767 + $0x10] sm:$0xff]
        %v1767 = vld [vmem:[%s767 + $0x18] sm:$0xff]
        %v1768 = vld [vmem:[%s767 + $0x20] sm:$0xff]
        %v1769 = vld [vmem:[%s767 + $0x28] sm:$0xff]
        %v1770 = vld [vmem:[%s767 + $0x30] sm:$0xff]
        %v1771 = vld [vmem:[%s767 + $0x38] sm:$0xff]
        %v1772 = vld [vmem:[%s767 + $0x40] sm:$0xff]
        %v1773 = vld [vmem:[%s767 + $0x48] sm:$0xff]
        %v1774 = vld [vmem:[%s767 + $0x50] sm:$0xff]
        %v1775 = vld [vmem:[%s767 + $0x58] sm:$0xff]
        %v1776 = vld [vmem:[%s767 + $0x60] sm:$0xff]
        %v1777 = vld [vmem:[%s767 + $0x68] sm:$0xff]
        %v1778 = vld [vmem:[%s767 + $0x70] sm:$0xff]
        %v1779 = vld [vmem:[%s767 + $0x78] sm:$0xff]
        %v1780 = vld [vmem:[%s767 + $0x80] sm:$0xff]
        %v1781 = vld [vmem:[%s767 + $0x88] sm:$0xff]
        %v1782 = vld [vmem:[%s767 + $0x90] sm:$0xff]
        %v1783 = vld [vmem:[%s767 + $0x98] sm:$0xff]
        %v1784 = vld [vmem:[%s767 + $0xa0] sm:$0xff]
        %v1785 = vld [vmem:[%s767 + $0xa8] sm:$0xff]
        %v1786 = vld [vmem:[%s767 + $0xb0] sm:$0xff]
        %v1787 = vld [vmem:[%s767 + $0xb8] sm:$0xff]
        %v1788 = vld [vmem:[%s767 + $0xc0] sm:$0xff]
        %v1789 = vld [vmem:[%s767 + $0xc8] sm:$0xff]
        %v1790 = vld [vmem:[%s767 + $0xd0] sm:$0xff]
        %v1791 = vld [vmem:[%s767 + $0xd8] sm:$0xff]
        %v1792 = vld [vmem:[%s767 + $0xe0] sm:$0xff]
        %v1793 = vld [vmem:[%s767 + $0xe8] sm:$0xff]
        %v1794 = vld [vmem:[%s767 + $0xf0] sm:$0xff]
        %v1795 = vld [vmem:[%s767 + $0xf8] sm:$0xff]
        %v1796 = vld [vmem:[%s767 + $0x100] sm:$0xff]
        %v1797 = vld [vmem:[%s767 + $0x108] sm:$0xff]
        %v1798 = vld [vmem:[%s767 + $0x110] sm:$0xff]
        %v1799 = vld [vmem:[%s767 + $0x118] sm:$0xff]
        %v1800 = vld [vmem:[%s767 + $0x120] sm:$0xff]
        %v1801 = vld [vmem:[%s767 + $0x128] sm:$0xff]
        %v1802 = vld [vmem:[%s767 + $0x130] sm:$0xff]
        %v1803 = vld [vmem:[%s767 + $0x138] sm:$0xff]
        %v1804 = vld [vmem:[%s767 + $0x140] sm:$0xff]
        %v1805 = vld [vmem:[%s767 + $0x148] sm:$0xff]
        %v1806 = vld [vmem:[%s767 + $0x150] sm:$0xff]
        %v1807 = vld [vmem:[%s767 + $0x158] sm:$0xff]
        %v1808 = vld [vmem:[%s767 + $0x160] sm:$0xff]
        %v1809 = vld [vmem:[%s767 + $0x168] sm:$0xff]
        %v1810 = vld [vmem:[%s767 + $0x170] sm:$0xff]
        %v1811 = vld [vmem:[%s767 + $0x178] sm:$0xff]
        %v1812 = vpack.c.bf16 %v1765, %v1764
        %v1813 = vpack.c.bf16 %v1767, %v1766
        %v1814 = vpack.c.bf16 %v1769, %v1768
        %v1815 = vpack.c.bf16 %v1771, %v1770
        %v1816 = vpack.c.bf16 %v1773, %v1772
        %v1817 = vpack.c.bf16 %v1775, %v1774
        %v1818 = vpack.c.bf16 %v1777, %v1776
        %v1819 = vpack.c.bf16 %v1779, %v1778
        %v1820 = vpack.c.bf16 %v1781, %v1780
        %v1821 = vpack.c.bf16 %v1783, %v1782
        %v1822 = vpack.c.bf16 %v1785, %v1784
        %v1823 = vpack.c.bf16 %v1787, %v1786
        %v1824 = vpack.c.bf16 %v1789, %v1788
        %v1825 = vpack.c.bf16 %v1791, %v1790
        %v1826 = vpack.c.bf16 %v1793, %v1792
        %v1827 = vpack.c.bf16 %v1795, %v1794
        %v1828 = vpack.c.bf16 %v1797, %v1796
        %v1829 = vpack.c.bf16 %v1799, %v1798
        %v1830 = vpack.c.bf16 %v1801, %v1800
        %v1831 = vpack.c.bf16 %v1803, %v1802
        %v1832 = vpack.c.bf16 %v1805, %v1804
        %v1833 = vpack.c.bf16 %v1807, %v1806
        %v1834 = vpack.c.bf16 %v1809, %v1808
        %v1835 = vpack.c.bf16 %v1811, %v1810
        %v1860 = vunpack.c.l.b16 %v1812
        %v1861 = vunpack.c.h.b16 %v1812
        %v1862 = vunpack.c.l.b16 %v1813
        %v1863 = vunpack.c.h.b16 %v1813
        %v1864 = vunpack.c.l.b16 %v1814
        %v1865 = vunpack.c.h.b16 %v1814
        %v1866 = vunpack.c.l.b16 %v1815
        %v1867 = vunpack.c.h.b16 %v1815
        %v1868 = vunpack.c.l.b16 %v1816
        %v1869 = vunpack.c.h.b16 %v1816
        %v1870 = vunpack.c.l.b16 %v1817
        %v1871 = vunpack.c.h.b16 %v1817
        %v1872 = vunpack.c.l.b16 %v1818
        %v1873 = vunpack.c.h.b16 %v1818
        %v1874 = vunpack.c.l.b16 %v1819
        %v1875 = vunpack.c.h.b16 %v1819
        %v1876 = vunpack.c.l.b16 %v1820
        %v1877 = vunpack.c.h.b16 %v1820
        %v1878 = vunpack.c.l.b16 %v1821
        %v1879 = vunpack.c.h.b16 %v1821
        %v1880 = vunpack.c.l.b16 %v1822
        %v1881 = vunpack.c.h.b16 %v1822
        %v1882 = vunpack.c.l.b16 %v1823
        %v1883 = vunpack.c.h.b16 %v1823
        %v1884 = vunpack.c.l.b16 %v1824
        %v1885 = vunpack.c.h.b16 %v1824
        %v1886 = vunpack.c.l.b16 %v1825
        %v1887 = vunpack.c.h.b16 %v1825
        %v1888 = vunpack.c.l.b16 %v1826
        %v1889 = vunpack.c.h.b16 %v1826
        %v1890 = vunpack.c.l.b16 %v1827
        %v1891 = vunpack.c.h.b16 %v1827
        %v1892 = vunpack.c.l.b16 %v1828
        %v1893 = vunpack.c.h.b16 %v1828
        %v1894 = vunpack.c.l.b16 %v1829
        %v1895 = vunpack.c.h.b16 %v1829
        %v1896 = vunpack.c.l.b16 %v1830
        %v1897 = vunpack.c.h.b16 %v1830
        %v1898 = vunpack.c.l.b16 %v1831
        %v1899 = vunpack.c.h.b16 %v1831
        %v1900 = vunpack.c.l.b16 %v1832
        %v1901 = vunpack.c.h.b16 %v1832
        %v1902 = vunpack.c.l.b16 %v1833
        %v1903 = vunpack.c.h.b16 %v1833
        %v1904 = vunpack.c.l.b16 %v1834
        %v1905 = vunpack.c.h.b16 %v1834
        %v1906 = vunpack.c.l.b16 %v1835
        %v1907 = vunpack.c.h.b16 %v1835
        %v1908 = vpack.c.b16 %v1860, %v1860
        %v1909 = vpack.c.b16 %v1861, %v1861
        %v1910 = vpack.c.b16 %v1862, %v1862
        %v1911 = vpack.c.b16 %v1863, %v1863
        %v1912 = vpack.c.b16 %v1864, %v1864
        %v1913 = vpack.c.b16 %v1865, %v1865
        %v1914 = vpack.c.b16 %v1866, %v1866
        %v1915 = vpack.c.b16 %v1867, %v1867
        %v1916 = vpack.c.b16 %v1868, %v1868
        %v1917 = vpack.c.b16 %v1869, %v1869
        %v1918 = vpack.c.b16 %v1870, %v1870
        %v1919 = vpack.c.b16 %v1871, %v1871
        %v1920 = vpack.c.b16 %v1872, %v1872
        %v1921 = vpack.c.b16 %v1873, %v1873
        %v1922 = vpack.c.b16 %v1874, %v1874
        %v1923 = vpack.c.b16 %v1875, %v1875
        %v1924 = vpack.c.b16 %v1876, %v1876
        %v1925 = vpack.c.b16 %v1877, %v1877
        %v1926 = vpack.c.b16 %v1878, %v1878
        %v1927 = vpack.c.b16 %v1879, %v1879
        %v1928 = vpack.c.b16 %v1880, %v1880
        %v1929 = vpack.c.b16 %v1881, %v1881
        %v1930 = vpack.c.b16 %v1882, %v1882
        %v1931 = vpack.c.b16 %v1883, %v1883
        %v1932 = vpack.c.b16 %v1884, %v1884
        %v1933 = vpack.c.b16 %v1885, %v1885
        %v1934 = vpack.c.b16 %v1886, %v1886
        %v1935 = vpack.c.b16 %v1887, %v1887
        %v1936 = vpack.c.b16 %v1888, %v1888
        %v1937 = vpack.c.b16 %v1889, %v1889
        %v1938 = vpack.c.b16 %v1890, %v1890
        %v1939 = vpack.c.b16 %v1891, %v1891
        %v1940 = vpack.c.b16 %v1892, %v1892
        %v1941 = vpack.c.b16 %v1893, %v1893
        %v1942 = vpack.c.b16 %v1894, %v1894
        %v1943 = vpack.c.b16 %v1895, %v1895
        %v1944 = vpack.c.b16 %v1896, %v1896
        %v1945 = vpack.c.b16 %v1897, %v1897
        %v1946 = vpack.c.b16 %v1898, %v1898
        %v1947 = vpack.c.b16 %v1899, %v1899
        %v1948 = vpack.c.b16 %v1900, %v1900
        %v1949 = vpack.c.b16 %v1901, %v1901
        %v1950 = vpack.c.b16 %v1902, %v1902
        %v1951 = vpack.c.b16 %v1903, %v1903
        %v1952 = vpack.c.b16 %v1904, %v1904
        %v1953 = vpack.c.b16 %v1905, %v1905
        %v1954 = vpack.c.b16 %v1906, %v1906
        %v1955 = vpack.c.b16 %v1907, %v1907
        %2004 = vst [vmem:[#allocation3 + $0xc] sm:$0xf] %v1908
        %2005 = vst [vmem:[#allocation3 + $0x30] sm:$0xf] %v1909
        %2006 = vst [vmem:[#allocation3 + $0x54] sm:$0xf] %v1910
        %2007 = vst [vmem:[#allocation3 + $0x78] sm:$0xf] %v1911
        %2008 = vst [vmem:[#allocation3 + $0x9c] sm:$0xf] %v1912
        %2009 = vst [vmem:[#allocation3 + $0xc0] sm:$0xf] %v1913
        %2010 = vst [vmem:[#allocation3 + $0xe4] sm:$0xf] %v1914
        %2011 = vst [vmem:[#allocation3 + $0x108] sm:$0xf] %v1915
        %2012 = vst [vmem:[#allocation3 + $0x12c] sm:$0xf] %v1916
        %2013 = vst [vmem:[#allocation3 + $0x150] sm:$0xf] %v1917
        %2014 = vst [vmem:[#allocation3 + $0x174] sm:$0xf] %v1918
        %2015 = vst [vmem:[#allocation3 + $0x198] sm:$0xf] %v1919
        %2016 = vst [vmem:[#allocation3 + $0x1bc] sm:$0xf] %v1920
        %2017 = vst [vmem:[#allocation3 + $0x1e0] sm:$0xf] %v1921
        %2018 = vst [vmem:[#allocation3 + $0x204] sm:$0xf] %v1922
        %2019 = vst [vmem:[#allocation3 + $0x228] sm:$0xf] %v1923
        %2020 = vst [vmem:[#allocation3 + $0x24c] sm:$0xf] %v1924
        %2021 = vst [vmem:[#allocation3 + $0x270] sm:$0xf] %v1925
        %2022 = vst [vmem:[#allocation3 + $0x294] sm:$0xf] %v1926
        %2023 = vst [vmem:[#allocation3 + $0x2b8] sm:$0xf] %v1927
        %2024 = vst [vmem:[#allocation3 + $0x2dc] sm:$0xf] %v1928
        %2025 = vst [vmem:[#allocation3 + $0x300] sm:$0xf] %v1929
        %2026 = vst [vmem:[#allocation3 + $0x324] sm:$0xf] %v1930
        %2027 = vst [vmem:[#allocation3 + $0x348] sm:$0xf] %v1931
        %2028 = vst [vmem:[#allocation3 + $0x36c] sm:$0xf] %v1932
        %2029 = vst [vmem:[#allocation3 + $0x390] sm:$0xf] %v1933
        %2030 = vst [vmem:[#allocation3 + $0x3b4] sm:$0xf] %v1934
        %2031 = vst [vmem:[#allocation3 + $0x3d8] sm:$0xf] %v1935
        %2032 = vst [vmem:[#allocation3 + $0x3fc] sm:$0xf] %v1936
        %2033 = vst [vmem:[#allocation3 + $0x420] sm:$0xf] %v1937
        %2034 = vst [vmem:[#allocation3 + $0x444] sm:$0xf] %v1938
        %2035 = vst [vmem:[#allocation3 + $0x468] sm:$0xf] %v1939
        %2036 = vst [vmem:[#allocation3 + $0x48c] sm:$0xf] %v1940
        %2037 = vst [vmem:[#allocation3 + $0x4b0] sm:$0xf] %v1941
        %2038 = vst [vmem:[#allocation3 + $0x4d4] sm:$0xf] %v1942
        %2039 = vst [vmem:[#allocation3 + $0x4f8] sm:$0xf] %v1943
        %2040 = vst [vmem:[#allocation3 + $0x51c] sm:$0xf] %v1944
        %2041 = vst [vmem:[#allocation3 + $0x540] sm:$0xf] %v1945
        %2042 = vst [vmem:[#allocation3 + $0x564] sm:$0xf] %v1946
        %2043 = vst [vmem:[#allocation3 + $0x588] sm:$0xf] %v1947
        %2044 = vst [vmem:[#allocation3 + $0x5ac] sm:$0xf] %v1948
        %2045 = vst [vmem:[#allocation3 + $0x5d0] sm:$0xf] %v1949
        %2046 = vst [vmem:[#allocation3 + $0x5f4] sm:$0xf] %v1950
        %2047 = vst [vmem:[#allocation3 + $0x618] sm:$0xf] %v1951
        %2048 = vst [vmem:[#allocation3 + $0x63c] sm:$0xf] %v1952
        %2049 = vst [vmem:[#allocation3 + $0x660] sm:$0xf] %v1953
        %2050 = vst [vmem:[#allocation3 + $0x684] sm:$0xf] %v1954
        %2051 = vst [vmem:[#allocation3 + $0x6a8] sm:$0xf] %v1955
        %v2052 = vrot.slane %v1764, 1
        %v2053 = vrot.slane %v1765, 1
        %v2054 = vrot.slane %v1766, 1
        %v2055 = vrot.slane %v1767, 1
        %v2056 = vrot.slane %v1768, 1
        %v2057 = vrot.slane %v1769, 1
        %v2058 = vrot.slane %v1770, 1
        %v2059 = vrot.slane %v1771, 1
        %v2060 = vrot.slane %v1772, 1
        %v2061 = vrot.slane %v1773, 1
        %v2062 = vrot.slane %v1774, 1
        %v2063 = vrot.slane %v1775, 1
        %v2064 = vrot.slane %v1776, 1
        %v2065 = vrot.slane %v1777, 1
        %v2066 = vrot.slane %v1778, 1
        %v2067 = vrot.slane %v1779, 1
        %v2068 = vrot.slane %v1780, 1
        %v2069 = vrot.slane %v1781, 1
        %v2070 = vrot.slane %v1782, 1
        %v2071 = vrot.slane %v1783, 1
        %v2072 = vrot.slane %v1784, 1
        %v2073 = vrot.slane %v1785, 1
        %v2074 = vrot.slane %v1786, 1
        %v2075 = vrot.slane %v1787, 1
        %v2076 = vrot.slane %v1788, 1
        %v2077 = vrot.slane %v1789, 1
        %v2078 = vrot.slane %v1790, 1
        %v2079 = vrot.slane %v1791, 1
        %v2080 = vrot.slane %v1792, 1
        %v2081 = vrot.slane %v1793, 1
        %v2082 = vrot.slane %v1794, 1
        %v2083 = vrot.slane %v1795, 1
        %v2084 = vrot.slane %v1796, 1
        %v2085 = vrot.slane %v1797, 1
        %v2086 = vrot.slane %v1798, 1
        %v2087 = vrot.slane %v1799, 1
        %v2088 = vrot.slane %v1800, 1
        %v2089 = vrot.slane %v1801, 1
        %v2090 = vrot.slane %v1802, 1
        %v2091 = vrot.slane %v1803, 1
        %v2092 = vrot.slane %v1804, 1
        %v2093 = vrot.slane %v1805, 1
        %v2094 = vrot.slane %v1806, 1
        %v2095 = vrot.slane %v1807, 1
        %v2096 = vrot.slane %v1808, 1
        %v2097 = vrot.slane %v1809, 1
        %v2098 = vrot.slane %v1810, 1
        %v2099 = vrot.slane %v1811, 1
        %v2100 = vsel %vm1138, %v2098, %v2099
        %v2101 = vsel %vm1138, %v2097, %v2098
        %v2102 = vsel %vm1138, %v2096, %v2097
        %v2103 = vsel %vm1138, %v2095, %v2096
        %v2104 = vsel %vm1138, %v2094, %v2095
        %v2105 = vsel %vm1138, %v2093, %v2094
        %v2106 = vsel %vm1138, %v2092, %v2093
        %v2107 = vsel %vm1138, %v2091, %v2092
        %v2108 = vsel %vm1138, %v2090, %v2091
        %v2109 = vsel %vm1138, %v2089, %v2090
        %v2110 = vsel %vm1138, %v2088, %v2089
        %v2111 = vsel %vm1138, %v2087, %v2088
        %v2112 = vsel %vm1138, %v2086, %v2087
        %v2113 = vsel %vm1138, %v2085, %v2086
        %v2114 = vsel %vm1138, %v2084, %v2085
        %v2115 = vsel %vm1138, %v2083, %v2084
        %v2116 = vsel %vm1138, %v2082, %v2083
        %v2117 = vsel %vm1138, %v2081, %v2082
        %v2118 = vsel %vm1138, %v2080, %v2081
        %v2119 = vsel %vm1138, %v2079, %v2080
        %v2120 = vsel %vm1138, %v2078, %v2079
        %v2121 = vsel %vm1138, %v2077, %v2078
        %v2122 = vsel %vm1138, %v2076, %v2077
        %v2123 = vsel %vm1138, %v2075, %v2076
        %v2124 = vsel %vm1138, %v2074, %v2075
        %v2125 = vsel %vm1138, %v2073, %v2074
        %v2126 = vsel %vm1138, %v2072, %v2073
        %v2127 = vsel %vm1138, %v2071, %v2072
        %v2128 = vsel %vm1138, %v2070, %v2071
        %v2129 = vsel %vm1138, %v2069, %v2070
        %v2130 = vsel %vm1138, %v2068, %v2069
        %v2131 = vsel %vm1138, %v2067, %v2068
        %v2132 = vsel %vm1138, %v2066, %v2067
        %v2133 = vsel %vm1138, %v2065, %v2066
        %v2134 = vsel %vm1138, %v2064, %v2065
        %v2135 = vsel %vm1138, %v2063, %v2064
        %v2136 = vsel %vm1138, %v2062, %v2063
        %v2137 = vsel %vm1138, %v2061, %v2062
        %v2138 = vsel %vm1138, %v2060, %v2061
        %v2139 = vsel %vm1138, %v2059, %v2060
        %v2140 = vsel %vm1138, %v2058, %v2059
        %v2141 = vsel %vm1138, %v2057, %v2058
        %v2142 = vsel %vm1138, %v2056, %v2057
        %v2143 = vsel %vm1138, %v2055, %v2056
        %v2144 = vsel %vm1138, %v2054, %v2055
        %v2145 = vsel %vm1138, %v2053, %v2054
        %v2146 = vsel %vm1138, %v2052, %v2053
        %v2147 = vsel %vm1138, %v2099, %v2052
        %v2148 = vpack.c.bf16 %v2145, %v2146
        %v2149 = vpack.c.bf16 %v2143, %v2144
        %v2150 = vpack.c.bf16 %v2141, %v2142
        %v2151 = vpack.c.bf16 %v2139, %v2140
        %v2152 = vpack.c.bf16 %v2137, %v2138
        %v2153 = vpack.c.bf16 %v2135, %v2136
        %v2154 = vpack.c.bf16 %v2133, %v2134
        %v2155 = vpack.c.bf16 %v2131, %v2132
        %v2156 = vpack.c.bf16 %v2129, %v2130
        %v2157 = vpack.c.bf16 %v2127, %v2128
        %v2158 = vpack.c.bf16 %v2125, %v2126
        %v2159 = vpack.c.bf16 %v2123, %v2124
        %v2160 = vpack.c.bf16 %v2121, %v2122
        %v2161 = vpack.c.bf16 %v2119, %v2120
        %v2162 = vpack.c.bf16 %v2117, %v2118
        %v2163 = vpack.c.bf16 %v2115, %v2116
        %v2164 = vpack.c.bf16 %v2113, %v2114
        %v2165 = vpack.c.bf16 %v2111, %v2112
        %v2166 = vpack.c.bf16 %v2109, %v2110
        %v2167 = vpack.c.bf16 %v2107, %v2108
        %v2168 = vpack.c.bf16 %v2105, %v2106
        %v2169 = vpack.c.bf16 %v2103, %v2104
        %v2170 = vpack.c.bf16 %v2101, %v2102
        %v2171 = vpack.c.bf16 %v2147, %v2100
        %v2196 = vunpack.c.l.b16 %v2148
        %v2197 = vunpack.c.h.b16 %v2148
        %v2198 = vunpack.c.l.b16 %v2149
        %v2199 = vunpack.c.h.b16 %v2149
        %v2200 = vunpack.c.l.b16 %v2150
        %v2201 = vunpack.c.h.b16 %v2150
        %v2202 = vunpack.c.l.b16 %v2151
        %v2203 = vunpack.c.h.b16 %v2151
        %v2204 = vunpack.c.l.b16 %v2152
        %v2205 = vunpack.c.h.b16 %v2152
        %v2206 = vunpack.c.l.b16 %v2153
        %v2207 = vunpack.c.h.b16 %v2153
        %v2208 = vunpack.c.l.b16 %v2154
        %v2209 = vunpack.c.h.b16 %v2154
        %v2210 = vunpack.c.l.b16 %v2155
        %v2211 = vunpack.c.h.b16 %v2155
        %v2212 = vunpack.c.l.b16 %v2156
        %v2213 = vunpack.c.h.b16 %v2156
        %v2214 = vunpack.c.l.b16 %v2157
        %v2215 = vunpack.c.h.b16 %v2157
        %v2216 = vunpack.c.l.b16 %v2158
        %v2217 = vunpack.c.h.b16 %v2158
        %v2218 = vunpack.c.l.b16 %v2159
        %v2219 = vunpack.c.h.b16 %v2159
        %v2220 = vunpack.c.l.b16 %v2160
        %v2221 = vunpack.c.h.b16 %v2160
        %v2222 = vunpack.c.l.b16 %v2161
        %v2223 = vunpack.c.h.b16 %v2161
        %v2224 = vunpack.c.l.b16 %v2162
        %v2225 = vunpack.c.h.b16 %v2162
        %v2226 = vunpack.c.l.b16 %v2163
        %v2227 = vunpack.c.h.b16 %v2163
        %v2228 = vunpack.c.l.b16 %v2164
        %v2229 = vunpack.c.h.b16 %v2164
        %v2230 = vunpack.c.l.b16 %v2165
        %v2231 = vunpack.c.h.b16 %v2165
        %v2232 = vunpack.c.l.b16 %v2166
        %v2233 = vunpack.c.h.b16 %v2166
        %v2234 = vunpack.c.l.b16 %v2167
        %v2235 = vunpack.c.h.b16 %v2167
        %v2236 = vunpack.c.l.b16 %v2168
        %v2237 = vunpack.c.h.b16 %v2168
        %v2238 = vunpack.c.l.b16 %v2169
        %v2239 = vunpack.c.h.b16 %v2169
        %v2240 = vunpack.c.l.b16 %v2170
        %v2241 = vunpack.c.h.b16 %v2170
        %v2242 = vunpack.c.l.b16 %v2171
        %v2243 = vunpack.c.h.b16 %v2171
        %v2244 = vpack.c.b16 %v2196, %v2196
        %v2245 = vpack.c.b16 %v2197, %v2197
        %v2246 = vpack.c.b16 %v2198, %v2198
        %v2247 = vpack.c.b16 %v2199, %v2199
        %v2248 = vpack.c.b16 %v2200, %v2200
        %v2249 = vpack.c.b16 %v2201, %v2201
        %v2250 = vpack.c.b16 %v2202, %v2202
        %v2251 = vpack.c.b16 %v2203, %v2203
        %v2252 = vpack.c.b16 %v2204, %v2204
        %v2253 = vpack.c.b16 %v2205, %v2205
        %v2254 = vpack.c.b16 %v2206, %v2206
        %v2255 = vpack.c.b16 %v2207, %v2207
        %v2256 = vpack.c.b16 %v2208, %v2208
        %v2257 = vpack.c.b16 %v2209, %v2209
        %v2258 = vpack.c.b16 %v2210, %v2210
        %v2259 = vpack.c.b16 %v2211, %v2211
        %v2260 = vpack.c.b16 %v2212, %v2212
        %v2261 = vpack.c.b16 %v2213, %v2213
        %v2262 = vpack.c.b16 %v2214, %v2214
        %v2263 = vpack.c.b16 %v2215, %v2215
        %v2264 = vpack.c.b16 %v2216, %v2216
        %v2265 = vpack.c.b16 %v2217, %v2217
        %v2266 = vpack.c.b16 %v2218, %v2218
        %v2267 = vpack.c.b16 %v2219, %v2219
        %v2268 = vpack.c.b16 %v2220, %v2220
        %v2269 = vpack.c.b16 %v2221, %v2221
        %v2270 = vpack.c.b16 %v2222, %v2222
        %v2271 = vpack.c.b16 %v2223, %v2223
        %v2272 = vpack.c.b16 %v2224, %v2224
        %v2273 = vpack.c.b16 %v2225, %v2225
        %v2274 = vpack.c.b16 %v2226, %v2226
        %v2275 = vpack.c.b16 %v2227, %v2227
        %v2276 = vpack.c.b16 %v2228, %v2228
        %v2277 = vpack.c.b16 %v2229, %v2229
        %v2278 = vpack.c.b16 %v2230, %v2230
        %v2279 = vpack.c.b16 %v2231, %v2231
        %v2280 = vpack.c.b16 %v2232, %v2232
        %v2281 = vpack.c.b16 %v2233, %v2233
        %v2282 = vpack.c.b16 %v2234, %v2234
        %v2283 = vpack.c.b16 %v2235, %v2235
        %v2284 = vpack.c.b16 %v2236, %v2236
        %v2285 = vpack.c.b16 %v2237, %v2237
        %v2286 = vpack.c.b16 %v2238, %v2238
        %v2287 = vpack.c.b16 %v2239, %v2239
        %v2288 = vpack.c.b16 %v2240, %v2240
        %v2289 = vpack.c.b16 %v2241, %v2241
        %v2290 = vpack.c.b16 %v2242, %v2242
        %v2291 = vpack.c.b16 %v2243, %v2243
        %2340 = vst [vmem:[#allocation3 + $0x10] sm:$0xf] %v2244
        %2341 = vst [vmem:[#allocation3 + $0x34] sm:$0xf] %v2245
        %2342 = vst [vmem:[#allocation3 + $0x58] sm:$0xf] %v2246
        %2343 = vst [vmem:[#allocation3 + $0x7c] sm:$0xf] %v2247
        %2344 = vst [vmem:[#allocation3 + $0xa0] sm:$0xf] %v2248
        %2345 = vst [vmem:[#allocation3 + $0xc4] sm:$0xf] %v2249
        %2346 = vst [vmem:[#allocation3 + $0xe8] sm:$0xf] %v2250
        %2347 = vst [vmem:[#allocation3 + $0x10c] sm:$0xf] %v2251
        %2348 = vst [vmem:[#allocation3 + $0x130] sm:$0xf] %v2252
        %2349 = vst [vmem:[#allocation3 + $0x154] sm:$0xf] %v2253
        %2350 = vst [vmem:[#allocation3 + $0x178] sm:$0xf] %v2254
        %2351 = vst [vmem:[#allocation3 + $0x19c] sm:$0xf] %v2255
        %2352 = vst [vmem:[#allocation3 + $0x1c0] sm:$0xf] %v2256
        %2353 = vst [vmem:[#allocation3 + $0x1e4] sm:$0xf] %v2257
        %2354 = vst [vmem:[#allocation3 + $0x208] sm:$0xf] %v2258
        %2355 = vst [vmem:[#allocation3 + $0x22c] sm:$0xf] %v2259
        %2356 = vst [vmem:[#allocation3 + $0x250] sm:$0xf] %v2260
        %2357 = vst [vmem:[#allocation3 + $0x274] sm:$0xf] %v2261
        %2358 = vst [vmem:[#allocation3 + $0x298] sm:$0xf] %v2262
        %2359 = vst [vmem:[#allocation3 + $0x2bc] sm:$0xf] %v2263
        %2360 = vst [vmem:[#allocation3 + $0x2e0] sm:$0xf] %v2264
        %2361 = vst [vmem:[#allocation3 + $0x304] sm:$0xf] %v2265
        %2362 = vst [vmem:[#allocation3 + $0x328] sm:$0xf] %v2266
        %2363 = vst [vmem:[#allocation3 + $0x34c] sm:$0xf] %v2267
        %2364 = vst [vmem:[#allocation3 + $0x370] sm:$0xf] %v2268
        %2365 = vst [vmem:[#allocation3 + $0x394] sm:$0xf] %v2269
        %2366 = vst [vmem:[#allocation3 + $0x3b8] sm:$0xf] %v2270
        %2367 = vst [vmem:[#allocation3 + $0x3dc] sm:$0xf] %v2271
        %2368 = vst [vmem:[#allocation3 + $0x400] sm:$0xf] %v2272
        %2369 = vst [vmem:[#allocation3 + $0x424] sm:$0xf] %v2273
        %2370 = vst [vmem:[#allocation3 + $0x448] sm:$0xf] %v2274
        %2371 = vst [vmem:[#allocation3 + $0x46c] sm:$0xf] %v2275
        %2372 = vst [vmem:[#allocation3 + $0x490] sm:$0xf] %v2276
        %2373 = vst [vmem:[#allocation3 + $0x4b4] sm:$0xf] %v2277
        %2374 = vst [vmem:[#allocation3 + $0x4d8] sm:$0xf] %v2278
        %2375 = vst [vmem:[#allocation3 + $0x4fc] sm:$0xf] %v2279
        %2376 = vst [vmem:[#allocation3 + $0x520] sm:$0xf] %v2280
        %2377 = vst [vmem:[#allocation3 + $0x544] sm:$0xf] %v2281
        %2378 = vst [vmem:[#allocation3 + $0x568] sm:$0xf] %v2282
        %2379 = vst [vmem:[#allocation3 + $0x58c] sm:$0xf] %v2283
        %2380 = vst [vmem:[#allocation3 + $0x5b0] sm:$0xf] %v2284
        %2381 = vst [vmem:[#allocation3 + $0x5d4] sm:$0xf] %v2285
        %2382 = vst [vmem:[#allocation3 + $0x5f8] sm:$0xf] %v2286
        %2383 = vst [vmem:[#allocation3 + $0x61c] sm:$0xf] %v2287
        %2384 = vst [vmem:[#allocation3 + $0x640] sm:$0xf] %v2288
        %2385 = vst [vmem:[#allocation3 + $0x664] sm:$0xf] %v2289
        %2386 = vst [vmem:[#allocation3 + $0x688] sm:$0xf] %v2290
        %2387 = vst [vmem:[#allocation3 + $0x6ac] sm:$0xf] %v2291
        %v2388 = vrot.slane %v1764, 2
        %v2389 = vrot.slane %v1765, 2
        %v2390 = vrot.slane %v1766, 2
        %v2391 = vrot.slane %v1767, 2
        %v2392 = vrot.slane %v1768, 2
        %v2393 = vrot.slane %v1769, 2
        %v2394 = vrot.slane %v1770, 2
        %v2395 = vrot.slane %v1771, 2
        %v2396 = vrot.slane %v1772, 2
        %v2397 = vrot.slane %v1773, 2
        %v2398 = vrot.slane %v1774, 2
        %v2399 = vrot.slane %v1775, 2
        %v2400 = vrot.slane %v1776, 2
        %v2401 = vrot.slane %v1777, 2
        %v2402 = vrot.slane %v1778, 2
        %v2403 = vrot.slane %v1779, 2
        %v2404 = vrot.slane %v1780, 2
        %v2405 = vrot.slane %v1781, 2
        %v2406 = vrot.slane %v1782, 2
        %v2407 = vrot.slane %v1783, 2
        %v2408 = vrot.slane %v1784, 2
        %v2409 = vrot.slane %v1785, 2
        %v2410 = vrot.slane %v1786, 2
        %v2411 = vrot.slane %v1787, 2
        %v2412 = vrot.slane %v1788, 2
        %v2413 = vrot.slane %v1789, 2
        %v2414 = vrot.slane %v1790, 2
        %v2415 = vrot.slane %v1791, 2
        %v2416 = vrot.slane %v1792, 2
        %v2417 = vrot.slane %v1793, 2
        %v2418 = vrot.slane %v1794, 2
        %v2419 = vrot.slane %v1795, 2
        %v2420 = vrot.slane %v1796, 2
        %v2421 = vrot.slane %v1797, 2
        %v2422 = vrot.slane %v1798, 2
        %v2423 = vrot.slane %v1799, 2
        %v2424 = vrot.slane %v1800, 2
        %v2425 = vrot.slane %v1801, 2
        %v2426 = vrot.slane %v1802, 2
        %v2427 = vrot.slane %v1803, 2
        %v2428 = vrot.slane %v1804, 2
        %v2429 = vrot.slane %v1805, 2
        %v2430 = vrot.slane %v1806, 2
        %v2431 = vrot.slane %v1807, 2
        %v2432 = vrot.slane %v1808, 2
        %v2433 = vrot.slane %v1809, 2
        %v2434 = vrot.slane %v1810, 2
        %v2435 = vrot.slane %v1811, 2
        %v2436 = vsel %vm1475, %v2434, %v2435
        %v2437 = vsel %vm1475, %v2433, %v2434
        %v2438 = vsel %vm1475, %v2432, %v2433
        %v2439 = vsel %vm1475, %v2431, %v2432
        %v2440 = vsel %vm1475, %v2430, %v2431
        %v2441 = vsel %vm1475, %v2429, %v2430
        %v2442 = vsel %vm1475, %v2428, %v2429
        %v2443 = vsel %vm1475, %v2427, %v2428
        %v2444 = vsel %vm1475, %v2426, %v2427
        %v2445 = vsel %vm1475, %v2425, %v2426
        %v2446 = vsel %vm1475, %v2424, %v2425
        %v2447 = vsel %vm1475, %v2423, %v2424
        %v2448 = vsel %vm1475, %v2422, %v2423
        %v2449 = vsel %vm1475, %v2421, %v2422
        %v2450 = vsel %vm1475, %v2420, %v2421
        %v2451 = vsel %vm1475, %v2419, %v2420
        %v2452 = vsel %vm1475, %v2418, %v2419
        %v2453 = vsel %vm1475, %v2417, %v2418
        %v2454 = vsel %vm1475, %v2416, %v2417
        %v2455 = vsel %vm1475, %v2415, %v2416
        %v2456 = vsel %vm1475, %v2414, %v2415
        %v2457 = vsel %vm1475, %v2413, %v2414
        %v2458 = vsel %vm1475, %v2412, %v2413
        %v2459 = vsel %vm1475, %v2411, %v2412
        %v2460 = vsel %vm1475, %v2410, %v2411
        %v2461 = vsel %vm1475, %v2409, %v2410
        %v2462 = vsel %vm1475, %v2408, %v2409
        %v2463 = vsel %vm1475, %v2407, %v2408
        %v2464 = vsel %vm1475, %v2406, %v2407
        %v2465 = vsel %vm1475, %v2405, %v2406
        %v2466 = vsel %vm1475, %v2404, %v2405
        %v2467 = vsel %vm1475, %v2403, %v2404
        %v2468 = vsel %vm1475, %v2402, %v2403
        %v2469 = vsel %vm1475, %v2401, %v2402
        %v2470 = vsel %vm1475, %v2400, %v2401
        %v2471 = vsel %vm1475, %v2399, %v2400
        %v2472 = vsel %vm1475, %v2398, %v2399
        %v2473 = vsel %vm1475, %v2397, %v2398
        %v2474 = vsel %vm1475, %v2396, %v2397
        %v2475 = vsel %vm1475, %v2395, %v2396
        %v2476 = vsel %vm1475, %v2394, %v2395
        %v2477 = vsel %vm1475, %v2393, %v2394
        %v2478 = vsel %vm1475, %v2392, %v2393
        %v2479 = vsel %vm1475, %v2391, %v2392
        %v2480 = vsel %vm1475, %v2390, %v2391
        %v2481 = vsel %vm1475, %v2389, %v2390
        %v2482 = vsel %vm1475, %v2388, %v2389
        %v2483 = vsel %vm1475, %v2435, %v2388
        %v2484 = vpack.c.bf16 %v2481, %v2482
        %v2485 = vpack.c.bf16 %v2479, %v2480
        %v2486 = vpack.c.bf16 %v2477, %v2478
        %v2487 = vpack.c.bf16 %v2475, %v2476
        %v2488 = vpack.c.bf16 %v2473, %v2474
        %v2489 = vpack.c.bf16 %v2471, %v2472
        %v2490 = vpack.c.bf16 %v2469, %v2470
        %v2491 = vpack.c.bf16 %v2467, %v2468
        %v2492 = vpack.c.bf16 %v2465, %v2466
        %v2493 = vpack.c.bf16 %v2463, %v2464
        %v2494 = vpack.c.bf16 %v2461, %v2462
        %v2495 = vpack.c.bf16 %v2459, %v2460
        %v2496 = vpack.c.bf16 %v2457, %v2458
        %v2497 = vpack.c.bf16 %v2455, %v2456
        %v2498 = vpack.c.bf16 %v2453, %v2454
        %v2499 = vpack.c.bf16 %v2451, %v2452
        %v2500 = vpack.c.bf16 %v2449, %v2450
        %v2501 = vpack.c.bf16 %v2447, %v2448
        %v2502 = vpack.c.bf16 %v2445, %v2446
        %v2503 = vpack.c.bf16 %v2443, %v2444
        %v2504 = vpack.c.bf16 %v2441, %v2442
        %v2505 = vpack.c.bf16 %v2439, %v2440
        %v2506 = vpack.c.bf16 %v2437, %v2438
        %v2507 = vpack.c.bf16 %v2483, %v2436
        %v2532 = vunpack.c.l.b16 %v2484
        %v2533 = vunpack.c.h.b16 %v2484
        %v2534 = vunpack.c.l.b16 %v2485
        %v2535 = vunpack.c.h.b16 %v2485
        %v2536 = vunpack.c.l.b16 %v2486
        %v2537 = vunpack.c.h.b16 %v2486
        %v2538 = vunpack.c.l.b16 %v2487
        %v2539 = vunpack.c.h.b16 %v2487
        %v2540 = vunpack.c.l.b16 %v2488
        %v2541 = vunpack.c.h.b16 %v2488
        %v2542 = vunpack.c.l.b16 %v2489
        %v2543 = vunpack.c.h.b16 %v2489
        %v2544 = vunpack.c.l.b16 %v2490
        %v2545 = vunpack.c.h.b16 %v2490
        %v2546 = vunpack.c.l.b16 %v2491
        %v2547 = vunpack.c.h.b16 %v2491
        %v2548 = vunpack.c.l.b16 %v2492
        %v2549 = vunpack.c.h.b16 %v2492
        %v2550 = vunpack.c.l.b16 %v2493
        %v2551 = vunpack.c.h.b16 %v2493
        %v2552 = vunpack.c.l.b16 %v2494
        %v2553 = vunpack.c.h.b16 %v2494
        %v2554 = vunpack.c.l.b16 %v2495
        %v2555 = vunpack.c.h.b16 %v2495
        %v2556 = vunpack.c.l.b16 %v2496
        %v2557 = vunpack.c.h.b16 %v2496
        %v2558 = vunpack.c.l.b16 %v2497
        %v2559 = vunpack.c.h.b16 %v2497
        %v2560 = vunpack.c.l.b16 %v2498
        %v2561 = vunpack.c.h.b16 %v2498
        %v2562 = vunpack.c.l.b16 %v2499
        %v2563 = vunpack.c.h.b16 %v2499
        %v2564 = vunpack.c.l.b16 %v2500
        %v2565 = vunpack.c.h.b16 %v2500
        %v2566 = vunpack.c.l.b16 %v2501
        %v2567 = vunpack.c.h.b16 %v2501
        %v2568 = vunpack.c.l.b16 %v2502
        %v2569 = vunpack.c.h.b16 %v2502
        %v2570 = vunpack.c.l.b16 %v2503
        %v2571 = vunpack.c.h.b16 %v2503
        %v2572 = vunpack.c.l.b16 %v2504
        %v2573 = vunpack.c.h.b16 %v2504
        %v2574 = vunpack.c.l.b16 %v2505
        %v2575 = vunpack.c.h.b16 %v2505
        %v2576 = vunpack.c.l.b16 %v2506
        %v2577 = vunpack.c.h.b16 %v2506
        %v2578 = vunpack.c.l.b16 %v2507
        %v2579 = vunpack.c.h.b16 %v2507
        %v2580 = vpack.c.b16 %v2532, %v2532
        %v2581 = vpack.c.b16 %v2533, %v2533
        %v2582 = vpack.c.b16 %v2534, %v2534
        %v2583 = vpack.c.b16 %v2535, %v2535
        %v2584 = vpack.c.b16 %v2536, %v2536
        %v2585 = vpack.c.b16 %v2537, %v2537
        %v2586 = vpack.c.b16 %v2538, %v2538
        %v2587 = vpack.c.b16 %v2539, %v2539
        %v2588 = vpack.c.b16 %v2540, %v2540
        %v2589 = vpack.c.b16 %v2541, %v2541
        %v2590 = vpack.c.b16 %v2542, %v2542
        %v2591 = vpack.c.b16 %v2543, %v2543
        %v2592 = vpack.c.b16 %v2544, %v2544
        %v2593 = vpack.c.b16 %v2545, %v2545
        %v2594 = vpack.c.b16 %v2546, %v2546
        %v2595 = vpack.c.b16 %v2547, %v2547
        %v2596 = vpack.c.b16 %v2548, %v2548
        %v2597 = vpack.c.b16 %v2549, %v2549
        %v2598 = vpack.c.b16 %v2550, %v2550
        %v2599 = vpack.c.b16 %v2551, %v2551
        %v2600 = vpack.c.b16 %v2552, %v2552
        %v2601 = vpack.c.b16 %v2553, %v2553
        %v2602 = vpack.c.b16 %v2554, %v2554
        %v2603 = vpack.c.b16 %v2555, %v2555
        %v2604 = vpack.c.b16 %v2556, %v2556
        %v2605 = vpack.c.b16 %v2557, %v2557
        %v2606 = vpack.c.b16 %v2558, %v2558
        %v2607 = vpack.c.b16 %v2559, %v2559
        %v2608 = vpack.c.b16 %v2560, %v2560
        %v2609 = vpack.c.b16 %v2561, %v2561
        %v2610 = vpack.c.b16 %v2562, %v2562
        %v2611 = vpack.c.b16 %v2563, %v2563
        %v2612 = vpack.c.b16 %v2564, %v2564
        %v2613 = vpack.c.b16 %v2565, %v2565
        %v2614 = vpack.c.b16 %v2566, %v2566
        %v2615 = vpack.c.b16 %v2567, %v2567
        %v2616 = vpack.c.b16 %v2568, %v2568
        %v2617 = vpack.c.b16 %v2569, %v2569
        %v2618 = vpack.c.b16 %v2570, %v2570
        %v2619 = vpack.c.b16 %v2571, %v2571
        %v2620 = vpack.c.b16 %v2572, %v2572
        %v2621 = vpack.c.b16 %v2573, %v2573
        %v2622 = vpack.c.b16 %v2574, %v2574
        %v2623 = vpack.c.b16 %v2575, %v2575
        %v2624 = vpack.c.b16 %v2576, %v2576
        %v2625 = vpack.c.b16 %v2577, %v2577
        %v2626 = vpack.c.b16 %v2578, %v2578
        %v2627 = vpack.c.b16 %v2579, %v2579
        %2676 = vst [vmem:[#allocation3 + $0x14] sm:$0xf] %v2580
        %2677 = vst [vmem:[#allocation3 + $0x38] sm:$0xf] %v2581
        %2678 = vst [vmem:[#allocation3 + $0x5c] sm:$0xf] %v2582
        %2679 = vst [vmem:[#allocation3 + $0x80] sm:$0xf] %v2583
        %2680 = vst [vmem:[#allocation3 + $0xa4] sm:$0xf] %v2584
        %2681 = vst [vmem:[#allocation3 + $0xc8] sm:$0xf] %v2585
        %2682 = vst [vmem:[#allocation3 + $0xec] sm:$0xf] %v2586
        %2683 = vst [vmem:[#allocation3 + $0x110] sm:$0xf] %v2587
        %2684 = vst [vmem:[#allocation3 + $0x134] sm:$0xf] %v2588
        %2685 = vst [vmem:[#allocation3 + $0x158] sm:$0xf] %v2589
        %2686 = vst [vmem:[#allocation3 + $0x17c] sm:$0xf] %v2590
        %2687 = vst [vmem:[#allocation3 + $0x1a0] sm:$0xf] %v2591
        %2688 = vst [vmem:[#allocation3 + $0x1c4] sm:$0xf] %v2592
        %2689 = vst [vmem:[#allocation3 + $0x1e8] sm:$0xf] %v2593
        %2690 = vst [vmem:[#allocation3 + $0x20c] sm:$0xf] %v2594
        %2691 = vst [vmem:[#allocation3 + $0x230] sm:$0xf] %v2595
        %2692 = vst [vmem:[#allocation3 + $0x254] sm:$0xf] %v2596
        %2693 = vst [vmem:[#allocation3 + $0x278] sm:$0xf] %v2597
        %2694 = vst [vmem:[#allocation3 + $0x29c] sm:$0xf] %v2598
        %2695 = vst [vmem:[#allocation3 + $0x2c0] sm:$0xf] %v2599
        %2696 = vst [vmem:[#allocation3 + $0x2e4] sm:$0xf] %v2600
        %2697 = vst [vmem:[#allocation3 + $0x308] sm:$0xf] %v2601
        %2698 = vst [vmem:[#allocation3 + $0x32c] sm:$0xf] %v2602
        %2699 = vst [vmem:[#allocation3 + $0x350] sm:$0xf] %v2603
        %2700 = vst [vmem:[#allocation3 + $0x374] sm:$0xf] %v2604
        %2701 = vst [vmem:[#allocation3 + $0x398] sm:$0xf] %v2605
        %2702 = vst [vmem:[#allocation3 + $0x3bc] sm:$0xf] %v2606
        %2703 = vst [vmem:[#allocation3 + $0x3e0] sm:$0xf] %v2607
        %2704 = vst [vmem:[#allocation3 + $0x404] sm:$0xf] %v2608
        %2705 = vst [vmem:[#allocation3 + $0x428] sm:$0xf] %v2609
        %2706 = vst [vmem:[#allocation3 + $0x44c] sm:$0xf] %v2610
        %2707 = vst [vmem:[#allocation3 + $0x470] sm:$0xf] %v2611
        %2708 = vst [vmem:[#allocation3 + $0x494] sm:$0xf] %v2612
        %2709 = vst [vmem:[#allocation3 + $0x4b8] sm:$0xf] %v2613
        %2710 = vst [vmem:[#allocation3 + $0x4dc] sm:$0xf] %v2614
        %2711 = vst [vmem:[#allocation3 + $0x500] sm:$0xf] %v2615
        %2712 = vst [vmem:[#allocation3 + $0x524] sm:$0xf] %v2616
        %2713 = vst [vmem:[#allocation3 + $0x548] sm:$0xf] %v2617
        %2714 = vst [vmem:[#allocation3 + $0x56c] sm:$0xf] %v2618
        %2715 = vst [vmem:[#allocation3 + $0x590] sm:$0xf] %v2619
        %2716 = vst [vmem:[#allocation3 + $0x5b4] sm:$0xf] %v2620
        %2717 = vst [vmem:[#allocation3 + $0x5d8] sm:$0xf] %v2621
        %2718 = vst [vmem:[#allocation3 + $0x5fc] sm:$0xf] %v2622
        %2719 = vst [vmem:[#allocation3 + $0x620] sm:$0xf] %v2623
        %2720 = vst [vmem:[#allocation3 + $0x644] sm:$0xf] %v2624
        %2721 = vst [vmem:[#allocation3 + $0x668] sm:$0xf] %v2625
        %2722 = vst [vmem:[#allocation3 + $0x68c] sm:$0xf] %v2626
        %2723 = vst [vmem:[#allocation3 + $0x6b0] sm:$0xf] %v2627
        %s2724 = scalar_lea.vmem [#allocation2], 48
        %v2725 = vld [vmem:[%s2724] sm:$0xff]
        %v2726 = vld [vmem:[%s2724 + $0x8] sm:$0xff]
        %v2727 = vld [vmem:[%s2724 + $0x10] sm:$0xff]
        %v2728 = vld [vmem:[%s2724 + $0x18] sm:$0xff]
        %v2729 = vld [vmem:[%s2724 + $0x20] sm:$0xff]
        %v2730 = vld [vmem:[%s2724 + $0x28] sm:$0xff]
        %v2731 = vld [vmem:[%s2724 + $0x30] sm:$0xff]
        %v2732 = vld [vmem:[%s2724 + $0x38] sm:$0xff]
        %v2733 = vld [vmem:[%s2724 + $0x40] sm:$0xff]
        %v2734 = vld [vmem:[%s2724 + $0x48] sm:$0xff]
        %v2735 = vld [vmem:[%s2724 + $0x50] sm:$0xff]
        %v2736 = vld [vmem:[%s2724 + $0x58] sm:$0xff]
        %v2737 = vld [vmem:[%s2724 + $0x60] sm:$0xff]
        %v2738 = vld [vmem:[%s2724 + $0x68] sm:$0xff]
        %v2739 = vld [vmem:[%s2724 + $0x70] sm:$0xff]
        %v2740 = vld [vmem:[%s2724 + $0x78] sm:$0xff]
        %v2741 = vld [vmem:[%s2724 + $0x80] sm:$0xff]
        %v2742 = vld [vmem:[%s2724 + $0x88] sm:$0xff]
        %v2743 = vld [vmem:[%s2724 + $0x90] sm:$0xff]
        %v2744 = vld [vmem:[%s2724 + $0x98] sm:$0xff]
        %v2745 = vld [vmem:[%s2724 + $0xa0] sm:$0xff]
        %v2746 = vld [vmem:[%s2724 + $0xa8] sm:$0xff]
        %v2747 = vld [vmem:[%s2724 + $0xb0] sm:$0xff]
        %v2748 = vld [vmem:[%s2724 + $0xb8] sm:$0xff]
        %v2749 = vld [vmem:[%s2724 + $0xc0] sm:$0xff]
        %v2750 = vld [vmem:[%s2724 + $0xc8] sm:$0xff]
        %v2751 = vld [vmem:[%s2724 + $0xd0] sm:$0xff]
        %v2752 = vld [vmem:[%s2724 + $0xd8] sm:$0xff]
        %v2753 = vld [vmem:[%s2724 + $0xe0] sm:$0xff]
        %v2754 = vld [vmem:[%s2724 + $0xe8] sm:$0xff]
        %v2755 = vld [vmem:[%s2724 + $0xf0] sm:$0xff]
        %v2756 = vld [vmem:[%s2724 + $0xf8] sm:$0xff]
        %v2757 = vld [vmem:[%s2724 + $0x100] sm:$0xff]
        %v2758 = vld [vmem:[%s2724 + $0x108] sm:$0xff]
        %v2759 = vld [vmem:[%s2724 + $0x110] sm:$0xff]
        %v2760 = vld [vmem:[%s2724 + $0x118] sm:$0xff]
        %v2761 = vld [vmem:[%s2724 + $0x120] sm:$0xff]
        %v2762 = vld [vmem:[%s2724 + $0x128] sm:$0xff]
        %v2763 = vld [vmem:[%s2724 + $0x130] sm:$0xff]
        %v2764 = vld [vmem:[%s2724 + $0x138] sm:$0xff]
        %v2765 = vld [vmem:[%s2724 + $0x140] sm:$0xff]
        %v2766 = vld [vmem:[%s2724 + $0x148] sm:$0xff]
        %v2767 = vld [vmem:[%s2724 + $0x150] sm:$0xff]
        %v2768 = vld [vmem:[%s2724 + $0x158] sm:$0xff]
        %v2769 = vld [vmem:[%s2724 + $0x160] sm:$0xff]
        %v2770 = vld [vmem:[%s2724 + $0x168] sm:$0xff]
        %v2771 = vld [vmem:[%s2724 + $0x170] sm:$0xff]
        %v2772 = vld [vmem:[%s2724 + $0x178] sm:$0xff]
        %v2773 = vpack.c.bf16 %v2726, %v2725
        %v2774 = vpack.c.bf16 %v2728, %v2727
        %v2775 = vpack.c.bf16 %v2730, %v2729
        %v2776 = vpack.c.bf16 %v2732, %v2731
        %v2777 = vpack.c.bf16 %v2734, %v2733
        %v2778 = vpack.c.bf16 %v2736, %v2735
        %v2779 = vpack.c.bf16 %v2738, %v2737
        %v2780 = vpack.c.bf16 %v2740, %v2739
        %v2781 = vpack.c.bf16 %v2742, %v2741
        %v2782 = vpack.c.bf16 %v2744, %v2743
        %v2783 = vpack.c.bf16 %v2746, %v2745
        %v2784 = vpack.c.bf16 %v2748, %v2747
        %v2785 = vpack.c.bf16 %v2750, %v2749
        %v2786 = vpack.c.bf16 %v2752, %v2751
        %v2787 = vpack.c.bf16 %v2754, %v2753
        %v2788 = vpack.c.bf16 %v2756, %v2755
        %v2789 = vpack.c.bf16 %v2758, %v2757
        %v2790 = vpack.c.bf16 %v2760, %v2759
        %v2791 = vpack.c.bf16 %v2762, %v2761
        %v2792 = vpack.c.bf16 %v2764, %v2763
        %v2793 = vpack.c.bf16 %v2766, %v2765
        %v2794 = vpack.c.bf16 %v2768, %v2767
        %v2795 = vpack.c.bf16 %v2770, %v2769
        %v2796 = vpack.c.bf16 %v2772, %v2771
        %v2821 = vunpack.c.l.b16 %v2773
        %v2822 = vunpack.c.h.b16 %v2773
        %v2823 = vunpack.c.l.b16 %v2774
        %v2824 = vunpack.c.h.b16 %v2774
        %v2825 = vunpack.c.l.b16 %v2775
        %v2826 = vunpack.c.h.b16 %v2775
        %v2827 = vunpack.c.l.b16 %v2776
        %v2828 = vunpack.c.h.b16 %v2776
        %v2829 = vunpack.c.l.b16 %v2777
        %v2830 = vunpack.c.h.b16 %v2777
        %v2831 = vunpack.c.l.b16 %v2778
        %v2832 = vunpack.c.h.b16 %v2778
        %v2833 = vunpack.c.l.b16 %v2779
        %v2834 = vunpack.c.h.b16 %v2779
        %v2835 = vunpack.c.l.b16 %v2780
        %v2836 = vunpack.c.h.b16 %v2780
        %v2837 = vunpack.c.l.b16 %v2781
        %v2838 = vunpack.c.h.b16 %v2781
        %v2839 = vunpack.c.l.b16 %v2782
        %v2840 = vunpack.c.h.b16 %v2782
        %v2841 = vunpack.c.l.b16 %v2783
        %v2842 = vunpack.c.h.b16 %v2783
        %v2843 = vunpack.c.l.b16 %v2784
        %v2844 = vunpack.c.h.b16 %v2784
        %v2845 = vunpack.c.l.b16 %v2785
        %v2846 = vunpack.c.h.b16 %v2785
        %v2847 = vunpack.c.l.b16 %v2786
        %v2848 = vunpack.c.h.b16 %v2786
        %v2849 = vunpack.c.l.b16 %v2787
        %v2850 = vunpack.c.h.b16 %v2787
        %v2851 = vunpack.c.l.b16 %v2788
        %v2852 = vunpack.c.h.b16 %v2788
        %v2853 = vunpack.c.l.b16 %v2789
        %v2854 = vunpack.c.h.b16 %v2789
        %v2855 = vunpack.c.l.b16 %v2790
        %v2856 = vunpack.c.h.b16 %v2790
        %v2857 = vunpack.c.l.b16 %v2791
        %v2858 = vunpack.c.h.b16 %v2791
        %v2859 = vunpack.c.l.b16 %v2792
        %v2860 = vunpack.c.h.b16 %v2792
        %v2861 = vunpack.c.l.b16 %v2793
        %v2862 = vunpack.c.h.b16 %v2793
        %v2863 = vunpack.c.l.b16 %v2794
        %v2864 = vunpack.c.h.b16 %v2794
        %v2865 = vunpack.c.l.b16 %v2795
        %v2866 = vunpack.c.h.b16 %v2795
        %v2867 = vunpack.c.l.b16 %v2796
        %v2868 = vunpack.c.h.b16 %v2796
        %v2869 = vpack.c.b16 %v2821, %v2821
        %v2870 = vpack.c.b16 %v2822, %v2822
        %v2871 = vpack.c.b16 %v2823, %v2823
        %v2872 = vpack.c.b16 %v2824, %v2824
        %v2873 = vpack.c.b16 %v2825, %v2825
        %v2874 = vpack.c.b16 %v2826, %v2826
        %v2875 = vpack.c.b16 %v2827, %v2827
        %v2876 = vpack.c.b16 %v2828, %v2828
        %v2877 = vpack.c.b16 %v2829, %v2829
        %v2878 = vpack.c.b16 %v2830, %v2830
        %v2879 = vpack.c.b16 %v2831, %v2831
        %v2880 = vpack.c.b16 %v2832, %v2832
        %v2881 = vpack.c.b16 %v2833, %v2833
        %v2882 = vpack.c.b16 %v2834, %v2834
        %v2883 = vpack.c.b16 %v2835, %v2835
        %v2884 = vpack.c.b16 %v2836, %v2836
        %v2885 = vpack.c.b16 %v2837, %v2837
        %v2886 = vpack.c.b16 %v2838, %v2838
        %v2887 = vpack.c.b16 %v2839, %v2839
        %v2888 = vpack.c.b16 %v2840, %v2840
        %v2889 = vpack.c.b16 %v2841, %v2841
        %v2890 = vpack.c.b16 %v2842, %v2842
        %v2891 = vpack.c.b16 %v2843, %v2843
        %v2892 = vpack.c.b16 %v2844, %v2844
        %v2893 = vpack.c.b16 %v2845, %v2845
        %v2894 = vpack.c.b16 %v2846, %v2846
        %v2895 = vpack.c.b16 %v2847, %v2847
        %v2896 = vpack.c.b16 %v2848, %v2848
        %v2897 = vpack.c.b16 %v2849, %v2849
        %v2898 = vpack.c.b16 %v2850, %v2850
        %v2899 = vpack.c.b16 %v2851, %v2851
        %v2900 = vpack.c.b16 %v2852, %v2852
        %v2901 = vpack.c.b16 %v2853, %v2853
        %v2902 = vpack.c.b16 %v2854, %v2854
        %v2903 = vpack.c.b16 %v2855, %v2855
        %v2904 = vpack.c.b16 %v2856, %v2856
        %v2905 = vpack.c.b16 %v2857, %v2857
        %v2906 = vpack.c.b16 %v2858, %v2858
        %v2907 = vpack.c.b16 %v2859, %v2859
        %v2908 = vpack.c.b16 %v2860, %v2860
        %v2909 = vpack.c.b16 %v2861, %v2861
        %v2910 = vpack.c.b16 %v2862, %v2862
        %v2911 = vpack.c.b16 %v2863, %v2863
        %v2912 = vpack.c.b16 %v2864, %v2864
        %v2913 = vpack.c.b16 %v2865, %v2865
        %v2914 = vpack.c.b16 %v2866, %v2866
        %v2915 = vpack.c.b16 %v2867, %v2867
        %v2916 = vpack.c.b16 %v2868, %v2868
        %2965 = vst [vmem:[#allocation3 + $0x18] sm:$0xf] %v2869
        %2966 = vst [vmem:[#allocation3 + $0x3c] sm:$0xf] %v2870
        %2967 = vst [vmem:[#allocation3 + $0x60] sm:$0xf] %v2871
        %2968 = vst [vmem:[#allocation3 + $0x84] sm:$0xf] %v2872
        %2969 = vst [vmem:[#allocation3 + $0xa8] sm:$0xf] %v2873
        %2970 = vst [vmem:[#allocation3 + $0xcc] sm:$0xf] %v2874
        %2971 = vst [vmem:[#allocation3 + $0xf0] sm:$0xf] %v2875
        %2972 = vst [vmem:[#allocation3 + $0x114] sm:$0xf] %v2876
        %2973 = vst [vmem:[#allocation3 + $0x138] sm:$0xf] %v2877
        %2974 = vst [vmem:[#allocation3 + $0x15c] sm:$0xf] %v2878
        %2975 = vst [vmem:[#allocation3 + $0x180] sm:$0xf] %v2879
        %2976 = vst [vmem:[#allocation3 + $0x1a4] sm:$0xf] %v2880
        %2977 = vst [vmem:[#allocation3 + $0x1c8] sm:$0xf] %v2881
        %2978 = vst [vmem:[#allocation3 + $0x1ec] sm:$0xf] %v2882
        %2979 = vst [vmem:[#allocation3 + $0x210] sm:$0xf] %v2883
        %2980 = vst [vmem:[#allocation3 + $0x234] sm:$0xf] %v2884
        %2981 = vst [vmem:[#allocation3 + $0x258] sm:$0xf] %v2885
        %2982 = vst [vmem:[#allocation3 + $0x27c] sm:$0xf] %v2886
        %2983 = vst [vmem:[#allocation3 + $0x2a0] sm:$0xf] %v2887
        %2984 = vst [vmem:[#allocation3 + $0x2c4] sm:$0xf] %v2888
        %2985 = vst [vmem:[#allocation3 + $0x2e8] sm:$0xf] %v2889
        %2986 = vst [vmem:[#allocation3 + $0x30c] sm:$0xf] %v2890
        %2987 = vst [vmem:[#allocation3 + $0x330] sm:$0xf] %v2891
        %2988 = vst [vmem:[#allocation3 + $0x354] sm:$0xf] %v2892
        %2989 = vst [vmem:[#allocation3 + $0x378] sm:$0xf] %v2893
        %2990 = vst [vmem:[#allocation3 + $0x39c] sm:$0xf] %v2894
        %2991 = vst [vmem:[#allocation3 + $0x3c0] sm:$0xf] %v2895
        %2992 = vst [vmem:[#allocation3 + $0x3e4] sm:$0xf] %v2896
        %2993 = vst [vmem:[#allocation3 + $0x408] sm:$0xf] %v2897
        %2994 = vst [vmem:[#allocation3 + $0x42c] sm:$0xf] %v2898
        %2995 = vst [vmem:[#allocation3 + $0x450] sm:$0xf] %v2899
        %2996 = vst [vmem:[#allocation3 + $0x474] sm:$0xf] %v2900
        %2997 = vst [vmem:[#allocation3 + $0x498] sm:$0xf] %v2901
        %2998 = vst [vmem:[#allocation3 + $0x4bc] sm:$0xf] %v2902
        %2999 = vst [vmem:[#allocation3 + $0x4e0] sm:$0xf] %v2903
        %3000 = vst [vmem:[#allocation3 + $0x504] sm:$0xf] %v2904
        %3001 = vst [vmem:[#allocation3 + $0x528] sm:$0xf] %v2905
        %3002 = vst [vmem:[#allocation3 + $0x54c] sm:$0xf] %v2906
        %3003 = vst [vmem:[#allocation3 + $0x570] sm:$0xf] %v2907
        %3004 = vst [vmem:[#allocation3 + $0x594] sm:$0xf] %v2908
        %3005 = vst [vmem:[#allocation3 + $0x5b8] sm:$0xf] %v2909
        %3006 = vst [vmem:[#allocation3 + $0x5dc] sm:$0xf] %v2910
        %3007 = vst [vmem:[#allocation3 + $0x600] sm:$0xf] %v2911
        %3008 = vst [vmem:[#allocation3 + $0x624] sm:$0xf] %v2912
        %3009 = vst [vmem:[#allocation3 + $0x648] sm:$0xf] %v2913
        %3010 = vst [vmem:[#allocation3 + $0x66c] sm:$0xf] %v2914
        %3011 = vst [vmem:[#allocation3 + $0x690] sm:$0xf] %v2915
        %3012 = vst [vmem:[#allocation3 + $0x6b4] sm:$0xf] %v2916
        %v3013 = vrot.slane %v2725, 1
        %v3014 = vrot.slane %v2726, 1
        %v3015 = vrot.slane %v2727, 1
        %v3016 = vrot.slane %v2728, 1
        %v3017 = vrot.slane %v2729, 1
        %v3018 = vrot.slane %v2730, 1
        %v3019 = vrot.slane %v2731, 1
        %v3020 = vrot.slane %v2732, 1
        %v3021 = vrot.slane %v2733, 1
        %v3022 = vrot.slane %v2734, 1
        %v3023 = vrot.slane %v2735, 1
        %v3024 = vrot.slane %v2736, 1
        %v3025 = vrot.slane %v2737, 1
        %v3026 = vrot.slane %v2738, 1
        %v3027 = vrot.slane %v2739, 1
        %v3028 = vrot.slane %v2740, 1
        %v3029 = vrot.slane %v2741, 1
        %v3030 = vrot.slane %v2742, 1
        %v3031 = vrot.slane %v2743, 1
        %v3032 = vrot.slane %v2744, 1
        %v3033 = vrot.slane %v2745, 1
        %v3034 = vrot.slane %v2746, 1
        %v3035 = vrot.slane %v2747, 1
        %v3036 = vrot.slane %v2748, 1
        %v3037 = vrot.slane %v2749, 1
        %v3038 = vrot.slane %v2750, 1
        %v3039 = vrot.slane %v2751, 1
        %v3040 = vrot.slane %v2752, 1
        %v3041 = vrot.slane %v2753, 1
        %v3042 = vrot.slane %v2754, 1
        %v3043 = vrot.slane %v2755, 1
        %v3044 = vrot.slane %v2756, 1
        %v3045 = vrot.slane %v2757, 1
        %v3046 = vrot.slane %v2758, 1
        %v3047 = vrot.slane %v2759, 1
        %v3048 = vrot.slane %v2760, 1
        %v3049 = vrot.slane %v2761, 1
        %v3050 = vrot.slane %v2762, 1
        %v3051 = vrot.slane %v2763, 1
        %v3052 = vrot.slane %v2764, 1
        %v3053 = vrot.slane %v2765, 1
        %v3054 = vrot.slane %v2766, 1
        %v3055 = vrot.slane %v2767, 1
        %v3056 = vrot.slane %v2768, 1
        %v3057 = vrot.slane %v2769, 1
        %v3058 = vrot.slane %v2770, 1
        %v3059 = vrot.slane %v2771, 1
        %v3060 = vrot.slane %v2772, 1
        %v3061 = vsel %vm1138, %v3059, %v3060
        %v3062 = vsel %vm1138, %v3058, %v3059
        %v3063 = vsel %vm1138, %v3057, %v3058
        %v3064 = vsel %vm1138, %v3056, %v3057
        %v3065 = vsel %vm1138, %v3055, %v3056
        %v3066 = vsel %vm1138, %v3054, %v3055
        %v3067 = vsel %vm1138, %v3053, %v3054
        %v3068 = vsel %vm1138, %v3052, %v3053
        %v3069 = vsel %vm1138, %v3051, %v3052
        %v3070 = vsel %vm1138, %v3050, %v3051
        %v3071 = vsel %vm1138, %v3049, %v3050
        %v3072 = vsel %vm1138, %v3048, %v3049
        %v3073 = vsel %vm1138, %v3047, %v3048
        %v3074 = vsel %vm1138, %v3046, %v3047
        %v3075 = vsel %vm1138, %v3045, %v3046
        %v3076 = vsel %vm1138, %v3044, %v3045
        %v3077 = vsel %vm1138, %v3043, %v3044
        %v3078 = vsel %vm1138, %v3042, %v3043
        %v3079 = vsel %vm1138, %v3041, %v3042
        %v3080 = vsel %vm1138, %v3040, %v3041
        %v3081 = vsel %vm1138, %v3039, %v3040
        %v3082 = vsel %vm1138, %v3038, %v3039
        %v3083 = vsel %vm1138, %v3037, %v3038
        %v3084 = vsel %vm1138, %v3036, %v3037
        %v3085 = vsel %vm1138, %v3035, %v3036
        %v3086 = vsel %vm1138, %v3034, %v3035
        %v3087 = vsel %vm1138, %v3033, %v3034
        %v3088 = vsel %vm1138, %v3032, %v3033
        %v3089 = vsel %vm1138, %v3031, %v3032
        %v3090 = vsel %vm1138, %v3030, %v3031
        %v3091 = vsel %vm1138, %v3029, %v3030
        %v3092 = vsel %vm1138, %v3028, %v3029
        %v3093 = vsel %vm1138, %v3027, %v3028
        %v3094 = vsel %vm1138, %v3026, %v3027
        %v3095 = vsel %vm1138, %v3025, %v3026
        %v3096 = vsel %vm1138, %v3024, %v3025
        %v3097 = vsel %vm1138, %v3023, %v3024
        %v3098 = vsel %vm1138, %v3022, %v3023
        %v3099 = vsel %vm1138, %v3021, %v3022
        %v3100 = vsel %vm1138, %v3020, %v3021
        %v3101 = vsel %vm1138, %v3019, %v3020
        %v3102 = vsel %vm1138, %v3018, %v3019
        %v3103 = vsel %vm1138, %v3017, %v3018
        %v3104 = vsel %vm1138, %v3016, %v3017
        %v3105 = vsel %vm1138, %v3015, %v3016
        %v3106 = vsel %vm1138, %v3014, %v3015
        %v3107 = vsel %vm1138, %v3013, %v3014
        %v3108 = vsel %vm1138, %v3060, %v3013
        %v3109 = vpack.c.bf16 %v3106, %v3107
        %v3110 = vpack.c.bf16 %v3104, %v3105
        %v3111 = vpack.c.bf16 %v3102, %v3103
        %v3112 = vpack.c.bf16 %v3100, %v3101
        %v3113 = vpack.c.bf16 %v3098, %v3099
        %v3114 = vpack.c.bf16 %v3096, %v3097
        %v3115 = vpack.c.bf16 %v3094, %v3095
        %v3116 = vpack.c.bf16 %v3092, %v3093
        %v3117 = vpack.c.bf16 %v3090, %v3091
        %v3118 = vpack.c.bf16 %v3088, %v3089
        %v3119 = vpack.c.bf16 %v3086, %v3087
        %v3120 = vpack.c.bf16 %v3084, %v3085
        %v3121 = vpack.c.bf16 %v3082, %v3083
        %v3122 = vpack.c.bf16 %v3080, %v3081
        %v3123 = vpack.c.bf16 %v3078, %v3079
        %v3124 = vpack.c.bf16 %v3076, %v3077
        %v3125 = vpack.c.bf16 %v3074, %v3075
        %v3126 = vpack.c.bf16 %v3072, %v3073
        %v3127 = vpack.c.bf16 %v3070, %v3071
        %v3128 = vpack.c.bf16 %v3068, %v3069
        %v3129 = vpack.c.bf16 %v3066, %v3067
        %v3130 = vpack.c.bf16 %v3064, %v3065
        %v3131 = vpack.c.bf16 %v3062, %v3063
        %v3132 = vpack.c.bf16 %v3108, %v3061
        %v3157 = vunpack.c.l.b16 %v3109
        %v3158 = vunpack.c.h.b16 %v3109
        %v3159 = vunpack.c.l.b16 %v3110
        %v3160 = vunpack.c.h.b16 %v3110
        %v3161 = vunpack.c.l.b16 %v3111
        %v3162 = vunpack.c.h.b16 %v3111
        %v3163 = vunpack.c.l.b16 %v3112
        %v3164 = vunpack.c.h.b16 %v3112
        %v3165 = vunpack.c.l.b16 %v3113
        %v3166 = vunpack.c.h.b16 %v3113
        %v3167 = vunpack.c.l.b16 %v3114
        %v3168 = vunpack.c.h.b16 %v3114
        %v3169 = vunpack.c.l.b16 %v3115
        %v3170 = vunpack.c.h.b16 %v3115
        %v3171 = vunpack.c.l.b16 %v3116
        %v3172 = vunpack.c.h.b16 %v3116
        %v3173 = vunpack.c.l.b16 %v3117
        %v3174 = vunpack.c.h.b16 %v3117
        %v3175 = vunpack.c.l.b16 %v3118
        %v3176 = vunpack.c.h.b16 %v3118
        %v3177 = vunpack.c.l.b16 %v3119
        %v3178 = vunpack.c.h.b16 %v3119
        %v3179 = vunpack.c.l.b16 %v3120
        %v3180 = vunpack.c.h.b16 %v3120
        %v3181 = vunpack.c.l.b16 %v3121
        %v3182 = vunpack.c.h.b16 %v3121
        %v3183 = vunpack.c.l.b16 %v3122
        %v3184 = vunpack.c.h.b16 %v3122
        %v3185 = vunpack.c.l.b16 %v3123
        %v3186 = vunpack.c.h.b16 %v3123
        %v3187 = vunpack.c.l.b16 %v3124
        %v3188 = vunpack.c.h.b16 %v3124
        %v3189 = vunpack.c.l.b16 %v3125
        %v3190 = vunpack.c.h.b16 %v3125
        %v3191 = vunpack.c.l.b16 %v3126
        %v3192 = vunpack.c.h.b16 %v3126
        %v3193 = vunpack.c.l.b16 %v3127
        %v3194 = vunpack.c.h.b16 %v3127
        %v3195 = vunpack.c.l.b16 %v3128
        %v3196 = vunpack.c.h.b16 %v3128
        %v3197 = vunpack.c.l.b16 %v3129
        %v3198 = vunpack.c.h.b16 %v3129
        %v3199 = vunpack.c.l.b16 %v3130
        %v3200 = vunpack.c.h.b16 %v3130
        %v3201 = vunpack.c.l.b16 %v3131
        %v3202 = vunpack.c.h.b16 %v3131
        %v3203 = vunpack.c.l.b16 %v3132
        %v3204 = vunpack.c.h.b16 %v3132
        %v3205 = vpack.c.b16 %v3157, %v3157
        %v3206 = vpack.c.b16 %v3158, %v3158
        %v3207 = vpack.c.b16 %v3159, %v3159
        %v3208 = vpack.c.b16 %v3160, %v3160
        %v3209 = vpack.c.b16 %v3161, %v3161
        %v3210 = vpack.c.b16 %v3162, %v3162
        %v3211 = vpack.c.b16 %v3163, %v3163
        %v3212 = vpack.c.b16 %v3164, %v3164
        %v3213 = vpack.c.b16 %v3165, %v3165
        %v3214 = vpack.c.b16 %v3166, %v3166
        %v3215 = vpack.c.b16 %v3167, %v3167
        %v3216 = vpack.c.b16 %v3168, %v3168
        %v3217 = vpack.c.b16 %v3169, %v3169
        %v3218 = vpack.c.b16 %v3170, %v3170
        %v3219 = vpack.c.b16 %v3171, %v3171
        %v3220 = vpack.c.b16 %v3172, %v3172
        %v3221 = vpack.c.b16 %v3173, %v3173
        %v3222 = vpack.c.b16 %v3174, %v3174
        %v3223 = vpack.c.b16 %v3175, %v3175
        %v3224 = vpack.c.b16 %v3176, %v3176
        %v3225 = vpack.c.b16 %v3177, %v3177
        %v3226 = vpack.c.b16 %v3178, %v3178
        %v3227 = vpack.c.b16 %v3179, %v3179
        %v3228 = vpack.c.b16 %v3180, %v3180
        %v3229 = vpack.c.b16 %v3181, %v3181
        %v3230 = vpack.c.b16 %v3182, %v3182
        %v3231 = vpack.c.b16 %v3183, %v3183
        %v3232 = vpack.c.b16 %v3184, %v3184
        %v3233 = vpack.c.b16 %v3185, %v3185
        %v3234 = vpack.c.b16 %v3186, %v3186
        %v3235 = vpack.c.b16 %v3187, %v3187
        %v3236 = vpack.c.b16 %v3188, %v3188
        %v3237 = vpack.c.b16 %v3189, %v3189
        %v3238 = vpack.c.b16 %v3190, %v3190
        %v3239 = vpack.c.b16 %v3191, %v3191
        %v3240 = vpack.c.b16 %v3192, %v3192
        %v3241 = vpack.c.b16 %v3193, %v3193
        %v3242 = vpack.c.b16 %v3194, %v3194
        %v3243 = vpack.c.b16 %v3195, %v3195
        %v3244 = vpack.c.b16 %v3196, %v3196
        %v3245 = vpack.c.b16 %v3197, %v3197
        %v3246 = vpack.c.b16 %v3198, %v3198
        %v3247 = vpack.c.b16 %v3199, %v3199
        %v3248 = vpack.c.b16 %v3200, %v3200
        %v3249 = vpack.c.b16 %v3201, %v3201
        %v3250 = vpack.c.b16 %v3202, %v3202
        %v3251 = vpack.c.b16 %v3203, %v3203
        %v3252 = vpack.c.b16 %v3204, %v3204
        %3301 = vst [vmem:[#allocation3 + $0x1c] sm:$0xf] %v3205
        %3302 = vst [vmem:[#allocation3 + $0x40] sm:$0xf] %v3206
        %3303 = vst [vmem:[#allocation3 + $0x64] sm:$0xf] %v3207
        %3304 = vst [vmem:[#allocation3 + $0x88] sm:$0xf] %v3208
        %3305 = vst [vmem:[#allocation3 + $0xac] sm:$0xf] %v3209
        %3306 = vst [vmem:[#allocation3 + $0xd0] sm:$0xf] %v3210
        %3307 = vst [vmem:[#allocation3 + $0xf4] sm:$0xf] %v3211
        %3308 = vst [vmem:[#allocation3 + $0x118] sm:$0xf] %v3212
        %3309 = vst [vmem:[#allocation3 + $0x13c] sm:$0xf] %v3213
        %3310 = vst [vmem:[#allocation3 + $0x160] sm:$0xf] %v3214
        %3311 = vst [vmem:[#allocation3 + $0x184] sm:$0xf] %v3215
        %3312 = vst [vmem:[#allocation3 + $0x1a8] sm:$0xf] %v3216
        %3313 = vst [vmem:[#allocation3 + $0x1cc] sm:$0xf] %v3217
        %3314 = vst [vmem:[#allocation3 + $0x1f0] sm:$0xf] %v3218
        %3315 = vst [vmem:[#allocation3 + $0x214] sm:$0xf] %v3219
        %3316 = vst [vmem:[#allocation3 + $0x238] sm:$0xf] %v3220
        %3317 = vst [vmem:[#allocation3 + $0x25c] sm:$0xf] %v3221
        %3318 = vst [vmem:[#allocation3 + $0x280] sm:$0xf] %v3222
        %3319 = vst [vmem:[#allocation3 + $0x2a4] sm:$0xf] %v3223
        %3320 = vst [vmem:[#allocation3 + $0x2c8] sm:$0xf] %v3224
        %3321 = vst [vmem:[#allocation3 + $0x2ec] sm:$0xf] %v3225
        %3322 = vst [vmem:[#allocation3 + $0x310] sm:$0xf] %v3226
        %3323 = vst [vmem:[#allocation3 + $0x334] sm:$0xf] %v3227
        %3324 = vst [vmem:[#allocation3 + $0x358] sm:$0xf] %v3228
        %3325 = vst [vmem:[#allocation3 + $0x37c] sm:$0xf] %v3229
        %3326 = vst [vmem:[#allocation3 + $0x3a0] sm:$0xf] %v3230
        %3327 = vst [vmem:[#allocation3 + $0x3c4] sm:$0xf] %v3231
        %3328 = vst [vmem:[#allocation3 + $0x3e8] sm:$0xf] %v3232
        %3329 = vst [vmem:[#allocation3 + $0x40c] sm:$0xf] %v3233
        %3330 = vst [vmem:[#allocation3 + $0x430] sm:$0xf] %v3234
        %3331 = vst [vmem:[#allocation3 + $0x454] sm:$0xf] %v3235
        %3332 = vst [vmem:[#allocation3 + $0x478] sm:$0xf] %v3236
        %3333 = vst [vmem:[#allocation3 + $0x49c] sm:$0xf] %v3237
        %3334 = vst [vmem:[#allocation3 + $0x4c0] sm:$0xf] %v3238
        %3335 = vst [vmem:[#allocation3 + $0x4e4] sm:$0xf] %v3239
        %3336 = vst [vmem:[#allocation3 + $0x508] sm:$0xf] %v3240
        %3337 = vst [vmem:[#allocation3 + $0x52c] sm:$0xf] %v3241
        %3338 = vst [vmem:[#allocation3 + $0x550] sm:$0xf] %v3242
        %3339 = vst [vmem:[#allocation3 + $0x574] sm:$0xf] %v3243
        %3340 = vst [vmem:[#allocation3 + $0x598] sm:$0xf] %v3244
        %3341 = vst [vmem:[#allocation3 + $0x5bc] sm:$0xf] %v3245
        %3342 = vst [vmem:[#allocation3 + $0x5e0] sm:$0xf] %v3246
        %3343 = vst [vmem:[#allocation3 + $0x604] sm:$0xf] %v3247
        %3344 = vst [vmem:[#allocation3 + $0x628] sm:$0xf] %v3248
        %3345 = vst [vmem:[#allocation3 + $0x64c] sm:$0xf] %v3249
        %3346 = vst [vmem:[#allocation3 + $0x670] sm:$0xf] %v3250
        %3347 = vst [vmem:[#allocation3 + $0x694] sm:$0xf] %v3251
        %3348 = vst [vmem:[#allocation3 + $0x6b8] sm:$0xf] %v3252
        %v3349 = vrot.slane %v2725, 2
        %v3350 = vrot.slane %v2726, 2
        %v3351 = vrot.slane %v2727, 2
        %v3352 = vrot.slane %v2728, 2
        %v3353 = vrot.slane %v2729, 2
        %v3354 = vrot.slane %v2730, 2
        %v3355 = vrot.slane %v2731, 2
        %v3356 = vrot.slane %v2732, 2
        %v3357 = vrot.slane %v2733, 2
        %v3358 = vrot.slane %v2734, 2
        %v3359 = vrot.slane %v2735, 2
        %v3360 = vrot.slane %v2736, 2
        %v3361 = vrot.slane %v2737, 2
        %v3362 = vrot.slane %v2738, 2
        %v3363 = vrot.slane %v2739, 2
        %v3364 = vrot.slane %v2740, 2
        %v3365 = vrot.slane %v2741, 2
        %v3366 = vrot.slane %v2742, 2
        %v3367 = vrot.slane %v2743, 2
        %v3368 = vrot.slane %v2744, 2
        %v3369 = vrot.slane %v2745, 2
        %v3370 = vrot.slane %v2746, 2
        %v3371 = vrot.slane %v2747, 2
        %v3372 = vrot.slane %v2748, 2
        %v3373 = vrot.slane %v2749, 2
        %v3374 = vrot.slane %v2750, 2
        %v3375 = vrot.slane %v2751, 2
        %v3376 = vrot.slane %v2752, 2
        %v3377 = vrot.slane %v2753, 2
        %v3378 = vrot.slane %v2754, 2
        %v3379 = vrot.slane %v2755, 2
        %v3380 = vrot.slane %v2756, 2
        %v3381 = vrot.slane %v2757, 2
        %v3382 = vrot.slane %v2758, 2
        %v3383 = vrot.slane %v2759, 2
        %v3384 = vrot.slane %v2760, 2
        %v3385 = vrot.slane %v2761, 2
        %v3386 = vrot.slane %v2762, 2
        %v3387 = vrot.slane %v2763, 2
        %v3388 = vrot.slane %v2764, 2
        %v3389 = vrot.slane %v2765, 2
        %v3390 = vrot.slane %v2766, 2
        %v3391 = vrot.slane %v2767, 2
        %v3392 = vrot.slane %v2768, 2
        %v3393 = vrot.slane %v2769, 2
        %v3394 = vrot.slane %v2770, 2
        %v3395 = vrot.slane %v2771, 2
        %v3396 = vrot.slane %v2772, 2
        %v3397 = vsel %vm1475, %v3395, %v3396
        %v3398 = vsel %vm1475, %v3394, %v3395
        %v3399 = vsel %vm1475, %v3393, %v3394
        %v3400 = vsel %vm1475, %v3392, %v3393
        %v3401 = vsel %vm1475, %v3391, %v3392
        %v3402 = vsel %vm1475, %v3390, %v3391
        %v3403 = vsel %vm1475, %v3389, %v3390
        %v3404 = vsel %vm1475, %v3388, %v3389
        %v3405 = vsel %vm1475, %v3387, %v3388
        %v3406 = vsel %vm1475, %v3386, %v3387
        %v3407 = vsel %vm1475, %v3385, %v3386
        %v3408 = vsel %vm1475, %v3384, %v3385
        %v3409 = vsel %vm1475, %v3383, %v3384
        %v3410 = vsel %vm1475, %v3382, %v3383
        %v3411 = vsel %vm1475, %v3381, %v3382
        %v3412 = vsel %vm1475, %v3380, %v3381
        %v3413 = vsel %vm1475, %v3379, %v3380
        %v3414 = vsel %vm1475, %v3378, %v3379
        %v3415 = vsel %vm1475, %v3377, %v3378
        %v3416 = vsel %vm1475, %v3376, %v3377
        %v3417 = vsel %vm1475, %v3375, %v3376
        %v3418 = vsel %vm1475, %v3374, %v3375
        %v3419 = vsel %vm1475, %v3373, %v3374
        %v3420 = vsel %vm1475, %v3372, %v3373
        %v3421 = vsel %vm1475, %v3371, %v3372
        %v3422 = vsel %vm1475, %v3370, %v3371
        %v3423 = vsel %vm1475, %v3369, %v3370
        %v3424 = vsel %vm1475, %v3368, %v3369
        %v3425 = vsel %vm1475, %v3367, %v3368
        %v3426 = vsel %vm1475, %v3366, %v3367
        %v3427 = vsel %vm1475, %v3365, %v3366
        %v3428 = vsel %vm1475, %v3364, %v3365
        %v3429 = vsel %vm1475, %v3363, %v3364
        %v3430 = vsel %vm1475, %v3362, %v3363
        %v3431 = vsel %vm1475, %v3361, %v3362
        %v3432 = vsel %vm1475, %v3360, %v3361
        %v3433 = vsel %vm1475, %v3359, %v3360
        %v3434 = vsel %vm1475, %v3358, %v3359
        %v3435 = vsel %vm1475, %v3357, %v3358
        %v3436 = vsel %vm1475, %v3356, %v3357
        %v3437 = vsel %vm1475, %v3355, %v3356
        %v3438 = vsel %vm1475, %v3354, %v3355
        %v3439 = vsel %vm1475, %v3353, %v3354
        %v3440 = vsel %vm1475, %v3352, %v3353
        %v3441 = vsel %vm1475, %v3351, %v3352
        %v3442 = vsel %vm1475, %v3350, %v3351
        %v3443 = vsel %vm1475, %v3349, %v3350
        %v3444 = vsel %vm1475, %v3396, %v3349
        %v3445 = vpack.c.bf16 %v3442, %v3443
        %v3446 = vpack.c.bf16 %v3440, %v3441
        %v3447 = vpack.c.bf16 %v3438, %v3439
        %v3448 = vpack.c.bf16 %v3436, %v3437
        %v3449 = vpack.c.bf16 %v3434, %v3435
        %v3450 = vpack.c.bf16 %v3432, %v3433
        %v3451 = vpack.c.bf16 %v3430, %v3431
        %v3452 = vpack.c.bf16 %v3428, %v3429
        %v3453 = vpack.c.bf16 %v3426, %v3427
        %v3454 = vpack.c.bf16 %v3424, %v3425
        %v3455 = vpack.c.bf16 %v3422, %v3423
        %v3456 = vpack.c.bf16 %v3420, %v3421
        %v3457 = vpack.c.bf16 %v3418, %v3419
        %v3458 = vpack.c.bf16 %v3416, %v3417
        %v3459 = vpack.c.bf16 %v3414, %v3415
        %v3460 = vpack.c.bf16 %v3412, %v3413
        %v3461 = vpack.c.bf16 %v3410, %v3411
        %v3462 = vpack.c.bf16 %v3408, %v3409
        %v3463 = vpack.c.bf16 %v3406, %v3407
        %v3464 = vpack.c.bf16 %v3404, %v3405
        %v3465 = vpack.c.bf16 %v3402, %v3403
        %v3466 = vpack.c.bf16 %v3400, %v3401
        %v3467 = vpack.c.bf16 %v3398, %v3399
        %v3468 = vpack.c.bf16 %v3444, %v3397
        %v3493 = vunpack.c.l.b16 %v3445
        %v3494 = vunpack.c.h.b16 %v3445
        %v3495 = vunpack.c.l.b16 %v3446
        %v3496 = vunpack.c.h.b16 %v3446
        %v3497 = vunpack.c.l.b16 %v3447
        %v3498 = vunpack.c.h.b16 %v3447
        %v3499 = vunpack.c.l.b16 %v3448
        %v3500 = vunpack.c.h.b16 %v3448
        %v3501 = vunpack.c.l.b16 %v3449
        %v3502 = vunpack.c.h.b16 %v3449
        %v3503 = vunpack.c.l.b16 %v3450
        %v3504 = vunpack.c.h.b16 %v3450
        %v3505 = vunpack.c.l.b16 %v3451
        %v3506 = vunpack.c.h.b16 %v3451
        %v3507 = vunpack.c.l.b16 %v3452
        %v3508 = vunpack.c.h.b16 %v3452
        %v3509 = vunpack.c.l.b16 %v3453
        %v3510 = vunpack.c.h.b16 %v3453
        %v3511 = vunpack.c.l.b16 %v3454
        %v3512 = vunpack.c.h.b16 %v3454
        %v3513 = vunpack.c.l.b16 %v3455
        %v3514 = vunpack.c.h.b16 %v3455
        %v3515 = vunpack.c.l.b16 %v3456
        %v3516 = vunpack.c.h.b16 %v3456
        %v3517 = vunpack.c.l.b16 %v3457
        %v3518 = vunpack.c.h.b16 %v3457
        %v3519 = vunpack.c.l.b16 %v3458
        %v3520 = vunpack.c.h.b16 %v3458
        %v3521 = vunpack.c.l.b16 %v3459
        %v3522 = vunpack.c.h.b16 %v3459
        %v3523 = vunpack.c.l.b16 %v3460
        %v3524 = vunpack.c.h.b16 %v3460
        %v3525 = vunpack.c.l.b16 %v3461
        %v3526 = vunpack.c.h.b16 %v3461
        %v3527 = vunpack.c.l.b16 %v3462
        %v3528 = vunpack.c.h.b16 %v3462
        %v3529 = vunpack.c.l.b16 %v3463
        %v3530 = vunpack.c.h.b16 %v3463
        %v3531 = vunpack.c.l.b16 %v3464
        %v3532 = vunpack.c.h.b16 %v3464
        %v3533 = vunpack.c.l.b16 %v3465
        %v3534 = vunpack.c.h.b16 %v3465
        %v3535 = vunpack.c.l.b16 %v3466
        %v3536 = vunpack.c.h.b16 %v3466
        %v3537 = vunpack.c.l.b16 %v3467
        %v3538 = vunpack.c.h.b16 %v3467
        %v3539 = vunpack.c.l.b16 %v3468
        %v3540 = vunpack.c.h.b16 %v3468
        %v3541 = vpack.c.b16 %v3493, %v3493
        %v3542 = vpack.c.b16 %v3494, %v3494
        %v3543 = vpack.c.b16 %v3495, %v3495
        %v3544 = vpack.c.b16 %v3496, %v3496
        %v3545 = vpack.c.b16 %v3497, %v3497
        %v3546 = vpack.c.b16 %v3498, %v3498
        %v3547 = vpack.c.b16 %v3499, %v3499
        %v3548 = vpack.c.b16 %v3500, %v3500
        %v3549 = vpack.c.b16 %v3501, %v3501
        %v3550 = vpack.c.b16 %v3502, %v3502
        %v3551 = vpack.c.b16 %v3503, %v3503
        %v3552 = vpack.c.b16 %v3504, %v3504
        %v3553 = vpack.c.b16 %v3505, %v3505
        %v3554 = vpack.c.b16 %v3506, %v3506
        %v3555 = vpack.c.b16 %v3507, %v3507
        %v3556 = vpack.c.b16 %v3508, %v3508
        %v3557 = vpack.c.b16 %v3509, %v3509
        %v3558 = vpack.c.b16 %v3510, %v3510
        %v3559 = vpack.c.b16 %v3511, %v3511
        %v3560 = vpack.c.b16 %v3512, %v3512
        %v3561 = vpack.c.b16 %v3513, %v3513
        %v3562 = vpack.c.b16 %v3514, %v3514
        %v3563 = vpack.c.b16 %v3515, %v3515
        %v3564 = vpack.c.b16 %v3516, %v3516
        %v3565 = vpack.c.b16 %v3517, %v3517
        %v3566 = vpack.c.b16 %v3518, %v3518
        %v3567 = vpack.c.b16 %v3519, %v3519
        %v3568 = vpack.c.b16 %v3520, %v3520
        %v3569 = vpack.c.b16 %v3521, %v3521
        %v3570 = vpack.c.b16 %v3522, %v3522
        %v3571 = vpack.c.b16 %v3523, %v3523
        %v3572 = vpack.c.b16 %v3524, %v3524
        %v3573 = vpack.c.b16 %v3525, %v3525
        %v3574 = vpack.c.b16 %v3526, %v3526
        %v3575 = vpack.c.b16 %v3527, %v3527
        %v3576 = vpack.c.b16 %v3528, %v3528
        %v3577 = vpack.c.b16 %v3529, %v3529
        %v3578 = vpack.c.b16 %v3530, %v3530
        %v3579 = vpack.c.b16 %v3531, %v3531
        %v3580 = vpack.c.b16 %v3532, %v3532
        %v3581 = vpack.c.b16 %v3533, %v3533
        %v3582 = vpack.c.b16 %v3534, %v3534
        %v3583 = vpack.c.b16 %v3535, %v3535
        %v3584 = vpack.c.b16 %v3536, %v3536
        %v3585 = vpack.c.b16 %v3537, %v3537
        %v3586 = vpack.c.b16 %v3538, %v3538
        %v3587 = vpack.c.b16 %v3539, %v3539
        %v3588 = vpack.c.b16 %v3540, %v3540
        %3637 = vst [vmem:[#allocation3 + $0x20] sm:$0xf] %v3541
        %3638 = vst [vmem:[#allocation3 + $0x44] sm:$0xf] %v3542
        %3639 = vst [vmem:[#allocation3 + $0x68] sm:$0xf] %v3543
        %3640 = vst [vmem:[#allocation3 + $0x8c] sm:$0xf] %v3544
        %3641 = vst [vmem:[#allocation3 + $0xb0] sm:$0xf] %v3545
        %3642 = vst [vmem:[#allocation3 + $0xd4] sm:$0xf] %v3546
        %3643 = vst [vmem:[#allocation3 + $0xf8] sm:$0xf] %v3547
        %3644 = vst [vmem:[#allocation3 + $0x11c] sm:$0xf] %v3548
        %3645 = vst [vmem:[#allocation3 + $0x140] sm:$0xf] %v3549
        %3646 = vst [vmem:[#allocation3 + $0x164] sm:$0xf] %v3550
        %3647 = vst [vmem:[#allocation3 + $0x188] sm:$0xf] %v3551
        %3648 = vst [vmem:[#allocation3 + $0x1ac] sm:$0xf] %v3552
        %3649 = vst [vmem:[#allocation3 + $0x1d0] sm:$0xf] %v3553
        %3650 = vst [vmem:[#allocation3 + $0x1f4] sm:$0xf] %v3554
        %3651 = vst [vmem:[#allocation3 + $0x218] sm:$0xf] %v3555
        %3652 = vst [vmem:[#allocation3 + $0x23c] sm:$0xf] %v3556
        %3653 = vst [vmem:[#allocation3 + $0x260] sm:$0xf] %v3557
        %3654 = vst [vmem:[#allocation3 + $0x284] sm:$0xf] %v3558
        %3655 = vst [vmem:[#allocation3 + $0x2a8] sm:$0xf] %v3559
        %3656 = vst [vmem:[#allocation3 + $0x2cc] sm:$0xf] %v3560
        %3657 = vst [vmem:[#allocation3 + $0x2f0] sm:$0xf] %v3561
        %3658 = vst [vmem:[#allocation3 + $0x314] sm:$0xf] %v3562
        %3659 = vst [vmem:[#allocation3 + $0x338] sm:$0xf] %v3563
        %3660 = vst [vmem:[#allocation3 + $0x35c] sm:$0xf] %v3564
        %3661 = vst [vmem:[#allocation3 + $0x380] sm:$0xf] %v3565
        %3662 = vst [vmem:[#allocation3 + $0x3a4] sm:$0xf] %v3566
        %3663 = vst [vmem:[#allocation3 + $0x3c8] sm:$0xf] %v3567
        %3664 = vst [vmem:[#allocation3 + $0x3ec] sm:$0xf] %v3568
        %3665 = vst [vmem:[#allocation3 + $0x410] sm:$0xf] %v3569
        %3666 = vst [vmem:[#allocation3 + $0x434] sm:$0xf] %v3570
        %3667 = vst [vmem:[#allocation3 + $0x458] sm:$0xf] %v3571
        %3668 = vst [vmem:[#allocation3 + $0x47c] sm:$0xf] %v3572
        %3669 = vst [vmem:[#allocation3 + $0x4a0] sm:$0xf] %v3573
        %3670 = vst [vmem:[#allocation3 + $0x4c4] sm:$0xf] %v3574
        %3671 = vst [vmem:[#allocation3 + $0x4e8] sm:$0xf] %v3575
        %3672 = vst [vmem:[#allocation3 + $0x50c] sm:$0xf] %v3576
        %3673 = vst [vmem:[#allocation3 + $0x530] sm:$0xf] %v3577
        %3674 = vst [vmem:[#allocation3 + $0x554] sm:$0xf] %v3578
        %3675 = vst [vmem:[#allocation3 + $0x578] sm:$0xf] %v3579
        %3676 = vst [vmem:[#allocation3 + $0x59c] sm:$0xf] %v3580
        %3677 = vst [vmem:[#allocation3 + $0x5c0] sm:$0xf] %v3581
        %3678 = vst [vmem:[#allocation3 + $0x5e4] sm:$0xf] %v3582
        %3679 = vst [vmem:[#allocation3 + $0x608] sm:$0xf] %v3583
        %3680 = vst [vmem:[#allocation3 + $0x62c] sm:$0xf] %v3584
        %3681 = vst [vmem:[#allocation3 + $0x650] sm:$0xf] %v3585
        %3682 = vst [vmem:[#allocation3 + $0x674] sm:$0xf] %v3586
        %3683 = vst [vmem:[#allocation3 + $0x698] sm:$0xf] %v3587
        %3684 = vst [vmem:[#allocation3 + $0x6bc] sm:$0xf] %v3588
        %v3685 = vld [vmem:[#allocation3] sm:$0xff]
        %v3686 = vld [vmem:[#allocation3 + $0x8] sm:$0xff]
        %v3687 = vld [vmem:[#allocation3 + $0x10] sm:$0xff]
        %v3688 = vld [vmem:[#allocation3 + $0x18] sm:$0xff]
        %v3689 = vld [vmem:[#allocation3 + $0x20] sm:$0xf]
        %v3690 = vld [vmem:[#allocation3 + $0x24] sm:$0xff]
        %v3691 = vld [vmem:[#allocation3 + $0x2c] sm:$0xff]
        %v3692 = vld [vmem:[#allocation3 + $0x34] sm:$0xff]
        %v3693 = vld [vmem:[#allocation3 + $0x3c] sm:$0xff]
        %v3694 = vld [vmem:[#allocation3 + $0x44] sm:$0xf]
        %v3695 = vld [vmem:[#allocation3 + $0x48] sm:$0xff]
        %v3696 = vld [vmem:[#allocation3 + $0x50] sm:$0xff]
        %v3697 = vld [vmem:[#allocation3 + $0x58] sm:$0xff]
        %v3698 = vld [vmem:[#allocation3 + $0x60] sm:$0xff]
        %v3699 = vld [vmem:[#allocation3 + $0x68] sm:$0xf]
        %v3700 = vld [vmem:[#allocation3 + $0x6c] sm:$0xff]
        %v3701 = vld [vmem:[#allocation3 + $0x74] sm:$0xff]
        %v3702 = vld [vmem:[#allocation3 + $0x7c] sm:$0xff]
        %v3703 = vld [vmem:[#allocation3 + $0x84] sm:$0xff]
        %v3704 = vld [vmem:[#allocation3 + $0x8c] sm:$0xf]
        %v3705 = vld [vmem:[#allocation3 + $0x90] sm:$0xff]
        %v3706 = vld [vmem:[#allocation3 + $0x98] sm:$0xff]
        %v3707 = vld [vmem:[#allocation3 + $0xa0] sm:$0xff]
        %v3708 = vld [vmem:[#allocation3 + $0xa8] sm:$0xff]
        %v3709 = vld [vmem:[#allocation3 + $0xb0] sm:$0xf]
        %v3710 = vld [vmem:[#allocation3 + $0xb4] sm:$0xff]
        %v3711 = vld [vmem:[#allocation3 + $0xbc] sm:$0xff]
        %v3712 = vld [vmem:[#allocation3 + $0xc4] sm:$0xff]
        %v3713 = vld [vmem:[#allocation3 + $0xcc] sm:$0xff]
        %v3714 = vld [vmem:[#allocation3 + $0xd4] sm:$0xf]
        %v3715 = vld [vmem:[#allocation3 + $0xd8] sm:$0xff]
        %v3716 = vld [vmem:[#allocation3 + $0xe0] sm:$0xff]
        %v3717 = vld [vmem:[#allocation3 + $0xe8] sm:$0xff]
        %v3718 = vld [vmem:[#allocation3 + $0xf0] sm:$0xff]
        %v3719 = vld [vmem:[#allocation3 + $0xf8] sm:$0xf]
        %v3720 = vld [vmem:[#allocation3 + $0xfc] sm:$0xff]
        %v3721 = vld [vmem:[#allocation3 + $0x104] sm:$0xff]
        %v3722 = vld [vmem:[#allocation3 + $0x10c] sm:$0xff]
        %v3723 = vld [vmem:[#allocation3 + $0x114] sm:$0xff]
        %v3724 = vld [vmem:[#allocation3 + $0x11c] sm:$0xf]
        %v3725 = vld [vmem:[#allocation3 + $0x120] sm:$0xff]
        %v3726 = vld [vmem:[#allocation3 + $0x128] sm:$0xff]
        %v3727 = vld [vmem:[#allocation3 + $0x130] sm:$0xff]
        %v3728 = vld [vmem:[#allocation3 + $0x138] sm:$0xff]
        %v3729 = vld [vmem:[#allocation3 + $0x140] sm:$0xf]
        %v3730 = vld [vmem:[#allocation3 + $0x144] sm:$0xff]
        %v3731 = vld [vmem:[#allocation3 + $0x14c] sm:$0xff]
        %v3732 = vld [vmem:[#allocation3 + $0x154] sm:$0xff]
        %v3733 = vld [vmem:[#allocation3 + $0x15c] sm:$0xff]
        %v3734 = vld [vmem:[#allocation3 + $0x164] sm:$0xf]
        %v3735 = vld [vmem:[#allocation3 + $0x168] sm:$0xff]
        %v3736 = vld [vmem:[#allocation3 + $0x170] sm:$0xff]
        %v3737 = vld [vmem:[#allocation3 + $0x178] sm:$0xff]
        %v3738 = vld [vmem:[#allocation3 + $0x180] sm:$0xff]
        %v3739 = vld [vmem:[#allocation3 + $0x188] sm:$0xf]
        %v3740 = vld [vmem:[#allocation3 + $0x18c] sm:$0xff]
        %v3741 = vld [vmem:[#allocation3 + $0x194] sm:$0xff]
        %v3742 = vld [vmem:[#allocation3 + $0x19c] sm:$0xff]
        %v3743 = vld [vmem:[#allocation3 + $0x1a4] sm:$0xff]
        %v3744 = vld [vmem:[#allocation3 + $0x1ac] sm:$0xf]
        %v3745 = vld [vmem:[#allocation3 + $0x1b0] sm:$0xff]
        %v3746 = vld [vmem:[#allocation3 + $0x1b8] sm:$0xff]
        %v3747 = vld [vmem:[#allocation3 + $0x1c0] sm:$0xff]
        %v3748 = vld [vmem:[#allocation3 + $0x1c8] sm:$0xff]
        %v3749 = vld [vmem:[#allocation3 + $0x1d0] sm:$0xf]
        %v3750 = vld [vmem:[#allocation3 + $0x1d4] sm:$0xff]
        %v3751 = vld [vmem:[#allocation3 + $0x1dc] sm:$0xff]
        %v3752 = vld [vmem:[#allocation3 + $0x1e4] sm:$0xff]
        %v3753 = vld [vmem:[#allocation3 + $0x1ec] sm:$0xff]
        %v3754 = vld [vmem:[#allocation3 + $0x1f4] sm:$0xf]
        %v3755 = vld [vmem:[#allocation3 + $0x1f8] sm:$0xff]
        %v3756 = vld [vmem:[#allocation3 + $0x200] sm:$0xff]
        %v3757 = vld [vmem:[#allocation3 + $0x208] sm:$0xff]
        %v3758 = vld [vmem:[#allocation3 + $0x210] sm:$0xff]
        %v3759 = vld [vmem:[#allocation3 + $0x218] sm:$0xf]
        %v3760 = vld [vmem:[#allocation3 + $0x21c] sm:$0xff]
        %v3761 = vld [vmem:[#allocation3 + $0x224] sm:$0xff]
        %v3762 = vld [vmem:[#allocation3 + $0x22c] sm:$0xff]
        %v3763 = vld [vmem:[#allocation3 + $0x234] sm:$0xff]
        %v3764 = vld [vmem:[#allocation3 + $0x23c] sm:$0xf]
        %v3765 = vld [vmem:[#allocation3 + $0x240] sm:$0xff]
        %v3766 = vld [vmem:[#allocation3 + $0x248] sm:$0xff]
        %v3767 = vld [vmem:[#allocation3 + $0x250] sm:$0xff]
        %v3768 = vld [vmem:[#allocation3 + $0x258] sm:$0xff]
        %v3769 = vld [vmem:[#allocation3 + $0x260] sm:$0xf]
        %v3770 = vld [vmem:[#allocation3 + $0x264] sm:$0xff]
        %v3771 = vld [vmem:[#allocation3 + $0x26c] sm:$0xff]
        %v3772 = vld [vmem:[#allocation3 + $0x274] sm:$0xff]
        %v3773 = vld [vmem:[#allocation3 + $0x27c] sm:$0xff]
        %v3774 = vld [vmem:[#allocation3 + $0x284] sm:$0xf]
        %v3775 = vld [vmem:[#allocation3 + $0x288] sm:$0xff]
        %v3776 = vld [vmem:[#allocation3 + $0x290] sm:$0xff]
        %v3777 = vld [vmem:[#allocation3 + $0x298] sm:$0xff]
        %v3778 = vld [vmem:[#allocation3 + $0x2a0] sm:$0xff]
        %v3779 = vld [vmem:[#allocation3 + $0x2a8] sm:$0xf]
        %v3780 = vld [vmem:[#allocation3 + $0x2ac] sm:$0xff]
        %v3781 = vld [vmem:[#allocation3 + $0x2b4] sm:$0xff]
        %v3782 = vld [vmem:[#allocation3 + $0x2bc] sm:$0xff]
        %v3783 = vld [vmem:[#allocation3 + $0x2c4] sm:$0xff]
        %v3784 = vld [vmem:[#allocation3 + $0x2cc] sm:$0xf]
        %v3785 = vld [vmem:[#allocation3 + $0x2d0] sm:$0xff]
        %v3786 = vld [vmem:[#allocation3 + $0x2d8] sm:$0xff]
        %v3787 = vld [vmem:[#allocation3 + $0x2e0] sm:$0xff]
        %v3788 = vld [vmem:[#allocation3 + $0x2e8] sm:$0xff]
        %v3789 = vld [vmem:[#allocation3 + $0x2f0] sm:$0xf]
        %v3790 = vld [vmem:[#allocation3 + $0x2f4] sm:$0xff]
        %v3791 = vld [vmem:[#allocation3 + $0x2fc] sm:$0xff]
        %v3792 = vld [vmem:[#allocation3 + $0x304] sm:$0xff]
        %v3793 = vld [vmem:[#allocation3 + $0x30c] sm:$0xff]
        %v3794 = vld [vmem:[#allocation3 + $0x314] sm:$0xf]
        %v3795 = vld [vmem:[#allocation3 + $0x318] sm:$0xff]
        %v3796 = vld [vmem:[#allocation3 + $0x320] sm:$0xff]
        %v3797 = vld [vmem:[#allocation3 + $0x328] sm:$0xff]
        %v3798 = vld [vmem:[#allocation3 + $0x330] sm:$0xff]
        %v3799 = vld [vmem:[#allocation3 + $0x338] sm:$0xf]
        %v3800 = vld [vmem:[#allocation3 + $0x33c] sm:$0xff]
        %v3801 = vld [vmem:[#allocation3 + $0x344] sm:$0xff]
        %v3802 = vld [vmem:[#allocation3 + $0x34c] sm:$0xff]
        %v3803 = vld [vmem:[#allocation3 + $0x354] sm:$0xff]
        %v3804 = vld [vmem:[#allocation3 + $0x35c] sm:$0xf]
        %v3805 = vld [vmem:[#allocation3 + $0x360] sm:$0xff]
        %v3806 = vld [vmem:[#allocation3 + $0x368] sm:$0xff]
        %v3807 = vld [vmem:[#allocation3 + $0x370] sm:$0xff]
        %v3808 = vld [vmem:[#allocation3 + $0x378] sm:$0xff]
        %v3809 = vld [vmem:[#allocation3 + $0x380] sm:$0xf]
        %v3810 = vld [vmem:[#allocation3 + $0x384] sm:$0xff]
        %v3811 = vld [vmem:[#allocation3 + $0x38c] sm:$0xff]
        %v3812 = vld [vmem:[#allocation3 + $0x394] sm:$0xff]
        %v3813 = vld [vmem:[#allocation3 + $0x39c] sm:$0xff]
        %v3814 = vld [vmem:[#allocation3 + $0x3a4] sm:$0xf]
        %v3815 = vld [vmem:[#allocation3 + $0x3a8] sm:$0xff]
        %v3816 = vld [vmem:[#allocation3 + $0x3b0] sm:$0xff]
        %v3817 = vld [vmem:[#allocation3 + $0x3b8] sm:$0xff]
        %v3818 = vld [vmem:[#allocation3 + $0x3c0] sm:$0xff]
        %v3819 = vld [vmem:[#allocation3 + $0x3c8] sm:$0xf]
        %v3820 = vld [vmem:[#allocation3 + $0x3cc] sm:$0xff]
        %v3821 = vld [vmem:[#allocation3 + $0x3d4] sm:$0xff]
        %v3822 = vld [vmem:[#allocation3 + $0x3dc] sm:$0xff]
        %v3823 = vld [vmem:[#allocation3 + $0x3e4] sm:$0xff]
        %v3824 = vld [vmem:[#allocation3 + $0x3ec] sm:$0xf]
        %v3825 = vld [vmem:[#allocation3 + $0x3f0] sm:$0xff]
        %v3826 = vld [vmem:[#allocation3 + $0x3f8] sm:$0xff]
        %v3827 = vld [vmem:[#allocation3 + $0x400] sm:$0xff]
        %v3828 = vld [vmem:[#allocation3 + $0x408] sm:$0xff]
        %v3829 = vld [vmem:[#allocation3 + $0x410] sm:$0xf]
        %v3830 = vld [vmem:[#allocation3 + $0x414] sm:$0xff]
        %v3831 = vld [vmem:[#allocation3 + $0x41c] sm:$0xff]
        %v3832 = vld [vmem:[#allocation3 + $0x424] sm:$0xff]
        %v3833 = vld [vmem:[#allocation3 + $0x42c] sm:$0xff]
        %v3834 = vld [vmem:[#allocation3 + $0x434] sm:$0xf]
        %v3835 = vld [vmem:[#allocation3 + $0x438] sm:$0xff]
        %v3836 = vld [vmem:[#allocation3 + $0x440] sm:$0xff]
        %v3837 = vld [vmem:[#allocation3 + $0x448] sm:$0xff]
        %v3838 = vld [vmem:[#allocation3 + $0x450] sm:$0xff]
        %v3839 = vld [vmem:[#allocation3 + $0x458] sm:$0xf]
        %v3840 = vld [vmem:[#allocation3 + $0x45c] sm:$0xff]
        %v3841 = vld [vmem:[#allocation3 + $0x464] sm:$0xff]
        %v3842 = vld [vmem:[#allocation3 + $0x46c] sm:$0xff]
        %v3843 = vld [vmem:[#allocation3 + $0x474] sm:$0xff]
        %v3844 = vld [vmem:[#allocation3 + $0x47c] sm:$0xf]
        %v3845 = vld [vmem:[#allocation3 + $0x480] sm:$0xff]
        %v3846 = vld [vmem:[#allocation3 + $0x488] sm:$0xff]
        %v3847 = vld [vmem:[#allocation3 + $0x490] sm:$0xff]
        %v3848 = vld [vmem:[#allocation3 + $0x498] sm:$0xff]
        %v3849 = vld [vmem:[#allocation3 + $0x4a0] sm:$0xf]
        %v3850 = vld [vmem:[#allocation3 + $0x4a4] sm:$0xff]
        %v3851 = vld [vmem:[#allocation3 + $0x4ac] sm:$0xff]
        %v3852 = vld [vmem:[#allocation3 + $0x4b4] sm:$0xff]
        %v3853 = vld [vmem:[#allocation3 + $0x4bc] sm:$0xff]
        %v3854 = vld [vmem:[#allocation3 + $0x4c4] sm:$0xf]
        %v3855 = vld [vmem:[#allocation3 + $0x4c8] sm:$0xff]
        %v3856 = vld [vmem:[#allocation3 + $0x4d0] sm:$0xff]
        %v3857 = vld [vmem:[#allocation3 + $0x4d8] sm:$0xff]
        %v3858 = vld [vmem:[#allocation3 + $0x4e0] sm:$0xff]
        %v3859 = vld [vmem:[#allocation3 + $0x4e8] sm:$0xf]
        %v3860 = vld [vmem:[#allocation3 + $0x4ec] sm:$0xff]
        %v3861 = vld [vmem:[#allocation3 + $0x4f4] sm:$0xff]
        %v3862 = vld [vmem:[#allocation3 + $0x4fc] sm:$0xff]
        %v3863 = vld [vmem:[#allocation3 + $0x504] sm:$0xff]
        %v3864 = vld [vmem:[#allocation3 + $0x50c] sm:$0xf]
        %v3865 = vld [vmem:[#allocation3 + $0x510] sm:$0xff]
        %v3866 = vld [vmem:[#allocation3 + $0x518] sm:$0xff]
        %v3867 = vld [vmem:[#allocation3 + $0x520] sm:$0xff]
        %v3868 = vld [vmem:[#allocation3 + $0x528] sm:$0xff]
        %v3869 = vld [vmem:[#allocation3 + $0x530] sm:$0xf]
        %v3870 = vld [vmem:[#allocation3 + $0x534] sm:$0xff]
        %v3871 = vld [vmem:[#allocation3 + $0x53c] sm:$0xff]
        %v3872 = vld [vmem:[#allocation3 + $0x544] sm:$0xff]
        %v3873 = vld [vmem:[#allocation3 + $0x54c] sm:$0xff]
        %v3874 = vld [vmem:[#allocation3 + $0x554] sm:$0xf]
        %v3875 = vld [vmem:[#allocation3 + $0x558] sm:$0xff]
        %v3876 = vld [vmem:[#allocation3 + $0x560] sm:$0xff]
        %v3877 = vld [vmem:[#allocation3 + $0x568] sm:$0xff]
        %v3878 = vld [vmem:[#allocation3 + $0x570] sm:$0xff]
        %v3879 = vld [vmem:[#allocation3 + $0x578] sm:$0xf]
        %v3880 = vld [vmem:[#allocation3 + $0x57c] sm:$0xff]
        %v3881 = vld [vmem:[#allocation3 + $0x584] sm:$0xff]
        %v3882 = vld [vmem:[#allocation3 + $0x58c] sm:$0xff]
        %v3883 = vld [vmem:[#allocation3 + $0x594] sm:$0xff]
        %v3884 = vld [vmem:[#allocation3 + $0x59c] sm:$0xf]
        %v3885 = vld [vmem:[#allocation3 + $0x5a0] sm:$0xff]
        %v3886 = vld [vmem:[#allocation3 + $0x5a8] sm:$0xff]
        %v3887 = vld [vmem:[#allocation3 + $0x5b0] sm:$0xff]
        %v3888 = vld [vmem:[#allocation3 + $0x5b8] sm:$0xff]
        %v3889 = vld [vmem:[#allocation3 + $0x5c0] sm:$0xf]
        %v3890 = vld [vmem:[#allocation3 + $0x5c4] sm:$0xff]
        %v3891 = vld [vmem:[#allocation3 + $0x5cc] sm:$0xff]
        %v3892 = vld [vmem:[#allocation3 + $0x5d4] sm:$0xff]
        %v3893 = vld [vmem:[#allocation3 + $0x5dc] sm:$0xff]
        %v3894 = vld [vmem:[#allocation3 + $0x5e4] sm:$0xf]
        %v3895 = vld [vmem:[#allocation3 + $0x5e8] sm:$0xff]
        %v3896 = vld [vmem:[#allocation3 + $0x5f0] sm:$0xff]
        %v3897 = vld [vmem:[#allocation3 + $0x5f8] sm:$0xff]
        %v3898 = vld [vmem:[#allocation3 + $0x600] sm:$0xff]
        %v3899 = vld [vmem:[#allocation3 + $0x608] sm:$0xf]
        %v3900 = vld [vmem:[#allocation3 + $0x60c] sm:$0xff]
        %v3901 = vld [vmem:[#allocation3 + $0x614] sm:$0xff]
        %v3902 = vld [vmem:[#allocation3 + $0x61c] sm:$0xff]
        %v3903 = vld [vmem:[#allocation3 + $0x624] sm:$0xff]
        %v3904 = vld [vmem:[#allocation3 + $0x62c] sm:$0xf]
        %v3905 = vld [vmem:[#allocation3 + $0x630] sm:$0xff]
        %v3906 = vld [vmem:[#allocation3 + $0x638] sm:$0xff]
        %v3907 = vld [vmem:[#allocation3 + $0x640] sm:$0xff]
        %v3908 = vld [vmem:[#allocation3 + $0x648] sm:$0xff]
        %v3909 = vld [vmem:[#allocation3 + $0x650] sm:$0xf]
        %v3910 = vld [vmem:[#allocation3 + $0x654] sm:$0xff]
        %v3911 = vld [vmem:[#allocation3 + $0x65c] sm:$0xff]
        %v3912 = vld [vmem:[#allocation3 + $0x664] sm:$0xff]
        %v3913 = vld [vmem:[#allocation3 + $0x66c] sm:$0xff]
        %v3914 = vld [vmem:[#allocation3 + $0x674] sm:$0xf]
        %v3915 = vld [vmem:[#allocation3 + $0x678] sm:$0xff]
        %v3916 = vld [vmem:[#allocation3 + $0x680] sm:$0xff]
        %v3917 = vld [vmem:[#allocation3 + $0x688] sm:$0xff]
        %v3918 = vld [vmem:[#allocation3 + $0x690] sm:$0xff]
        %v3919 = vld [vmem:[#allocation3 + $0x698] sm:$0xf]
        %v3920 = vld [vmem:[#allocation3 + $0x69c] sm:$0xff]
        %v3921 = vld [vmem:[#allocation3 + $0x6a4] sm:$0xff]
        %v3922 = vld [vmem:[#allocation3 + $0x6ac] sm:$0xff]
        %v3923 = vld [vmem:[#allocation3 + $0x6b4] sm:$0xff]
        %v3924 = vld [vmem:[#allocation3 + $0x6bc] sm:$0xf]
        %v3925 = vld [vmem:[%s2] sm:$0xf]
        %v3926 = vld [vmem:[%s2 + $0x4] sm:$0xf]
        %v3927 = vld [vmem:[%s2 + $0x8] sm:$0xf]
        %v3928 = vld [vmem:[%s2 + $0xc] sm:$0xf]
        %v3929 = vld [vmem:[%s2 + $0x10] sm:$0xf]
        %v3930 = vld [vmem:[%s2 + $0x14] sm:$0xf]
        %v3931 = vld [vmem:[%s2 + $0x18] sm:$0xf]
        %v3932 = vld [vmem:[%s2 + $0x1c] sm:$0xf]
        %v3933 = vld [vmem:[%s2 + $0x20] sm:$0xf]
        %v3934 = vld [vmem:[%s2 + $0x24] sm:$0xf]
        %v3935 = vld [vmem:[%s2 + $0x28] sm:$0xf]
        %v3936 = vld [vmem:[%s2 + $0x2c] sm:$0xf]
        %v3937 = vld [vmem:[%s2 + $0x30] sm:$0xf]
        %v3938 = vld [vmem:[%s2 + $0x34] sm:$0xf]
        %v3939 = vld [vmem:[%s2 + $0x38] sm:$0xf]
        %v3940 = vld [vmem:[%s2 + $0x3c] sm:$0xf]
        %v3941 = vld [vmem:[%s2 + $0x40] sm:$0xf]
        %v3942 = vld [vmem:[%s2 + $0x44] sm:$0xf]
        %v3943 = vld [vmem:[%s2 + $0x48] sm:$0xf]
        %v3944 = vld [vmem:[%s2 + $0x4c] sm:$0xf]
        %v3945 = vld [vmem:[%s2 + $0x50] sm:$0xf]
        %v3946 = vld [vmem:[%s2 + $0x54] sm:$0xf]
        %v3947 = vld [vmem:[%s2 + $0x58] sm:$0xf]
        %v3948 = vld [vmem:[%s2 + $0x5c] sm:$0xf]
        %v3949 = vld [vmem:[%s2 + $0x60] sm:$0xf]
        %v3950 = vld [vmem:[%s2 + $0x64] sm:$0xf]
        %v3951 = vld [vmem:[%s2 + $0x68] sm:$0xf]
        %v3952 = vld [vmem:[%s2 + $0x6c] sm:$0xf]
        %v3953 = vld [vmem:[%s2 + $0x70] sm:$0xf]
        %v3954 = vld [vmem:[%s2 + $0x74] sm:$0xf]
        %v3955 = vld [vmem:[%s2 + $0x78] sm:$0xf]
        %v3956 = vld [vmem:[%s2 + $0x7c] sm:$0xf]
        %v3957 = vld [vmem:[%s2 + $0x80] sm:$0xf]
        %v3958 = vld [vmem:[%s2 + $0x84] sm:$0xf]
        %v3959 = vld [vmem:[%s2 + $0x88] sm:$0xf]
        %v3960 = vld [vmem:[%s2 + $0x8c] sm:$0xf]
        %v3961 = vld [vmem:[%s2 + $0x90] sm:$0xf]
        %v3962 = vld [vmem:[%s2 + $0x94] sm:$0xf]
        %v3963 = vld [vmem:[%s2 + $0x98] sm:$0xf]
        %v3964 = vld [vmem:[%s2 + $0x9c] sm:$0xf]
        %v3965 = vld [vmem:[%s2 + $0xa0] sm:$0xf]
        %v3966 = vld [vmem:[%s2 + $0xa4] sm:$0xf]
        %v3967 = vld [vmem:[%s2 + $0xa8] sm:$0xf]
        %v3968 = vld [vmem:[%s2 + $0xac] sm:$0xf]
        %v3969 = vld [vmem:[%s2 + $0xb0] sm:$0xf]
        %v3970 = vld [vmem:[%s2 + $0xb4] sm:$0xf]
        %v3971 = vld [vmem:[%s2 + $0xb8] sm:$0xf]
        %v3972 = vld [vmem:[%s2 + $0xbc] sm:$0xf]
        %v3973 = vld [vmem:[%s2 + $0xc0] sm:$0xf]
        %v3974 = vld [vmem:[%s2 + $0xc4] sm:$0xf]
        %v3975 = vld [vmem:[%s2 + $0xc8] sm:$0xf]
        %v3976 = vld [vmem:[%s2 + $0xcc] sm:$0xf]
        %v3977 = vld [vmem:[%s2 + $0xd0] sm:$0xf]
        %v3978 = vld [vmem:[%s2 + $0xd4] sm:$0xf]
        %v3979 = vld [vmem:[%s2 + $0xd8] sm:$0xf]
        %v3980 = vld [vmem:[%s2 + $0xdc] sm:$0xf]
        %v3981 = vld [vmem:[%s2 + $0xe0] sm:$0xf]
        %v3982 = vld [vmem:[%s2 + $0xe4] sm:$0xf]
        %v3983 = vld [vmem:[%s2 + $0xe8] sm:$0xf]
        %v3984 = vld [vmem:[%s2 + $0xec] sm:$0xf]
        %v3985 = vld [vmem:[%s2 + $0xf0] sm:$0xf]
        %v3986 = vld [vmem:[%s2 + $0xf4] sm:$0xf]
        %v3987 = vld [vmem:[%s2 + $0xf8] sm:$0xf]
        %v3988 = vld [vmem:[%s2 + $0xfc] sm:$0xf]
        %v3989 = vld [vmem:[%s2 + $0x100] sm:$0xf]
        %v3990 = vld [vmem:[%s2 + $0x104] sm:$0xf]
        %v3991 = vld [vmem:[%s2 + $0x108] sm:$0xf]
        %v3992 = vld [vmem:[%s2 + $0x10c] sm:$0xf]
        %v3993 = vld [vmem:[%s2 + $0x110] sm:$0xf]
        %v3994 = vld [vmem:[%s2 + $0x114] sm:$0xf]
        %v3995 = vld [vmem:[%s2 + $0x118] sm:$0xf]
        %v3996 = vld [vmem:[%s2 + $0x11c] sm:$0xf]
        %v3997 = vld [vmem:[%s2 + $0x120] sm:$0xf]
        %v3998 = vld [vmem:[%s2 + $0x124] sm:$0xf]
        %v3999 = vld [vmem:[%s2 + $0x128] sm:$0xf]
        %v4000 = vld [vmem:[%s2 + $0x12c] sm:$0xf]
        %v4001 = vld [vmem:[%s2 + $0x130] sm:$0xf]
        %v4002 = vld [vmem:[%s2 + $0x134] sm:$0xf]
        %v4003 = vld [vmem:[%s2 + $0x138] sm:$0xf]
        %v4004 = vld [vmem:[%s2 + $0x13c] sm:$0xf]
        %v4005 = vld [vmem:[%s2 + $0x140] sm:$0xf]
        %v4006 = vld [vmem:[%s2 + $0x144] sm:$0xf]
        %v4007 = vld [vmem:[%s2 + $0x148] sm:$0xf]
        %v4008 = vld [vmem:[%s2 + $0x14c] sm:$0xf]
        %v4009 = vld [vmem:[%s2 + $0x150] sm:$0xf]
        %v4010 = vld [vmem:[%s2 + $0x154] sm:$0xf]
        %v4011 = vld [vmem:[%s2 + $0x158] sm:$0xf]
        %v4012 = vld [vmem:[%s2 + $0x15c] sm:$0xf]
        %v4013 = vld [vmem:[%s2 + $0x160] sm:$0xf]
        %v4014 = vld [vmem:[%s2 + $0x164] sm:$0xf]
        %v4015 = vld [vmem:[%s2 + $0x168] sm:$0xf]
        %v4016 = vld [vmem:[%s2 + $0x16c] sm:$0xf]
        %v4017 = vld [vmem:[%s2 + $0x170] sm:$0xf]
        %v4018 = vld [vmem:[%s2 + $0x174] sm:$0xf]
        %v4019 = vld [vmem:[%s2 + $0x178] sm:$0xf]
        %v4020 = vld [vmem:[%s2 + $0x17c] sm:$0xf]
        %v4021 = vld [vmem:[%s2 + $0x180] sm:$0xf]
        %v4022 = vld [vmem:[%s2 + $0x184] sm:$0xf]
        %v4023 = vld [vmem:[%s2 + $0x188] sm:$0xf]
        %v4024 = vld [vmem:[%s2 + $0x18c] sm:$0xf]
        %v4025 = vld [vmem:[%s2 + $0x190] sm:$0xf]
        %v4026 = vld [vmem:[%s2 + $0x194] sm:$0xf]
        %v4027 = vld [vmem:[%s2 + $0x198] sm:$0xf]
        %v4028 = vld [vmem:[%s2 + $0x19c] sm:$0xf]
        %v4029 = vld [vmem:[%s2 + $0x1a0] sm:$0xf]
        %v4030 = vld [vmem:[%s2 + $0x1a4] sm:$0xf]
        %v4031 = vld [vmem:[%s2 + $0x1a8] sm:$0xf]
        %v4032 = vld [vmem:[%s2 + $0x1ac] sm:$0xf]
        %v4033 = vld [vmem:[%s2 + $0x1b0] sm:$0xf]
        %v4034 = vld [vmem:[%s2 + $0x1b4] sm:$0xf]
        %v4035 = vld [vmem:[%s2 + $0x1b8] sm:$0xf]
        %v4036 = vld [vmem:[%s2 + $0x1bc] sm:$0xf]
        %v4037 = vld [vmem:[%s2 + $0x1c0] sm:$0xf]
        %v4038 = vld [vmem:[%s2 + $0x1c4] sm:$0xf]
        %v4039 = vld [vmem:[%s2 + $0x1c8] sm:$0xf]
        %v4040 = vld [vmem:[%s2 + $0x1cc] sm:$0xf]
        %v4041 = vld [vmem:[%s2 + $0x1d0] sm:$0xf]
        %v4042 = vld [vmem:[%s2 + $0x1d4] sm:$0xf]
        %v4043 = vld [vmem:[%s2 + $0x1d8] sm:$0xf]
        %v4044 = vld [vmem:[%s2 + $0x1dc] sm:$0xf]
        %v4045 = vld [vmem:[%s2 + $0x1e0] sm:$0xf]
        %v4046 = vld [vmem:[%s2 + $0x1e4] sm:$0xf]
        %v4047 = vld [vmem:[%s2 + $0x1e8] sm:$0xf]
        %v4048 = vld [vmem:[%s2 + $0x1ec] sm:$0xf]
        %v4049 = vld [vmem:[%s2 + $0x1f0] sm:$0xf]
        %v4050 = vld [vmem:[%s2 + $0x1f4] sm:$0xf]
        %v4051 = vld [vmem:[%s2 + $0x1f8] sm:$0xf]
        %v4052 = vld [vmem:[%s2 + $0x1fc] sm:$0xf]
        %v4053 = vld [vmem:[%s2 + $0x200] sm:$0xf]
        %v4054 = vld [vmem:[%s2 + $0x204] sm:$0xf]
        %v4055 = vld [vmem:[%s2 + $0x208] sm:$0xf]
        %v4056 = vld [vmem:[%s2 + $0x20c] sm:$0xf]
        %v4057 = vld [vmem:[%s2 + $0x210] sm:$0xf]
        %v4058 = vld [vmem:[%s2 + $0x214] sm:$0xf]
        %v4059 = vld [vmem:[%s2 + $0x218] sm:$0xf]
        %v4060 = vld [vmem:[%s2 + $0x21c] sm:$0xf]
        %v4061 = vld [vmem:[%s2 + $0x220] sm:$0xf]
        %v4062 = vld [vmem:[%s2 + $0x224] sm:$0xf]
        %v4063 = vld [vmem:[%s2 + $0x228] sm:$0xf]
        %v4064 = vld [vmem:[%s2 + $0x22c] sm:$0xf]
        %v4065 = vld [vmem:[%s2 + $0x230] sm:$0xf]
        %v4066 = vld [vmem:[%s2 + $0x234] sm:$0xf]
        %v4067 = vld [vmem:[%s2 + $0x238] sm:$0xf]
        %v4068 = vld [vmem:[%s2 + $0x23c] sm:$0xf]
        %v4069 = vld [vmem:[%s6] sm:$0x1]
        %v4071 = vlaneseq
        %v4072 = vshrl.u32 %v4071, 7
        %v4073 = vsub.s32 0, %v4072
        %v4074 = vrot.slane %v4069, %v4073
        %v4316 = vunpack.c.l.b16 %v3685
        %v4317 = vunpack.c.h.b16 %v3685
        %v4318 = vunpack.c.l.b16 %v3686
        %v4319 = vunpack.c.h.b16 %v3686
        %v4320 = vunpack.c.l.b16 %v3687
        %v4321 = vunpack.c.h.b16 %v3687
        %v4322 = vunpack.c.l.b16 %v3688
        %v4323 = vunpack.c.h.b16 %v3688
        %v4324 = vunpack.c.l.b16 %v3689
        %v4325 = vunpack.c.l.b16 %v3690
        %v4326 = vunpack.c.h.b16 %v3690
        %v4327 = vunpack.c.l.b16 %v3691
        %v4328 = vunpack.c.h.b16 %v3691
        %v4329 = vunpack.c.l.b16 %v3692
        %v4330 = vunpack.c.h.b16 %v3692
        %v4331 = vunpack.c.l.b16 %v3693
        %v4332 = vunpack.c.h.b16 %v3693
        %v4333 = vunpack.c.l.b16 %v3694
        %v4334 = vunpack.c.l.b16 %v3695
        %v4335 = vunpack.c.h.b16 %v3695
        %v4336 = vunpack.c.l.b16 %v3696
        %v4337 = vunpack.c.h.b16 %v3696
        %v4338 = vunpack.c.l.b16 %v3697
        %v4339 = vunpack.c.h.b16 %v3697
        %v4340 = vunpack.c.l.b16 %v3698
        %v4341 = vunpack.c.h.b16 %v3698
        %v4342 = vunpack.c.l.b16 %v3699
        %v4343 = vunpack.c.l.b16 %v3700
        %v4344 = vunpack.c.h.b16 %v3700
        %v4345 = vunpack.c.l.b16 %v3701
        %v4346 = vunpack.c.h.b16 %v3701
        %v4347 = vunpack.c.l.b16 %v3702
        %v4348 = vunpack.c.h.b16 %v3702
        %v4349 = vunpack.c.l.b16 %v3703
        %v4350 = vunpack.c.h.b16 %v3703
        %v4351 = vunpack.c.l.b16 %v3704
        %v4352 = vunpack.c.l.b16 %v3705
        %v4353 = vunpack.c.h.b16 %v3705
        %v4354 = vunpack.c.l.b16 %v3706
        %v4355 = vunpack.c.h.b16 %v3706
        %v4356 = vunpack.c.l.b16 %v3707
        %v4357 = vunpack.c.h.b16 %v3707
        %v4358 = vunpack.c.l.b16 %v3708
        %v4359 = vunpack.c.h.b16 %v3708
        %v4360 = vunpack.c.l.b16 %v3709
        %v4361 = vunpack.c.l.b16 %v3710
        %v4362 = vunpack.c.h.b16 %v3710
        %v4363 = vunpack.c.l.b16 %v3711
        %v4364 = vunpack.c.h.b16 %v3711
        %v4365 = vunpack.c.l.b16 %v3712
        %v4366 = vunpack.c.h.b16 %v3712
        %v4367 = vunpack.c.l.b16 %v3713
        %v4368 = vunpack.c.h.b16 %v3713
        %v4369 = vunpack.c.l.b16 %v3714
        %v4370 = vunpack.c.l.b16 %v3715
        %v4371 = vunpack.c.h.b16 %v3715
        %v4372 = vunpack.c.l.b16 %v3716
        %v4373 = vunpack.c.h.b16 %v3716
        %v4374 = vunpack.c.l.b16 %v3717
        %v4375 = vunpack.c.h.b16 %v3717
        %v4376 = vunpack.c.l.b16 %v3718
        %v4377 = vunpack.c.h.b16 %v3718
        %v4378 = vunpack.c.l.b16 %v3719
        %v4379 = vunpack.c.l.b16 %v3720
        %v4380 = vunpack.c.h.b16 %v3720
        %v4381 = vunpack.c.l.b16 %v3721
        %v4382 = vunpack.c.h.b16 %v3721
        %v4383 = vunpack.c.l.b16 %v3722
        %v4384 = vunpack.c.h.b16 %v3722
        %v4385 = vunpack.c.l.b16 %v3723
        %v4386 = vunpack.c.h.b16 %v3723
        %v4387 = vunpack.c.l.b16 %v3724
        %v4388 = vunpack.c.l.b16 %v3725
        %v4389 = vunpack.c.h.b16 %v3725
        %v4390 = vunpack.c.l.b16 %v3726
        %v4391 = vunpack.c.h.b16 %v3726
        %v4392 = vunpack.c.l.b16 %v3727
        %v4393 = vunpack.c.h.b16 %v3727
        %v4394 = vunpack.c.l.b16 %v3728
        %v4395 = vunpack.c.h.b16 %v3728
        %v4396 = vunpack.c.l.b16 %v3729
        %v4397 = vunpack.c.l.b16 %v3730
        %v4398 = vunpack.c.h.b16 %v3730
        %v4399 = vunpack.c.l.b16 %v3731
        %v4400 = vunpack.c.h.b16 %v3731
        %v4401 = vunpack.c.l.b16 %v3732
        %v4402 = vunpack.c.h.b16 %v3732
        %v4403 = vunpack.c.l.b16 %v3733
        %v4404 = vunpack.c.h.b16 %v3733
        %v4405 = vunpack.c.l.b16 %v3734
        %v4406 = vunpack.c.l.b16 %v3735
        %v4407 = vunpack.c.h.b16 %v3735
        %v4408 = vunpack.c.l.b16 %v3736
        %v4409 = vunpack.c.h.b16 %v3736
        %v4410 = vunpack.c.l.b16 %v3737
        %v4411 = vunpack.c.h.b16 %v3737
        %v4412 = vunpack.c.l.b16 %v3738
        %v4413 = vunpack.c.h.b16 %v3738
        %v4414 = vunpack.c.l.b16 %v3739
        %v4415 = vunpack.c.l.b16 %v3740
        %v4416 = vunpack.c.h.b16 %v3740
        %v4417 = vunpack.c.l.b16 %v3741
        %v4418 = vunpack.c.h.b16 %v3741
        %v4419 = vunpack.c.l.b16 %v3742
        %v4420 = vunpack.c.h.b16 %v3742
        %v4421 = vunpack.c.l.b16 %v3743
        %v4422 = vunpack.c.h.b16 %v3743
        %v4423 = vunpack.c.l.b16 %v3744
        %v4424 = vunpack.c.l.b16 %v3745
        %v4425 = vunpack.c.h.b16 %v3745
        %v4426 = vunpack.c.l.b16 %v3746
        %v4427 = vunpack.c.h.b16 %v3746
        %v4428 = vunpack.c.l.b16 %v3747
        %v4429 = vunpack.c.h.b16 %v3747
        %v4430 = vunpack.c.l.b16 %v3748
        %v4431 = vunpack.c.h.b16 %v3748
        %v4432 = vunpack.c.l.b16 %v3749
        %v4433 = vunpack.c.l.b16 %v3750
        %v4434 = vunpack.c.h.b16 %v3750
        %v4435 = vunpack.c.l.b16 %v3751
        %v4436 = vunpack.c.h.b16 %v3751
        %v4437 = vunpack.c.l.b16 %v3752
        %v4438 = vunpack.c.h.b16 %v3752
        %v4439 = vunpack.c.l.b16 %v3753
        %v4440 = vunpack.c.h.b16 %v3753
        %v4441 = vunpack.c.l.b16 %v3754
        %v4442 = vunpack.c.l.b16 %v3755
        %v4443 = vunpack.c.h.b16 %v3755
        %v4444 = vunpack.c.l.b16 %v3756
        %v4445 = vunpack.c.h.b16 %v3756
        %v4446 = vunpack.c.l.b16 %v3757
        %v4447 = vunpack.c.h.b16 %v3757
        %v4448 = vunpack.c.l.b16 %v3758
        %v4449 = vunpack.c.h.b16 %v3758
        %v4450 = vunpack.c.l.b16 %v3759
        %v4451 = vunpack.c.l.b16 %v3760
        %v4452 = vunpack.c.h.b16 %v3760
        %v4453 = vunpack.c.l.b16 %v3761
        %v4454 = vunpack.c.h.b16 %v3761
        %v4455 = vunpack.c.l.b16 %v3762
        %v4456 = vunpack.c.h.b16 %v3762
        %v4457 = vunpack.c.l.b16 %v3763
        %v4458 = vunpack.c.h.b16 %v3763
        %v4459 = vunpack.c.l.b16 %v3764
        %v4460 = vunpack.c.l.b16 %v3765
        %v4461 = vunpack.c.h.b16 %v3765
        %v4462 = vunpack.c.l.b16 %v3766
        %v4463 = vunpack.c.h.b16 %v3766
        %v4464 = vunpack.c.l.b16 %v3767
        %v4465 = vunpack.c.h.b16 %v3767
        %v4466 = vunpack.c.l.b16 %v3768
        %v4467 = vunpack.c.h.b16 %v3768
        %v4468 = vunpack.c.l.b16 %v3769
        %v4469 = vunpack.c.l.b16 %v3770
        %v4470 = vunpack.c.h.b16 %v3770
        %v4471 = vunpack.c.l.b16 %v3771
        %v4472 = vunpack.c.h.b16 %v3771
        %v4473 = vunpack.c.l.b16 %v3772
        %v4474 = vunpack.c.h.b16 %v3772
        %v4475 = vunpack.c.l.b16 %v3773
        %v4476 = vunpack.c.h.b16 %v3773
        %v4477 = vunpack.c.l.b16 %v3774
        %v4478 = vunpack.c.l.b16 %v3775
        %v4479 = vunpack.c.h.b16 %v3775
        %v4480 = vunpack.c.l.b16 %v3776
        %v4481 = vunpack.c.h.b16 %v3776
        %v4482 = vunpack.c.l.b16 %v3777
        %v4483 = vunpack.c.h.b16 %v3777
        %v4484 = vunpack.c.l.b16 %v3778
        %v4485 = vunpack.c.h.b16 %v3778
        %v4486 = vunpack.c.l.b16 %v3779
        %v4487 = vunpack.c.l.b16 %v3780
        %v4488 = vunpack.c.h.b16 %v3780
        %v4489 = vunpack.c.l.b16 %v3781
        %v4490 = vunpack.c.h.b16 %v3781
        %v4491 = vunpack.c.l.b16 %v3782
        %v4492 = vunpack.c.h.b16 %v3782
        %v4493 = vunpack.c.l.b16 %v3783
        %v4494 = vunpack.c.h.b16 %v3783
        %v4495 = vunpack.c.l.b16 %v3784
        %v4496 = vunpack.c.l.b16 %v3785
        %v4497 = vunpack.c.h.b16 %v3785
        %v4498 = vunpack.c.l.b16 %v3786
        %v4499 = vunpack.c.h.b16 %v3786
        %v4500 = vunpack.c.l.b16 %v3787
        %v4501 = vunpack.c.h.b16 %v3787
        %v4502 = vunpack.c.l.b16 %v3788
        %v4503 = vunpack.c.h.b16 %v3788
        %v4504 = vunpack.c.l.b16 %v3789
        %v4505 = vunpack.c.l.b16 %v3790
        %v4506 = vunpack.c.h.b16 %v3790
        %v4507 = vunpack.c.l.b16 %v3791
        %v4508 = vunpack.c.h.b16 %v3791
        %v4509 = vunpack.c.l.b16 %v3792
        %v4510 = vunpack.c.h.b16 %v3792
        %v4511 = vunpack.c.l.b16 %v3793
        %v4512 = vunpack.c.h.b16 %v3793
        %v4513 = vunpack.c.l.b16 %v3794
        %v4514 = vunpack.c.l.b16 %v3795
        %v4515 = vunpack.c.h.b16 %v3795
        %v4516 = vunpack.c.l.b16 %v3796
        %v4517 = vunpack.c.h.b16 %v3796
        %v4518 = vunpack.c.l.b16 %v3797
        %v4519 = vunpack.c.h.b16 %v3797
        %v4520 = vunpack.c.l.b16 %v3798
        %v4521 = vunpack.c.h.b16 %v3798
        %v4522 = vunpack.c.l.b16 %v3799
        %v4523 = vunpack.c.l.b16 %v3800
        %v4524 = vunpack.c.h.b16 %v3800
        %v4525 = vunpack.c.l.b16 %v3801
        %v4526 = vunpack.c.h.b16 %v3801
        %v4527 = vunpack.c.l.b16 %v3802
        %v4528 = vunpack.c.h.b16 %v3802
        %v4529 = vunpack.c.l.b16 %v3803
        %v4530 = vunpack.c.h.b16 %v3803
        %v4531 = vunpack.c.l.b16 %v3804
        %v4532 = vunpack.c.l.b16 %v3805
        %v4533 = vunpack.c.h.b16 %v3805
        %v4534 = vunpack.c.l.b16 %v3806
        %v4535 = vunpack.c.h.b16 %v3806
        %v4536 = vunpack.c.l.b16 %v3807
        %v4537 = vunpack.c.h.b16 %v3807
        %v4538 = vunpack.c.l.b16 %v3808
        %v4539 = vunpack.c.h.b16 %v3808
        %v4540 = vunpack.c.l.b16 %v3809
        %v4541 = vunpack.c.l.b16 %v3810
        %v4542 = vunpack.c.h.b16 %v3810
        %v4543 = vunpack.c.l.b16 %v3811
        %v4544 = vunpack.c.h.b16 %v3811
        %v4545 = vunpack.c.l.b16 %v3812
        %v4546 = vunpack.c.h.b16 %v3812
        %v4547 = vunpack.c.l.b16 %v3813
        %v4548 = vunpack.c.h.b16 %v3813
        %v4549 = vunpack.c.l.b16 %v3814
        %v4550 = vunpack.c.l.b16 %v3815
        %v4551 = vunpack.c.h.b16 %v3815
        %v4552 = vunpack.c.l.b16 %v3816
        %v4553 = vunpack.c.h.b16 %v3816
        %v4554 = vunpack.c.l.b16 %v3817
        %v4555 = vunpack.c.h.b16 %v3817
        %v4556 = vunpack.c.l.b16 %v3818
        %v4557 = vunpack.c.h.b16 %v3818
        %v4558 = vunpack.c.l.b16 %v3819
        %v4559 = vunpack.c.l.b16 %v3820
        %v4560 = vunpack.c.h.b16 %v3820
        %v4561 = vunpack.c.l.b16 %v3821
        %v4562 = vunpack.c.h.b16 %v3821
        %v4563 = vunpack.c.l.b16 %v3822
        %v4564 = vunpack.c.h.b16 %v3822
        %v4565 = vunpack.c.l.b16 %v3823
        %v4566 = vunpack.c.h.b16 %v3823
        %v4567 = vunpack.c.l.b16 %v3824
        %v4568 = vunpack.c.l.b16 %v3825
        %v4569 = vunpack.c.h.b16 %v3825
        %v4570 = vunpack.c.l.b16 %v3826
        %v4571 = vunpack.c.h.b16 %v3826
        %v4572 = vunpack.c.l.b16 %v3827
        %v4573 = vunpack.c.h.b16 %v3827
        %v4574 = vunpack.c.l.b16 %v3828
        %v4575 = vunpack.c.h.b16 %v3828
        %v4576 = vunpack.c.l.b16 %v3829
        %v4577 = vunpack.c.l.b16 %v3830
        %v4578 = vunpack.c.h.b16 %v3830
        %v4579 = vunpack.c.l.b16 %v3831
        %v4580 = vunpack.c.h.b16 %v3831
        %v4581 = vunpack.c.l.b16 %v3832
        %v4582 = vunpack.c.h.b16 %v3832
        %v4583 = vunpack.c.l.b16 %v3833
        %v4584 = vunpack.c.h.b16 %v3833
        %v4585 = vunpack.c.l.b16 %v3834
        %v4586 = vunpack.c.l.b16 %v3835
        %v4587 = vunpack.c.h.b16 %v3835
        %v4588 = vunpack.c.l.b16 %v3836
        %v4589 = vunpack.c.h.b16 %v3836
        %v4590 = vunpack.c.l.b16 %v3837
        %v4591 = vunpack.c.h.b16 %v3837
        %v4592 = vunpack.c.l.b16 %v3838
        %v4593 = vunpack.c.h.b16 %v3838
        %v4594 = vunpack.c.l.b16 %v3839
        %v4595 = vunpack.c.l.b16 %v3840
        %v4596 = vunpack.c.h.b16 %v3840
        %v4597 = vunpack.c.l.b16 %v3841
        %v4598 = vunpack.c.h.b16 %v3841
        %v4599 = vunpack.c.l.b16 %v3842
        %v4600 = vunpack.c.h.b16 %v3842
        %v4601 = vunpack.c.l.b16 %v3843
        %v4602 = vunpack.c.h.b16 %v3843
        %v4603 = vunpack.c.l.b16 %v3844
        %v4604 = vunpack.c.l.b16 %v3845
        %v4605 = vunpack.c.h.b16 %v3845
        %v4606 = vunpack.c.l.b16 %v3846
        %v4607 = vunpack.c.h.b16 %v3846
        %v4608 = vunpack.c.l.b16 %v3847
        %v4609 = vunpack.c.h.b16 %v3847
        %v4610 = vunpack.c.l.b16 %v3848
        %v4611 = vunpack.c.h.b16 %v3848
        %v4612 = vunpack.c.l.b16 %v3849
        %v4613 = vunpack.c.l.b16 %v3850
        %v4614 = vunpack.c.h.b16 %v3850
        %v4615 = vunpack.c.l.b16 %v3851
        %v4616 = vunpack.c.h.b16 %v3851
        %v4617 = vunpack.c.l.b16 %v3852
        %v4618 = vunpack.c.h.b16 %v3852
        %v4619 = vunpack.c.l.b16 %v3853
        %v4620 = vunpack.c.h.b16 %v3853
        %v4621 = vunpack.c.l.b16 %v3854
        %v4622 = vunpack.c.l.b16 %v3855
        %v4623 = vunpack.c.h.b16 %v3855
        %v4624 = vunpack.c.l.b16 %v3856
        %v4625 = vunpack.c.h.b16 %v3856
        %v4626 = vunpack.c.l.b16 %v3857
        %v4627 = vunpack.c.h.b16 %v3857
        %v4628 = vunpack.c.l.b16 %v3858
        %v4629 = vunpack.c.h.b16 %v3858
        %v4630 = vunpack.c.l.b16 %v3859
        %v4631 = vunpack.c.l.b16 %v3860
        %v4632 = vunpack.c.h.b16 %v3860
        %v4633 = vunpack.c.l.b16 %v3861
        %v4634 = vunpack.c.h.b16 %v3861
        %v4635 = vunpack.c.l.b16 %v3862
        %v4636 = vunpack.c.h.b16 %v3862
        %v4637 = vunpack.c.l.b16 %v3863
        %v4638 = vunpack.c.h.b16 %v3863
        %v4639 = vunpack.c.l.b16 %v3864
        %v4640 = vunpack.c.l.b16 %v3865
        %v4641 = vunpack.c.h.b16 %v3865
        %v4642 = vunpack.c.l.b16 %v3866
        %v4643 = vunpack.c.h.b16 %v3866
        %v4644 = vunpack.c.l.b16 %v3867
        %v4645 = vunpack.c.h.b16 %v3867
        %v4646 = vunpack.c.l.b16 %v3868
        %v4647 = vunpack.c.h.b16 %v3868
        %v4648 = vunpack.c.l.b16 %v3869
        %v4649 = vunpack.c.l.b16 %v3870
        %v4650 = vunpack.c.h.b16 %v3870
        %v4651 = vunpack.c.l.b16 %v3871
        %v4652 = vunpack.c.h.b16 %v3871
        %v4653 = vunpack.c.l.b16 %v3872
        %v4654 = vunpack.c.h.b16 %v3872
        %v4655 = vunpack.c.l.b16 %v3873
        %v4656 = vunpack.c.h.b16 %v3873
        %v4657 = vunpack.c.l.b16 %v3874
        %v4658 = vunpack.c.l.b16 %v3875
        %v4659 = vunpack.c.h.b16 %v3875
        %v4660 = vunpack.c.l.b16 %v3876
        %v4661 = vunpack.c.h.b16 %v3876
        %v4662 = vunpack.c.l.b16 %v3877
        %v4663 = vunpack.c.h.b16 %v3877
        %v4664 = vunpack.c.l.b16 %v3878
        %v4665 = vunpack.c.h.b16 %v3878
        %v4666 = vunpack.c.l.b16 %v3879
        %v4667 = vunpack.c.l.b16 %v3880
        %v4668 = vunpack.c.h.b16 %v3880
        %v4669 = vunpack.c.l.b16 %v3881
        %v4670 = vunpack.c.h.b16 %v3881
        %v4671 = vunpack.c.l.b16 %v3882
        %v4672 = vunpack.c.h.b16 %v3882
        %v4673 = vunpack.c.l.b16 %v3883
        %v4674 = vunpack.c.h.b16 %v3883
        %v4675 = vunpack.c.l.b16 %v3884
        %v4676 = vunpack.c.l.b16 %v3885
        %v4677 = vunpack.c.h.b16 %v3885
        %v4678 = vunpack.c.l.b16 %v3886
        %v4679 = vunpack.c.h.b16 %v3886
        %v4680 = vunpack.c.l.b16 %v3887
        %v4681 = vunpack.c.h.b16 %v3887
        %v4682 = vunpack.c.l.b16 %v3888
        %v4683 = vunpack.c.h.b16 %v3888
        %v4684 = vunpack.c.l.b16 %v3889
        %v4685 = vunpack.c.l.b16 %v3890
        %v4686 = vunpack.c.h.b16 %v3890
        %v4687 = vunpack.c.l.b16 %v3891
        %v4688 = vunpack.c.h.b16 %v3891
        %v4689 = vunpack.c.l.b16 %v3892
        %v4690 = vunpack.c.h.b16 %v3892
        %v4691 = vunpack.c.l.b16 %v3893
        %v4692 = vunpack.c.h.b16 %v3893
        %v4693 = vunpack.c.l.b16 %v3894
        %v4694 = vunpack.c.l.b16 %v3895
        %v4695 = vunpack.c.h.b16 %v3895
        %v4696 = vunpack.c.l.b16 %v3896
        %v4697 = vunpack.c.h.b16 %v3896
        %v4698 = vunpack.c.l.b16 %v3897
        %v4699 = vunpack.c.h.b16 %v3897
        %v4700 = vunpack.c.l.b16 %v3898
        %v4701 = vunpack.c.h.b16 %v3898
        %v4702 = vunpack.c.l.b16 %v3899
        %v4703 = vunpack.c.l.b16 %v3900
        %v4704 = vunpack.c.h.b16 %v3900
        %v4705 = vunpack.c.l.b16 %v3901
        %v4706 = vunpack.c.h.b16 %v3901
        %v4707 = vunpack.c.l.b16 %v3902
        %v4708 = vunpack.c.h.b16 %v3902
        %v4709 = vunpack.c.l.b16 %v3903
        %v4710 = vunpack.c.h.b16 %v3903
        %v4711 = vunpack.c.l.b16 %v3904
        %v4712 = vunpack.c.l.b16 %v3905
        %v4713 = vunpack.c.h.b16 %v3905
        %v4714 = vunpack.c.l.b16 %v3906
        %v4715 = vunpack.c.h.b16 %v3906
        %v4716 = vunpack.c.l.b16 %v3907
        %v4717 = vunpack.c.h.b16 %v3907
        %v4718 = vunpack.c.l.b16 %v3908
        %v4719 = vunpack.c.h.b16 %v3908
        %v4720 = vunpack.c.l.b16 %v3909
        %v4721 = vunpack.c.l.b16 %v3910
        %v4722 = vunpack.c.h.b16 %v3910
        %v4723 = vunpack.c.l.b16 %v3911
        %v4724 = vunpack.c.h.b16 %v3911
        %v4725 = vunpack.c.l.b16 %v3912
        %v4726 = vunpack.c.h.b16 %v3912
        %v4727 = vunpack.c.l.b16 %v3913
        %v4728 = vunpack.c.h.b16 %v3913
        %v4729 = vunpack.c.l.b16 %v3914
        %v4730 = vunpack.c.l.b16 %v3915
        %v4731 = vunpack.c.h.b16 %v3915
        %v4732 = vunpack.c.l.b16 %v3916
        %v4733 = vunpack.c.h.b16 %v3916
        %v4734 = vunpack.c.l.b16 %v3917
        %v4735 = vunpack.c.h.b16 %v3917
        %v4736 = vunpack.c.l.b16 %v3918
        %v4737 = vunpack.c.h.b16 %v3918
        %v4738 = vunpack.c.l.b16 %v3919
        %v4739 = vunpack.c.l.b16 %v3920
        %v4740 = vunpack.c.h.b16 %v3920
        %v4741 = vunpack.c.l.b16 %v3921
        %v4742 = vunpack.c.h.b16 %v3921
        %v4743 = vunpack.c.l.b16 %v3922
        %v4744 = vunpack.c.h.b16 %v3922
        %v4745 = vunpack.c.l.b16 %v3923
        %v4746 = vunpack.c.h.b16 %v3923
        %v4747 = vunpack.c.l.b16 %v3924
        %v4748 = vpack.c.b16 %v4325, %v4316
        %v4749 = vpack.c.b16 %v4326, %v4317
        %v4750 = vpack.c.b16 %v4327, %v4318
        %v4751 = vpack.c.b16 %v4328, %v4319
        %v4752 = vpack.c.b16 %v4329, %v4320
        %v4753 = vpack.c.b16 %v4330, %v4321
        %v4754 = vpack.c.b16 %v4331, %v4322
        %v4755 = vpack.c.b16 %v4332, %v4323
        %v4756 = vpack.c.b16 %v4333, %v4324
        %v4757 = vpack.c.b16 %v4343, %v4334
        %v4758 = vpack.c.b16 %v4344, %v4335
        %v4759 = vpack.c.b16 %v4345, %v4336
        %v4760 = vpack.c.b16 %v4346, %v4337
        %v4761 = vpack.c.b16 %v4347, %v4338
        %v4762 = vpack.c.b16 %v4348, %v4339
        %v4763 = vpack.c.b16 %v4349, %v4340
        %v4764 = vpack.c.b16 %v4350, %v4341
        %v4765 = vpack.c.b16 %v4351, %v4342
        %v4766 = vpack.c.b16 %v4361, %v4352
        %v4767 = vpack.c.b16 %v4362, %v4353
        %v4768 = vpack.c.b16 %v4363, %v4354
        %v4769 = vpack.c.b16 %v4364, %v4355
        %v4770 = vpack.c.b16 %v4365, %v4356
        %v4771 = vpack.c.b16 %v4366, %v4357
        %v4772 = vpack.c.b16 %v4367, %v4358
        %v4773 = vpack.c.b16 %v4368, %v4359
        %v4774 = vpack.c.b16 %v4369, %v4360
        %v4775 = vpack.c.b16 %v4379, %v4370
        %v4776 = vpack.c.b16 %v4380, %v4371
        %v4777 = vpack.c.b16 %v4381, %v4372
        %v4778 = vpack.c.b16 %v4382, %v4373
        %v4779 = vpack.c.b16 %v4383, %v4374
        %v4780 = vpack.c.b16 %v4384, %v4375
        %v4781 = vpack.c.b16 %v4385, %v4376
        %v4782 = vpack.c.b16 %v4386, %v4377
        %v4783 = vpack.c.b16 %v4387, %v4378
        %v4784 = vpack.c.b16 %v4397, %v4388
        %v4785 = vpack.c.b16 %v4398, %v4389
        %v4786 = vpack.c.b16 %v4399, %v4390
        %v4787 = vpack.c.b16 %v4400, %v4391
        %v4788 = vpack.c.b16 %v4401, %v4392
        %v4789 = vpack.c.b16 %v4402, %v4393
        %v4790 = vpack.c.b16 %v4403, %v4394
        %v4791 = vpack.c.b16 %v4404, %v4395
        %v4792 = vpack.c.b16 %v4405, %v4396
        %v4793 = vpack.c.b16 %v4415, %v4406
        %v4794 = vpack.c.b16 %v4416, %v4407
        %v4795 = vpack.c.b16 %v4417, %v4408
        %v4796 = vpack.c.b16 %v4418, %v4409
        %v4797 = vpack.c.b16 %v4419, %v4410
        %v4798 = vpack.c.b16 %v4420, %v4411
        %v4799 = vpack.c.b16 %v4421, %v4412
        %v4800 = vpack.c.b16 %v4422, %v4413
        %v4801 = vpack.c.b16 %v4423, %v4414
        %v4802 = vpack.c.b16 %v4433, %v4424
        %v4803 = vpack.c.b16 %v4434, %v4425
        %v4804 = vpack.c.b16 %v4435, %v4426
        %v4805 = vpack.c.b16 %v4436, %v4427
        %v4806 = vpack.c.b16 %v4437, %v4428
        %v4807 = vpack.c.b16 %v4438, %v4429
        %v4808 = vpack.c.b16 %v4439, %v4430
        %v4809 = vpack.c.b16 %v4440, %v4431
        %v4810 = vpack.c.b16 %v4441, %v4432
        %v4811 = vpack.c.b16 %v4451, %v4442
        %v4812 = vpack.c.b16 %v4452, %v4443
        %v4813 = vpack.c.b16 %v4453, %v4444
        %v4814 = vpack.c.b16 %v4454, %v4445
        %v4815 = vpack.c.b16 %v4455, %v4446
        %v4816 = vpack.c.b16 %v4456, %v4447
        %v4817 = vpack.c.b16 %v4457, %v4448
        %v4818 = vpack.c.b16 %v4458, %v4449
        %v4819 = vpack.c.b16 %v4459, %v4450
        %v4820 = vpack.c.b16 %v4469, %v4460
        %v4821 = vpack.c.b16 %v4470, %v4461
        %v4822 = vpack.c.b16 %v4471, %v4462
        %v4823 = vpack.c.b16 %v4472, %v4463
        %v4824 = vpack.c.b16 %v4473, %v4464
        %v4825 = vpack.c.b16 %v4474, %v4465
        %v4826 = vpack.c.b16 %v4475, %v4466
        %v4827 = vpack.c.b16 %v4476, %v4467
        %v4828 = vpack.c.b16 %v4477, %v4468
        %v4829 = vpack.c.b16 %v4487, %v4478
        %v4830 = vpack.c.b16 %v4488, %v4479
        %v4831 = vpack.c.b16 %v4489, %v4480
        %v4832 = vpack.c.b16 %v4490, %v4481
        %v4833 = vpack.c.b16 %v4491, %v4482
        %v4834 = vpack.c.b16 %v4492, %v4483
        %v4835 = vpack.c.b16 %v4493, %v4484
        %v4836 = vpack.c.b16 %v4494, %v4485
        %v4837 = vpack.c.b16 %v4495, %v4486
        %v4838 = vpack.c.b16 %v4505, %v4496
        %v4839 = vpack.c.b16 %v4506, %v4497
        %v4840 = vpack.c.b16 %v4507, %v4498
        %v4841 = vpack.c.b16 %v4508, %v4499
        %v4842 = vpack.c.b16 %v4509, %v4500
        %v4843 = vpack.c.b16 %v4510, %v4501
        %v4844 = vpack.c.b16 %v4511, %v4502
        %v4845 = vpack.c.b16 %v4512, %v4503
        %v4846 = vpack.c.b16 %v4513, %v4504
        %v4847 = vpack.c.b16 %v4523, %v4514
        %v4848 = vpack.c.b16 %v4524, %v4515
        %v4849 = vpack.c.b16 %v4525, %v4516
        %v4850 = vpack.c.b16 %v4526, %v4517
        %v4851 = vpack.c.b16 %v4527, %v4518
        %v4852 = vpack.c.b16 %v4528, %v4519
        %v4853 = vpack.c.b16 %v4529, %v4520
        %v4854 = vpack.c.b16 %v4530, %v4521
        %v4855 = vpack.c.b16 %v4531, %v4522
        %v4856 = vpack.c.b16 %v4541, %v4532
        %v4857 = vpack.c.b16 %v4542, %v4533
        %v4858 = vpack.c.b16 %v4543, %v4534
        %v4859 = vpack.c.b16 %v4544, %v4535
        %v4860 = vpack.c.b16 %v4545, %v4536
        %v4861 = vpack.c.b16 %v4546, %v4537
        %v4862 = vpack.c.b16 %v4547, %v4538
        %v4863 = vpack.c.b16 %v4548, %v4539
        %v4864 = vpack.c.b16 %v4549, %v4540
        %v4865 = vpack.c.b16 %v4559, %v4550
        %v4866 = vpack.c.b16 %v4560, %v4551
        %v4867 = vpack.c.b16 %v4561, %v4552
        %v4868 = vpack.c.b16 %v4562, %v4553
        %v4869 = vpack.c.b16 %v4563, %v4554
        %v4870 = vpack.c.b16 %v4564, %v4555
        %v4871 = vpack.c.b16 %v4565, %v4556
        %v4872 = vpack.c.b16 %v4566, %v4557
        %v4873 = vpack.c.b16 %v4567, %v4558
        %v4874 = vpack.c.b16 %v4577, %v4568
        %v4875 = vpack.c.b16 %v4578, %v4569
        %v4876 = vpack.c.b16 %v4579, %v4570
        %v4877 = vpack.c.b16 %v4580, %v4571
        %v4878 = vpack.c.b16 %v4581, %v4572
        %v4879 = vpack.c.b16 %v4582, %v4573
        %v4880 = vpack.c.b16 %v4583, %v4574
        %v4881 = vpack.c.b16 %v4584, %v4575
        %v4882 = vpack.c.b16 %v4585, %v4576
        %v4883 = vpack.c.b16 %v4595, %v4586
        %v4884 = vpack.c.b16 %v4596, %v4587
        %v4885 = vpack.c.b16 %v4597, %v4588
        %v4886 = vpack.c.b16 %v4598, %v4589
        %v4887 = vpack.c.b16 %v4599, %v4590
        %v4888 = vpack.c.b16 %v4600, %v4591
        %v4889 = vpack.c.b16 %v4601, %v4592
        %v4890 = vpack.c.b16 %v4602, %v4593
        %v4891 = vpack.c.b16 %v4603, %v4594
        %v4892 = vpack.c.b16 %v4613, %v4604
        %v4893 = vpack.c.b16 %v4614, %v4605
        %v4894 = vpack.c.b16 %v4615, %v4606
        %v4895 = vpack.c.b16 %v4616, %v4607
        %v4896 = vpack.c.b16 %v4617, %v4608
        %v4897 = vpack.c.b16 %v4618, %v4609
        %v4898 = vpack.c.b16 %v4619, %v4610
        %v4899 = vpack.c.b16 %v4620, %v4611
        %v4900 = vpack.c.b16 %v4621, %v4612
        %v4901 = vpack.c.b16 %v4631, %v4622
        %v4902 = vpack.c.b16 %v4632, %v4623
        %v4903 = vpack.c.b16 %v4633, %v4624
        %v4904 = vpack.c.b16 %v4634, %v4625
        %v4905 = vpack.c.b16 %v4635, %v4626
        %v4906 = vpack.c.b16 %v4636, %v4627
        %v4907 = vpack.c.b16 %v4637, %v4628
        %v4908 = vpack.c.b16 %v4638, %v4629
        %v4909 = vpack.c.b16 %v4639, %v4630
        %v4910 = vpack.c.b16 %v4649, %v4640
        %v4911 = vpack.c.b16 %v4650, %v4641
        %v4912 = vpack.c.b16 %v4651, %v4642
        %v4913 = vpack.c.b16 %v4652, %v4643
        %v4914 = vpack.c.b16 %v4653, %v4644
        %v4915 = vpack.c.b16 %v4654, %v4645
        %v4916 = vpack.c.b16 %v4655, %v4646
        %v4917 = vpack.c.b16 %v4656, %v4647
        %v4918 = vpack.c.b16 %v4657, %v4648
        %v4919 = vpack.c.b16 %v4667, %v4658
        %v4920 = vpack.c.b16 %v4668, %v4659
        %v4921 = vpack.c.b16 %v4669, %v4660
        %v4922 = vpack.c.b16 %v4670, %v4661
        %v4923 = vpack.c.b16 %v4671, %v4662
        %v4924 = vpack.c.b16 %v4672, %v4663
        %v4925 = vpack.c.b16 %v4673, %v4664
        %v4926 = vpack.c.b16 %v4674, %v4665
        %v4927 = vpack.c.b16 %v4675, %v4666
        %v4928 = vpack.c.b16 %v4685, %v4676
        %v4929 = vpack.c.b16 %v4686, %v4677
        %v4930 = vpack.c.b16 %v4687, %v4678
        %v4931 = vpack.c.b16 %v4688, %v4679
        %v4932 = vpack.c.b16 %v4689, %v4680
        %v4933 = vpack.c.b16 %v4690, %v4681
        %v4934 = vpack.c.b16 %v4691, %v4682
        %v4935 = vpack.c.b16 %v4692, %v4683
        %v4936 = vpack.c.b16 %v4693, %v4684
        %v4937 = vpack.c.b16 %v4703, %v4694
        %v4938 = vpack.c.b16 %v4704, %v4695
        %v4939 = vpack.c.b16 %v4705, %v4696
        %v4940 = vpack.c.b16 %v4706, %v4697
        %v4941 = vpack.c.b16 %v4707, %v4698
        %v4942 = vpack.c.b16 %v4708, %v4699
        %v4943 = vpack.c.b16 %v4709, %v4700
        %v4944 = vpack.c.b16 %v4710, %v4701
        %v4945 = vpack.c.b16 %v4711, %v4702
        %v4946 = vpack.c.b16 %v4721, %v4712
        %v4947 = vpack.c.b16 %v4722, %v4713
        %v4948 = vpack.c.b16 %v4723, %v4714
        %v4949 = vpack.c.b16 %v4724, %v4715
        %v4950 = vpack.c.b16 %v4725, %v4716
        %v4951 = vpack.c.b16 %v4726, %v4717
        %v4952 = vpack.c.b16 %v4727, %v4718
        %v4953 = vpack.c.b16 %v4728, %v4719
        %v4954 = vpack.c.b16 %v4729, %v4720
        %v4955 = vpack.c.b16 %v4739, %v4730
        %v4956 = vpack.c.b16 %v4740, %v4731
        %v4957 = vpack.c.b16 %v4741, %v4732
        %v4958 = vpack.c.b16 %v4742, %v4733
        %v4959 = vpack.c.b16 %v4743, %v4734
        %v4960 = vpack.c.b16 %v4744, %v4735
        %v4961 = vpack.c.b16 %v4745, %v4736
        %v4962 = vpack.c.b16 %v4746, %v4737
        %v4963 = vpack.c.b16 %v4747, %v4738
        %v5324 = vunpack.c.l.b16 %v3925
        %v5325 = vunpack.c.l.b16 %v3926
        %v5326 = vunpack.c.l.b16 %v3927
        %v5327 = vunpack.c.l.b16 %v3928
        %v5328 = vunpack.c.l.b16 %v3929
        %v5329 = vunpack.c.l.b16 %v3930
        %v5330 = vunpack.c.l.b16 %v3931
        %v5331 = vunpack.c.l.b16 %v3932
        %v5332 = vunpack.c.l.b16 %v3933
        %v5333 = vunpack.c.l.b16 %v3934
        %v5334 = vunpack.c.l.b16 %v3935
        %v5335 = vunpack.c.l.b16 %v3936
        %v5336 = vunpack.c.l.b16 %v3937
        %v5337 = vunpack.c.l.b16 %v3938
        %v5338 = vunpack.c.l.b16 %v3939
        %v5339 = vunpack.c.l.b16 %v3940
        %v5340 = vunpack.c.l.b16 %v3941
        %v5341 = vunpack.c.l.b16 %v3942
        %v5342 = vunpack.c.l.b16 %v3943
        %v5343 = vunpack.c.l.b16 %v3944
        %v5344 = vunpack.c.l.b16 %v3945
        %v5345 = vunpack.c.l.b16 %v3946
        %v5346 = vunpack.c.l.b16 %v3947
        %v5347 = vunpack.c.l.b16 %v3948
        %v5348 = vunpack.c.l.b16 %v3949
        %v5349 = vunpack.c.l.b16 %v3950
        %v5350 = vunpack.c.l.b16 %v3951
        %v5351 = vunpack.c.l.b16 %v3952
        %v5352 = vunpack.c.l.b16 %v3953
        %v5353 = vunpack.c.l.b16 %v3954
        %v5354 = vunpack.c.l.b16 %v3955
        %v5355 = vunpack.c.l.b16 %v3956
        %v5356 = vunpack.c.l.b16 %v3957
        %v5357 = vunpack.c.l.b16 %v3958
        %v5358 = vunpack.c.l.b16 %v3959
        %v5359 = vunpack.c.l.b16 %v3960
        %v5360 = vunpack.c.l.b16 %v3961
        %v5361 = vunpack.c.l.b16 %v3962
        %v5362 = vunpack.c.l.b16 %v3963
        %v5363 = vunpack.c.l.b16 %v3964
        %v5364 = vunpack.c.l.b16 %v3965
        %v5365 = vunpack.c.l.b16 %v3966
        %v5366 = vunpack.c.l.b16 %v3967
        %v5367 = vunpack.c.l.b16 %v3968
        %v5368 = vunpack.c.l.b16 %v3969
        %v5369 = vunpack.c.l.b16 %v3970
        %v5370 = vunpack.c.l.b16 %v3971
        %v5371 = vunpack.c.l.b16 %v3972
        %v5372 = vunpack.c.l.b16 %v3973
        %v5373 = vunpack.c.l.b16 %v3974
        %v5374 = vunpack.c.l.b16 %v3975
        %v5375 = vunpack.c.l.b16 %v3976
        %v5376 = vunpack.c.l.b16 %v3977
        %v5377 = vunpack.c.l.b16 %v3978
        %v5378 = vunpack.c.l.b16 %v3979
        %v5379 = vunpack.c.l.b16 %v3980
        %v5380 = vunpack.c.l.b16 %v3981
        %v5381 = vunpack.c.l.b16 %v3982
        %v5382 = vunpack.c.l.b16 %v3983
        %v5383 = vunpack.c.l.b16 %v3984
        %v5384 = vunpack.c.l.b16 %v3985
        %v5385 = vunpack.c.l.b16 %v3986
        %v5386 = vunpack.c.l.b16 %v3987
        %v5387 = vunpack.c.l.b16 %v3988
        %v5388 = vunpack.c.l.b16 %v3989
        %v5389 = vunpack.c.l.b16 %v3990
        %v5390 = vunpack.c.l.b16 %v3991
        %v5391 = vunpack.c.l.b16 %v3992
        %v5392 = vunpack.c.l.b16 %v3993
        %v5393 = vunpack.c.l.b16 %v3994
        %v5394 = vunpack.c.l.b16 %v3995
        %v5395 = vunpack.c.l.b16 %v3996
        %v5396 = vunpack.c.l.b16 %v3997
        %v5397 = vunpack.c.l.b16 %v3998
        %v5398 = vunpack.c.l.b16 %v3999
        %v5399 = vunpack.c.l.b16 %v4000
        %v5400 = vunpack.c.l.b16 %v4001
        %v5401 = vunpack.c.l.b16 %v4002
        %v5402 = vunpack.c.l.b16 %v4003
        %v5403 = vunpack.c.l.b16 %v4004
        %v5404 = vunpack.c.l.b16 %v4005
        %v5405 = vunpack.c.l.b16 %v4006
        %v5406 = vunpack.c.l.b16 %v4007
        %v5407 = vunpack.c.l.b16 %v4008
        %v5408 = vunpack.c.l.b16 %v4009
        %v5409 = vunpack.c.l.b16 %v4010
        %v5410 = vunpack.c.l.b16 %v4011
        %v5411 = vunpack.c.l.b16 %v4012
        %v5412 = vunpack.c.l.b16 %v4013
        %v5413 = vunpack.c.l.b16 %v4014
        %v5414 = vunpack.c.l.b16 %v4015
        %v5415 = vunpack.c.l.b16 %v4016
        %v5416 = vunpack.c.l.b16 %v4017
        %v5417 = vunpack.c.l.b16 %v4018
        %v5418 = vunpack.c.l.b16 %v4019
        %v5419 = vunpack.c.l.b16 %v4020
        %v5420 = vunpack.c.l.b16 %v4021
        %v5421 = vunpack.c.l.b16 %v4022
        %v5422 = vunpack.c.l.b16 %v4023
        %v5423 = vunpack.c.l.b16 %v4024
        %v5424 = vunpack.c.l.b16 %v4025
        %v5425 = vunpack.c.l.b16 %v4026
        %v5426 = vunpack.c.l.b16 %v4027
        %v5427 = vunpack.c.l.b16 %v4028
        %v5428 = vunpack.c.l.b16 %v4029
        %v5429 = vunpack.c.l.b16 %v4030
        %v5430 = vunpack.c.l.b16 %v4031
        %v5431 = vunpack.c.l.b16 %v4032
        %v5432 = vunpack.c.l.b16 %v4033
        %v5433 = vunpack.c.l.b16 %v4034
        %v5434 = vunpack.c.l.b16 %v4035
        %v5435 = vunpack.c.l.b16 %v4036
        %v5436 = vunpack.c.l.b16 %v4037
        %v5437 = vunpack.c.l.b16 %v4038
        %v5438 = vunpack.c.l.b16 %v4039
        %v5439 = vunpack.c.l.b16 %v4040
        %v5440 = vunpack.c.l.b16 %v4041
        %v5441 = vunpack.c.l.b16 %v4042
        %v5442 = vunpack.c.l.b16 %v4043
        %v5443 = vunpack.c.l.b16 %v4044
        %v5444 = vunpack.c.l.b16 %v4045
        %v5445 = vunpack.c.l.b16 %v4046
        %v5446 = vunpack.c.l.b16 %v4047
        %v5447 = vunpack.c.l.b16 %v4048
        %v5448 = vunpack.c.l.b16 %v4049
        %v5449 = vunpack.c.l.b16 %v4050
        %v5450 = vunpack.c.l.b16 %v4051
        %v5451 = vunpack.c.l.b16 %v4052
        %v5452 = vunpack.c.l.b16 %v4053
        %v5453 = vunpack.c.l.b16 %v4054
        %v5454 = vunpack.c.l.b16 %v4055
        %v5455 = vunpack.c.l.b16 %v4056
        %v5456 = vunpack.c.l.b16 %v4057
        %v5457 = vunpack.c.l.b16 %v4058
        %v5458 = vunpack.c.l.b16 %v4059
        %v5459 = vunpack.c.l.b16 %v4060
        %v5460 = vunpack.c.l.b16 %v4061
        %v5461 = vunpack.c.l.b16 %v4062
        %v5462 = vunpack.c.l.b16 %v4063
        %v5463 = vunpack.c.l.b16 %v4064
        %v5464 = vunpack.c.l.b16 %v4065
        %v5465 = vunpack.c.l.b16 %v4066
        %v5466 = vunpack.c.l.b16 %v4067
        %v5467 = vunpack.c.l.b16 %v4068
        %v5468 = vpack.c.b16 %v5325, %v5324
        %v5469 = vpack.c.b16 %v5327, %v5326
        %v5470 = vpack.c.b16 %v5329, %v5328
        %v5471 = vpack.c.b16 %v5331, %v5330
        %v5472 = vpack.c.b16 %v5333, %v5332
        %v5473 = vpack.c.b16 %v5335, %v5334
        %v5474 = vpack.c.b16 %v5337, %v5336
        %v5475 = vpack.c.b16 %v5339, %v5338
        %v5476 = vpack.c.b16 %v5341, %v5340
        %v5477 = vpack.c.b16 %v5343, %v5342
        %v5478 = vpack.c.b16 %v5345, %v5344
        %v5479 = vpack.c.b16 %v5347, %v5346
        %v5480 = vpack.c.b16 %v5349, %v5348
        %v5481 = vpack.c.b16 %v5351, %v5350
        %v5482 = vpack.c.b16 %v5353, %v5352
        %v5483 = vpack.c.b16 %v5355, %v5354
        %v5484 = vpack.c.b16 %v5357, %v5356
        %v5485 = vpack.c.b16 %v5359, %v5358
        %v5486 = vpack.c.b16 %v5361, %v5360
        %v5487 = vpack.c.b16 %v5363, %v5362
        %v5488 = vpack.c.b16 %v5365, %v5364
        %v5489 = vpack.c.b16 %v5367, %v5366
        %v5490 = vpack.c.b16 %v5369, %v5368
        %v5491 = vpack.c.b16 %v5371, %v5370
        %v5492 = vpack.c.b16 %v5373, %v5372
        %v5493 = vpack.c.b16 %v5375, %v5374
        %v5494 = vpack.c.b16 %v5377, %v5376
        %v5495 = vpack.c.b16 %v5379, %v5378
        %v5496 = vpack.c.b16 %v5381, %v5380
        %v5497 = vpack.c.b16 %v5383, %v5382
        %v5498 = vpack.c.b16 %v5385, %v5384
        %v5499 = vpack.c.b16 %v5387, %v5386
        %v5500 = vpack.c.b16 %v5389, %v5388
        %v5501 = vpack.c.b16 %v5391, %v5390
        %v5502 = vpack.c.b16 %v5393, %v5392
        %v5503 = vpack.c.b16 %v5395, %v5394
        %v5504 = vpack.c.b16 %v5397, %v5396
        %v5505 = vpack.c.b16 %v5399, %v5398
        %v5506 = vpack.c.b16 %v5401, %v5400
        %v5507 = vpack.c.b16 %v5403, %v5402
        %v5508 = vpack.c.b16 %v5405, %v5404
        %v5509 = vpack.c.b16 %v5407, %v5406
        %v5510 = vpack.c.b16 %v5409, %v5408
        %v5511 = vpack.c.b16 %v5411, %v5410
        %v5512 = vpack.c.b16 %v5413, %v5412
        %v5513 = vpack.c.b16 %v5415, %v5414
        %v5514 = vpack.c.b16 %v5417, %v5416
        %v5515 = vpack.c.b16 %v5419, %v5418
        %v5516 = vpack.c.b16 %v5421, %v5420
        %v5517 = vpack.c.b16 %v5423, %v5422
        %v5518 = vpack.c.b16 %v5425, %v5424
        %v5519 = vpack.c.b16 %v5427, %v5426
        %v5520 = vpack.c.b16 %v5429, %v5428
        %v5521 = vpack.c.b16 %v5431, %v5430
        %v5522 = vpack.c.b16 %v5433, %v5432
        %v5523 = vpack.c.b16 %v5435, %v5434
        %v5524 = vpack.c.b16 %v5437, %v5436
        %v5525 = vpack.c.b16 %v5439, %v5438
        %v5526 = vpack.c.b16 %v5441, %v5440
        %v5527 = vpack.c.b16 %v5443, %v5442
        %v5528 = vpack.c.b16 %v5445, %v5444
        %v5529 = vpack.c.b16 %v5447, %v5446
        %v5530 = vpack.c.b16 %v5449, %v5448
        %v5531 = vpack.c.b16 %v5451, %v5450
        %v5532 = vpack.c.b16 %v5453, %v5452
        %v5533 = vpack.c.b16 %v5455, %v5454
        %v5534 = vpack.c.b16 %v5457, %v5456
        %v5535 = vpack.c.b16 %v5459, %v5458
        %v5536 = vpack.c.b16 %v5461, %v5460
        %v5537 = vpack.c.b16 %v5463, %v5462
        %v5538 = vpack.c.b16 %v5465, %v5464
        %v5539 = vpack.c.b16 %v5467, %v5466
        %5612 = vmatprep.subr.bf16.mxu0 0
        %5613 = vmatpush1.bf16.msra.mxu0 %v5475
        %5614 = vmatprep.subr.bf16.mxu0 0
        %5615 = vmatpush1.bf16.msra.mxu0 %v5474
        %5616 = vmatprep.subr.bf16.mxu0 0
        %5617 = vmatpush1.bf16.msra.mxu0 %v5473
        %5618 = vmatprep.subr.bf16.mxu0 0
        %5619 = vmatpush1.bf16.msra.mxu0 %v5472
        %5620 = vmatprep.subr.bf16.mxu0 0
        %5621 = vmatpush1.bf16.msra.mxu0 %v5471
        %5622 = vmatprep.subr.bf16.mxu0 0
        %5623 = vmatpush1.bf16.msra.mxu0 %v5470
        %5624 = vmatprep.subr.bf16.mxu0 0
        %5625 = vmatpush1.bf16.msra.mxu0 %v5469
        %5626 = vmatprep.subr.bf16.mxu0 0
        %5627 = vmatpush1.bf16.msra.mxu0 %v5468
        %5628 = vmatprep.subr.bf16.mxu0 0
        %5629 = vmatpush2.bf16.msra.mxu0 %v5483
        %5630 = vmatprep.subr.bf16.mxu0 0
        %5631 = vmatpush2.bf16.msra.mxu0 %v5482
        %5632 = vmatprep.subr.bf16.mxu0 0
        %5633 = vmatpush2.bf16.msra.mxu0 %v5481
        %5634 = vmatprep.subr.bf16.mxu0 0
        %5635 = vmatpush2.bf16.msra.mxu0 %v5480
        %5636 = vmatprep.subr.bf16.mxu0 0
        %5637 = vmatpush2.bf16.msra.mxu0 %v5479
        %5638 = vmatprep.subr.bf16.mxu0 0
        %5639 = vmatpush2.bf16.msra.mxu0 %v5478
        %5640 = vmatprep.subr.bf16.mxu0 0
        %5641 = vmatpush2.bf16.msra.mxu0 %v5477
        %5642 = vmatprep.subr.bf16.mxu0 0
        %5643 = vmatpush2.bf16.msra.mxu0 %v5476
        %5644 = vmatprep.mubr.bf16.mxu0 %v4749
        %5645 = vmatmul.mubr.bf16.gmra.mxu0 %v4748
        %v5646 = vpop.f32.mrf.mxu0
        %v5647 = vadd.f32 %v4074, %v5646
        %v5648 = vpop.f32.mrf.mxu0
        %v5649 = vpop.f32.mrf.mxu0
        %v5650 = vadd.f32 %v4074, %v5649
        %v5651 = vpop.f32.mrf.mxu0
        %5652 = vmatprep.mubr.bf16.mxu0 %v4758
        %5653 = vmatmul.mubr.bf16.gmra.mxu0 %v4757
        %v5654 = vpop.f32.mrf.mxu0
        %v5655 = vadd.f32 %v4074, %v5654
        %v5656 = vpop.f32.mrf.mxu0
        %v5657 = vpop.f32.mrf.mxu0
        %v5658 = vadd.f32 %v4074, %v5657
        %v5659 = vpop.f32.mrf.mxu0
        %5660 = vmatprep.mubr.bf16.mxu0 %v4767
        %5661 = vmatmul.mubr.bf16.gmra.mxu0 %v4766
        %v5662 = vpop.f32.mrf.mxu0
        %v5663 = vadd.f32 %v4074, %v5662
        %v5664 = vpop.f32.mrf.mxu0
        %v5665 = vpop.f32.mrf.mxu0
        %v5666 = vadd.f32 %v4074, %v5665
        %v5667 = vpop.f32.mrf.mxu0
        %5668 = vmatprep.mubr.bf16.mxu0 %v4776
        %5669 = vmatmul.mubr.bf16.gmra.mxu0 %v4775
        %v5670 = vpop.f32.mrf.mxu0
        %v5671 = vadd.f32 %v4074, %v5670
        %v5672 = vpop.f32.mrf.mxu0
        %v5673 = vpop.f32.mrf.mxu0
        %v5674 = vadd.f32 %v4074, %v5673
        %v5675 = vpop.f32.mrf.mxu0
        %5676 = vmatprep.mubr.bf16.mxu0 %v4785
        %5677 = vmatmul.mubr.bf16.gmra.mxu0 %v4784
        %v5678 = vpop.f32.mrf.mxu0
        %v5679 = vadd.f32 %v4074, %v5678
        %v5680 = vpop.f32.mrf.mxu0
        %v5681 = vpop.f32.mrf.mxu0
        %v5682 = vadd.f32 %v4074, %v5681
        %v5683 = vpop.f32.mrf.mxu0
        %5684 = vmatprep.mubr.bf16.mxu0 %v4794
        %5685 = vmatmul.mubr.bf16.gmra.mxu0 %v4793
        %v5686 = vpop.f32.mrf.mxu0
        %v5687 = vadd.f32 %v4074, %v5686
        %v5688 = vpop.f32.mrf.mxu0
        %v5689 = vpop.f32.mrf.mxu0
        %v5690 = vadd.f32 %v4074, %v5689
        %v5691 = vpop.f32.mrf.mxu0
        %5692 = vmatprep.mubr.bf16.mxu0 %v4803
        %5693 = vmatmul.mubr.bf16.gmra.mxu0 %v4802
        %v5694 = vpop.f32.mrf.mxu0
        %v5695 = vadd.f32 %v4074, %v5694
        %v5696 = vpop.f32.mrf.mxu0
        %v5697 = vpop.f32.mrf.mxu0
        %v5698 = vadd.f32 %v4074, %v5697
        %v5699 = vpop.f32.mrf.mxu0
        %5700 = vmatprep.mubr.bf16.mxu0 %v4812
        %5701 = vmatmul.mubr.bf16.gmra.mxu0 %v4811
        %v5702 = vpop.f32.mrf.mxu0
        %v5703 = vadd.f32 %v4074, %v5702
        %v5704 = vpop.f32.mrf.mxu0
        %v5705 = vpop.f32.mrf.mxu0
        %v5706 = vadd.f32 %v4074, %v5705
        %v5707 = vpop.f32.mrf.mxu0
        %5708 = vmatprep.mubr.bf16.mxu0 %v4821
        %5709 = vmatmul.mubr.bf16.gmra.mxu0 %v4820
        %v5710 = vpop.f32.mrf.mxu0
        %v5711 = vadd.f32 %v4074, %v5710
        %v5712 = vpop.f32.mrf.mxu0
        %v5713 = vpop.f32.mrf.mxu0
        %v5714 = vadd.f32 %v4074, %v5713
        %v5715 = vpop.f32.mrf.mxu0
        %5716 = vmatprep.mubr.bf16.mxu0 %v4830
        %5717 = vmatmul.mubr.bf16.gmra.mxu0 %v4829
        %v5718 = vpop.f32.mrf.mxu0
        %v5719 = vadd.f32 %v4074, %v5718
        %v5720 = vpop.f32.mrf.mxu0
        %v5721 = vpop.f32.mrf.mxu0
        %v5722 = vadd.f32 %v4074, %v5721
        %v5723 = vpop.f32.mrf.mxu0
        %5724 = vmatprep.mubr.bf16.mxu0 %v4839
        %5725 = vmatmul.mubr.bf16.gmra.mxu0 %v4838
        %v5726 = vpop.f32.mrf.mxu0
        %v5727 = vadd.f32 %v4074, %v5726
        %v5728 = vpop.f32.mrf.mxu0
        %v5729 = vpop.f32.mrf.mxu0
        %v5730 = vadd.f32 %v4074, %v5729
        %v5731 = vpop.f32.mrf.mxu0
        %5732 = vmatprep.mubr.bf16.mxu0 %v4848
        %5733 = vmatmul.mubr.bf16.gmra.mxu0 %v4847
        %v5734 = vpop.f32.mrf.mxu0
        %v5735 = vadd.f32 %v4074, %v5734
        %v5736 = vpop.f32.mrf.mxu0
        %v5737 = vpop.f32.mrf.mxu0
        %v5738 = vadd.f32 %v4074, %v5737
        %v5739 = vpop.f32.mrf.mxu0
        %5740 = vmatprep.mubr.bf16.mxu0 %v4857
        %5741 = vmatmul.mubr.bf16.gmra.mxu0 %v4856
        %v5742 = vpop.f32.mrf.mxu0
        %v5743 = vadd.f32 %v4074, %v5742
        %v5744 = vpop.f32.mrf.mxu0
        %v5745 = vpop.f32.mrf.mxu0
        %v5746 = vadd.f32 %v4074, %v5745
        %v5747 = vpop.f32.mrf.mxu0
        %5748 = vmatprep.mubr.bf16.mxu0 %v4866
        %5749 = vmatmul.mubr.bf16.gmra.mxu0 %v4865
        %v5750 = vpop.f32.mrf.mxu0
        %v5751 = vadd.f32 %v4074, %v5750
        %v5752 = vpop.f32.mrf.mxu0
        %v5753 = vpop.f32.mrf.mxu0
        %v5754 = vadd.f32 %v4074, %v5753
        %v5755 = vpop.f32.mrf.mxu0
        %5756 = vmatprep.mubr.bf16.mxu0 %v4875
        %5757 = vmatmul.mubr.bf16.gmra.mxu0 %v4874
        %v5758 = vpop.f32.mrf.mxu0
        %v5759 = vadd.f32 %v4074, %v5758
        %v5760 = vpop.f32.mrf.mxu0
        %v5761 = vpop.f32.mrf.mxu0
        %v5762 = vadd.f32 %v4074, %v5761
        %v5763 = vpop.f32.mrf.mxu0
        %5764 = vmatprep.mubr.bf16.mxu0 %v4884
        %5765 = vmatmul.mubr.bf16.gmra.mxu0 %v4883
        %v5766 = vpop.f32.mrf.mxu0
        %v5767 = vadd.f32 %v4074, %v5766
        %v5768 = vpop.f32.mrf.mxu0
        %v5769 = vpop.f32.mrf.mxu0
        %v5770 = vadd.f32 %v4074, %v5769
        %v5771 = vpop.f32.mrf.mxu0
        %5772 = vmatprep.mubr.bf16.mxu0 %v4893
        %5773 = vmatmul.mubr.bf16.gmra.mxu0 %v4892
        %v5774 = vpop.f32.mrf.mxu0
        %v5775 = vadd.f32 %v4074, %v5774
        %v5776 = vpop.f32.mrf.mxu0
        %v5777 = vpop.f32.mrf.mxu0
        %v5778 = vadd.f32 %v4074, %v5777
        %v5779 = vpop.f32.mrf.mxu0
        %5780 = vmatprep.mubr.bf16.mxu0 %v4902
        %5781 = vmatmul.mubr.bf16.gmra.mxu0 %v4901
        %v5782 = vpop.f32.mrf.mxu0
        %v5783 = vadd.f32 %v4074, %v5782
        %v5784 = vpop.f32.mrf.mxu0
        %v5785 = vpop.f32.mrf.mxu0
        %v5786 = vadd.f32 %v4074, %v5785
        %v5787 = vpop.f32.mrf.mxu0
        %5788 = vmatprep.mubr.bf16.mxu0 %v4911
        %5789 = vmatmul.mubr.bf16.gmra.mxu0 %v4910
        %v5790 = vpop.f32.mrf.mxu0
        %v5791 = vadd.f32 %v4074, %v5790
        %v5792 = vpop.f32.mrf.mxu0
        %v5793 = vpop.f32.mrf.mxu0
        %v5794 = vadd.f32 %v4074, %v5793
        %v5795 = vpop.f32.mrf.mxu0
        %5796 = vmatprep.mubr.bf16.mxu0 %v4920
        %5797 = vmatmul.mubr.bf16.gmra.mxu0 %v4919
        %v5798 = vpop.f32.mrf.mxu0
        %v5799 = vadd.f32 %v4074, %v5798
        %v5800 = vpop.f32.mrf.mxu0
        %v5801 = vpop.f32.mrf.mxu0
        %v5802 = vadd.f32 %v4074, %v5801
        %v5803 = vpop.f32.mrf.mxu0
        %5804 = vmatprep.mubr.bf16.mxu0 %v4929
        %5805 = vmatmul.mubr.bf16.gmra.mxu0 %v4928
        %v5806 = vpop.f32.mrf.mxu0
        %v5807 = vadd.f32 %v4074, %v5806
        %v5808 = vpop.f32.mrf.mxu0
        %v5809 = vpop.f32.mrf.mxu0
        %v5810 = vadd.f32 %v4074, %v5809
        %v5811 = vpop.f32.mrf.mxu0
        %5812 = vmatprep.mubr.bf16.mxu0 %v4938
        %5813 = vmatmul.mubr.bf16.gmra.mxu0 %v4937
        %v5814 = vpop.f32.mrf.mxu0
        %v5815 = vadd.f32 %v4074, %v5814
        %v5816 = vpop.f32.mrf.mxu0
        %v5817 = vpop.f32.mrf.mxu0
        %v5818 = vadd.f32 %v4074, %v5817
        %v5819 = vpop.f32.mrf.mxu0
        %5820 = vmatprep.mubr.bf16.mxu0 %v4947
        %5821 = vmatmul.mubr.bf16.gmra.mxu0 %v4946
        %v5822 = vpop.f32.mrf.mxu0
        %v5823 = vadd.f32 %v4074, %v5822
        %v5824 = vpop.f32.mrf.mxu0
        %v5825 = vpop.f32.mrf.mxu0
        %v5826 = vadd.f32 %v4074, %v5825
        %v5827 = vpop.f32.mrf.mxu0
        %5828 = vmatprep.mubr.bf16.mxu0 %v4956
        %5829 = vmatmul.mubr.bf16.gmra.mxu0 %v4955
        %v5830 = vpop.f32.mrf.mxu0
        %v5831 = vadd.f32 %v4074, %v5830
        %v5832 = vpop.f32.mrf.mxu0
        %v5833 = vpop.f32.mrf.mxu0
        %v5834 = vadd.f32 %v4074, %v5833
        %v5835 = vpop.f32.mrf.mxu0
        %5836 = vdwg.mxu0
        %5837 = vmatprep.subr.bf16.mxu0 0
        %5838 = vmatpush1.bf16.msra.mxu0 %v5491
        %5839 = vmatprep.subr.bf16.mxu0 0
        %5840 = vmatpush1.bf16.msra.mxu0 %v5490
        %5841 = vmatprep.subr.bf16.mxu0 0
        %5842 = vmatpush1.bf16.msra.mxu0 %v5489
        %5843 = vmatprep.subr.bf16.mxu0 0
        %5844 = vmatpush1.bf16.msra.mxu0 %v5488
        %5845 = vmatprep.subr.bf16.mxu0 0
        %5846 = vmatpush1.bf16.msra.mxu0 %v5487
        %5847 = vmatprep.subr.bf16.mxu0 0
        %5848 = vmatpush1.bf16.msra.mxu0 %v5486
        %5849 = vmatprep.subr.bf16.mxu0 0
        %5850 = vmatpush1.bf16.msra.mxu0 %v5485
        %5851 = vmatprep.subr.bf16.mxu0 0
        %5852 = vmatpush1.bf16.msra.mxu0 %v5484
        %5853 = vmatprep.subr.bf16.mxu0 0
        %5854 = vmatpush2.bf16.msra.mxu0 %v5499
        %5855 = vmatprep.subr.bf16.mxu0 0
        %5856 = vmatpush2.bf16.msra.mxu0 %v5498
        %5857 = vmatprep.subr.bf16.mxu0 0
        %5858 = vmatpush2.bf16.msra.mxu0 %v5497
        %5859 = vmatprep.subr.bf16.mxu0 0
        %5860 = vmatpush2.bf16.msra.mxu0 %v5496
        %5861 = vmatprep.subr.bf16.mxu0 0
        %5862 = vmatpush2.bf16.msra.mxu0 %v5495
        %5863 = vmatprep.subr.bf16.mxu0 0
        %5864 = vmatpush2.bf16.msra.mxu0 %v5494
        %5865 = vmatprep.subr.bf16.mxu0 0
        %5866 = vmatpush2.bf16.msra.mxu0 %v5493
        %5867 = vmatprep.subr.bf16.mxu0 0
        %5868 = vmatpush2.bf16.msra.mxu0 %v5492
        %5869 = vmatprep.mubr.bf16.mxu0 %v4751
        %5870 = vmatmul.mubr.bf16.gmra.mxu0 %v4750
        %v5871 = vpop.f32.mrf.mxu0
        %v5872 = vadd.f32 %v5647, %v5871
        %v5873 = vpop.f32.mrf.mxu0
        %v5874 = vpop.f32.mrf.mxu0
        %v5875 = vadd.f32 %v5650, %v5874
        %v5876 = vpop.f32.mrf.mxu0
        %5877 = vmatprep.mubr.bf16.mxu0 %v4760
        %5878 = vmatmul.mubr.bf16.gmra.mxu0 %v4759
        %v5879 = vpop.f32.mrf.mxu0
        %v5880 = vadd.f32 %v5655, %v5879
        %v5881 = vpop.f32.mrf.mxu0
        %v5882 = vpop.f32.mrf.mxu0
        %v5883 = vadd.f32 %v5658, %v5882
        %v5884 = vpop.f32.mrf.mxu0
        %5885 = vmatprep.mubr.bf16.mxu0 %v4769
        %5886 = vmatmul.mubr.bf16.gmra.mxu0 %v4768
        %v5887 = vpop.f32.mrf.mxu0
        %v5888 = vadd.f32 %v5663, %v5887
        %v5889 = vpop.f32.mrf.mxu0
        %v5890 = vpop.f32.mrf.mxu0
        %v5891 = vadd.f32 %v5666, %v5890
        %v5892 = vpop.f32.mrf.mxu0
        %5893 = vmatprep.mubr.bf16.mxu0 %v4778
        %5894 = vmatmul.mubr.bf16.gmra.mxu0 %v4777
        %v5895 = vpop.f32.mrf.mxu0
        %v5896 = vadd.f32 %v5671, %v5895
        %v5897 = vpop.f32.mrf.mxu0
        %v5898 = vpop.f32.mrf.mxu0
        %v5899 = vadd.f32 %v5674, %v5898
        %v5900 = vpop.f32.mrf.mxu0
        %5901 = vmatprep.mubr.bf16.mxu0 %v4787
        %5902 = vmatmul.mubr.bf16.gmra.mxu0 %v4786
        %v5903 = vpop.f32.mrf.mxu0
        %v5904 = vadd.f32 %v5679, %v5903
        %v5905 = vpop.f32.mrf.mxu0
        %v5906 = vpop.f32.mrf.mxu0
        %v5907 = vadd.f32 %v5682, %v5906
        %v5908 = vpop.f32.mrf.mxu0
        %5909 = vmatprep.mubr.bf16.mxu0 %v4796
        %5910 = vmatmul.mubr.bf16.gmra.mxu0 %v4795
        %v5911 = vpop.f32.mrf.mxu0
        %v5912 = vadd.f32 %v5687, %v5911
        %v5913 = vpop.f32.mrf.mxu0
        %v5914 = vpop.f32.mrf.mxu0
        %v5915 = vadd.f32 %v5690, %v5914
        %v5916 = vpop.f32.mrf.mxu0
        %5917 = vmatprep.mubr.bf16.mxu0 %v4805
        %5918 = vmatmul.mubr.bf16.gmra.mxu0 %v4804
        %v5919 = vpop.f32.mrf.mxu0
        %v5920 = vadd.f32 %v5695, %v5919
        %v5921 = vpop.f32.mrf.mxu0
        %v5922 = vpop.f32.mrf.mxu0
        %v5923 = vadd.f32 %v5698, %v5922
        %v5924 = vpop.f32.mrf.mxu0
        %5925 = vmatprep.mubr.bf16.mxu0 %v4814
        %5926 = vmatmul.mubr.bf16.gmra.mxu0 %v4813
        %v5927 = vpop.f32.mrf.mxu0
        %v5928 = vadd.f32 %v5703, %v5927
        %v5929 = vpop.f32.mrf.mxu0
        %v5930 = vpop.f32.mrf.mxu0
        %v5931 = vadd.f32 %v5706, %v5930
        %v5932 = vpop.f32.mrf.mxu0
        %5933 = vmatprep.mubr.bf16.mxu0 %v4823
        %5934 = vmatmul.mubr.bf16.gmra.mxu0 %v4822
        %v5935 = vpop.f32.mrf.mxu0
        %v5936 = vadd.f32 %v5711, %v5935
        %v5937 = vpop.f32.mrf.mxu0
        %v5938 = vpop.f32.mrf.mxu0
        %v5939 = vadd.f32 %v5714, %v5938
        %v5940 = vpop.f32.mrf.mxu0
        %5941 = vmatprep.mubr.bf16.mxu0 %v4832
        %5942 = vmatmul.mubr.bf16.gmra.mxu0 %v4831
        %v5943 = vpop.f32.mrf.mxu0
        %v5944 = vadd.f32 %v5719, %v5943
        %v5945 = vpop.f32.mrf.mxu0
        %v5946 = vpop.f32.mrf.mxu0
        %v5947 = vadd.f32 %v5722, %v5946
        %v5948 = vpop.f32.mrf.mxu0
        %5949 = vmatprep.mubr.bf16.mxu0 %v4841
        %5950 = vmatmul.mubr.bf16.gmra.mxu0 %v4840
        %v5951 = vpop.f32.mrf.mxu0
        %v5952 = vadd.f32 %v5727, %v5951
        %v5953 = vpop.f32.mrf.mxu0
        %v5954 = vpop.f32.mrf.mxu0
        %v5955 = vadd.f32 %v5730, %v5954
        %v5956 = vpop.f32.mrf.mxu0
        %5957 = vmatprep.mubr.bf16.mxu0 %v4850
        %5958 = vmatmul.mubr.bf16.gmra.mxu0 %v4849
        %v5959 = vpop.f32.mrf.mxu0
        %v5960 = vadd.f32 %v5735, %v5959
        %v5961 = vpop.f32.mrf.mxu0
        %v5962 = vpop.f32.mrf.mxu0
        %v5963 = vadd.f32 %v5738, %v5962
        %v5964 = vpop.f32.mrf.mxu0
        %5965 = vmatprep.mubr.bf16.mxu0 %v4859
        %5966 = vmatmul.mubr.bf16.gmra.mxu0 %v4858
        %v5967 = vpop.f32.mrf.mxu0
        %v5968 = vadd.f32 %v5743, %v5967
        %v5969 = vpop.f32.mrf.mxu0
        %v5970 = vpop.f32.mrf.mxu0
        %v5971 = vadd.f32 %v5746, %v5970
        %v5972 = vpop.f32.mrf.mxu0
        %5973 = vmatprep.mubr.bf16.mxu0 %v4868
        %5974 = vmatmul.mubr.bf16.gmra.mxu0 %v4867
        %v5975 = vpop.f32.mrf.mxu0
        %v5976 = vadd.f32 %v5751, %v5975
        %v5977 = vpop.f32.mrf.mxu0
        %v5978 = vpop.f32.mrf.mxu0
        %v5979 = vadd.f32 %v5754, %v5978
        %v5980 = vpop.f32.mrf.mxu0
        %5981 = vmatprep.mubr.bf16.mxu0 %v4877
        %5982 = vmatmul.mubr.bf16.gmra.mxu0 %v4876
        %v5983 = vpop.f32.mrf.mxu0
        %v5984 = vadd.f32 %v5759, %v5983
        %v5985 = vpop.f32.mrf.mxu0
        %v5986 = vpop.f32.mrf.mxu0
        %v5987 = vadd.f32 %v5762, %v5986
        %v5988 = vpop.f32.mrf.mxu0
        %5989 = vmatprep.mubr.bf16.mxu0 %v4886
        %5990 = vmatmul.mubr.bf16.gmra.mxu0 %v4885
        %v5991 = vpop.f32.mrf.mxu0
        %v5992 = vadd.f32 %v5767, %v5991
        %v5993 = vpop.f32.mrf.mxu0
        %v5994 = vpop.f32.mrf.mxu0
        %v5995 = vadd.f32 %v5770, %v5994
        %v5996 = vpop.f32.mrf.mxu0
        %5997 = vmatprep.mubr.bf16.mxu0 %v4895
        %5998 = vmatmul.mubr.bf16.gmra.mxu0 %v4894
        %v5999 = vpop.f32.mrf.mxu0
        %v6000 = vadd.f32 %v5775, %v5999
        %v6001 = vpop.f32.mrf.mxu0
        %v6002 = vpop.f32.mrf.mxu0
        %v6003 = vadd.f32 %v5778, %v6002
        %v6004 = vpop.f32.mrf.mxu0
        %6005 = vmatprep.mubr.bf16.mxu0 %v4904
        %6006 = vmatmul.mubr.bf16.gmra.mxu0 %v4903
        %v6007 = vpop.f32.mrf.mxu0
        %v6008 = vadd.f32 %v5783, %v6007
        %v6009 = vpop.f32.mrf.mxu0
        %v6010 = vpop.f32.mrf.mxu0
        %v6011 = vadd.f32 %v5786, %v6010
        %v6012 = vpop.f32.mrf.mxu0
        %6013 = vmatprep.mubr.bf16.mxu0 %v4913
        %6014 = vmatmul.mubr.bf16.gmra.mxu0 %v4912
        %v6015 = vpop.f32.mrf.mxu0
        %v6016 = vadd.f32 %v5791, %v6015
        %v6017 = vpop.f32.mrf.mxu0
        %v6018 = vpop.f32.mrf.mxu0
        %v6019 = vadd.f32 %v5794, %v6018
        %v6020 = vpop.f32.mrf.mxu0
        %6021 = vmatprep.mubr.bf16.mxu0 %v4922
        %6022 = vmatmul.mubr.bf16.gmra.mxu0 %v4921
        %v6023 = vpop.f32.mrf.mxu0
        %v6024 = vadd.f32 %v5799, %v6023
        %v6025 = vpop.f32.mrf.mxu0
        %v6026 = vpop.f32.mrf.mxu0
        %v6027 = vadd.f32 %v5802, %v6026
        %v6028 = vpop.f32.mrf.mxu0
        %6029 = vmatprep.mubr.bf16.mxu0 %v4931
        %6030 = vmatmul.mubr.bf16.gmra.mxu0 %v4930
        %v6031 = vpop.f32.mrf.mxu0
        %v6032 = vadd.f32 %v5807, %v6031
        %v6033 = vpop.f32.mrf.mxu0
        %v6034 = vpop.f32.mrf.mxu0
        %v6035 = vadd.f32 %v5810, %v6034
        %v6036 = vpop.f32.mrf.mxu0
        %6037 = vmatprep.mubr.bf16.mxu0 %v4940
        %6038 = vmatmul.mubr.bf16.gmra.mxu0 %v4939
        %v6039 = vpop.f32.mrf.mxu0
        %v6040 = vadd.f32 %v5815, %v6039
        %v6041 = vpop.f32.mrf.mxu0
        %v6042 = vpop.f32.mrf.mxu0
        %v6043 = vadd.f32 %v5818, %v6042
        %v6044 = vpop.f32.mrf.mxu0
        %6045 = vmatprep.mubr.bf16.mxu0 %v4949
        %6046 = vmatmul.mubr.bf16.gmra.mxu0 %v4948
        %v6047 = vpop.f32.mrf.mxu0
        %v6048 = vadd.f32 %v5823, %v6047
        %v6049 = vpop.f32.mrf.mxu0
        %v6050 = vpop.f32.mrf.mxu0
        %v6051 = vadd.f32 %v5826, %v6050
        %v6052 = vpop.f32.mrf.mxu0
        %6053 = vmatprep.mubr.bf16.mxu0 %v4958
        %6054 = vmatmul.mubr.bf16.gmra.mxu0 %v4957
        %v6055 = vpop.f32.mrf.mxu0
        %v6056 = vadd.f32 %v5831, %v6055
        %v6057 = vpop.f32.mrf.mxu0
        %v6058 = vpop.f32.mrf.mxu0
        %v6059 = vadd.f32 %v5834, %v6058
        %v6060 = vpop.f32.mrf.mxu0
        %6061 = vdwg.mxu0
        %6062 = vmatprep.subr.bf16.mxu0 0
        %6063 = vmatpush1.bf16.msra.mxu0 %v5507
        %6064 = vmatprep.subr.bf16.mxu0 0
        %6065 = vmatpush1.bf16.msra.mxu0 %v5506
        %6066 = vmatprep.subr.bf16.mxu0 0
        %6067 = vmatpush1.bf16.msra.mxu0 %v5505
        %6068 = vmatprep.subr.bf16.mxu0 0
        %6069 = vmatpush1.bf16.msra.mxu0 %v5504
        %6070 = vmatprep.subr.bf16.mxu0 0
        %6071 = vmatpush1.bf16.msra.mxu0 %v5503
        %6072 = vmatprep.subr.bf16.mxu0 0
        %6073 = vmatpush1.bf16.msra.mxu0 %v5502
        %6074 = vmatprep.subr.bf16.mxu0 0
        %6075 = vmatpush1.bf16.msra.mxu0 %v5501
        %6076 = vmatprep.subr.bf16.mxu0 0
        %6077 = vmatpush1.bf16.msra.mxu0 %v5500
        %6078 = vmatprep.subr.bf16.mxu0 0
        %6079 = vmatpush2.bf16.msra.mxu0 %v5515
        %6080 = vmatprep.subr.bf16.mxu0 0
        %6081 = vmatpush2.bf16.msra.mxu0 %v5514
        %6082 = vmatprep.subr.bf16.mxu0 0
        %6083 = vmatpush2.bf16.msra.mxu0 %v5513
        %6084 = vmatprep.subr.bf16.mxu0 0
        %6085 = vmatpush2.bf16.msra.mxu0 %v5512
        %6086 = vmatprep.subr.bf16.mxu0 0
        %6087 = vmatpush2.bf16.msra.mxu0 %v5511
        %6088 = vmatprep.subr.bf16.mxu0 0
        %6089 = vmatpush2.bf16.msra.mxu0 %v5510
        %6090 = vmatprep.subr.bf16.mxu0 0
        %6091 = vmatpush2.bf16.msra.mxu0 %v5509
        %6092 = vmatprep.subr.bf16.mxu0 0
        %6093 = vmatpush2.bf16.msra.mxu0 %v5508
        %6094 = vmatprep.mubr.bf16.mxu0 %v4753
        %6095 = vmatmul.mubr.bf16.gmra.mxu0 %v4752
        %v6096 = vpop.f32.mrf.mxu0
        %v6097 = vadd.f32 %v5872, %v6096
        %v6098 = vpop.f32.mrf.mxu0
        %v6099 = vpop.f32.mrf.mxu0
        %v6100 = vadd.f32 %v5875, %v6099
        %v6101 = vpop.f32.mrf.mxu0
        %6102 = vmatprep.mubr.bf16.mxu0 %v4762
        %6103 = vmatmul.mubr.bf16.gmra.mxu0 %v4761
        %v6104 = vpop.f32.mrf.mxu0
        %v6105 = vadd.f32 %v5880, %v6104
        %v6106 = vpop.f32.mrf.mxu0
        %v6107 = vpop.f32.mrf.mxu0
        %v6108 = vadd.f32 %v5883, %v6107
        %v6109 = vpop.f32.mrf.mxu0
        %6110 = vmatprep.mubr.bf16.mxu0 %v4771
        %6111 = vmatmul.mubr.bf16.gmra.mxu0 %v4770
        %v6112 = vpop.f32.mrf.mxu0
        %v6113 = vadd.f32 %v5888, %v6112
        %v6114 = vpop.f32.mrf.mxu0
        %v6115 = vpop.f32.mrf.mxu0
        %v6116 = vadd.f32 %v5891, %v6115
        %v6117 = vpop.f32.mrf.mxu0
        %6118 = vmatprep.mubr.bf16.mxu0 %v4780
        %6119 = vmatmul.mubr.bf16.gmra.mxu0 %v4779
        %v6120 = vpop.f32.mrf.mxu0
        %v6121 = vadd.f32 %v5896, %v6120
        %v6122 = vpop.f32.mrf.mxu0
        %v6123 = vpop.f32.mrf.mxu0
        %v6124 = vadd.f32 %v5899, %v6123
        %v6125 = vpop.f32.mrf.mxu0
        %6126 = vmatprep.mubr.bf16.mxu0 %v4789
        %6127 = vmatmul.mubr.bf16.gmra.mxu0 %v4788
        %v6128 = vpop.f32.mrf.mxu0
        %v6129 = vadd.f32 %v5904, %v6128
        %v6130 = vpop.f32.mrf.mxu0
        %v6131 = vpop.f32.mrf.mxu0
        %v6132 = vadd.f32 %v5907, %v6131
        %v6133 = vpop.f32.mrf.mxu0
        %6134 = vmatprep.mubr.bf16.mxu0 %v4798
        %6135 = vmatmul.mubr.bf16.gmra.mxu0 %v4797
        %v6136 = vpop.f32.mrf.mxu0
        %v6137 = vadd.f32 %v5912, %v6136
        %v6138 = vpop.f32.mrf.mxu0
        %v6139 = vpop.f32.mrf.mxu0
        %v6140 = vadd.f32 %v5915, %v6139
        %v6141 = vpop.f32.mrf.mxu0
        %6142 = vmatprep.mubr.bf16.mxu0 %v4807
        %6143 = vmatmul.mubr.bf16.gmra.mxu0 %v4806
        %v6144 = vpop.f32.mrf.mxu0
        %v6145 = vadd.f32 %v5920, %v6144
        %v6146 = vpop.f32.mrf.mxu0
        %v6147 = vpop.f32.mrf.mxu0
        %v6148 = vadd.f32 %v5923, %v6147
        %v6149 = vpop.f32.mrf.mxu0
        %6150 = vmatprep.mubr.bf16.mxu0 %v4816
        %6151 = vmatmul.mubr.bf16.gmra.mxu0 %v4815
        %v6152 = vpop.f32.mrf.mxu0
        %v6153 = vadd.f32 %v5928, %v6152
        %v6154 = vpop.f32.mrf.mxu0
        %v6155 = vpop.f32.mrf.mxu0
        %v6156 = vadd.f32 %v5931, %v6155
        %v6157 = vpop.f32.mrf.mxu0
        %6158 = vmatprep.mubr.bf16.mxu0 %v4825
        %6159 = vmatmul.mubr.bf16.gmra.mxu0 %v4824
        %v6160 = vpop.f32.mrf.mxu0
        %v6161 = vadd.f32 %v5936, %v6160
        %v6162 = vpop.f32.mrf.mxu0
        %v6163 = vpop.f32.mrf.mxu0
        %v6164 = vadd.f32 %v5939, %v6163
        %v6165 = vpop.f32.mrf.mxu0
        %6166 = vmatprep.mubr.bf16.mxu0 %v4834
        %6167 = vmatmul.mubr.bf16.gmra.mxu0 %v4833
        %v6168 = vpop.f32.mrf.mxu0
        %v6169 = vadd.f32 %v5944, %v6168
        %v6170 = vpop.f32.mrf.mxu0
        %v6171 = vpop.f32.mrf.mxu0
        %v6172 = vadd.f32 %v5947, %v6171
        %v6173 = vpop.f32.mrf.mxu0
        %6174 = vmatprep.mubr.bf16.mxu0 %v4843
        %6175 = vmatmul.mubr.bf16.gmra.mxu0 %v4842
        %v6176 = vpop.f32.mrf.mxu0
        %v6177 = vadd.f32 %v5952, %v6176
        %v6178 = vpop.f32.mrf.mxu0
        %v6179 = vpop.f32.mrf.mxu0
        %v6180 = vadd.f32 %v5955, %v6179
        %v6181 = vpop.f32.mrf.mxu0
        %6182 = vmatprep.mubr.bf16.mxu0 %v4852
        %6183 = vmatmul.mubr.bf16.gmra.mxu0 %v4851
        %v6184 = vpop.f32.mrf.mxu0
        %v6185 = vadd.f32 %v5960, %v6184
        %v6186 = vpop.f32.mrf.mxu0
        %v6187 = vpop.f32.mrf.mxu0
        %v6188 = vadd.f32 %v5963, %v6187
        %v6189 = vpop.f32.mrf.mxu0
        %6190 = vmatprep.mubr.bf16.mxu0 %v4861
        %6191 = vmatmul.mubr.bf16.gmra.mxu0 %v4860
        %v6192 = vpop.f32.mrf.mxu0
        %v6193 = vadd.f32 %v5968, %v6192
        %v6194 = vpop.f32.mrf.mxu0
        %v6195 = vpop.f32.mrf.mxu0
        %v6196 = vadd.f32 %v5971, %v6195
        %v6197 = vpop.f32.mrf.mxu0
        %6198 = vmatprep.mubr.bf16.mxu0 %v4870
        %6199 = vmatmul.mubr.bf16.gmra.mxu0 %v4869
        %v6200 = vpop.f32.mrf.mxu0
        %v6201 = vadd.f32 %v5976, %v6200
        %v6202 = vpop.f32.mrf.mxu0
        %v6203 = vpop.f32.mrf.mxu0
        %v6204 = vadd.f32 %v5979, %v6203
        %v6205 = vpop.f32.mrf.mxu0
        %6206 = vmatprep.mubr.bf16.mxu0 %v4879
        %6207 = vmatmul.mubr.bf16.gmra.mxu0 %v4878
        %v6208 = vpop.f32.mrf.mxu0
        %v6209 = vadd.f32 %v5984, %v6208
        %v6210 = vpop.f32.mrf.mxu0
        %v6211 = vpop.f32.mrf.mxu0
        %v6212 = vadd.f32 %v5987, %v6211
        %v6213 = vpop.f32.mrf.mxu0
        %6214 = vmatprep.mubr.bf16.mxu0 %v4888
        %6215 = vmatmul.mubr.bf16.gmra.mxu0 %v4887
        %v6216 = vpop.f32.mrf.mxu0
        %v6217 = vadd.f32 %v5992, %v6216
        %v6218 = vpop.f32.mrf.mxu0
        %v6219 = vpop.f32.mrf.mxu0
        %v6220 = vadd.f32 %v5995, %v6219
        %v6221 = vpop.f32.mrf.mxu0
        %6222 = vmatprep.mubr.bf16.mxu0 %v4897
        %6223 = vmatmul.mubr.bf16.gmra.mxu0 %v4896
        %v6224 = vpop.f32.mrf.mxu0
        %v6225 = vadd.f32 %v6000, %v6224
        %v6226 = vpop.f32.mrf.mxu0
        %v6227 = vpop.f32.mrf.mxu0
        %v6228 = vadd.f32 %v6003, %v6227
        %v6229 = vpop.f32.mrf.mxu0
        %6230 = vmatprep.mubr.bf16.mxu0 %v4906
        %6231 = vmatmul.mubr.bf16.gmra.mxu0 %v4905
        %v6232 = vpop.f32.mrf.mxu0
        %v6233 = vadd.f32 %v6008, %v6232
        %v6234 = vpop.f32.mrf.mxu0
        %v6235 = vpop.f32.mrf.mxu0
        %v6236 = vadd.f32 %v6011, %v6235
        %v6237 = vpop.f32.mrf.mxu0
        %6238 = vmatprep.mubr.bf16.mxu0 %v4915
        %6239 = vmatmul.mubr.bf16.gmra.mxu0 %v4914
        %v6240 = vpop.f32.mrf.mxu0
        %v6241 = vadd.f32 %v6016, %v6240
        %v6242 = vpop.f32.mrf.mxu0
        %v6243 = vpop.f32.mrf.mxu0
        %v6244 = vadd.f32 %v6019, %v6243
        %v6245 = vpop.f32.mrf.mxu0
        %6246 = vmatprep.mubr.bf16.mxu0 %v4924
        %6247 = vmatmul.mubr.bf16.gmra.mxu0 %v4923
        %v6248 = vpop.f32.mrf.mxu0
        %v6249 = vadd.f32 %v6024, %v6248
        %v6250 = vpop.f32.mrf.mxu0
        %v6251 = vpop.f32.mrf.mxu0
        %v6252 = vadd.f32 %v6027, %v6251
        %v6253 = vpop.f32.mrf.mxu0
        %6254 = vmatprep.mubr.bf16.mxu0 %v4933
        %6255 = vmatmul.mubr.bf16.gmra.mxu0 %v4932
        %v6256 = vpop.f32.mrf.mxu0
        %v6257 = vadd.f32 %v6032, %v6256
        %v6258 = vpop.f32.mrf.mxu0
        %v6259 = vpop.f32.mrf.mxu0
        %v6260 = vadd.f32 %v6035, %v6259
        %v6261 = vpop.f32.mrf.mxu0
        %6262 = vmatprep.mubr.bf16.mxu0 %v4942
        %6263 = vmatmul.mubr.bf16.gmra.mxu0 %v4941
        %v6264 = vpop.f32.mrf.mxu0
        %v6265 = vadd.f32 %v6040, %v6264
        %v6266 = vpop.f32.mrf.mxu0
        %v6267 = vpop.f32.mrf.mxu0
        %v6268 = vadd.f32 %v6043, %v6267
        %v6269 = vpop.f32.mrf.mxu0
        %6270 = vmatprep.mubr.bf16.mxu0 %v4951
        %6271 = vmatmul.mubr.bf16.gmra.mxu0 %v4950
        %v6272 = vpop.f32.mrf.mxu0
        %v6273 = vadd.f32 %v6048, %v6272
        %v6274 = vpop.f32.mrf.mxu0
        %v6275 = vpop.f32.mrf.mxu0
        %v6276 = vadd.f32 %v6051, %v6275
        %v6277 = vpop.f32.mrf.mxu0
        %6278 = vmatprep.mubr.bf16.mxu0 %v4960
        %6279 = vmatmul.mubr.bf16.gmra.mxu0 %v4959
        %v6280 = vpop.f32.mrf.mxu0
        %v6281 = vadd.f32 %v6056, %v6280
        %v6282 = vpop.f32.mrf.mxu0
        %v6283 = vpop.f32.mrf.mxu0
        %v6284 = vadd.f32 %v6059, %v6283
        %v6285 = vpop.f32.mrf.mxu0
        %6286 = vdwg.mxu0
        %6287 = vmatprep.subr.bf16.mxu0 0
        %6288 = vmatpush1.bf16.msra.mxu0 %v5523
        %6289 = vmatprep.subr.bf16.mxu0 0
        %6290 = vmatpush1.bf16.msra.mxu0 %v5522
        %6291 = vmatprep.subr.bf16.mxu0 0
        %6292 = vmatpush1.bf16.msra.mxu0 %v5521
        %6293 = vmatprep.subr.bf16.mxu0 0
        %6294 = vmatpush1.bf16.msra.mxu0 %v5520
        %6295 = vmatprep.subr.bf16.mxu0 0
        %6296 = vmatpush1.bf16.msra.mxu0 %v5519
        %6297 = vmatprep.subr.bf16.mxu0 0
        %6298 = vmatpush1.bf16.msra.mxu0 %v5518
        %6299 = vmatprep.subr.bf16.mxu0 0
        %6300 = vmatpush1.bf16.msra.mxu0 %v5517
        %6301 = vmatprep.subr.bf16.mxu0 0
        %6302 = vmatpush1.bf16.msra.mxu0 %v5516
        %6303 = vmatprep.subr.bf16.mxu0 0
        %6304 = vmatpush2.bf16.msra.mxu0 %v5531
        %6305 = vmatprep.subr.bf16.mxu0 0
        %6306 = vmatpush2.bf16.msra.mxu0 %v5530
        %6307 = vmatprep.subr.bf16.mxu0 0
        %6308 = vmatpush2.bf16.msra.mxu0 %v5529
        %6309 = vmatprep.subr.bf16.mxu0 0
        %6310 = vmatpush2.bf16.msra.mxu0 %v5528
        %6311 = vmatprep.subr.bf16.mxu0 0
        %6312 = vmatpush2.bf16.msra.mxu0 %v5527
        %6313 = vmatprep.subr.bf16.mxu0 0
        %6314 = vmatpush2.bf16.msra.mxu0 %v5526
        %6315 = vmatprep.subr.bf16.mxu0 0
        %6316 = vmatpush2.bf16.msra.mxu0 %v5525
        %6317 = vmatprep.subr.bf16.mxu0 0
        %6318 = vmatpush2.bf16.msra.mxu0 %v5524
        %6319 = vmatprep.mubr.bf16.mxu0 %v4755
        %6320 = vmatmul.mubr.bf16.gmra.mxu0 %v4754
        %v6321 = vpop.f32.mrf.mxu0
        %v6322 = vadd.f32 %v6097, %v6321
        %v6323 = vpop.f32.mrf.mxu0
        %v6324 = vpop.f32.mrf.mxu0
        %v6325 = vadd.f32 %v6100, %v6324
        %v6326 = vpop.f32.mrf.mxu0
        %6327 = vmatprep.mubr.bf16.mxu0 %v4764
        %6328 = vmatmul.mubr.bf16.gmra.mxu0 %v4763
        %v6329 = vpop.f32.mrf.mxu0
        %v6330 = vadd.f32 %v6105, %v6329
        %v6331 = vpop.f32.mrf.mxu0
        %v6332 = vpop.f32.mrf.mxu0
        %v6333 = vadd.f32 %v6108, %v6332
        %v6334 = vpop.f32.mrf.mxu0
        %6335 = vmatprep.mubr.bf16.mxu0 %v4773
        %6336 = vmatmul.mubr.bf16.gmra.mxu0 %v4772
        %v6337 = vpop.f32.mrf.mxu0
        %v6338 = vadd.f32 %v6113, %v6337
        %v6339 = vpop.f32.mrf.mxu0
        %v6340 = vpop.f32.mrf.mxu0
        %v6341 = vadd.f32 %v6116, %v6340
        %v6342 = vpop.f32.mrf.mxu0
        %6343 = vmatprep.mubr.bf16.mxu0 %v4782
        %6344 = vmatmul.mubr.bf16.gmra.mxu0 %v4781
        %v6345 = vpop.f32.mrf.mxu0
        %v6346 = vadd.f32 %v6121, %v6345
        %v6347 = vpop.f32.mrf.mxu0
        %v6348 = vpop.f32.mrf.mxu0
        %v6349 = vadd.f32 %v6124, %v6348
        %v6350 = vpop.f32.mrf.mxu0
        %6351 = vmatprep.mubr.bf16.mxu0 %v4791
        %6352 = vmatmul.mubr.bf16.gmra.mxu0 %v4790
        %v6353 = vpop.f32.mrf.mxu0
        %v6354 = vadd.f32 %v6129, %v6353
        %v6355 = vpop.f32.mrf.mxu0
        %v6356 = vpop.f32.mrf.mxu0
        %v6357 = vadd.f32 %v6132, %v6356
        %v6358 = vpop.f32.mrf.mxu0
        %6359 = vmatprep.mubr.bf16.mxu0 %v4800
        %6360 = vmatmul.mubr.bf16.gmra.mxu0 %v4799
        %v6361 = vpop.f32.mrf.mxu0
        %v6362 = vadd.f32 %v6137, %v6361
        %v6363 = vpop.f32.mrf.mxu0
        %v6364 = vpop.f32.mrf.mxu0
        %v6365 = vadd.f32 %v6140, %v6364
        %v6366 = vpop.f32.mrf.mxu0
        %6367 = vmatprep.mubr.bf16.mxu0 %v4809
        %6368 = vmatmul.mubr.bf16.gmra.mxu0 %v4808
        %v6369 = vpop.f32.mrf.mxu0
        %v6370 = vadd.f32 %v6145, %v6369
        %v6371 = vpop.f32.mrf.mxu0
        %v6372 = vpop.f32.mrf.mxu0
        %v6373 = vadd.f32 %v6148, %v6372
        %v6374 = vpop.f32.mrf.mxu0
        %6375 = vmatprep.mubr.bf16.mxu0 %v4818
        %6376 = vmatmul.mubr.bf16.gmra.mxu0 %v4817
        %v6377 = vpop.f32.mrf.mxu0
        %v6378 = vadd.f32 %v6153, %v6377
        %v6379 = vpop.f32.mrf.mxu0
        %v6380 = vpop.f32.mrf.mxu0
        %v6381 = vadd.f32 %v6156, %v6380
        %v6382 = vpop.f32.mrf.mxu0
        %6383 = vmatprep.mubr.bf16.mxu0 %v4827
        %6384 = vmatmul.mubr.bf16.gmra.mxu0 %v4826
        %v6385 = vpop.f32.mrf.mxu0
        %v6386 = vadd.f32 %v6161, %v6385
        %v6387 = vpop.f32.mrf.mxu0
        %v6388 = vpop.f32.mrf.mxu0
        %v6389 = vadd.f32 %v6164, %v6388
        %v6390 = vpop.f32.mrf.mxu0
        %6391 = vmatprep.mubr.bf16.mxu0 %v4836
        %6392 = vmatmul.mubr.bf16.gmra.mxu0 %v4835
        %v6393 = vpop.f32.mrf.mxu0
        %v6394 = vadd.f32 %v6169, %v6393
        %v6395 = vpop.f32.mrf.mxu0
        %v6396 = vpop.f32.mrf.mxu0
        %v6397 = vadd.f32 %v6172, %v6396
        %v6398 = vpop.f32.mrf.mxu0
        %6399 = vmatprep.mubr.bf16.mxu0 %v4845
        %6400 = vmatmul.mubr.bf16.gmra.mxu0 %v4844
        %v6401 = vpop.f32.mrf.mxu0
        %v6402 = vadd.f32 %v6177, %v6401
        %v6403 = vpop.f32.mrf.mxu0
        %v6404 = vpop.f32.mrf.mxu0
        %v6405 = vadd.f32 %v6180, %v6404
        %v6406 = vpop.f32.mrf.mxu0
        %6407 = vmatprep.mubr.bf16.mxu0 %v4854
        %6408 = vmatmul.mubr.bf16.gmra.mxu0 %v4853
        %v6409 = vpop.f32.mrf.mxu0
        %v6410 = vadd.f32 %v6185, %v6409
        %v6411 = vpop.f32.mrf.mxu0
        %v6412 = vpop.f32.mrf.mxu0
        %v6413 = vadd.f32 %v6188, %v6412
        %v6414 = vpop.f32.mrf.mxu0
        %6415 = vmatprep.mubr.bf16.mxu0 %v4863
        %6416 = vmatmul.mubr.bf16.gmra.mxu0 %v4862
        %v6417 = vpop.f32.mrf.mxu0
        %v6418 = vadd.f32 %v6193, %v6417
        %v6419 = vpop.f32.mrf.mxu0
        %v6420 = vpop.f32.mrf.mxu0
        %v6421 = vadd.f32 %v6196, %v6420
        %v6422 = vpop.f32.mrf.mxu0
        %6423 = vmatprep.mubr.bf16.mxu0 %v4872
        %6424 = vmatmul.mubr.bf16.gmra.mxu0 %v4871
        %v6425 = vpop.f32.mrf.mxu0
        %v6426 = vadd.f32 %v6201, %v6425
        %v6427 = vpop.f32.mrf.mxu0
        %v6428 = vpop.f32.mrf.mxu0
        %v6429 = vadd.f32 %v6204, %v6428
        %v6430 = vpop.f32.mrf.mxu0
        %6431 = vmatprep.mubr.bf16.mxu0 %v4881
        %6432 = vmatmul.mubr.bf16.gmra.mxu0 %v4880
        %v6433 = vpop.f32.mrf.mxu0
        %v6434 = vadd.f32 %v6209, %v6433
        %v6435 = vpop.f32.mrf.mxu0
        %v6436 = vpop.f32.mrf.mxu0
        %v6437 = vadd.f32 %v6212, %v6436
        %v6438 = vpop.f32.mrf.mxu0
        %6439 = vmatprep.mubr.bf16.mxu0 %v4890
        %6440 = vmatmul.mubr.bf16.gmra.mxu0 %v4889
        %v6441 = vpop.f32.mrf.mxu0
        %v6442 = vadd.f32 %v6217, %v6441
        %v6443 = vpop.f32.mrf.mxu0
        %v6444 = vpop.f32.mrf.mxu0
        %v6445 = vadd.f32 %v6220, %v6444
        %v6446 = vpop.f32.mrf.mxu0
        %6447 = vmatprep.mubr.bf16.mxu0 %v4899
        %6448 = vmatmul.mubr.bf16.gmra.mxu0 %v4898
        %v6449 = vpop.f32.mrf.mxu0
        %v6450 = vadd.f32 %v6225, %v6449
        %v6451 = vpop.f32.mrf.mxu0
        %v6452 = vpop.f32.mrf.mxu0
        %v6453 = vadd.f32 %v6228, %v6452
        %v6454 = vpop.f32.mrf.mxu0
        %6455 = vmatprep.mubr.bf16.mxu0 %v4908
        %6456 = vmatmul.mubr.bf16.gmra.mxu0 %v4907
        %v6457 = vpop.f32.mrf.mxu0
        %v6458 = vadd.f32 %v6233, %v6457
        %v6459 = vpop.f32.mrf.mxu0
        %v6460 = vpop.f32.mrf.mxu0
        %v6461 = vadd.f32 %v6236, %v6460
        %v6462 = vpop.f32.mrf.mxu0
        %6463 = vmatprep.mubr.bf16.mxu0 %v4917
        %6464 = vmatmul.mubr.bf16.gmra.mxu0 %v4916
        %v6465 = vpop.f32.mrf.mxu0
        %v6466 = vadd.f32 %v6241, %v6465
        %v6467 = vpop.f32.mrf.mxu0
        %v6468 = vpop.f32.mrf.mxu0
        %v6469 = vadd.f32 %v6244, %v6468
        %v6470 = vpop.f32.mrf.mxu0
        %6471 = vmatprep.mubr.bf16.mxu0 %v4926
        %6472 = vmatmul.mubr.bf16.gmra.mxu0 %v4925
        %v6473 = vpop.f32.mrf.mxu0
        %v6474 = vadd.f32 %v6249, %v6473
        %v6475 = vpop.f32.mrf.mxu0
        %v6476 = vpop.f32.mrf.mxu0
        %v6477 = vadd.f32 %v6252, %v6476
        %v6478 = vpop.f32.mrf.mxu0
        %6479 = vmatprep.mubr.bf16.mxu0 %v4935
        %6480 = vmatmul.mubr.bf16.gmra.mxu0 %v4934
        %v6481 = vpop.f32.mrf.mxu0
        %v6482 = vadd.f32 %v6257, %v6481
        %v6483 = vpop.f32.mrf.mxu0
        %v6484 = vpop.f32.mrf.mxu0
        %v6485 = vadd.f32 %v6260, %v6484
        %v6486 = vpop.f32.mrf.mxu0
        %6487 = vmatprep.mubr.bf16.mxu0 %v4944
        %6488 = vmatmul.mubr.bf16.gmra.mxu0 %v4943
        %v6489 = vpop.f32.mrf.mxu0
        %v6490 = vadd.f32 %v6265, %v6489
        %v6491 = vpop.f32.mrf.mxu0
        %v6492 = vpop.f32.mrf.mxu0
        %v6493 = vadd.f32 %v6268, %v6492
        %v6494 = vpop.f32.mrf.mxu0
        %6495 = vmatprep.mubr.bf16.mxu0 %v4953
        %6496 = vmatmul.mubr.bf16.gmra.mxu0 %v4952
        %v6497 = vpop.f32.mrf.mxu0
        %v6498 = vadd.f32 %v6273, %v6497
        %v6499 = vpop.f32.mrf.mxu0
        %v6500 = vpop.f32.mrf.mxu0
        %v6501 = vadd.f32 %v6276, %v6500
        %v6502 = vpop.f32.mrf.mxu0
        %6503 = vmatprep.mubr.bf16.mxu0 %v4962
        %6504 = vmatmul.mubr.bf16.gmra.mxu0 %v4961
        %v6505 = vpop.f32.mrf.mxu0
        %v6506 = vadd.f32 %v6281, %v6505
        %v6507 = vpop.f32.mrf.mxu0
        %v6508 = vpop.f32.mrf.mxu0
        %v6509 = vadd.f32 %v6284, %v6508
        %v6510 = vpop.f32.mrf.mxu0
        %6511 = vdwg.mxu0
        %6512 = vmatprep.subr.bf16.mxu0 0
        %6513 = vmatpush1.bf16.msra.mxu0 %v5539
        %6514 = vmatprep.subr.bf16.mxu0 0
        %6515 = vmatpush1.bf16.msra.mxu0 %v5538
        %6516 = vmatprep.subr.bf16.mxu0 0
        %6517 = vmatpush1.bf16.msra.mxu0 %v5537
        %6518 = vmatprep.subr.bf16.mxu0 0
        %6519 = vmatpush1.bf16.msra.mxu0 %v5536
        %6520 = vmatprep.subr.bf16.mxu0 0
        %6521 = vmatpush1.bf16.msra.mxu0 %v5535
        %6522 = vmatprep.subr.bf16.mxu0 0
        %6523 = vmatpush1.bf16.msra.mxu0 %v5534
        %6524 = vmatprep.subr.bf16.mxu0 0
        %6525 = vmatpush1.bf16.msra.mxu0 %v5533
        %6526 = vmatprep.subr.bf16.mxu0 0
        %6527 = vmatpush1.bf16.msra.mxu0 %v5532
        %6528 = vmatprep.subr.bf16.mxu0 0
        %6529 = vmatpush2.bf16.msra.mxu0 0
        %6530 = vmatprep.subr.bf16.mxu0 0
        %6531 = vmatpush2.bf16.msra.mxu0 0
        %6532 = vmatprep.subr.bf16.mxu0 0
        %6533 = vmatpush2.bf16.msra.mxu0 0
        %6534 = vmatprep.subr.bf16.mxu0 0
        %6535 = vmatpush2.bf16.msra.mxu0 0
        %6536 = vmatprep.subr.bf16.mxu0 0
        %6537 = vmatpush2.bf16.msra.mxu0 0
        %6538 = vmatprep.subr.bf16.mxu0 0
        %6539 = vmatpush2.bf16.msra.mxu0 0
        %6540 = vmatprep.subr.bf16.mxu0 0
        %6541 = vmatpush2.bf16.msra.mxu0 0
        %6542 = vmatprep.subr.bf16.mxu0 0
        %6543 = vmatpush2.bf16.msra.mxu0 0
        %6544 = vmatprep.mubr.bf16.mxu0 0
        %6545 = vmatmul.mubr.bf16.gmra.mxu0 %v4756
        %v6546 = vpop.f32.mrf.mxu0
        %v6547 = vadd.f32 %v6322, %v6546
        %v6548 = vpop.f32.mrf.mxu0
        %v6549 = vpop.f32.mrf.mxu0
        %v6550 = vadd.f32 %v6325, %v6549
        %v6551 = vpop.f32.mrf.mxu0
        %6552 = vmatprep.mubr.bf16.mxu0 0
        %6553 = vmatmul.mubr.bf16.gmra.mxu0 %v4765
        %v6554 = vpop.f32.mrf.mxu0
        %v6555 = vadd.f32 %v6330, %v6554
        %v6556 = vpop.f32.mrf.mxu0
        %v6557 = vpop.f32.mrf.mxu0
        %v6558 = vadd.f32 %v6333, %v6557
        %v6559 = vpop.f32.mrf.mxu0
        %6560 = vmatprep.mubr.bf16.mxu0 0
        %6561 = vmatmul.mubr.bf16.gmra.mxu0 %v4774
        %v6562 = vpop.f32.mrf.mxu0
        %v6563 = vadd.f32 %v6338, %v6562
        %v6564 = vpop.f32.mrf.mxu0
        %v6565 = vpop.f32.mrf.mxu0
        %v6566 = vadd.f32 %v6341, %v6565
        %v6567 = vpop.f32.mrf.mxu0
        %6568 = vmatprep.mubr.bf16.mxu0 0
        %6569 = vmatmul.mubr.bf16.gmra.mxu0 %v4783
        %v6570 = vpop.f32.mrf.mxu0
        %v6571 = vadd.f32 %v6346, %v6570
        %v6572 = vpop.f32.mrf.mxu0
        %v6573 = vpop.f32.mrf.mxu0
        %v6574 = vadd.f32 %v6349, %v6573
        %v6575 = vpop.f32.mrf.mxu0
        %6576 = vmatprep.mubr.bf16.mxu0 0
        %6577 = vmatmul.mubr.bf16.gmra.mxu0 %v4792
        %v6578 = vpop.f32.mrf.mxu0
        %v6579 = vadd.f32 %v6354, %v6578
        %v6580 = vpop.f32.mrf.mxu0
        %v6581 = vpop.f32.mrf.mxu0
        %v6582 = vadd.f32 %v6357, %v6581
        %v6583 = vpop.f32.mrf.mxu0
        %6584 = vmatprep.mubr.bf16.mxu0 0
        %6585 = vmatmul.mubr.bf16.gmra.mxu0 %v4801
        %v6586 = vpop.f32.mrf.mxu0
        %v6587 = vadd.f32 %v6362, %v6586
        %v6588 = vpop.f32.mrf.mxu0
        %v6589 = vpop.f32.mrf.mxu0
        %v6590 = vadd.f32 %v6365, %v6589
        %v6591 = vpop.f32.mrf.mxu0
        %6592 = vmatprep.mubr.bf16.mxu0 0
        %6593 = vmatmul.mubr.bf16.gmra.mxu0 %v4810
        %v6594 = vpop.f32.mrf.mxu0
        %v6595 = vadd.f32 %v6370, %v6594
        %v6596 = vpop.f32.mrf.mxu0
        %v6597 = vpop.f32.mrf.mxu0
        %v6598 = vadd.f32 %v6373, %v6597
        %v6599 = vpop.f32.mrf.mxu0
        %6600 = vmatprep.mubr.bf16.mxu0 0
        %6601 = vmatmul.mubr.bf16.gmra.mxu0 %v4819
        %v6602 = vpop.f32.mrf.mxu0
        %v6603 = vadd.f32 %v6378, %v6602
        %v6604 = vpop.f32.mrf.mxu0
        %v6605 = vpop.f32.mrf.mxu0
        %v6606 = vadd.f32 %v6381, %v6605
        %v6607 = vpop.f32.mrf.mxu0
        %6608 = vmatprep.mubr.bf16.mxu0 0
        %6609 = vmatmul.mubr.bf16.gmra.mxu0 %v4828
        %v6610 = vpop.f32.mrf.mxu0
        %v6611 = vadd.f32 %v6386, %v6610
        %v6612 = vpop.f32.mrf.mxu0
        %v6613 = vpop.f32.mrf.mxu0
        %v6614 = vadd.f32 %v6389, %v6613
        %v6615 = vpop.f32.mrf.mxu0
        %6616 = vmatprep.mubr.bf16.mxu0 0
        %6617 = vmatmul.mubr.bf16.gmra.mxu0 %v4837
        %v6618 = vpop.f32.mrf.mxu0
        %v6619 = vadd.f32 %v6394, %v6618
        %v6620 = vpop.f32.mrf.mxu0
        %v6621 = vpop.f32.mrf.mxu0
        %v6622 = vadd.f32 %v6397, %v6621
        %v6623 = vpop.f32.mrf.mxu0
        %6624 = vmatprep.mubr.bf16.mxu0 0
        %6625 = vmatmul.mubr.bf16.gmra.mxu0 %v4846
        %v6626 = vpop.f32.mrf.mxu0
        %v6627 = vadd.f32 %v6402, %v6626
        %v6628 = vpop.f32.mrf.mxu0
        %v6629 = vpop.f32.mrf.mxu0
        %v6630 = vadd.f32 %v6405, %v6629
        %v6631 = vpop.f32.mrf.mxu0
        %6632 = vmatprep.mubr.bf16.mxu0 0
        %6633 = vmatmul.mubr.bf16.gmra.mxu0 %v4855
        %v6634 = vpop.f32.mrf.mxu0
        %v6635 = vadd.f32 %v6410, %v6634
        %v6636 = vpop.f32.mrf.mxu0
        %v6637 = vpop.f32.mrf.mxu0
        %v6638 = vadd.f32 %v6413, %v6637
        %v6639 = vpop.f32.mrf.mxu0
        %6640 = vmatprep.mubr.bf16.mxu0 0
        %6641 = vmatmul.mubr.bf16.gmra.mxu0 %v4864
        %v6642 = vpop.f32.mrf.mxu0
        %v6643 = vadd.f32 %v6418, %v6642
        %v6644 = vpop.f32.mrf.mxu0
        %v6645 = vpop.f32.mrf.mxu0
        %v6646 = vadd.f32 %v6421, %v6645
        %v6647 = vpop.f32.mrf.mxu0
        %6648 = vmatprep.mubr.bf16.mxu0 0
        %6649 = vmatmul.mubr.bf16.gmra.mxu0 %v4873
        %v6650 = vpop.f32.mrf.mxu0
        %v6651 = vadd.f32 %v6426, %v6650
        %v6652 = vpop.f32.mrf.mxu0
        %v6653 = vpop.f32.mrf.mxu0
        %v6654 = vadd.f32 %v6429, %v6653
        %v6655 = vpop.f32.mrf.mxu0
        %6656 = vmatprep.mubr.bf16.mxu0 0
        %6657 = vmatmul.mubr.bf16.gmra.mxu0 %v4882
        %v6658 = vpop.f32.mrf.mxu0
        %v6659 = vadd.f32 %v6434, %v6658
        %v6660 = vpop.f32.mrf.mxu0
        %v6661 = vpop.f32.mrf.mxu0
        %v6662 = vadd.f32 %v6437, %v6661
        %v6663 = vpop.f32.mrf.mxu0
        %6664 = vmatprep.mubr.bf16.mxu0 0
        %6665 = vmatmul.mubr.bf16.gmra.mxu0 %v4891
        %v6666 = vpop.f32.mrf.mxu0
        %v6667 = vadd.f32 %v6442, %v6666
        %v6668 = vpop.f32.mrf.mxu0
        %v6669 = vpop.f32.mrf.mxu0
        %v6670 = vadd.f32 %v6445, %v6669
        %v6671 = vpop.f32.mrf.mxu0
        %6672 = vmatprep.mubr.bf16.mxu0 0
        %6673 = vmatmul.mubr.bf16.gmra.mxu0 %v4900
        %v6674 = vpop.f32.mrf.mxu0
        %v6675 = vadd.f32 %v6450, %v6674
        %v6676 = vpop.f32.mrf.mxu0
        %v6677 = vpop.f32.mrf.mxu0
        %v6678 = vadd.f32 %v6453, %v6677
        %v6679 = vpop.f32.mrf.mxu0
        %6680 = vmatprep.mubr.bf16.mxu0 0
        %6681 = vmatmul.mubr.bf16.gmra.mxu0 %v4909
        %v6682 = vpop.f32.mrf.mxu0
        %v6683 = vadd.f32 %v6458, %v6682
        %v6684 = vpop.f32.mrf.mxu0
        %v6685 = vpop.f32.mrf.mxu0
        %v6686 = vadd.f32 %v6461, %v6685
        %v6687 = vpop.f32.mrf.mxu0
        %6688 = vmatprep.mubr.bf16.mxu0 0
        %6689 = vmatmul.mubr.bf16.gmra.mxu0 %v4918
        %v6690 = vpop.f32.mrf.mxu0
        %v6691 = vadd.f32 %v6466, %v6690
        %v6692 = vpop.f32.mrf.mxu0
        %v6693 = vpop.f32.mrf.mxu0
        %v6694 = vadd.f32 %v6469, %v6693
        %v6695 = vpop.f32.mrf.mxu0
        %6696 = vmatprep.mubr.bf16.mxu0 0
        %6697 = vmatmul.mubr.bf16.gmra.mxu0 %v4927
        %v6698 = vpop.f32.mrf.mxu0
        %v6699 = vadd.f32 %v6474, %v6698
        %v6700 = vpop.f32.mrf.mxu0
        %v6701 = vpop.f32.mrf.mxu0
        %v6702 = vadd.f32 %v6477, %v6701
        %v6703 = vpop.f32.mrf.mxu0
        %6704 = vmatprep.mubr.bf16.mxu0 0
        %6705 = vmatmul.mubr.bf16.gmra.mxu0 %v4936
        %v6706 = vpop.f32.mrf.mxu0
        %v6707 = vadd.f32 %v6482, %v6706
        %v6708 = vpop.f32.mrf.mxu0
        %v6709 = vpop.f32.mrf.mxu0
        %v6710 = vadd.f32 %v6485, %v6709
        %v6711 = vpop.f32.mrf.mxu0
        %6712 = vmatprep.mubr.bf16.mxu0 0
        %6713 = vmatmul.mubr.bf16.gmra.mxu0 %v4945
        %v6714 = vpop.f32.mrf.mxu0
        %v6715 = vadd.f32 %v6490, %v6714
        %v6716 = vpop.f32.mrf.mxu0
        %v6717 = vpop.f32.mrf.mxu0
        %v6718 = vadd.f32 %v6493, %v6717
        %v6719 = vpop.f32.mrf.mxu0
        %6720 = vmatprep.mubr.bf16.mxu0 0
        %6721 = vmatmul.mubr.bf16.gmra.mxu0 %v4954
        %v6722 = vpop.f32.mrf.mxu0
        %v6723 = vadd.f32 %v6498, %v6722
        %v6724 = vpop.f32.mrf.mxu0
        %v6725 = vpop.f32.mrf.mxu0
        %v6726 = vadd.f32 %v6501, %v6725
        %v6727 = vpop.f32.mrf.mxu0
        %6728 = vmatprep.mubr.bf16.mxu0 0
        %6729 = vmatmul.mubr.bf16.gmra.mxu0 %v4963
        %v6730 = vpop.f32.mrf.mxu0
        %v6731 = vadd.f32 %v6506, %v6730
        %v6732 = vpop.f32.mrf.mxu0
        %v6733 = vpop.f32.mrf.mxu0
        %v6734 = vadd.f32 %v6509, %v6733
        %v6735 = vpop.f32.mrf.mxu0
        %6736 = vdwg.mxu0
        %v6737 = vmax.f32 %v6547, 0.0
        %v6738 = vmax.f32 %v6550, 0.0
        %v6739 = vmax.f32 %v6555, 0.0
        %v6740 = vmax.f32 %v6558, 0.0
        %v6741 = vmax.f32 %v6563, 0.0
        %v6742 = vmax.f32 %v6566, 0.0
        %v6743 = vmax.f32 %v6571, 0.0
        %v6744 = vmax.f32 %v6574, 0.0
        %v6745 = vmax.f32 %v6579, 0.0
        %v6746 = vmax.f32 %v6582, 0.0
        %v6747 = vmax.f32 %v6587, 0.0
        %v6748 = vmax.f32 %v6590, 0.0
        %v6749 = vmax.f32 %v6595, 0.0
        %v6750 = vmax.f32 %v6598, 0.0
        %v6751 = vmax.f32 %v6603, 0.0
        %v6752 = vmax.f32 %v6606, 0.0
        %v6753 = vmax.f32 %v6611, 0.0
        %v6754 = vmax.f32 %v6614, 0.0
        %v6755 = vmax.f32 %v6619, 0.0
        %v6756 = vmax.f32 %v6622, 0.0
        %v6757 = vmax.f32 %v6627, 0.0
        %v6758 = vmax.f32 %v6630, 0.0
        %v6759 = vmax.f32 %v6635, 0.0
        %v6760 = vmax.f32 %v6638, 0.0
        %v6761 = vmax.f32 %v6643, 0.0
        %v6762 = vmax.f32 %v6646, 0.0
        %v6763 = vmax.f32 %v6651, 0.0
        %v6764 = vmax.f32 %v6654, 0.0
        %v6765 = vmax.f32 %v6659, 0.0
        %v6766 = vmax.f32 %v6662, 0.0
        %v6767 = vmax.f32 %v6667, 0.0
        %v6768 = vmax.f32 %v6670, 0.0
        %v6769 = vmax.f32 %v6675, 0.0
        %v6770 = vmax.f32 %v6678, 0.0
        %v6771 = vmax.f32 %v6683, 0.0
        %v6772 = vmax.f32 %v6686, 0.0
        %v6773 = vmax.f32 %v6691, 0.0
        %v6774 = vmax.f32 %v6694, 0.0
        %v6775 = vmax.f32 %v6699, 0.0
        %v6776 = vmax.f32 %v6702, 0.0
        %v6777 = vmax.f32 %v6707, 0.0
        %v6778 = vmax.f32 %v6710, 0.0
        %v6779 = vmax.f32 %v6715, 0.0
        %v6780 = vmax.f32 %v6718, 0.0
        %v6781 = vmax.f32 %v6723, 0.0
        %v6782 = vmax.f32 %v6726, 0.0
        %v6783 = vmax.f32 %v6731, 0.0
        %v6784 = vmax.f32 %v6734, 0.0
        %v6785 = vpack.c.bf16 %v6738, %v6737
        %v6786 = vpack.c.bf16 %v6740, %v6739
        %v6787 = vpack.c.bf16 %v6742, %v6741
        %v6788 = vpack.c.bf16 %v6744, %v6743
        %v6789 = vpack.c.bf16 %v6746, %v6745
        %v6790 = vpack.c.bf16 %v6748, %v6747
        %v6791 = vpack.c.bf16 %v6750, %v6749
        %v6792 = vpack.c.bf16 %v6752, %v6751
        %v6793 = vpack.c.bf16 %v6754, %v6753
        %v6794 = vpack.c.bf16 %v6756, %v6755
        %v6795 = vpack.c.bf16 %v6758, %v6757
        %v6796 = vpack.c.bf16 %v6760, %v6759
        %v6797 = vpack.c.bf16 %v6762, %v6761
        %v6798 = vpack.c.bf16 %v6764, %v6763
        %v6799 = vpack.c.bf16 %v6766, %v6765
        %v6800 = vpack.c.bf16 %v6768, %v6767
        %v6801 = vpack.c.bf16 %v6770, %v6769
        %v6802 = vpack.c.bf16 %v6772, %v6771
        %v6803 = vpack.c.bf16 %v6774, %v6773
        %v6804 = vpack.c.bf16 %v6776, %v6775
        %v6805 = vpack.c.bf16 %v6778, %v6777
        %v6806 = vpack.c.bf16 %v6780, %v6779
        %v6807 = vpack.c.bf16 %v6782, %v6781
        %v6808 = vpack.c.bf16 %v6784, %v6783
        %v6833 = vunpack.c.l.b16 %v6785
        %v6834 = vunpack.c.h.b16 %v6785
        %v6835 = vunpack.c.h.b16 %v6786
        %v6836 = vunpack.c.l.b16 %v6787
        %v6837 = vunpack.c.l.b16 %v6788
        %v6838 = vunpack.c.h.b16 %v6788
        %v6839 = vunpack.c.h.b16 %v6789
        %v6840 = vunpack.c.l.b16 %v6790
        %v6841 = vunpack.c.l.b16 %v6791
        %v6842 = vunpack.c.h.b16 %v6791
        %v6843 = vunpack.c.h.b16 %v6792
        %v6844 = vunpack.c.l.b16 %v6793
        %v6845 = vunpack.c.l.b16 %v6794
        %v6846 = vunpack.c.h.b16 %v6794
        %v6847 = vunpack.c.h.b16 %v6795
        %v6848 = vunpack.c.l.b16 %v6796
        %v6849 = vunpack.c.l.b16 %v6797
        %v6850 = vunpack.c.h.b16 %v6797
        %v6851 = vunpack.c.h.b16 %v6798
        %v6852 = vunpack.c.l.b16 %v6799
        %v6853 = vunpack.c.l.b16 %v6800
        %v6854 = vunpack.c.h.b16 %v6800
        %v6855 = vunpack.c.h.b16 %v6801
        %v6856 = vunpack.c.l.b16 %v6802
        %v6857 = vunpack.c.l.b16 %v6803
        %v6858 = vunpack.c.h.b16 %v6803
        %v6859 = vunpack.c.h.b16 %v6804
        %v6860 = vunpack.c.l.b16 %v6805
        %v6861 = vunpack.c.l.b16 %v6806
        %v6862 = vunpack.c.h.b16 %v6806
        %v6863 = vunpack.c.h.b16 %v6807
        %v6864 = vunpack.c.l.b16 %v6808
        %v6865 = vld [vmem:[%s3] sm:$0xff]
        %v6866 = vld [vmem:[%s3 + $0x8] sm:$0xff]
        %v6867 = vld [vmem:[%s3 + $0x10] sm:$0xff]
        %v6868 = vld [vmem:[%s3 + $0x18] sm:$0xff]
        %v6869 = vld [vmem:[%s3 + $0x20] sm:$0xff]
        %v6870 = vld [vmem:[%s3 + $0x28] sm:$0xff]
        %v6871 = vld [vmem:[%s3 + $0x30] sm:$0xff]
        %v6872 = vld [vmem:[%s3 + $0x38] sm:$0xff]
        %v6873 = vld [vmem:[%s3 + $0x40] sm:$0xff]
        %v6874 = vld [vmem:[%s3 + $0x48] sm:$0xff]
        %v6875 = vld [vmem:[%s3 + $0x50] sm:$0xff]
        %v6876 = vld [vmem:[%s3 + $0x58] sm:$0xff]
        %v6877 = vld [vmem:[%s3 + $0x60] sm:$0xff]
        %v6878 = vld [vmem:[%s3 + $0x68] sm:$0xff]
        %v6879 = vld [vmem:[%s3 + $0x70] sm:$0xff]
        %v6880 = vld [vmem:[%s3 + $0x78] sm:$0xff]
        %v6881 = vld [vmem:[%s4] sm:$0xff]
        %v6882 = vld [vmem:[%s4 + $0x8] sm:$0xff]
        %v6883 = vld [vmem:[%s4 + $0x10] sm:$0xff]
        %v6884 = vld [vmem:[%s4 + $0x18] sm:$0xff]
        %v6885 = vld [vmem:[%s4 + $0x20] sm:$0xff]
        %v6886 = vld [vmem:[%s4 + $0x28] sm:$0xff]
        %v6887 = vld [vmem:[%s4 + $0x30] sm:$0xff]
        %v6888 = vld [vmem:[%s4 + $0x38] sm:$0xff]
        %v6897 = vunpack.c.l.b16 %v6881
        %v6898 = vunpack.c.h.b16 %v6881
        %v6899 = vunpack.c.l.b16 %v6882
        %v6900 = vunpack.c.h.b16 %v6882
        %v6901 = vunpack.c.l.b16 %v6883
        %v6902 = vunpack.c.h.b16 %v6883
        %v6903 = vunpack.c.l.b16 %v6884
        %v6904 = vunpack.c.h.b16 %v6884
        %v6905 = vunpack.c.l.b16 %v6885
        %v6906 = vunpack.c.h.b16 %v6885
        %v6907 = vunpack.c.l.b16 %v6886
        %v6908 = vunpack.c.h.b16 %v6886
        %v6909 = vunpack.c.l.b16 %v6887
        %v6910 = vunpack.c.h.b16 %v6887
        %v6911 = vunpack.c.l.b16 %v6888
        %v6912 = vunpack.c.h.b16 %v6888
        %v6913 = vpack.c.b16 %v6899, %v6897
        %v6914 = vpack.c.b16 %v6900, %v6898
        %v6915 = vpack.c.b16 %v6903, %v6901
        %v6916 = vpack.c.b16 %v6904, %v6902
        %v6917 = vpack.c.b16 %v6907, %v6905
        %v6918 = vpack.c.b16 %v6908, %v6906
        %v6919 = vpack.c.b16 %v6911, %v6909
        %v6920 = vpack.c.b16 %v6912, %v6910
        %6929 = vmatprep.subr.bf16.mxu0 0
        %6930 = vmatpush1.bf16.msra.mxu0 0
        %6931 = vmatprep.subr.bf16.mxu0 0
        %6932 = vmatpush1.bf16.msra.mxu0 0
        %6933 = vmatprep.subr.bf16.mxu0 0
        %6934 = vmatpush1.bf16.msra.mxu0 0
        %6935 = vmatprep.subr.bf16.mxu0 0
        %6936 = vmatpush1.bf16.msra.mxu0 0
        %6937 = vmatprep.subr.bf16.mxu0 %v6920
        %6938 = vmatpush1.bf16.msra.mxu0 %v6919
        %6939 = vmatprep.subr.bf16.mxu0 %v6918
        %6940 = vmatpush1.bf16.msra.mxu0 %v6917
        %6941 = vmatprep.subr.bf16.mxu0 %v6916
        %6942 = vmatpush1.bf16.msra.mxu0 %v6915
        %6943 = vmatprep.subr.bf16.mxu0 %v6914
        %6944 = vmatpush1.bf16.msra.mxu0 %v6913
        %6945 = vmatprep.subr.bf16.mxu0 0
        %6946 = vmatpush2.bf16.msra.mxu0 0
        %6947 = vmatprep.subr.bf16.mxu0 0
        %6948 = vmatpush2.bf16.msra.mxu0 0
        %6949 = vmatprep.subr.bf16.mxu0 0
        %6950 = vmatpush2.bf16.msra.mxu0 0
        %6951 = vmatprep.subr.bf16.mxu0 0
        %6952 = vmatpush2.bf16.msra.mxu0 0
        %6953 = vmatprep.subr.bf16.mxu0 0
        %6954 = vmatpush2.bf16.msra.mxu0 0
        %6955 = vmatprep.subr.bf16.mxu0 0
        %6956 = vmatpush2.bf16.msra.mxu0 0
        %6957 = vmatprep.subr.bf16.mxu0 0
        %6958 = vmatpush2.bf16.msra.mxu0 0
        %6959 = vmatprep.subr.bf16.mxu0 0
        %6960 = vmatpush2.bf16.msra.mxu0 0
        %6961 = vmatprep.mubr.bf16.mxu0 0
        %6962 = vmatmul.mubr.bf16.gmra.mxu0 %v527
        %v6963 = vpop.f32.mrf.mxu0
        %v6964 = vadd.f32 0.0, %v6963
        %v6965 = vpop.f32.mrf.mxu0
        %v6966 = vadd.f32 0.0, %v6965
        %v6967 = vpop.f32.mrf.mxu0
        %v6968 = vadd.f32 0.0, %v6967
        %v6969 = vpop.f32.mrf.mxu0
        %v6970 = vadd.f32 0.0, %v6969
        %6971 = vmatprep.mubr.bf16.mxu0 0
        %6972 = vmatmul.mubr.bf16.gmra.mxu0 %v530
        %v6973 = vpop.f32.mrf.mxu0
        %v6974 = vadd.f32 0.0, %v6973
        %v6975 = vpop.f32.mrf.mxu0
        %v6976 = vadd.f32 0.0, %v6975
        %v6977 = vpop.f32.mrf.mxu0
        %v6978 = vadd.f32 0.0, %v6977
        %v6979 = vpop.f32.mrf.mxu0
        %v6980 = vadd.f32 0.0, %v6979
        %6981 = vmatprep.mubr.bf16.mxu0 0
        %6982 = vmatmul.mubr.bf16.gmra.mxu0 %v533
        %v6983 = vpop.f32.mrf.mxu0
        %v6984 = vadd.f32 0.0, %v6983
        %v6985 = vpop.f32.mrf.mxu0
        %v6986 = vadd.f32 0.0, %v6985
        %v6987 = vpop.f32.mrf.mxu0
        %v6988 = vadd.f32 0.0, %v6987
        %v6989 = vpop.f32.mrf.mxu0
        %v6990 = vadd.f32 0.0, %v6989
        %6991 = vmatprep.mubr.bf16.mxu0 0
        %6992 = vmatmul.mubr.bf16.gmra.mxu0 %v536
        %v6993 = vpop.f32.mrf.mxu0
        %v6994 = vadd.f32 0.0, %v6993
        %v6995 = vpop.f32.mrf.mxu0
        %v6996 = vadd.f32 0.0, %v6995
        %v6997 = vpop.f32.mrf.mxu0
        %v6998 = vadd.f32 0.0, %v6997
        %v6999 = vpop.f32.mrf.mxu0
        %v7000 = vadd.f32 0.0, %v6999
        %7001 = vmatprep.mubr.bf16.mxu0 0
        %7002 = vmatmul.mubr.bf16.gmra.mxu0 %v539
        %v7003 = vpop.f32.mrf.mxu0
        %v7004 = vadd.f32 0.0, %v7003
        %v7005 = vpop.f32.mrf.mxu0
        %v7006 = vadd.f32 0.0, %v7005
        %v7007 = vpop.f32.mrf.mxu0
        %v7008 = vadd.f32 0.0, %v7007
        %v7009 = vpop.f32.mrf.mxu0
        %v7010 = vadd.f32 0.0, %v7009
        %7011 = vmatprep.mubr.bf16.mxu0 0
        %7012 = vmatmul.mubr.bf16.gmra.mxu0 %v542
        %v7013 = vpop.f32.mrf.mxu0
        %v7014 = vadd.f32 0.0, %v7013
        %v7015 = vpop.f32.mrf.mxu0
        %v7016 = vadd.f32 0.0, %v7015
        %v7017 = vpop.f32.mrf.mxu0
        %v7018 = vadd.f32 0.0, %v7017
        %v7019 = vpop.f32.mrf.mxu0
        %v7020 = vadd.f32 0.0, %v7019
        %7021 = vmatprep.mubr.bf16.mxu0 0
        %7022 = vmatmul.mubr.bf16.gmra.mxu0 %v545
        %v7023 = vpop.f32.mrf.mxu0
        %v7024 = vadd.f32 0.0, %v7023
        %v7025 = vpop.f32.mrf.mxu0
        %v7026 = vadd.f32 0.0, %v7025
        %v7027 = vpop.f32.mrf.mxu0
        %v7028 = vadd.f32 0.0, %v7027
        %v7029 = vpop.f32.mrf.mxu0
        %v7030 = vadd.f32 0.0, %v7029
        %7031 = vmatprep.mubr.bf16.mxu0 0
        %7032 = vmatmul.mubr.bf16.gmra.mxu0 %v548
        %v7033 = vpop.f32.mrf.mxu0
        %v7034 = vadd.f32 0.0, %v7033
        %v7035 = vpop.f32.mrf.mxu0
        %v7036 = vadd.f32 0.0, %v7035
        %v7037 = vpop.f32.mrf.mxu0
        %v7038 = vadd.f32 0.0, %v7037
        %v7039 = vpop.f32.mrf.mxu0
        %v7040 = vadd.f32 0.0, %v7039
        %7041 = vmatprep.mubr.bf16.mxu0 0
        %7042 = vmatmul.mubr.bf16.gmra.mxu0 %v551
        %v7043 = vpop.f32.mrf.mxu0
        %v7044 = vadd.f32 0.0, %v7043
        %v7045 = vpop.f32.mrf.mxu0
        %v7046 = vadd.f32 0.0, %v7045
        %v7047 = vpop.f32.mrf.mxu0
        %v7048 = vadd.f32 0.0, %v7047
        %v7049 = vpop.f32.mrf.mxu0
        %v7050 = vadd.f32 0.0, %v7049
        %7051 = vmatprep.mubr.bf16.mxu0 0
        %7052 = vmatmul.mubr.bf16.gmra.mxu0 %v554
        %v7053 = vpop.f32.mrf.mxu0
        %v7054 = vadd.f32 0.0, %v7053
        %v7055 = vpop.f32.mrf.mxu0
        %v7056 = vadd.f32 0.0, %v7055
        %v7057 = vpop.f32.mrf.mxu0
        %v7058 = vadd.f32 0.0, %v7057
        %v7059 = vpop.f32.mrf.mxu0
        %v7060 = vadd.f32 0.0, %v7059
        %7061 = vmatprep.mubr.bf16.mxu0 0
        %7062 = vmatmul.mubr.bf16.gmra.mxu0 %v557
        %v7063 = vpop.f32.mrf.mxu0
        %v7064 = vadd.f32 0.0, %v7063
        %v7065 = vpop.f32.mrf.mxu0
        %v7066 = vadd.f32 0.0, %v7065
        %v7067 = vpop.f32.mrf.mxu0
        %v7068 = vadd.f32 0.0, %v7067
        %v7069 = vpop.f32.mrf.mxu0
        %v7070 = vadd.f32 0.0, %v7069
        %7071 = vmatprep.mubr.bf16.mxu0 0
        %7072 = vmatmul.mubr.bf16.gmra.mxu0 %v560
        %v7073 = vpop.f32.mrf.mxu0
        %v7074 = vadd.f32 0.0, %v7073
        %v7075 = vpop.f32.mrf.mxu0
        %v7076 = vadd.f32 0.0, %v7075
        %v7077 = vpop.f32.mrf.mxu0
        %v7078 = vadd.f32 0.0, %v7077
        %v7079 = vpop.f32.mrf.mxu0
        %v7080 = vadd.f32 0.0, %v7079
        %7081 = vmatprep.mubr.bf16.mxu0 0
        %7082 = vmatmul.mubr.bf16.gmra.mxu0 %v563
        %v7083 = vpop.f32.mrf.mxu0
        %v7084 = vadd.f32 0.0, %v7083
        %v7085 = vpop.f32.mrf.mxu0
        %v7086 = vadd.f32 0.0, %v7085
        %v7087 = vpop.f32.mrf.mxu0
        %v7088 = vadd.f32 0.0, %v7087
        %v7089 = vpop.f32.mrf.mxu0
        %v7090 = vadd.f32 0.0, %v7089
        %7091 = vmatprep.mubr.bf16.mxu0 0
        %7092 = vmatmul.mubr.bf16.gmra.mxu0 %v566
        %v7093 = vpop.f32.mrf.mxu0
        %v7094 = vadd.f32 0.0, %v7093
        %v7095 = vpop.f32.mrf.mxu0
        %v7096 = vadd.f32 0.0, %v7095
        %v7097 = vpop.f32.mrf.mxu0
        %v7098 = vadd.f32 0.0, %v7097
        %v7099 = vpop.f32.mrf.mxu0
        %v7100 = vadd.f32 0.0, %v7099
        %7101 = vmatprep.mubr.bf16.mxu0 0
        %7102 = vmatmul.mubr.bf16.gmra.mxu0 %v569
        %v7103 = vpop.f32.mrf.mxu0
        %v7104 = vadd.f32 0.0, %v7103
        %v7105 = vpop.f32.mrf.mxu0
        %v7106 = vadd.f32 0.0, %v7105
        %v7107 = vpop.f32.mrf.mxu0
        %v7108 = vadd.f32 0.0, %v7107
        %v7109 = vpop.f32.mrf.mxu0
        %v7110 = vadd.f32 0.0, %v7109
        %7111 = vmatprep.mubr.bf16.mxu0 0
        %7112 = vmatmul.mubr.bf16.gmra.mxu0 %v572
        %v7113 = vpop.f32.mrf.mxu0
        %v7114 = vadd.f32 0.0, %v7113
        %v7115 = vpop.f32.mrf.mxu0
        %v7116 = vadd.f32 0.0, %v7115
        %v7117 = vpop.f32.mrf.mxu0
        %v7118 = vadd.f32 0.0, %v7117
        %v7119 = vpop.f32.mrf.mxu0
        %v7120 = vadd.f32 0.0, %v7119
        %7121 = vdwg.mxu0
        %v7122 = vpack.c.b16 %v6834, %v6833
        %v7123 = vpack.c.b16 %v6836, %v6835
        %v7124 = vpack.c.b16 %v6838, %v6837
        %v7125 = vpack.c.b16 %v6840, %v6839
        %v7126 = vpack.c.b16 %v6842, %v6841
        %v7127 = vpack.c.b16 %v6844, %v6843
        %v7128 = vpack.c.b16 %v6846, %v6845
        %v7129 = vpack.c.b16 %v6848, %v6847
        %v7130 = vpack.c.b16 %v6850, %v6849
        %v7131 = vpack.c.b16 %v6852, %v6851
        %v7132 = vpack.c.b16 %v6854, %v6853
        %v7133 = vpack.c.b16 %v6856, %v6855
        %v7134 = vpack.c.b16 %v6858, %v6857
        %v7135 = vpack.c.b16 %v6860, %v6859
        %v7136 = vpack.c.b16 %v6862, %v6861
        %v7137 = vpack.c.b16 %v6864, %v6863
        %v7170 = vunpack.c.l.b16 %v6865
        %v7171 = vunpack.c.h.b16 %v6865
        %v7172 = vunpack.c.l.b16 %v6866
        %v7173 = vunpack.c.h.b16 %v6866
        %v7174 = vunpack.c.l.b16 %v6867
        %v7175 = vunpack.c.h.b16 %v6867
        %v7176 = vunpack.c.l.b16 %v6868
        %v7177 = vunpack.c.h.b16 %v6868
        %v7178 = vunpack.c.l.b16 %v6869
        %v7179 = vunpack.c.h.b16 %v6869
        %v7180 = vunpack.c.l.b16 %v6870
        %v7181 = vunpack.c.h.b16 %v6870
        %v7182 = vunpack.c.l.b16 %v6871
        %v7183 = vunpack.c.h.b16 %v6871
        %v7184 = vunpack.c.l.b16 %v6872
        %v7185 = vunpack.c.h.b16 %v6872
        %v7186 = vunpack.c.l.b16 %v6873
        %v7187 = vunpack.c.h.b16 %v6873
        %v7188 = vunpack.c.l.b16 %v6874
        %v7189 = vunpack.c.h.b16 %v6874
        %v7190 = vunpack.c.l.b16 %v6875
        %v7191 = vunpack.c.h.b16 %v6875
        %v7192 = vunpack.c.l.b16 %v6876
        %v7193 = vunpack.c.h.b16 %v6876
        %v7194 = vunpack.c.l.b16 %v6877
        %v7195 = vunpack.c.h.b16 %v6877
        %v7196 = vunpack.c.l.b16 %v6878
        %v7197 = vunpack.c.h.b16 %v6878
        %v7198 = vunpack.c.l.b16 %v6879
        %v7199 = vunpack.c.h.b16 %v6879
        %v7200 = vunpack.c.l.b16 %v6880
        %v7201 = vunpack.c.h.b16 %v6880
        %v7202 = vpack.c.b16 %v7172, %v7170
        %v7203 = vpack.c.b16 %v7173, %v7171
        %v7204 = vpack.c.b16 %v7176, %v7174
        %v7205 = vpack.c.b16 %v7177, %v7175
        %v7206 = vpack.c.b16 %v7180, %v7178
        %v7207 = vpack.c.b16 %v7181, %v7179
        %v7208 = vpack.c.b16 %v7184, %v7182
        %v7209 = vpack.c.b16 %v7185, %v7183
        %v7210 = vpack.c.b16 %v7188, %v7186
        %v7211 = vpack.c.b16 %v7189, %v7187
        %v7212 = vpack.c.b16 %v7192, %v7190
        %v7213 = vpack.c.b16 %v7193, %v7191
        %v7214 = vpack.c.b16 %v7196, %v7194
        %v7215 = vpack.c.b16 %v7197, %v7195
        %v7216 = vpack.c.b16 %v7200, %v7198
        %v7217 = vpack.c.b16 %v7201, %v7199
        %7234 = vmatprep.subr.bf16.mxu0 %v7217
        %7235 = vmatpush1.bf16.msra.mxu0 %v7216
        %7236 = vmatprep.subr.bf16.mxu0 %v7215
        %7237 = vmatpush1.bf16.msra.mxu0 %v7214
        %7238 = vmatprep.subr.bf16.mxu0 %v7213
        %7239 = vmatpush1.bf16.msra.mxu0 %v7212
        %7240 = vmatprep.subr.bf16.mxu0 %v7211
        %7241 = vmatpush1.bf16.msra.mxu0 %v7210
        %7242 = vmatprep.subr.bf16.mxu0 %v7209
        %7243 = vmatpush1.bf16.msra.mxu0 %v7208
        %7244 = vmatprep.subr.bf16.mxu0 %v7207
        %7245 = vmatpush1.bf16.msra.mxu0 %v7206
        %7246 = vmatprep.subr.bf16.mxu0 %v7205
        %7247 = vmatpush1.bf16.msra.mxu0 %v7204
        %7248 = vmatprep.subr.bf16.mxu0 %v7203
        %7249 = vmatpush1.bf16.msra.mxu0 %v7202
        %7250 = vmatprep.subr.bf16.mxu0 0
        %7251 = vmatpush2.bf16.msra.mxu0 0
        %7252 = vmatprep.subr.bf16.mxu0 0
        %7253 = vmatpush2.bf16.msra.mxu0 0
        %7254 = vmatprep.subr.bf16.mxu0 0
        %7255 = vmatpush2.bf16.msra.mxu0 0
        %7256 = vmatprep.subr.bf16.mxu0 0
        %7257 = vmatpush2.bf16.msra.mxu0 0
        %7258 = vmatprep.subr.bf16.mxu0 0
        %7259 = vmatpush2.bf16.msra.mxu0 0
        %7260 = vmatprep.subr.bf16.mxu0 0
        %7261 = vmatpush2.bf16.msra.mxu0 0
        %7262 = vmatprep.subr.bf16.mxu0 0
        %7263 = vmatpush2.bf16.msra.mxu0 0
        %7264 = vmatprep.subr.bf16.mxu0 0
        %7265 = vmatpush2.bf16.msra.mxu0 0
        %7266 = vmatprep.mubr.bf16.mxu0 0
        %7267 = vmatmul.mubr.bf16.gmra.mxu0 %v7122
        %v7268 = vpop.f32.mrf.mxu0
        %v7269 = vadd.f32 %v6964, %v7268
        %v7270 = vpop.f32.mrf.mxu0
        %v7271 = vadd.f32 %v6966, %v7270
        %v7272 = vpop.f32.mrf.mxu0
        %v7273 = vadd.f32 %v6968, %v7272
        %v7274 = vpop.f32.mrf.mxu0
        %v7275 = vadd.f32 %v6970, %v7274
        %7276 = vmatprep.mubr.bf16.mxu0 0
        %7277 = vmatmul.mubr.bf16.gmra.mxu0 %v7123
        %v7278 = vpop.f32.mrf.mxu0
        %v7279 = vadd.f32 %v6974, %v7278
        %v7280 = vpop.f32.mrf.mxu0
        %v7281 = vadd.f32 %v6976, %v7280
        %v7282 = vpop.f32.mrf.mxu0
        %v7283 = vadd.f32 %v6978, %v7282
        %v7284 = vpop.f32.mrf.mxu0
        %v7285 = vadd.f32 %v6980, %v7284
        %7286 = vmatprep.mubr.bf16.mxu0 0
        %7287 = vmatmul.mubr.bf16.gmra.mxu0 %v7124
        %v7288 = vpop.f32.mrf.mxu0
        %v7289 = vadd.f32 %v6984, %v7288
        %v7290 = vpop.f32.mrf.mxu0
        %v7291 = vadd.f32 %v6986, %v7290
        %v7292 = vpop.f32.mrf.mxu0
        %v7293 = vadd.f32 %v6988, %v7292
        %v7294 = vpop.f32.mrf.mxu0
        %v7295 = vadd.f32 %v6990, %v7294
        %7296 = vmatprep.mubr.bf16.mxu0 0
        %7297 = vmatmul.mubr.bf16.gmra.mxu0 %v7125
        %v7298 = vpop.f32.mrf.mxu0
        %v7299 = vadd.f32 %v6994, %v7298
        %v7300 = vpop.f32.mrf.mxu0
        %v7301 = vadd.f32 %v6996, %v7300
        %v7302 = vpop.f32.mrf.mxu0
        %v7303 = vadd.f32 %v6998, %v7302
        %v7304 = vpop.f32.mrf.mxu0
        %v7305 = vadd.f32 %v7000, %v7304
        %7306 = vmatprep.mubr.bf16.mxu0 0
        %7307 = vmatmul.mubr.bf16.gmra.mxu0 %v7126
        %v7308 = vpop.f32.mrf.mxu0
        %v7309 = vadd.f32 %v7004, %v7308
        %v7310 = vpop.f32.mrf.mxu0
        %v7311 = vadd.f32 %v7006, %v7310
        %v7312 = vpop.f32.mrf.mxu0
        %v7313 = vadd.f32 %v7008, %v7312
        %v7314 = vpop.f32.mrf.mxu0
        %v7315 = vadd.f32 %v7010, %v7314
        %7316 = vmatprep.mubr.bf16.mxu0 0
        %7317 = vmatmul.mubr.bf16.gmra.mxu0 %v7127
        %v7318 = vpop.f32.mrf.mxu0
        %v7319 = vadd.f32 %v7014, %v7318
        %v7320 = vpop.f32.mrf.mxu0
        %v7321 = vadd.f32 %v7016, %v7320
        %v7322 = vpop.f32.mrf.mxu0
        %v7323 = vadd.f32 %v7018, %v7322
        %v7324 = vpop.f32.mrf.mxu0
        %v7325 = vadd.f32 %v7020, %v7324
        %7326 = vmatprep.mubr.bf16.mxu0 0
        %7327 = vmatmul.mubr.bf16.gmra.mxu0 %v7128
        %v7328 = vpop.f32.mrf.mxu0
        %v7329 = vadd.f32 %v7024, %v7328
        %v7330 = vpop.f32.mrf.mxu0
        %v7331 = vadd.f32 %v7026, %v7330
        %v7332 = vpop.f32.mrf.mxu0
        %v7333 = vadd.f32 %v7028, %v7332
        %v7334 = vpop.f32.mrf.mxu0
        %v7335 = vadd.f32 %v7030, %v7334
        %7336 = vmatprep.mubr.bf16.mxu0 0
        %7337 = vmatmul.mubr.bf16.gmra.mxu0 %v7129
        %v7338 = vpop.f32.mrf.mxu0
        %v7339 = vadd.f32 %v7034, %v7338
        %v7340 = vpop.f32.mrf.mxu0
        %v7341 = vadd.f32 %v7036, %v7340
        %v7342 = vpop.f32.mrf.mxu0
        %v7343 = vadd.f32 %v7038, %v7342
        %v7344 = vpop.f32.mrf.mxu0
        %v7345 = vadd.f32 %v7040, %v7344
        %7346 = vmatprep.mubr.bf16.mxu0 0
        %7347 = vmatmul.mubr.bf16.gmra.mxu0 %v7130
        %v7348 = vpop.f32.mrf.mxu0
        %v7349 = vadd.f32 %v7044, %v7348
        %v7350 = vpop.f32.mrf.mxu0
        %v7351 = vadd.f32 %v7046, %v7350
        %v7352 = vpop.f32.mrf.mxu0
        %v7353 = vadd.f32 %v7048, %v7352
        %v7354 = vpop.f32.mrf.mxu0
        %v7355 = vadd.f32 %v7050, %v7354
        %7356 = vmatprep.mubr.bf16.mxu0 0
        %7357 = vmatmul.mubr.bf16.gmra.mxu0 %v7131
        %v7358 = vpop.f32.mrf.mxu0
        %v7359 = vadd.f32 %v7054, %v7358
        %v7360 = vpop.f32.mrf.mxu0
        %v7361 = vadd.f32 %v7056, %v7360
        %v7362 = vpop.f32.mrf.mxu0
        %v7363 = vadd.f32 %v7058, %v7362
        %v7364 = vpop.f32.mrf.mxu0
        %v7365 = vadd.f32 %v7060, %v7364
        %7366 = vmatprep.mubr.bf16.mxu0 0
        %7367 = vmatmul.mubr.bf16.gmra.mxu0 %v7132
        %v7368 = vpop.f32.mrf.mxu0
        %v7369 = vadd.f32 %v7064, %v7368
        %v7370 = vpop.f32.mrf.mxu0
        %v7371 = vadd.f32 %v7066, %v7370
        %v7372 = vpop.f32.mrf.mxu0
        %v7373 = vadd.f32 %v7068, %v7372
        %v7374 = vpop.f32.mrf.mxu0
        %v7375 = vadd.f32 %v7070, %v7374
        %7376 = vmatprep.mubr.bf16.mxu0 0
        %7377 = vmatmul.mubr.bf16.gmra.mxu0 %v7133
        %v7378 = vpop.f32.mrf.mxu0
        %v7379 = vadd.f32 %v7074, %v7378
        %v7380 = vpop.f32.mrf.mxu0
        %v7381 = vadd.f32 %v7076, %v7380
        %v7382 = vpop.f32.mrf.mxu0
        %v7383 = vadd.f32 %v7078, %v7382
        %v7384 = vpop.f32.mrf.mxu0
        %v7385 = vadd.f32 %v7080, %v7384
        %7386 = vmatprep.mubr.bf16.mxu0 0
        %7387 = vmatmul.mubr.bf16.gmra.mxu0 %v7134
        %v7388 = vpop.f32.mrf.mxu0
        %v7389 = vadd.f32 %v7084, %v7388
        %v7390 = vpop.f32.mrf.mxu0
        %v7391 = vadd.f32 %v7086, %v7390
        %v7392 = vpop.f32.mrf.mxu0
        %v7393 = vadd.f32 %v7088, %v7392
        %v7394 = vpop.f32.mrf.mxu0
        %v7395 = vadd.f32 %v7090, %v7394
        %7396 = vmatprep.mubr.bf16.mxu0 0
        %7397 = vmatmul.mubr.bf16.gmra.mxu0 %v7135
        %v7398 = vpop.f32.mrf.mxu0
        %v7399 = vadd.f32 %v7094, %v7398
        %v7400 = vpop.f32.mrf.mxu0
        %v7401 = vadd.f32 %v7096, %v7400
        %v7402 = vpop.f32.mrf.mxu0
        %v7403 = vadd.f32 %v7098, %v7402
        %v7404 = vpop.f32.mrf.mxu0
        %v7405 = vadd.f32 %v7100, %v7404
        %7406 = vmatprep.mubr.bf16.mxu0 0
        %7407 = vmatmul.mubr.bf16.gmra.mxu0 %v7136
        %v7408 = vpop.f32.mrf.mxu0
        %v7409 = vadd.f32 %v7104, %v7408
        %v7410 = vpop.f32.mrf.mxu0
        %v7411 = vadd.f32 %v7106, %v7410
        %v7412 = vpop.f32.mrf.mxu0
        %v7413 = vadd.f32 %v7108, %v7412
        %v7414 = vpop.f32.mrf.mxu0
        %v7415 = vadd.f32 %v7110, %v7414
        %7416 = vmatprep.mubr.bf16.mxu0 0
        %7417 = vmatmul.mubr.bf16.gmra.mxu0 %v7137
        %v7418 = vpop.f32.mrf.mxu0
        %v7419 = vadd.f32 %v7114, %v7418
        %v7420 = vpop.f32.mrf.mxu0
        %v7421 = vadd.f32 %v7116, %v7420
        %v7422 = vpop.f32.mrf.mxu0
        %v7423 = vadd.f32 %v7118, %v7422
        %v7424 = vpop.f32.mrf.mxu0
        %v7425 = vadd.f32 %v7120, %v7424
        %7426 = vdwg.mxu0
        %v7427 = vld [vmem:[%s7] sm:$0x3]
        %v7429 = vlaneseq
        %v7430 = vshrl.u32 %v7429, 7
        %v7431 = vsub.s32 0, %v7430
        %v7432 = vrot.slane %v7427, %v7431
        %v7433 = vlaneseq
        %v7434 = vshrl.u32 %v7433, 7
        %v7435 = vsub.s32 1, %v7434
        %v7436 = vrot.slane %v7427, %v7435
        %v7439 = vadd.f32 %v7269, %v7432
        %v7440 = vadd.f32 %v7271, %v7436
        %v7441 = vadd.f32 %v7273, %v7432
        %v7442 = vadd.f32 %v7275, %v7436
        %v7443 = vadd.f32 %v7279, %v7432
        %v7444 = vadd.f32 %v7281, %v7436
        %v7445 = vadd.f32 %v7283, %v7432
        %v7446 = vadd.f32 %v7285, %v7436
        %v7447 = vadd.f32 %v7289, %v7432
        %v7448 = vadd.f32 %v7291, %v7436
        %v7449 = vadd.f32 %v7293, %v7432
        %v7450 = vadd.f32 %v7295, %v7436
        %v7451 = vadd.f32 %v7299, %v7432
        %v7452 = vadd.f32 %v7301, %v7436
        %v7453 = vadd.f32 %v7303, %v7432
        %v7454 = vadd.f32 %v7305, %v7436
        %v7455 = vadd.f32 %v7309, %v7432
        %v7456 = vadd.f32 %v7311, %v7436
        %v7457 = vadd.f32 %v7313, %v7432
        %v7458 = vadd.f32 %v7315, %v7436
        %v7459 = vadd.f32 %v7319, %v7432
        %v7460 = vadd.f32 %v7321, %v7436
        %v7461 = vadd.f32 %v7323, %v7432
        %v7462 = vadd.f32 %v7325, %v7436
        %v7463 = vadd.f32 %v7329, %v7432
        %v7464 = vadd.f32 %v7331, %v7436
        %v7465 = vadd.f32 %v7333, %v7432
        %v7466 = vadd.f32 %v7335, %v7436
        %v7467 = vadd.f32 %v7339, %v7432
        %v7468 = vadd.f32 %v7341, %v7436
        %v7469 = vadd.f32 %v7343, %v7432
        %v7470 = vadd.f32 %v7345, %v7436
        %v7471 = vadd.f32 %v7349, %v7432
        %v7472 = vadd.f32 %v7351, %v7436
        %v7473 = vadd.f32 %v7353, %v7432
        %v7474 = vadd.f32 %v7355, %v7436
        %v7475 = vadd.f32 %v7359, %v7432
        %v7476 = vadd.f32 %v7361, %v7436
        %v7477 = vadd.f32 %v7363, %v7432
        %v7478 = vadd.f32 %v7365, %v7436
        %v7479 = vadd.f32 %v7369, %v7432
        %v7480 = vadd.f32 %v7371, %v7436
        %v7481 = vadd.f32 %v7373, %v7432
        %v7482 = vadd.f32 %v7375, %v7436
        %v7483 = vadd.f32 %v7379, %v7432
        %v7484 = vadd.f32 %v7381, %v7436
        %v7485 = vadd.f32 %v7383, %v7432
        %v7486 = vadd.f32 %v7385, %v7436
        %v7487 = vadd.f32 %v7389, %v7432
        %v7488 = vadd.f32 %v7391, %v7436
        %v7489 = vadd.f32 %v7393, %v7432
        %v7490 = vadd.f32 %v7395, %v7436
        %v7491 = vadd.f32 %v7399, %v7432
        %v7492 = vadd.f32 %v7401, %v7436
        %v7493 = vadd.f32 %v7403, %v7432
        %v7494 = vadd.f32 %v7405, %v7436
        %v7495 = vadd.f32 %v7409, %v7432
        %v7496 = vadd.f32 %v7411, %v7436
        %v7497 = vadd.f32 %v7413, %v7432
        %v7498 = vadd.f32 %v7415, %v7436
        %v7499 = vadd.f32 %v7419, %v7432
        %v7500 = vadd.f32 %v7421, %v7436
        %v7501 = vadd.f32 %v7423, %v7432
        %v7502 = vadd.f32 %v7425, %v7436
        %v7503 = vmax.f32 %v7439, 0.0
        %v7504 = vmax.f32 %v7440, 0.0
        %v7505 = vmax.f32 %v7441, 0.0
        %v7506 = vmax.f32 %v7442, 0.0
        %v7507 = vmax.f32 %v7443, 0.0
        %v7508 = vmax.f32 %v7444, 0.0
        %v7509 = vmax.f32 %v7445, 0.0
        %v7510 = vmax.f32 %v7446, 0.0
        %v7511 = vmax.f32 %v7447, 0.0
        %v7512 = vmax.f32 %v7448, 0.0
        %v7513 = vmax.f32 %v7449, 0.0
        %v7514 = vmax.f32 %v7450, 0.0
        %v7515 = vmax.f32 %v7451, 0.0
        %v7516 = vmax.f32 %v7452, 0.0
        %v7517 = vmax.f32 %v7453, 0.0
        %v7518 = vmax.f32 %v7454, 0.0
        %v7519 = vmax.f32 %v7455, 0.0
        %v7520 = vmax.f32 %v7456, 0.0
        %v7521 = vmax.f32 %v7457, 0.0
        %v7522 = vmax.f32 %v7458, 0.0
        %v7523 = vmax.f32 %v7459, 0.0
        %v7524 = vmax.f32 %v7460, 0.0
        %v7525 = vmax.f32 %v7461, 0.0
        %v7526 = vmax.f32 %v7462, 0.0
        %v7527 = vmax.f32 %v7463, 0.0
        %v7528 = vmax.f32 %v7464, 0.0
        %v7529 = vmax.f32 %v7465, 0.0
        %v7530 = vmax.f32 %v7466, 0.0
        %v7531 = vmax.f32 %v7467, 0.0
        %v7532 = vmax.f32 %v7468, 0.0
        %v7533 = vmax.f32 %v7469, 0.0
        %v7534 = vmax.f32 %v7470, 0.0
        %v7535 = vmax.f32 %v7471, 0.0
        %v7536 = vmax.f32 %v7472, 0.0
        %v7537 = vmax.f32 %v7473, 0.0
        %v7538 = vmax.f32 %v7474, 0.0
        %v7539 = vmax.f32 %v7475, 0.0
        %v7540 = vmax.f32 %v7476, 0.0
        %v7541 = vmax.f32 %v7477, 0.0
        %v7542 = vmax.f32 %v7478, 0.0
        %v7543 = vmax.f32 %v7479, 0.0
        %v7544 = vmax.f32 %v7480, 0.0
        %v7545 = vmax.f32 %v7481, 0.0
        %v7546 = vmax.f32 %v7482, 0.0
        %v7547 = vmax.f32 %v7483, 0.0
        %v7548 = vmax.f32 %v7484, 0.0
        %v7549 = vmax.f32 %v7485, 0.0
        %v7550 = vmax.f32 %v7486, 0.0
        %v7551 = vmax.f32 %v7487, 0.0
        %v7552 = vmax.f32 %v7488, 0.0
        %v7553 = vmax.f32 %v7489, 0.0
        %v7554 = vmax.f32 %v7490, 0.0
        %v7555 = vmax.f32 %v7491, 0.0
        %v7556 = vmax.f32 %v7492, 0.0
        %v7557 = vmax.f32 %v7493, 0.0
        %v7558 = vmax.f32 %v7494, 0.0
        %v7559 = vmax.f32 %v7495, 0.0
        %v7560 = vmax.f32 %v7496, 0.0
        %v7561 = vmax.f32 %v7497, 0.0
        %v7562 = vmax.f32 %v7498, 0.0
        %v7563 = vmax.f32 %v7499, 0.0
        %v7564 = vmax.f32 %v7500, 0.0
        %v7565 = vmax.f32 %v7501, 0.0
        %v7566 = vmax.f32 %v7502, 0.0
        %7567 = vst [vmem:[%s313] sm:$0xff] %v7503
        %7568 = vst [vmem:[%s313 + $0x8] sm:$0xff] %v7504
        %7569 = vst [vmem:[%s313 + $0x10] sm:$0xff] %v7505
        %7570 = vst [vmem:[%s313 + $0x18] sm:$0xff] %v7506
        %7571 = vst [vmem:[%s313 + $0x20] sm:$0xff] %v7507
        %7572 = vst [vmem:[%s313 + $0x28] sm:$0xff] %v7508
        %7573 = vst [vmem:[%s313 + $0x30] sm:$0xff] %v7509
        %7574 = vst [vmem:[%s313 + $0x38] sm:$0xff] %v7510
        %7575 = vst [vmem:[%s313 + $0x40] sm:$0xff] %v7511
        %7576 = vst [vmem:[%s313 + $0x48] sm:$0xff] %v7512
        %7577 = vst [vmem:[%s313 + $0x50] sm:$0xff] %v7513
        %7578 = vst [vmem:[%s313 + $0x58] sm:$0xff] %v7514
        %7579 = vst [vmem:[%s313 + $0x60] sm:$0xff] %v7515
        %7580 = vst [vmem:[%s313 + $0x68] sm:$0xff] %v7516
        %7581 = vst [vmem:[%s313 + $0x70] sm:$0xff] %v7517
        %7582 = vst [vmem:[%s313 + $0x78] sm:$0xff] %v7518
        %7583 = vst [vmem:[%s313 + $0x80] sm:$0xff] %v7519
        %7584 = vst [vmem:[%s313 + $0x88] sm:$0xff] %v7520
        %7585 = vst [vmem:[%s313 + $0x90] sm:$0xff] %v7521
        %7586 = vst [vmem:[%s313 + $0x98] sm:$0xff] %v7522
        %7587 = vst [vmem:[%s313 + $0xa0] sm:$0xff] %v7523
        %7588 = vst [vmem:[%s313 + $0xa8] sm:$0xff] %v7524
        %7589 = vst [vmem:[%s313 + $0xb0] sm:$0xff] %v7525
        %7590 = vst [vmem:[%s313 + $0xb8] sm:$0xff] %v7526
        %7591 = vst [vmem:[%s313 + $0xc0] sm:$0xff] %v7527
        %7592 = vst [vmem:[%s313 + $0xc8] sm:$0xff] %v7528
        %7593 = vst [vmem:[%s313 + $0xd0] sm:$0xff] %v7529
        %7594 = vst [vmem:[%s313 + $0xd8] sm:$0xff] %v7530
        %7595 = vst [vmem:[%s313 + $0xe0] sm:$0xff] %v7531
        %7596 = vst [vmem:[%s313 + $0xe8] sm:$0xff] %v7532
        %7597 = vst [vmem:[%s313 + $0xf0] sm:$0xff] %v7533
        %7598 = vst [vmem:[%s313 + $0xf8] sm:$0xff] %v7534
        %7599 = vst [vmem:[%s313 + $0x100] sm:$0xff] %v7535
        %7600 = vst [vmem:[%s313 + $0x108] sm:$0xff] %v7536
        %7601 = vst [vmem:[%s313 + $0x110] sm:$0xff] %v7537
        %7602 = vst [vmem:[%s313 + $0x118] sm:$0xff] %v7538
        %7603 = vst [vmem:[%s313 + $0x120] sm:$0xff] %v7539
        %7604 = vst [vmem:[%s313 + $0x128] sm:$0xff] %v7540
        %7605 = vst [vmem:[%s313 + $0x130] sm:$0xff] %v7541
        %7606 = vst [vmem:[%s313 + $0x138] sm:$0xff] %v7542
        %7607 = vst [vmem:[%s313 + $0x140] sm:$0xff] %v7543
        %7608 = vst [vmem:[%s313 + $0x148] sm:$0xff] %v7544
        %7609 = vst [vmem:[%s313 + $0x150] sm:$0xff] %v7545
        %7610 = vst [vmem:[%s313 + $0x158] sm:$0xff] %v7546
        %7611 = vst [vmem:[%s313 + $0x160] sm:$0xff] %v7547
        %7612 = vst [vmem:[%s313 + $0x168] sm:$0xff] %v7548
        %7613 = vst [vmem:[%s313 + $0x170] sm:$0xff] %v7549
        %7614 = vst [vmem:[%s313 + $0x178] sm:$0xff] %v7550
        %7615 = vst [vmem:[%s313 + $0x180] sm:$0xff] %v7551
        %7616 = vst [vmem:[%s313 + $0x188] sm:$0xff] %v7552
        %7617 = vst [vmem:[%s313 + $0x190] sm:$0xff] %v7553
        %7618 = vst [vmem:[%s313 + $0x198] sm:$0xff] %v7554
        %7619 = vst [vmem:[%s313 + $0x1a0] sm:$0xff] %v7555
        %7620 = vst [vmem:[%s313 + $0x1a8] sm:$0xff] %v7556
        %7621 = vst [vmem:[%s313 + $0x1b0] sm:$0xff] %v7557
        %7622 = vst [vmem:[%s313 + $0x1b8] sm:$0xff] %v7558
        %7623 = vst [vmem:[%s313 + $0x1c0] sm:$0xff] %v7559
        %7624 = vst [vmem:[%s313 + $0x1c8] sm:$0xff] %v7560
        %7625 = vst [vmem:[%s313 + $0x1d0] sm:$0xff] %v7561
        %7626 = vst [vmem:[%s313 + $0x1d8] sm:$0xff] %v7562
        %7627 = vst [vmem:[%s313 + $0x1e0] sm:$0xff] %v7563
        %7628 = vst [vmem:[%s313 + $0x1e8] sm:$0xff] %v7564
        %7629 = vst [vmem:[%s313 + $0x1f0] sm:$0xff] %v7565
        %7630 = vst [vmem:[%s313 + $0x1f8] sm:$0xff] %v7566
        %s7631 = sand.u32 %s204, 1
        %s7632 = scalar_lea.sflag [#allocation6], %s7631
        %s7633 = sand.u32 %s204, 1
        %s7634 = smul.addr %s7633, 512
        %s7635 = scalar_lea.vmem [#allocation7], %s7634
        // Predicated region
        $region57: #{bottleneckx_forward.1} parent=51 // pred_check
          %p7636 = pneg %p214
        $region58: #{bottleneckx_forward.1} parent=51 // pred_check_branch
          %7638 = sbr.rel (%p7636) target = $region60
        $region59: #{bottleneckx_forward.1} parent=51 // pred_region
          %s7640 = ssub.s32 8192, 8192
          %7641 = vsyncadd %s7632, %s7640
          %s7642 = smul.addr %s23, 64
          %s7643 = smul.addr %s7642, 128
          %s7644 = scalar_lea.hbm %s8, %s7643
          %s7645 = sshll.u32 %s7635, 4
          %s7646 = int_to_ptr.vmem [resolvable:$true] %s7645
          %7651 = dma.vmem_to_hbm [thread:$0]  %s7646, 8192, %s7644, %s7632, 256, 256, 16
        $region60: #{bottleneckx_forward.1} parent=51 // pred_fallthru
          _
      $region52: #{bottleneckx_forward.1} parent=5 // pred_fallthru
        _
      %p7652 = scmp.le.s32.totalorder 2, %s18
      // Predicated region
      $region61: #{bottleneckx_forward.1} parent=5 // pred_check
        %p7653 = pneg %p7652
      $region62: #{bottleneckx_forward.1} parent=5 // pred_check_branch
        %7655 = sbr.rel (%p7653) target = $region64
      $region63: #{bottleneckx_forward.1} parent=5 // pred_region
        %s7656 = ssub.s32 %s18, 2
        // Predicated region
        $region65: #{bottleneckx_forward.1} parent=63 // pred_check
          %p7657 = pneg %p220
        $region66: #{bottleneckx_forward.1} parent=63 // pred_check_branch
          %7659 = sbr.rel (%p7657) target = $region68
        $region67: #{bottleneckx_forward.1} parent=63 // pred_region
          %s7660 = sand.u32 %s205, 1
          %s7661 = scalar_lea.sflag [#allocation6], %s7660
          %s7662 = sand.u32 %s205, 1
          %s7663 = smul.addr %s7662, 512
          %s7664 = scalar_lea.vmem [#allocation7], %s7663
          %7665 = dma.done %s7661, 8192
        $region68: #{bottleneckx_forward.1} parent=63 // pred_fallthru
          _
      $region64: #{bottleneckx_forward.1} parent=5 // pred_fallthru
        _
    $region6: #{bottleneckx_forward.1} parent=1 // loop_footer
      %s22 = sadd.s32 1, %s18
    $region7: #{bottleneckx_forward.1} parent=1 // loop_footer_branch
      %17 = sbr.rel target = $region3
    $region8: #{bottleneckx_forward.1} parent=1 // loop_exit
      _
    %7666 = vsyncpa [#allocation5], 1
    %s7667 = scalar_lea.sflag [#allocation5], 1
    %7668 = vsyncpa %s7667, 1
    %7669 = vsyncpa [#allocation6], 1
    %s7670 = scalar_lea.sflag [#allocation6], 1
    %7671 = vsyncpa %s7670, 1

</llo_original>
